<compile_context>
chip_gen: v7x
topology: tpu7x:2x2x1
jax: 0.10.0
libtpu: 0.0.40
codegen_flags: <defaults>
</compile_context>

<pallas_src>
import numpy as np
import jax
import jax.numpy as jnp
from jax import lax
from jax.experimental import pallas as pl
from jax.experimental.pallas import tpu as pltpu

_EPS = float(np.finfo(np.float32).eps)  # torch.finfo(torch.float32).eps
_LC_MAX = 32                            # in-kernel time-chunk length
_MIB = 1 << 20

_GOOD_CONFIG = None  # memoized (use_core_parallel, single_buffer_weights)


# ----------------------------------------------------------------------------
# Hardware introspection helpers (safe fallbacks everywhere)
# ----------------------------------------------------------------------------
def _device_kind():
    try:
        return jax.devices()[0].device_kind.lower()
    except Exception:
        return ""


def _vmem_capacity_bytes():
    try:
        return int(pltpu.get_tpu_info().vmem_capacity_bytes)
    except Exception:
        return 64 * _MIB  # conservative default (v7x-sized per-core VMEM)


def _sigmoid(v):
    # 1 EUP op (tanh) + 2 VPU ops instead of a possible exp + reciprocal.
    return 0.5 * jnp.tanh(0.5 * v) + 0.5


# ----------------------------------------------------------------------------
# Pallas kernel factory: one full ResRNN pass
#   out = x + Linear(BiLSTM(GroupNorm(x)))
# layout: [L (time), TB (batch tile), C (channels on lanes)]
# ----------------------------------------------------------------------------
def _make_resrnn_kernel(L, TB, C, H, LC, bf16_act):
    G = 4 * H
    NC = -(-L // LC)
    chunks = [(j * LC, min(LC, L - j * LC)) for j in range(NC)]

    def lstm_cell(g, c):
        # gate columns ordered i | f | g | o ; c stays f32.
        if bf16_act:
            g = g.astype(jnp.bfloat16)          # bf16 EUP on v6e/v7x
        i_g = _sigmoid(g[:, :H])
        f_g = _sigmoid(g[:, H:2 * H])
        g_g = jnp.tanh(g[:, 2 * H:3 * H])
        o_g = _sigmoid(g[:, 3 * H:])
        c_new = f_g * c + i_g * g_g             # promotes to f32
        h_new = o_g * jnp.tanh(c_new)           # f32
        return h_new, c_new

    def kernel(x_ref, gamma_ref, beta_ref,
               wihf_ref, bf_ref, whhf_ref,
               wihb_ref, bb_ref, whhb_ref,
               wpf_ref, wpb_ref, bp_ref,
               o_ref,
               gf_ref, gb_ref, hf_ref, hb_ref):
        # --- GroupNorm(1, C): single fused sum / sum-of-squares pass, chunked
        #     so temporaries stay chunk-sized; also initialise the output with
        #     the residual input + projection bias. ---
        bp = bp_ref[...].reshape(1, 1, C)
        s1 = jnp.zeros((1, TB, 1), jnp.float32)
        s2 = jnp.zeros((1, TB, 1), jnp.float32)
        for c0, lc in chunks:
            xc = x_ref[c0:c0 + lc]
            s1 = s1 + jnp.sum(xc, axis=(0, 2), keepdims=True)
            s2 = s2 + jnp.sum(xc * xc, axis=(0, 2), keepdims=True)
            o_ref[c0:c0 + lc] = xc + bp
        n = float(L * C)
        mean = s1 / n
        var = jnp.maximum(s2 / n - mean * mean, 0.0)
        rstd = lax.rsqrt(var + _EPS)
        scale = rstd * gamma_ref[...].reshape(1, 1, C)           # [1, TB, C]
        shift = beta_ref[...].reshape(1, 1, C) - mean * scale    # [1, TB, C]

        wih_f = wihf_ref[...]; wih_b = wihb_ref[...]             # bf16 [C, G]
        whh_f = whhf_ref[...]; whh_b = whhb_ref[...]             # bf16 [H, G]
        wp_f = wpf_ref[...]; wp_b = wpb_ref[...]                 # bf16 [H, C]
        b_f = bf_ref[...]; b_b = bb_ref[...]                     # f32  [1, G]

        def hoist_gates(c0, lc, wih, b, g_scr):
            xn = (x_ref[c0:c0 + lc] * scale + shift).astype(jnp.bfloat16)
            g = jnp.dot(xn.reshape(lc * TB, C), wih,
                        preferred_element_type=jnp.float32) + b
            g_scr[0:lc] = g.reshape(lc, TB, G).astype(jnp.bfloat16)

        def project(c0, lc, h_scr, wp):
            y = jnp.dot(h_scr[0:lc].reshape(lc * TB, H), wp,
                        preferred_element_type=jnp.float32)
            o_ref[c0:c0 + lc] = o_ref[c0:c0 + lc] + y.reshape(lc, TB, C)

        zeros = jnp.zeros((TB, H), jnp.float32)
        h_f, c_f, h_b, c_b = zeros, zeros, zeros, zeros
        gate_bytes = TB * G * 4

        for j in range(NC):
            cf0, lf = chunks[j]                 # forward chunk (ascending)
            cb0, lb = chunks[NC - 1 - j]        # backward chunk (descending)

            hoist_gates(cf0, lf, wih_f, b_f, gf_ref)
            hoist_gates(cb0, lb, wih_b, b_b, gb_ref)

            trip = max(lf, lb)
            mask_f = lf < trip                  # static: only ragged chunks
            mask_b = lb < trip

            def step(t, carry, lf=lf, lb=lb, mask_f=mask_f, mask_b=mask_b):
                hf, cf, hb, cb = carry
                g_f = gf_ref[t].astype(jnp.float32) + jnp.dot(
                    hf.astype(jnp.bfloat16), whh_f,
                    preferred_element_type=jnp.float32)
                ib = lb - 1 - t
                if mask_b:
                    ib = jnp.maximum(ib, 0)
                g_b = gb_ref[ib].astype(jnp.float32) + jnp.dot(
                    hb.astype(jnp.bfloat16), whh_b,
                    preferred_element_type=jnp.float32)
                hf_n, cf_n = lstm_cell(g_f, cf)
                hb_n, cb_n = lstm_cell(g_b, cb)
                if mask_f:                      # past the forward chunk length
                    keep = t < lf
                    hf_n = jnp.where(keep, hf_n, hf)
                    cf_n = jnp.where(keep, cf_n, cf)
                if mask_b:                      # past the backward chunk length
                    keep = t < lb
                    hb_n = jnp.where(keep, hb_n, hb)
                    cb_n = jnp.where(keep, cb_n, cb)
                hf_ref[t] = hf_n.astype(jnp.bfloat16)
                hb_ref[ib] = hb_n.astype(jnp.bfloat16)
                return hf_n, cf_n, hb_n, cb_n

            if gate_bytes >= (256 << 10):
                unroll = min(trip, 2)           # avoid huge live temporaries
            elif trip <= 8:
                unroll = trip
            else:
                unroll = min(trip, 4)
            h_f, c_f, h_b, c_b = lax.fori_loop(
                0, trip, step, (h_f, c_f, h_b, c_b), unroll=unroll)

            # Chunk projection + residual accumulate (read-modify-write of the
            # VMEM-resident output block; lane-dense for feature_dim >= 128).
            project(cf0, lf, hf_ref, wp_f)
            project(cb0, lb, hb_ref, wp_b)

    return kernel


# ----------------------------------------------------------------------------
# VMEM estimate + tiling helper
# ----------------------------------------------------------------------------
def _estimate_vmem_bytes(L, TB, C, H, LC, weight_bytes, single_buffer=True):
    G = 4 * H
    io = 2 * 2 * 4 * L * TB * C                 # x + out blocks, double-buffered f32
    gate = 2 * LC * TB * G * 2                  # bf16 chunk gate scratch (fwd+bwd)
    hid = 2 * LC * TB * H * 2                   # bf16 chunk hidden scratch (fwd+bwd)
    w = weight_bytes * (1 if single_buffer else 2)
    # transient temporaries: normalized chunk (bf16) + hoisted-dot result (f32,
    # before the bf16 store) + chunk projection result (f32)
    tmp = LC * TB * (C * 2 + G * 4 + C * 4)
    return io + gate + hid + w + tmp + 2 * _MIB


def _pick_batch_tile(bbp, L, C, H, LC, weight_bytes, budget, multi_core):
    cands = [t for t in range(8, min(bbp, 128) + 1, 8) if bbp % t == 0]
    fit = [t for t in cands
           if _estimate_vmem_bytes(L, t, C, H, LC, weight_bytes) <= budget]
    if not fit:
        return 8
    if multi_core:
        # Prefer an even number (>=2) of grid steps so both TensorCores work.
        even = [t for t in fit if (bbp // t) >= 2 and (bbp // t) % 2 == 0]
        if even:
            return max(even)
    return max(fit)


# ----------------------------------------------------------------------------
# Wrapper: one ResRNN pass
# ----------------------------------------------------------------------------
def resrnn_forward(x_lbc, p):
    """x_lbc: [L, BB, C] float32 (time-major, channels on lanes)."""
    global _GOOD_CONFIG
    L, BB, C = x_lbc.shape
    H = p["whh_f"].shape[0]
    G = 4 * H

    BBp = ((BB + 7) // 8) * 8
    if BBp != BB:
        x_lbc = jnp.pad(x_lbc, ((0, 0), (0, BBp - BB), (0, 0)))

    kind = _device_kind()
    vmem_cap = _vmem_capacity_bytes()
    big_vmem = vmem_cap >= 100 * _MIB                       # v5e / v6e (128 MiB)
    multi_core = any(tok in kind for tok in ("v7", "7x", "v4", "v5p"))
    bf16_act = not any(tok in kind for tok in ("v5 lite", "v5e", "v5lite"))

    LC = min(L, _LC_MAX)
    weight_bytes = (2 * C * G + 2 * H * G + 2 * H * C) * 2 + (2 * G + 3 * C) * 4
    tile_budget = (44 * _MIB) if big_vmem else (20 * _MIB)  # v7x: <=64 MiB/TC
    TB = _pick_batch_tile(BBp, L, C, H, LC, weight_bytes, tile_budget, multi_core)
    grid = (BBp // TB,)

    est = _estimate_vmem_bytes(L, TB, C, H, LC, weight_bytes)
    if big_vmem:
        vmem_limit = int(min(96 * _MIB, max(48 * _MIB, est + est // 4 + 8 * _MIB)))
    else:
        vmem_limit = int(min(50 * _MIB, max(32 * _MIB, est + est // 4 + 6 * _MIB)))

    kernel = _make_resrnn_kernel(L, TB, C, H, LC, bf16_act)

    # bf16 operands for all MXU matmuls (accumulation stays f32 in the kernel).
    bf16 = jnp.bfloat16
    args = (x_lbc, p["gamma"], p["beta"],
            p["wih_f"].astype(bf16), p["b_f"], p["whh_f"].astype(bf16),
            p["wih_b"].astype(bf16), p["b_b"], p["whh_b"].astype(bf16),
            p["wp_f"].astype(bf16), p["wp_b"].astype(bf16), p["b_p"])

    def run(core_parallel, single_buffer):
        def rep(shape):
            nd = len(shape)
            imap = lambda i, _nd=nd: (0,) * _nd
            if single_buffer:
                # Constant-index weights are never re-fetched: single-buffer
                # them and spend the reclaimed VMEM on a larger batch tile.
                return pl.BlockSpec(shape, imap, pipeline_mode=pl.Buffered(1))
            return pl.BlockSpec(shape, imap)

        in_specs = [
            pl.BlockSpec((L, TB, C), lambda i: (0, i, 0)),   # x
            rep((1, C)), rep((1, C)),                        # gamma, beta
            rep((C, G)), rep((1, G)), rep((H, G)),           # forward LSTM
            rep((C, G)), rep((1, G)), rep((H, G)),           # backward LSTM
            rep((H, C)), rep((H, C)), rep((1, C)),           # projection
        ]
        sem = (pltpu.CORE_PARALLEL,) if core_parallel else ("parallel",)
        return pl.pallas_call(
            kernel,
            out_shape=jax.ShapeDtypeStruct((L, BBp, C), jnp.float32),
            grid=grid,
            in_specs=in_specs,
            out_specs=pl.BlockSpec((L, TB, C), lambda i: (0, i, 0)),
            scratch_shapes=[
                pltpu.VMEM((LC, TB, G), jnp.bfloat16),   # fwd chunk gates
                pltpu.VMEM((LC, TB, G), jnp.bfloat16),   # bwd chunk gates
                pltpu.VMEM((LC, TB, H), jnp.bfloat16),   # fwd chunk hidden
                pltpu.VMEM((LC, TB, H), jnp.bfloat16),   # bwd chunk hidden
            ],
            compiler_params=pltpu.CompilerParams(
                dimension_semantics=sem,
                vmem_limit_bytes=vmem_limit),
        )(*args)

    # Feature ladder: CORE_PARALLEL (v7x dual-TensorCore sharding) and
    # single-buffered weight specs are tried first and dropped gracefully if
    # the installed Mosaic build rejects them.
    cands = []
    for cp in ([True, False] if ("v7" in kind or "7x" in kind) else [False]):
        for sb in (True, False):
            cands.append((cp, sb))
    if _GOOD_CONFIG in cands:
        cands = [_GOOD_CONFIG] + [c for c in cands if c != _GOOD_CONFIG]

    out, last_err = None, None
    for cp, sb in cands:
        try:
            out = run(cp, sb)
            _GOOD_CONFIG = (cp, sb)
            break
        except Exception as e:  # fall through the feature ladder
            last_err = e
    if out is None:
        raise last_err

    return out[:, :BB, :] if BBp != BB else out


# ----------------------------------------------------------------------------
# Plain-JAX glue mirroring BSNet / FuseSeparation reshapes.
# Inter-kernel contract: [T, B*nband, feature_dim]  (time-major, lanes = fd).
# ----------------------------------------------------------------------------
def bsnet_forward(x_tbf, p, B, nband, fd, resrnn_fn=resrnn_forward):
    T = x_tbf.shape[0]
    # band_rnn: sequence over time, per (batch, band)
    y = resrnn_fn(x_tbf, p["band_rnn"])                       # [T, B*nband, fd]
    # band_comm: sequence over bands, per (batch, time)  — one XLA transpose
    y = jnp.transpose(y.reshape(T, B, nband, fd),
                      (2, 1, 0, 3)).reshape(nband, B * T, fd)
    z = resrnn_fn(y, p["band_comm"])                          # [nband, B*T, fd]
    z = jnp.transpose(z.reshape(nband, B, T, fd),
                      (2, 1, 0, 3)).reshape(T, B * nband, fd)
    return z


def fuse_separation_forward(x, spk_embedding, params, nband, feature_dim, nch=1,
                            resrnn_fn=resrnn_forward):
    # spk_fuse_type=None path: speaker embedding is an unused dummy.
    del spk_embedding
    B = x.shape[0] * nch
    fd = feature_dim
    T = x.shape[-1]
    x = x.reshape(B, nband, fd, T)
    # single layout change for the whole stack: [B, nband, fd, T] -> [T, B*nband, fd]
    h = jnp.transpose(x, (3, 0, 1, 2)).reshape(T, B * nband, fd)
    for p in params["separation"]:
        h = bsnet_forward(h, p, B, nband, fd, resrnn_fn)
    # back to [B*nch, nband, fd, T]
    return jnp.transpose(h.reshape(T, B, nband, fd), (1, 2, 3, 0))


# ----------------------------------------------------------------------------
# Deterministic parameter init (PyTorch-style shapes/init, fused gate layout)
# ----------------------------------------------------------------------------
def init_resrnn_params(key, C):
    H = 2 * C
    ks = jax.random.split(key, 10)

    def u(k, shape, scale):
        return jax.random.uniform(k, shape, jnp.float32, -scale, scale)

    s_rnn = 1.0 / np.sqrt(H)
    W_ih_f = u(ks[0], (4 * H, C), s_rnn); W_hh_f = u(ks[1], (4 * H, H), s_rnn)
    b_ih_f = u(ks[2], (4 * H,), s_rnn);   b_hh_f = u(ks[3], (4 * H,), s_rnn)
    W_ih_b = u(ks[4], (4 * H, C), s_rnn); W_hh_b = u(ks[5], (4 * H, H), s_rnn)
    b_ih_b = u(ks[6], (4 * H,), s_rnn);   b_hh_b = u(ks[7], (4 * H,), s_rnn)
    s_proj = 1.0 / np.sqrt(2 * H)
    W_proj = u(ks[8], (C, 2 * H), s_proj)
    b_proj = u(ks[9], (C,), s_proj)

    return {
        "gamma": jnp.ones((1, C), jnp.float32),
        "beta": jnp.zeros((1, C), jnp.float32),
        # fused gate layout: columns are [i | f | g | o] blocks of width H
        "wih_f": W_ih_f.T, "whh_f": W_hh_f.T,
        "b_f": (b_ih_f + b_hh_f).reshape(1, 4 * H),
        "wih_b": W_ih_b.T, "whh_b": W_hh_b.T,
        "b_b": (b_ih_b + b_hh_b).reshape(1, 4 * H),
        "wp_f": W_proj[:, :H].T, "wp_b": W_proj[:, H:].T,
        "b_p": b_proj.reshape(1, C),
    }


# ----------------------------------------------------------------------------
# Pure-JAX reference (same [L, BB, C] signature, f32, for numerical validation)
# ----------------------------------------------------------------------------
def _resrnn_reference(x_lbc, p):
    L, BB, C = x_lbc.shape
    H = p["whh_f"].shape[0]
    mean = jnp.mean(x_lbc, axis=(0, 2), keepdims=True)
    var = jnp.mean(jnp.square(x_lbc - mean), axis=(0, 2), keepdims=True)
    xn = (x_lbc - mean) / jnp.sqrt(var + _EPS)
    xn = xn * p["gamma"].reshape(1, 1, C) + p["beta"].reshape(1, 1, C)

    def run(wih, whh, b, reverse):
        seq = xn[::-1] if reverse else xn
        g_in = jnp.einsum("lbc,cg->lbg", seq, wih) + b.reshape(1, 1, -1)

        def step(carry, g_t):
            h, c = carry
            g = g_t + h @ whh
            i = jax.nn.sigmoid(g[:, :H]); f = jax.nn.sigmoid(g[:, H:2 * H])
            gg = jnp.tanh(g[:, 2 * H:3 * H]); o = jax.nn.sigmoid(g[:, 3 * H:])
            c = f * c + i * gg
            h = o * jnp.tanh(c)
            return (h, c), h

        init = (jnp.zeros((BB, H), jnp.float32), jnp.zeros((BB, H), jnp.float32))
        _, hs = lax.scan(step, init, g_in)
        return hs[::-1] if reverse else hs

    h_f = run(p["wih_f"], p["whh_f"], p["b_f"], False)
    h_b = run(p["wih_b"], p["whh_b"], p["b_b"], True)
    y = (jnp.einsum("lbh,hc->lbc", h_f, p["wp_f"])
         + jnp.einsum("lbh,hc->lbc", h_b, p["wp_b"])
         + p["b_p"].reshape(1, 1, C))
    return x_lbc + y


if __name__ == "__main__":
    def build_params(key, num_repeat, feature_dim):
        sep_keys = jax.random.split(key, num_repeat * 2)
        return {"separation": [
            {"band_rnn": init_resrnn_params(sep_keys[2 * r], feature_dim),
             "band_comm": init_resrnn_params(sep_keys[2 * r + 1], feature_dim)}
            for r in range(num_repeat)]}

    def check(B, nband, feature_dim, T, num_repeat):
        key = jax.random.PRNGKey(0)
        kx, kp, ks = jax.random.split(key, 3)
        x = jax.random.normal(kx, (B, nband, feature_dim, T), jnp.float32)
        # dummy speaker embedding (unused in the spk_fuse_type=None config)
        spk = jax.random.normal(ks, (B, 256, T), jnp.float32)
        params = build_params(kp, num_repeat, feature_dim)

        out = fuse_separation_forward(x, spk, params, nband, feature_dim)
        out = jax.block_until_ready(out)
        assert out.shape == (B, nband, feature_dim, T)
        assert bool(jnp.all(jnp.isfinite(out)))

        ref = fuse_separation_forward(x, spk, params, nband, feature_dim,
                                      resrnn_fn=_resrnn_reference)
        ref = jax.block_until_ready(ref)
        # bf16 MXU operands / gate scratch -> widened tolerance vs f32 reference
        np.testing.assert_allclose(np.asarray(out), np.asarray(ref),
                                   rtol=1e-1, atol=1e-1)

    # Primary small config (structure of FuseSeparation(nband, num_repeat, fd)).
    check(B=2, nband=3, feature_dim=16, T=8, num_repeat=2)
    # Longer sequence to exercise the in-kernel time-chunked recurrence
    # (ragged last chunk + forward/backward masking paths).
    check(B=1, nband=2, feature_dim=16, T=40, num_repeat=1)

    print("KERNEL_OK")
</pallas_src>

<mosaic_0001>
module attributes {stable_mosaic.version = 11 : i64} {
  func.func @kernel(%arg0: i32, %arg1: memref<8x8x16xf32, #tpu.memory_space<vmem>>, %arg2: memref<1x16xf32, #tpu.memory_space<vmem>>, %arg3: memref<1x16xf32, #tpu.memory_space<vmem>>, %arg4: memref<16x128xbf16, #tpu.memory_space<vmem>>, %arg5: memref<1x128xf32, #tpu.memory_space<vmem>>, %arg6: memref<32x128xbf16, #tpu.memory_space<vmem>>, %arg7: memref<16x128xbf16, #tpu.memory_space<vmem>>, %arg8: memref<1x128xf32, #tpu.memory_space<vmem>>, %arg9: memref<32x128xbf16, #tpu.memory_space<vmem>>, %arg10: memref<32x16xbf16, #tpu.memory_space<vmem>>, %arg11: memref<32x16xbf16, #tpu.memory_space<vmem>>, %arg12: memref<1x16xf32, #tpu.memory_space<vmem>>, %arg13: memref<8x8x16xf32, #tpu.memory_space<vmem>>, %arg14: memref<8x8x128xbf16, #tpu.memory_space<vmem>>, %arg15: memref<8x8x128xbf16, #tpu.memory_space<vmem>>, %arg16: memref<8x8x32xbf16, #tpu.memory_space<vmem>>, %arg17: memref<8x8x32xbf16, #tpu.memory_space<vmem>>) attributes {dimension_semantics = [#tpu.dimension_semantics<parallel>], iteration_bounds = array<i64: 1>, scalar_prefetch = 0 : i64, scratch_operands = 4 : i64, tpu.core_type = #tpu.core_type<tc>, window_params = [{transform_indices = @transform_0, window_bounds = array<i64: 8, 8, 16>}, {pipeline_mode = #tpu.pipeline_mode<synchronous>, transform_indices = @transform_1, window_bounds = array<i64: 1, 16>}, {pipeline_mode = #tpu.pipeline_mode<synchronous>, transform_indices = @transform_2, window_bounds = array<i64: 1, 16>}, {pipeline_mode = #tpu.pipeline_mode<synchronous>, transform_indices = @transform_3, window_bounds = array<i64: 16, 128>}, {pipeline_mode = #tpu.pipeline_mode<synchronous>, transform_indices = @transform_4, window_bounds = array<i64: 1, 128>}, {pipeline_mode = #tpu.pipeline_mode<synchronous>, transform_indices = @transform_5, window_bounds = array<i64: 32, 128>}, {pipeline_mode = #tpu.pipeline_mode<synchronous>, transform_indices = @transform_6, window_bounds = array<i64: 16, 128>}, {pipeline_mode = #tpu.pipeline_mode<synchronous>, transform_indices = @transform_7, window_bounds = array<i64: 1, 128>}, {pipeline_mode = #tpu.pipeline_mode<synchronous>, transform_indices = @transform_8, window_bounds = array<i64: 32, 128>}, {pipeline_mode = #tpu.pipeline_mode<synchronous>, transform_indices = @transform_9, window_bounds = array<i64: 32, 16>}, {pipeline_mode = #tpu.pipeline_mode<synchronous>, transform_indices = @transform_10, window_bounds = array<i64: 32, 16>}, {pipeline_mode = #tpu.pipeline_mode<synchronous>, transform_indices = @transform_11, window_bounds = array<i64: 1, 16>}, {transform_indices = @transform_12, window_bounds = array<i64: 8, 8, 16>}]} {
    %c0 = arith.constant 0 : index
    %c0_0 = arith.constant 0 : index
    %0 = vector.load %arg12[%c0, %c0_0] : memref<1x16xf32, #tpu.memory_space<vmem>>, vector<1x16xf32>
    %1 = vector.shape_cast %0 : vector<1x16xf32> to vector<1x1x16xf32>
    %cst = arith.constant 0.000000e+00 : f32
    %2 = vector.broadcast %cst : f32 to vector<1x8x1xf32>
    %cst_1 = arith.constant 0.000000e+00 : f32
    %3 = vector.broadcast %cst_1 : f32 to vector<1x8x1xf32>
    %c0_2 = arith.constant 0 : index
    %c0_3 = arith.constant 0 : index
    %c0_4 = arith.constant 0 : index
    %4 = vector.load %arg1[%c0_2, %c0_3, %c0_4] : memref<8x8x16xf32, #tpu.memory_space<vmem>>, vector<8x8x16xf32>
    %cst_5 = arith.constant dense<0.000000e+00> : vector<8xf32>
    %5 = vector.multi_reduction <add>, %4, %cst_5 [0, 2] : vector<8x8x16xf32> to vector<8xf32>
    %6 = vector.shape_cast %5 : vector<8xf32> to vector<1x8x1xf32>
    %7 = arith.addf %2, %6 : vector<1x8x1xf32>
    %8 = arith.mulf %4, %4 : vector<8x8x16xf32>
    %cst_6 = arith.constant dense<0.000000e+00> : vector<8xf32>
    %9 = vector.multi_reduction <add>, %8, %cst_6 [0, 2] : vector<8x8x16xf32> to vector<8xf32>
    %10 = vector.shape_cast %9 : vector<8xf32> to vector<1x8x1xf32>
    %11 = arith.addf %3, %10 : vector<1x8x1xf32>
    %12 = vector.broadcast %1 : vector<1x1x16xf32> to vector<8x8x16xf32>
    %13 = arith.addf %4, %12 : vector<8x8x16xf32>
    %c0_7 = arith.constant 0 : index
    %c0_8 = arith.constant 0 : index
    %c0_9 = arith.constant 0 : index
    %14 = vector.load %arg13[%c0_7, %c0_8, %c0_9] : memref<8x8x16xf32, #tpu.memory_space<vmem>>, vector<8x8x16xf32>
    tpu.vector_store %arg13[%c0_7, %c0_8, %c0_9], %13 {strides = array<i32>} : memref<8x8x16xf32, #tpu.memory_space<vmem>>, vector<8x8x16xf32>,
    %cst_10 = arith.constant 1.280000e+02 : f32
    %15 = vector.broadcast %cst_10 : f32 to vector<1x8x1xf32>
    %16 = arith.divf %7, %15 : vector<1x8x1xf32>
    %cst_11 = arith.constant 1.280000e+02 : f32
    %17 = vector.broadcast %cst_11 : f32 to vector<1x8x1xf32>
    %18 = arith.divf %11, %17 : vector<1x8x1xf32>
    %19 = arith.mulf %16, %16 : vector<1x8x1xf32>
    %20 = arith.subf %18, %19 : vector<1x8x1xf32>
    %cst_12 = arith.constant 0.000000e+00 : f32
    %21 = vector.broadcast %cst_12 : f32 to vector<1x8x1xf32>
    %22 = arith.maximumf %20, %21 : vector<1x8x1xf32>
    %cst_13 = arith.constant 1.1920929E-7 : f32
    %23 = vector.broadcast %cst_13 : f32 to vector<1x8x1xf32>
    %24 = arith.addf %22, %23 : vector<1x8x1xf32>
    %25 = math.rsqrt %24 : vector<1x8x1xf32>
    %c0_14 = arith.constant 0 : index
    %c0_15 = arith.constant 0 : index
    %26 = vector.load %arg2[%c0_14, %c0_15] : memref<1x16xf32, #tpu.memory_space<vmem>>, vector<1x16xf32>
    %27 = vector.shape_cast %26 : vector<1x16xf32> to vector<1x1x16xf32>
    %28 = vector.broadcast %25 : vector<1x8x1xf32> to vector<1x8x16xf32>
    %29 = vector.broadcast %27 : vector<1x1x16xf32> to vector<1x8x16xf32>
    %30 = arith.mulf %28, %29 : vector<1x8x16xf32>
    %c0_16 = arith.constant 0 : index
    %c0_17 = arith.constant 0 : index
    %31 = vector.load %arg3[%c0_16, %c0_17] : memref<1x16xf32, #tpu.memory_space<vmem>>, vector<1x16xf32>
    %32 = vector.shape_cast %31 : vector<1x16xf32> to vector<1x1x16xf32>
    %33 = vector.broadcast %16 : vector<1x8x1xf32> to vector<1x8x16xf32>
    %34 = arith.mulf %33, %30 : vector<1x8x16xf32>
    %35 = vector.broadcast %32 : vector<1x1x16xf32> to vector<1x8x16xf32>
    %36 = arith.subf %35, %34 : vector<1x8x16xf32>
    %c0_18 = arith.constant 0 : index
    %c0_19 = arith.constant 0 : index
    %37 = vector.load %arg4[%c0_18, %c0_19] : memref<16x128xbf16, #tpu.memory_space<vmem>>, vector<16x128xbf16>
    %c0_20 = arith.constant 0 : index
    %c0_21 = arith.constant 0 : index
    %38 = vector.load %arg7[%c0_20, %c0_21] : memref<16x128xbf16, #tpu.memory_space<vmem>>, vector<16x128xbf16>
    %c0_22 = arith.constant 0 : index
    %c0_23 = arith.constant 0 : index
    %39 = vector.load %arg6[%c0_22, %c0_23] : memref<32x128xbf16, #tpu.memory_space<vmem>>, vector<32x128xbf16>
    %c0_24 = arith.constant 0 : index
    %c0_25 = arith.constant 0 : index
    %40 = vector.load %arg9[%c0_24, %c0_25] : memref<32x128xbf16, #tpu.memory_space<vmem>>, vector<32x128xbf16>
    %c0_26 = arith.constant 0 : index
    %c0_27 = arith.constant 0 : index
    %41 = vector.load %arg10[%c0_26, %c0_27] : memref<32x16xbf16, #tpu.memory_space<vmem>>, vector<32x16xbf16>
    %c0_28 = arith.constant 0 : index
    %c0_29 = arith.constant 0 : index
    %42 = vector.load %arg11[%c0_28, %c0_29] : memref<32x16xbf16, #tpu.memory_space<vmem>>, vector<32x16xbf16>
    %c0_30 = arith.constant 0 : index
    %c0_31 = arith.constant 0 : index
    %43 = vector.load %arg5[%c0_30, %c0_31] : memref<1x128xf32, #tpu.memory_space<vmem>>, vector<1x128xf32>
    %c0_32 = arith.constant 0 : index
    %c0_33 = arith.constant 0 : index
    %44 = vector.load %arg8[%c0_32, %c0_33] : memref<1x128xf32, #tpu.memory_space<vmem>>, vector<1x128xf32>
    %cst_34 = arith.constant 0.000000e+00 : f32
    %45 = vector.broadcast %cst_34 : f32 to vector<8x32xf32>
    %c0_35 = arith.constant 0 : index
    %c0_36 = arith.constant 0 : index
    %c0_37 = arith.constant 0 : index
    %46 = vector.load %arg1[%c0_35, %c0_36, %c0_37] : memref<8x8x16xf32, #tpu.memory_space<vmem>>, vector<8x8x16xf32>
    %47 = vector.broadcast %30 : vector<1x8x16xf32> to vector<8x8x16xf32>
    %48 = arith.mulf %46, %47 : vector<8x8x16xf32>
    %49 = vector.broadcast %36 : vector<1x8x16xf32> to vector<8x8x16xf32>
    %50 = arith.addf %48, %49 : vector<8x8x16xf32>
    %51 = arith.truncf %50 : vector<8x8x16xf32> to vector<8x8x16xbf16>
    %52 = vector.shape_cast %51 : vector<8x8x16xbf16> to vector<64x16xbf16>
    %cst_38 = arith.constant dense<0.000000e+00> : vector<64x128xf32>
    %53 = tpu.matmul %52, %37, %cst_38 {dimension_numbers = #tpu.dot_dimension_numbers<[1], [0], [0], [1], [0, 0, 1, 1], [], []>} : vector<64x16xbf16>, vector<16x128xbf16>, vector<64x128xf32> -> vector<64x128xf32>
    %54 = vector.broadcast %43 : vector<1x128xf32> to vector<64x128xf32>
    %55 = arith.addf %53, %54 : vector<64x128xf32>
    %56 = vector.shape_cast %55 : vector<64x128xf32> to vector<8x8x128xf32>
    %57 = arith.truncf %56 : vector<8x8x128xf32> to vector<8x8x128xbf16>
    %c0_39 = arith.constant 0 : index
    %c0_40 = arith.constant 0 : index
    %c0_41 = arith.constant 0 : index
    %58 = vector.load %arg14[%c0_39, %c0_40, %c0_41] : memref<8x8x128xbf16, #tpu.memory_space<vmem>>, vector<8x8x128xbf16>
    tpu.vector_store %arg14[%c0_39, %c0_40, %c0_41], %57 {strides = array<i32>} : memref<8x8x128xbf16, #tpu.memory_space<vmem>>, vector<8x8x128xbf16>,
    %c0_42 = arith.constant 0 : index
    %c0_43 = arith.constant 0 : index
    %c0_44 = arith.constant 0 : index
    %59 = vector.load %arg1[%c0_42, %c0_43, %c0_44] : memref<8x8x16xf32, #tpu.memory_space<vmem>>, vector<8x8x16xf32>
    %60 = vector.broadcast %30 : vector<1x8x16xf32> to vector<8x8x16xf32>
    %61 = arith.mulf %59, %60 : vector<8x8x16xf32>
    %62 = vector.broadcast %36 : vector<1x8x16xf32> to vector<8x8x16xf32>
    %63 = arith.addf %61, %62 : vector<8x8x16xf32>
    %64 = arith.truncf %63 : vector<8x8x16xf32> to vector<8x8x16xbf16>
    %65 = vector.shape_cast %64 : vector<8x8x16xbf16> to vector<64x16xbf16>
    %cst_45 = arith.constant dense<0.000000e+00> : vector<64x128xf32>
    %66 = tpu.matmul %65, %38, %cst_45 {dimension_numbers = #tpu.dot_dimension_numbers<[1], [0], [0], [1], [0, 0, 1, 1], [], []>} : vector<64x16xbf16>, vector<16x128xbf16>, vector<64x128xf32> -> vector<64x128xf32>
    %67 = vector.broadcast %44 : vector<1x128xf32> to vector<64x128xf32>
    %68 = arith.addf %66, %67 : vector<64x128xf32>
    %69 = vector.shape_cast %68 : vector<64x128xf32> to vector<8x8x128xf32>
    %70 = arith.truncf %69 : vector<8x8x128xf32> to vector<8x8x128xbf16>
    %c0_46 = arith.constant 0 : index
    %c0_47 = arith.constant 0 : index
    %c0_48 = arith.constant 0 : index
    %71 = vector.load %arg15[%c0_46, %c0_47, %c0_48] : memref<8x8x128xbf16, #tpu.memory_space<vmem>>, vector<8x8x128xbf16>
    tpu.vector_store %arg15[%c0_46, %c0_47, %c0_48], %70 {strides = array<i32>} : memref<8x8x128xbf16, #tpu.memory_space<vmem>>, vector<8x8x128xbf16>,
    %c0_i32 = arith.constant 0 : i32
    %72 = arith.index_cast %c0_i32 : i32 to index
    %c0_49 = arith.constant 0 : index
    %c0_50 = arith.constant 0 : index
    %73 = vector.load %arg14[%72, %c0_49, %c0_50] : memref<8x8x128xbf16, #tpu.memory_space<vmem>>, vector<1x8x128xbf16>
    %74 = vector.shape_cast %73 : vector<1x8x128xbf16> to vector<8x128xbf16>
    %75 = arith.extf %74 : vector<8x128xbf16> to vector<8x128xf32>
    %76 = arith.truncf %45 : vector<8x32xf32> to vector<8x32xbf16>
    %cst_51 = arith.constant dense<0.000000e+00> : vector<8x128xf32>
    %77 = tpu.matmul %76, %39, %cst_51 {dimension_numbers = #tpu.dot_dimension_numbers<[1], [0], [0], [1], [0, 0, 1, 1], [], []>} : vector<8x32xbf16>, vector<32x128xbf16>, vector<8x128xf32> -> vector<8x128xf32>
    %78 = arith.addf %75, %77 : vector<8x128xf32>
    %c7_i32 = arith.constant 7 : i32
    %79 = arith.subi %c7_i32, %c0_i32 : i32
    %80 = arith.index_cast %79 : i32 to index
    %c0_52 = arith.constant 0 : index
    %c0_53 = arith.constant 0 : index
    %81 = vector.load %arg15[%80, %c0_52, %c0_53] : memref<8x8x128xbf16, #tpu.memory_space<vmem>>, vector<1x8x128xbf16>
    %82 = vector.shape_cast %81 : vector<1x8x128xbf16> to vector<8x128xbf16>
    %83 = arith.extf %82 : vector<8x128xbf16> to vector<8x128xf32>
    %84 = arith.truncf %45 : vector<8x32xf32> to vector<8x32xbf16>
    %cst_54 = arith.constant dense<0.000000e+00> : vector<8x128xf32>
    %85 = tpu.matmul %84, %40, %cst_54 {dimension_numbers = #tpu.dot_dimension_numbers<[1], [0], [0], [1], [0, 0, 1, 1], [], []>} : vector<8x32xbf16>, vector<32x128xbf16>, vector<8x128xf32> -> vector<8x128xf32>
    %86 = arith.addf %83, %85 : vector<8x128xf32>
    %87 = arith.truncf %78 : vector<8x128xf32> to vector<8x128xbf16>
    %88 = vector.extract_strided_slice %87 {offsets = [0, 0], sizes = [8, 32], strides = [1, 1]} : vector<8x128xbf16> to vector<8x32xbf16>
    %cst_55 = arith.constant 5.000000e-01 : bf16
    %89 = vector.broadcast %cst_55 : bf16 to vector<8x32xbf16>
    %90 = arith.mulf %89, %88 : vector<8x32xbf16>
    %91 = math.tanh %90 : vector<8x32xbf16>
    %cst_56 = arith.constant 5.000000e-01 : bf16
    %92 = vector.broadcast %cst_56 : bf16 to vector<8x32xbf16>
    %93 = arith.mulf %92, %91 : vector<8x32xbf16>
    %cst_57 = arith.constant 5.000000e-01 : bf16
    %94 = vector.broadcast %cst_57 : bf16 to vector<8x32xbf16>
    %95 = arith.addf %93, %94 : vector<8x32xbf16>
    %96 = vector.extract_strided_slice %87 {offsets = [0, 32], sizes = [8, 32], strides = [1, 1]} : vector<8x128xbf16> to vector<8x32xbf16>
    %cst_58 = arith.constant 5.000000e-01 : bf16
    %97 = vector.broadcast %cst_58 : bf16 to vector<8x32xbf16>
    %98 = arith.mulf %97, %96 : vector<8x32xbf16>
    %99 = math.tanh %98 : vector<8x32xbf16>
    %cst_59 = arith.constant 5.000000e-01 : bf16
    %100 = vector.broadcast %cst_59 : bf16 to vector<8x32xbf16>
    %101 = arith.mulf %100, %99 : vector<8x32xbf16>
    %cst_60 = arith.constant 5.000000e-01 : bf16
    %102 = vector.broadcast %cst_60 : bf16 to vector<8x32xbf16>
    %103 = arith.addf %101, %102 : vector<8x32xbf16>
    %104 = vector.extract_strided_slice %87 {offsets = [0, 64], sizes = [8, 32], strides = [1, 1]} : vector<8x128xbf16> to vector<8x32xbf16>
    %105 = math.tanh %104 : vector<8x32xbf16>
    %106 = vector.extract_strided_slice %87 {offsets = [0, 96], sizes = [8, 32], strides = [1, 1]} : vector<8x128xbf16> to vector<8x32xbf16>
    %cst_61 = arith.constant 5.000000e-01 : bf16
    %107 = vector.broadcast %cst_61 : bf16 to vector<8x32xbf16>
    %108 = arith.mulf %107, %106 : vector<8x32xbf16>
    %109 = math.tanh %108 : vector<8x32xbf16>
    %cst_62 = arith.constant 5.000000e-01 : bf16
    %110 = vector.broadcast %cst_62 : bf16 to vector<8x32xbf16>
    %111 = arith.mulf %110, %109 : vector<8x32xbf16>
    %cst_63 = arith.constant 5.000000e-01 : bf16
    %112 = vector.broadcast %cst_63 : bf16 to vector<8x32xbf16>
    %113 = arith.addf %111, %112 : vector<8x32xbf16>
    %114 = arith.extf %103 : vector<8x32xbf16> to vector<8x32xf32>
    %115 = arith.mulf %114, %45 : vector<8x32xf32>
    %116 = arith.mulf %95, %105 : vector<8x32xbf16>
    %117 = arith.extf %116 : vector<8x32xbf16> to vector<8x32xf32>
    %118 = arith.addf %115, %117 : vector<8x32xf32>
    %119 = math.tanh %118 : vector<8x32xf32>
    %120 = arith.extf %113 : vector<8x32xbf16> to vector<8x32xf32>
    %121 = arith.mulf %120, %119 : vector<8x32xf32>
    %122 = arith.truncf %86 : vector<8x128xf32> to vector<8x128xbf16>
    %123 = vector.extract_strided_slice %122 {offsets = [0, 0], sizes = [8, 32], strides = [1, 1]} : vector<8x128xbf16> to vector<8x32xbf16>
    %cst_64 = arith.constant 5.000000e-01 : bf16
    %124 = vector.broadcast %cst_64 : bf16 to vector<8x32xbf16>
    %125 = arith.mulf %124, %123 : vector<8x32xbf16>
    %126 = math.tanh %125 : vector<8x32xbf16>
    %cst_65 = arith.constant 5.000000e-01 : bf16
    %127 = vector.broadcast %cst_65 : bf16 to vector<8x32xbf16>
    %128 = arith.mulf %127, %126 : vector<8x32xbf16>
    %cst_66 = arith.constant 5.000000e-01 : bf16
    %129 = vector.broadcast %cst_66 : bf16 to vector<8x32xbf16>
    %130 = arith.addf %128, %129 : vector<8x32xbf16>
    %131 = vector.extract_strided_slice %122 {offsets = [0, 32], sizes = [8, 32], strides = [1, 1]} : vector<8x128xbf16> to vector<8x32xbf16>
    %cst_67 = arith.constant 5.000000e-01 : bf16
    %132 = vector.broadcast %cst_67 : bf16 to vector<8x32xbf16>
    %133 = arith.mulf %132, %131 : vector<8x32xbf16>
    %134 = math.tanh %133 : vector<8x32xbf16>
    %cst_68 = arith.constant 5.000000e-01 : bf16
    %135 = vector.broadcast %cst_68 : bf16 to vector<8x32xbf16>
    %136 = arith.mulf %135, %134 : vector<8x32xbf16>
    %cst_69 = arith.constant 5.000000e-01 : bf16
    %137 = vector.broadcast %cst_69 : bf16 to vector<8x32xbf16>
    %138 = arith.addf %136, %137 : vector<8x32xbf16>
    %139 = vector.extract_strided_slice %122 {offsets = [0, 64], sizes = [8, 32], strides = [1, 1]} : vector<8x128xbf16> to vector<8x32xbf16>
    %140 = math.tanh %139 : vector<8x32xbf16>
    %141 = vector.extract_strided_slice %122 {offsets = [0, 96], sizes = [8, 32], strides = [1, 1]} : vector<8x128xbf16> to vector<8x32xbf16>
    %cst_70 = arith.constant 5.000000e-01 : bf16
    %142 = vector.broadcast %cst_70 : bf16 to vector<8x32xbf16>
    %143 = arith.mulf %142, %141 : vector<8x32xbf16>
    %144 = math.tanh %143 : vector<8x32xbf16>
    %cst_71 = arith.constant 5.000000e-01 : bf16
    %145 = vector.broadcast %cst_71 : bf16 to vector<8x32xbf16>
    %146 = arith.mulf %145, %144 : vector<8x32xbf16>
    %cst_72 = arith.constant 5.000000e-01 : bf16
    %147 = vector.broadcast %cst_72 : bf16 to vector<8x32xbf16>
    %148 = arith.addf %146, %147 : vector<8x32xbf16>
    %149 = arith.extf %138 : vector<8x32xbf16> to vector<8x32xf32>
    %150 = arith.mulf %149, %45 : vector<8x32xf32>
    %151 = arith.mulf %130, %140 : vector<8x32xbf16>
    %152 = arith.extf %151 : vector<8x32xbf16> to vector<8x32xf32>
    %153 = arith.addf %150, %152 : vector<8x32xf32>
    %154 = math.tanh %153 : vector<8x32xf32>
    %155 = arith.extf %148 : vector<8x32xbf16> to vector<8x32xf32>
    %156 = arith.mulf %155, %154 : vector<8x32xf32>
    %157 = arith.truncf %121 : vector<8x32xf32> to vector<8x32xbf16>
    %158 = arith.index_cast %c0_i32 : i32 to index
    %c0_73 = arith.constant 0 : index
    %c0_74 = arith.constant 0 : index
    %159 = vector.load %arg16[%158, %c0_73, %c0_74] : memref<8x8x32xbf16, #tpu.memory_space<vmem>>, vector<1x8x32xbf16>
    %160 = vector.shape_cast %159 : vector<1x8x32xbf16> to vector<8x32xbf16>
    %161 = vector.shape_cast %157 : vector<8x32xbf16> to vector<1x8x32xbf16>
    tpu.vector_store %arg16[%158, %c0_73, %c0_74], %161 {strides = array<i32>} : memref<8x8x32xbf16, #tpu.memory_space<vmem>>, vector<1x8x32xbf16>,
    %162 = arith.truncf %156 : vector<8x32xf32> to vector<8x32xbf16>
    %163 = arith.index_cast %79 : i32 to index
    %c0_75 = arith.constant 0 : index
    %c0_76 = arith.constant 0 : index
    %164 = vector.load %arg17[%163, %c0_75, %c0_76] : memref<8x8x32xbf16, #tpu.memory_space<vmem>>, vector<1x8x32xbf16>
    %165 = vector.shape_cast %164 : vector<1x8x32xbf16> to vector<8x32xbf16>
    %166 = vector.shape_cast %162 : vector<8x32xbf16> to vector<1x8x32xbf16>
    tpu.vector_store %arg17[%163, %c0_75, %c0_76], %166 {strides = array<i32>} : memref<8x8x32xbf16, #tpu.memory_space<vmem>>, vector<1x8x32xbf16>,
    %c1_i32 = arith.constant 1 : i32
    %167 = arith.index_cast %c1_i32 : i32 to index
    %c0_77 = arith.constant 0 : index
    %c0_78 = arith.constant 0 : index
    %168 = vector.load %arg14[%167, %c0_77, %c0_78] : memref<8x8x128xbf16, #tpu.memory_space<vmem>>, vector<1x8x128xbf16>
    %169 = vector.shape_cast %168 : vector<1x8x128xbf16> to vector<8x128xbf16>
    %170 = arith.extf %169 : vector<8x128xbf16> to vector<8x128xf32>
    %171 = arith.truncf %121 : vector<8x32xf32> to vector<8x32xbf16>
    %cst_79 = arith.constant dense<0.000000e+00> : vector<8x128xf32>
    %172 = tpu.matmul %171, %39, %cst_79 {dimension_numbers = #tpu.dot_dimension_numbers<[1], [0], [0], [1], [0, 0, 1, 1], [], []>} : vector<8x32xbf16>, vector<32x128xbf16>, vector<8x128xf32> -> vector<8x128xf32>
    %173 = arith.addf %170, %172 : vector<8x128xf32>
    %c7_i32_80 = arith.constant 7 : i32
    %174 = arith.subi %c7_i32_80, %c1_i32 : i32
    %175 = arith.index_cast %174 : i32 to index
    %c0_81 = arith.constant 0 : index
    %c0_82 = arith.constant 0 : index
    %176 = vector.load %arg15[%175, %c0_81, %c0_82] : memref<8x8x128xbf16, #tpu.memory_space<vmem>>, vector<1x8x128xbf16>
    %177 = vector.shape_cast %176 : vector<1x8x128xbf16> to vector<8x128xbf16>
    %178 = arith.extf %177 : vector<8x128xbf16> to vector<8x128xf32>
    %179 = arith.truncf %156 : vector<8x32xf32> to vector<8x32xbf16>
    %cst_83 = arith.constant dense<0.000000e+00> : vector<8x128xf32>
    %180 = tpu.matmul %179, %40, %cst_83 {dimension_numbers = #tpu.dot_dimension_numbers<[1], [0], [0], [1], [0, 0, 1, 1], [], []>} : vector<8x32xbf16>, vector<32x128xbf16>, vector<8x128xf32> -> vector<8x128xf32>
    %181 = arith.addf %178, %180 : vector<8x128xf32>
    %182 = arith.truncf %173 : vector<8x128xf32> to vector<8x128xbf16>
    %183 = vector.extract_strided_slice %182 {offsets = [0, 0], sizes = [8, 32], strides = [1, 1]} : vector<8x128xbf16> to vector<8x32xbf16>
    %cst_84 = arith.constant 5.000000e-01 : bf16
    %184 = vector.broadcast %cst_84 : bf16 to vector<8x32xbf16>
    %185 = arith.mulf %184, %183 : vector<8x32xbf16>
    %186 = math.tanh %185 : vector<8x32xbf16>
    %cst_85 = arith.constant 5.000000e-01 : bf16
    %187 = vector.broadcast %cst_85 : bf16 to vector<8x32xbf16>
    %188 = arith.mulf %187, %186 : vector<8x32xbf16>
    %cst_86 = arith.constant 5.000000e-01 : bf16
    %189 = vector.broadcast %cst_86 : bf16 to vector<8x32xbf16>
    %190 = arith.addf %188, %189 : vector<8x32xbf16>
    %191 = vector.extract_strided_slice %182 {offsets = [0, 32], sizes = [8, 32], strides = [1, 1]} : vector<8x128xbf16> to vector<8x32xbf16>
    %cst_87 = arith.constant 5.000000e-01 : bf16
    %192 = vector.broadcast %cst_87 : bf16 to vector<8x32xbf16>
    %193 = arith.mulf %192, %191 : vector<8x32xbf16>
    %194 = math.tanh %193 : vector<8x32xbf16>
    %cst_88 = arith.constant 5.000000e-01 : bf16
    %195 = vector.broadcast %cst_88 : bf16 to vector<8x32xbf16>
    %196 = arith.mulf %195, %194 : vector<8x32xbf16>
    %cst_89 = arith.constant 5.000000e-01 : bf16
    %197 = vector.broadcast %cst_89 : bf16 to vector<8x32xbf16>
    %198 = arith.addf %196, %197 : vector<8x32xbf16>
    %199 = vector.extract_strided_slice %182 {offsets = [0, 64], sizes = [8, 32], strides = [1, 1]} : vector<8x128xbf16> to vector<8x32xbf16>
    %200 = math.tanh %199 : vector<8x32xbf16>
    %201 = vector.extract_strided_slice %182 {offsets = [0, 96], sizes = [8, 32], strides = [1, 1]} : vector<8x128xbf16> to vector<8x32xbf16>
    %cst_90 = arith.constant 5.000000e-01 : bf16
    %202 = vector.broadcast %cst_90 : bf16 to vector<8x32xbf16>
    %203 = arith.mulf %202, %201 : vector<8x32xbf16>
    %204 = math.tanh %203 : vector<8x32xbf16>
    %cst_91 = arith.constant 5.000000e-01 : bf16
    %205 = vector.broadcast %cst_91 : bf16 to vector<8x32xbf16>
    %206 = arith.mulf %205, %204 : vector<8x32xbf16>
    %cst_92 = arith.constant 5.000000e-01 : bf16
    %207 = vector.broadcast %cst_92 : bf16 to vector<8x32xbf16>
    %208 = arith.addf %206, %207 : vector<8x32xbf16>
    %209 = arith.extf %198 : vector<8x32xbf16> to vector<8x32xf32>
    %210 = arith.mulf %209, %118 : vector<8x32xf32>
    %211 = arith.mulf %190, %200 : vector<8x32xbf16>
    %212 = arith.extf %211 : vector<8x32xbf16> to vector<8x32xf32>
    %213 = arith.addf %210, %212 : vector<8x32xf32>
    %214 = math.tanh %213 : vector<8x32xf32>
    %215 = arith.extf %208 : vector<8x32xbf16> to vector<8x32xf32>
    %216 = arith.mulf %215, %214 : vector<8x32xf32>
    %217 = arith.truncf %181 : vector<8x128xf32> to vector<8x128xbf16>
    %218 = vector.extract_strided_slice %217 {offsets = [0, 0], sizes = [8, 32], strides = [1, 1]} : vector<8x128xbf16> to vector<8x32xbf16>
    %cst_93 = arith.constant 5.000000e-01 : bf16
    %219 = vector.broadcast %cst_93 : bf16 to vector<8x32xbf16>
    %220 = arith.mulf %219, %218 : vector<8x32xbf16>
    %221 = math.tanh %220 : vector<8x32xbf16>
    %cst_94 = arith.constant 5.000000e-01 : bf16
    %222 = vector.broadcast %cst_94 : bf16 to vector<8x32xbf16>
    %223 = arith.mulf %222, %221 : vector<8x32xbf16>
    %cst_95 = arith.constant 5.000000e-01 : bf16
    %224 = vector.broadcast %cst_95 : bf16 to vector<8x32xbf16>
    %225 = arith.addf %223, %224 : vector<8x32xbf16>
    %226 = vector.extract_strided_slice %217 {offsets = [0, 32], sizes = [8, 32], strides = [1, 1]} : vector<8x128xbf16> to vector<8x32xbf16>
    %cst_96 = arith.constant 5.000000e-01 : bf16
    %227 = vector.broadcast %cst_96 : bf16 to vector<8x32xbf16>
    %228 = arith.mulf %227, %226 : vector<8x32xbf16>
    %229 = math.tanh %228 : vector<8x32xbf16>
    %cst_97 = arith.constant 5.000000e-01 : bf16
    %230 = vector.broadcast %cst_97 : bf16 to vector<8x32xbf16>
    %231 = arith.mulf %230, %229 : vector<8x32xbf16>
    %cst_98 = arith.constant 5.000000e-01 : bf16
    %232 = vector.broadcast %cst_98 : bf16 to vector<8x32xbf16>
    %233 = arith.addf %231, %232 : vector<8x32xbf16>
    %234 = vector.extract_strided_slice %217 {offsets = [0, 64], sizes = [8, 32], strides = [1, 1]} : vector<8x128xbf16> to vector<8x32xbf16>
    %235 = math.tanh %234 : vector<8x32xbf16>
    %236 = vector.extract_strided_slice %217 {offsets = [0, 96], sizes = [8, 32], strides = [1, 1]} : vector<8x128xbf16> to vector<8x32xbf16>
    %cst_99 = arith.constant 5.000000e-01 : bf16
    %237 = vector.broadcast %cst_99 : bf16 to vector<8x32xbf16>
    %238 = arith.mulf %237, %236 : vector<8x32xbf16>
    %239 = math.tanh %238 : vector<8x32xbf16>
    %cst_100 = arith.constant 5.000000e-01 : bf16
    %240 = vector.broadcast %cst_100 : bf16 to vector<8x32xbf16>
    %241 = arith.mulf %240, %239 : vector<8x32xbf16>
    %cst_101 = arith.constant 5.000000e-01 : bf16
    %242 = vector.broadcast %cst_101 : bf16 to vector<8x32xbf16>
    %243 = arith.addf %241, %242 : vector<8x32xbf16>
    %244 = arith.extf %233 : vector<8x32xbf16> to vector<8x32xf32>
    %245 = arith.mulf %244, %153 : vector<8x32xf32>
    %246 = arith.mulf %225, %235 : vector<8x32xbf16>
    %247 = arith.extf %246 : vector<8x32xbf16> to vector<8x32xf32>
    %248 = arith.addf %245, %247 : vector<8x32xf32>
    %249 = math.tanh %248 : vector<8x32xf32>
    %250 = arith.extf %243 : vector<8x32xbf16> to vector<8x32xf32>
    %251 = arith.mulf %250, %249 : vector<8x32xf32>
    %252 = arith.truncf %216 : vector<8x32xf32> to vector<8x32xbf16>
    %253 = arith.index_cast %c1_i32 : i32 to index
    %c0_102 = arith.constant 0 : index
    %c0_103 = arith.constant 0 : index
    %254 = vector.load %arg16[%253, %c0_102, %c0_103] : memref<8x8x32xbf16, #tpu.memory_space<vmem>>, vector<1x8x32xbf16>
    %255 = vector.shape_cast %254 : vector<1x8x32xbf16> to vector<8x32xbf16>
    %256 = vector.shape_cast %252 : vector<8x32xbf16> to vector<1x8x32xbf16>
    tpu.vector_store %arg16[%253, %c0_102, %c0_103], %256 {strides = array<i32>} : memref<8x8x32xbf16, #tpu.memory_space<vmem>>, vector<1x8x32xbf16>,
    %257 = arith.truncf %251 : vector<8x32xf32> to vector<8x32xbf16>
    %258 = arith.index_cast %174 : i32 to index
    %c0_104 = arith.constant 0 : index
    %c0_105 = arith.constant 0 : index
    %259 = vector.load %arg17[%258, %c0_104, %c0_105] : memref<8x8x32xbf16, #tpu.memory_space<vmem>>, vector<1x8x32xbf16>
    %260 = vector.shape_cast %259 : vector<1x8x32xbf16> to vector<8x32xbf16>
    %261 = vector.shape_cast %257 : vector<8x32xbf16> to vector<1x8x32xbf16>
    tpu.vector_store %arg17[%258, %c0_104, %c0_105], %261 {strides = array<i32>} : memref<8x8x32xbf16, #tpu.memory_space<vmem>>, vector<1x8x32xbf16>,
    %c2_i32 = arith.constant 2 : i32
    %262 = arith.index_cast %c2_i32 : i32 to index
    %c0_106 = arith.constant 0 : index
    %c0_107 = arith.constant 0 : index
    %263 = vector.load %arg14[%262, %c0_106, %c0_107] : memref<8x8x128xbf16, #tpu.memory_space<vmem>>, vector<1x8x128xbf16>
    %264 = vector.shape_cast %263 : vector<1x8x128xbf16> to vector<8x128xbf16>
    %265 = arith.extf %264 : vector<8x128xbf16> to vector<8x128xf32>
    %266 = arith.truncf %216 : vector<8x32xf32> to vector<8x32xbf16>
    %cst_108 = arith.constant dense<0.000000e+00> : vector<8x128xf32>
    %267 = tpu.matmul %266, %39, %cst_108 {dimension_numbers = #tpu.dot_dimension_numbers<[1], [0], [0], [1], [0, 0, 1, 1], [], []>} : vector<8x32xbf16>, vector<32x128xbf16>, vector<8x128xf32> -> vector<8x128xf32>
    %268 = arith.addf %265, %267 : vector<8x128xf32>
    %c7_i32_109 = arith.constant 7 : i32
    %269 = arith.subi %c7_i32_109, %c2_i32 : i32
    %270 = arith.index_cast %269 : i32 to index
    %c0_110 = arith.constant 0 : index
    %c0_111 = arith.constant 0 : index
    %271 = vector.load %arg15[%270, %c0_110, %c0_111] : memref<8x8x128xbf16, #tpu.memory_space<vmem>>, vector<1x8x128xbf16>
    %272 = vector.shape_cast %271 : vector<1x8x128xbf16> to vector<8x128xbf16>
    %273 = arith.extf %272 : vector<8x128xbf16> to vector<8x128xf32>
    %274 = arith.truncf %251 : vector<8x32xf32> to vector<8x32xbf16>
    %cst_112 = arith.constant dense<0.000000e+00> : vector<8x128xf32>
    %275 = tpu.matmul %274, %40, %cst_112 {dimension_numbers = #tpu.dot_dimension_numbers<[1], [0], [0], [1], [0, 0, 1, 1], [], []>} : vector<8x32xbf16>, vector<32x128xbf16>, vector<8x128xf32> -> vector<8x128xf32>
    %276 = arith.addf %273, %275 : vector<8x128xf32>
    %277 = arith.truncf %268 : vector<8x128xf32> to vector<8x128xbf16>
    %278 = vector.extract_strided_slice %277 {offsets = [0, 0], sizes = [8, 32], strides = [1, 1]} : vector<8x128xbf16> to vector<8x32xbf16>
    %cst_113 = arith.constant 5.000000e-01 : bf16
    %279 = vector.broadcast %cst_113 : bf16 to vector<8x32xbf16>
    %280 = arith.mulf %279, %278 : vector<8x32xbf16>
    %281 = math.tanh %280 : vector<8x32xbf16>
    %cst_114 = arith.constant 5.000000e-01 : bf16
    %282 = vector.broadcast %cst_114 : bf16 to vector<8x32xbf16>
    %283 = arith.mulf %282, %281 : vector<8x32xbf16>
    %cst_115 = arith.constant 5.000000e-01 : bf16
    %284 = vector.broadcast %cst_115 : bf16 to vector<8x32xbf16>
    %285 = arith.addf %283, %284 : vector<8x32xbf16>
    %286 = vector.extract_strided_slice %277 {offsets = [0, 32], sizes = [8, 32], strides = [1, 1]} : vector<8x128xbf16> to vector<8x32xbf16>
    %cst_116 = arith.constant 5.000000e-01 : bf16
    %287 = vector.broadcast %cst_116 : bf16 to vector<8x32xbf16>
    %288 = arith.mulf %287, %286 : vector<8x32xbf16>
    %289 = math.tanh %288 : vector<8x32xbf16>
    %cst_117 = arith.constant 5.000000e-01 : bf16
    %290 = vector.broadcast %cst_117 : bf16 to vector<8x32xbf16>
    %291 = arith.mulf %290, %289 : vector<8x32xbf16>
    %cst_118 = arith.constant 5.000000e-01 : bf16
    %292 = vector.broadcast %cst_118 : bf16 to vector<8x32xbf16>
    %293 = arith.addf %291, %292 : vector<8x32xbf16>
    %294 = vector.extract_strided_slice %277 {offsets = [0, 64], sizes = [8, 32], strides = [1, 1]} : vector<8x128xbf16> to vector<8x32xbf16>
    %295 = math.tanh %294 : vector<8x32xbf16>
    %296 = vector.extract_strided_slice %277 {offsets = [0, 96], sizes = [8, 32], strides = [1, 1]} : vector<8x128xbf16> to vector<8x32xbf16>
    %cst_119 = arith.constant 5.000000e-01 : bf16
    %297 = vector.broadcast %cst_119 : bf16 to vector<8x32xbf16>
    %298 = arith.mulf %297, %296 : vector<8x32xbf16>
    %299 = math.tanh %298 : vector<8x32xbf16>
    %cst_120 = arith.constant 5.000000e-01 : bf16
    %300 = vector.broadcast %cst_120 : bf16 to vector<8x32xbf16>
    %301 = arith.mulf %300, %299 : vector<8x32xbf16>
    %cst_121 = arith.constant 5.000000e-01 : bf16
    %302 = vector.broadcast %cst_121 : bf16 to vector<8x32xbf16>
    %303 = arith.addf %301, %302 : vector<8x32xbf16>
    %304 = arith.extf %293 : vector<8x32xbf16> to vector<8x32xf32>
    %305 = arith.mulf %304, %213 : vector<8x32xf32>
    %306 = arith.mulf %285, %295 : vector<8x32xbf16>
    %307 = arith.extf %306 : vector<8x32xbf16> to vector<8x32xf32>
    %308 = arith.addf %305, %307 : vector<8x32xf32>
    %309 = math.tanh %308 : vector<8x32xf32>
    %310 = arith.extf %303 : vector<8x32xbf16> to vector<8x32xf32>
    %311 = arith.mulf %310, %309 : vector<8x32xf32>
    %312 = arith.truncf %276 : vector<8x128xf32> to vector<8x128xbf16>
    %313 = vector.extract_strided_slice %312 {offsets = [0, 0], sizes = [8, 32], strides = [1, 1]} : vector<8x128xbf16> to vector<8x32xbf16>
    %cst_122 = arith.constant 5.000000e-01 : bf16
    %314 = vector.broadcast %cst_122 : bf16 to vector<8x32xbf16>
    %315 = arith.mulf %314, %313 : vector<8x32xbf16>
    %316 = math.tanh %315 : vector<8x32xbf16>
    %cst_123 = arith.constant 5.000000e-01 : bf16
    %317 = vector.broadcast %cst_123 : bf16 to vector<8x32xbf16>
    %318 = arith.mulf %317, %316 : vector<8x32xbf16>
    %cst_124 = arith.constant 5.000000e-01 : bf16
    %319 = vector.broadcast %cst_124 : bf16 to vector<8x32xbf16>
    %320 = arith.addf %318, %319 : vector<8x32xbf16>
    %321 = vector.extract_strided_slice %312 {offsets = [0, 32], sizes = [8, 32], strides = [1, 1]} : vector<8x128xbf16> to vector<8x32xbf16>
    %cst_125 = arith.constant 5.000000e-01 : bf16
    %322 = vector.broadcast %cst_125 : bf16 to vector<8x32xbf16>
    %323 = arith.mulf %322, %321 : vector<8x32xbf16>
    %324 = math.tanh %323 : vector<8x32xbf16>
    %cst_126 = arith.constant 5.000000e-01 : bf16
    %325 = vector.broadcast %cst_126 : bf16 to vector<8x32xbf16>
    %326 = arith.mulf %325, %324 : vector<8x32xbf16>
    %cst_127 = arith.constant 5.000000e-01 : bf16
    %327 = vector.broadcast %cst_127 : bf16 to vector<8x32xbf16>
    %328 = arith.addf %326, %327 : vector<8x32xbf16>
    %329 = vector.extract_strided_slice %312 {offsets = [0, 64], sizes = [8, 32], strides = [1, 1]} : vector<8x128xbf16> to vector<8x32xbf16>
    %330 = math.tanh %329 : vector<8x32xbf16>
    %331 = vector.extract_strided_slice %312 {offsets = [0, 96], sizes = [8, 32], strides = [1, 1]} : vector<8x128xbf16> to vector<8x32xbf16>
    %cst_128 = arith.constant 5.000000e-01 : bf16
    %332 = vector.broadcast %cst_128 : bf16 to vector<8x32xbf16>
    %333 = arith.mulf %332, %331 : vector<8x32xbf16>
    %334 = math.tanh %333 : vector<8x32xbf16>
    %cst_129 = arith.constant 5.000000e-01 : bf16
    %335 = vector.broadcast %cst_129 : bf16 to vector<8x32xbf16>
    %336 = arith.mulf %335, %334 : vector<8x32xbf16>
    %cst_130 = arith.constant 5.000000e-01 : bf16
    %337 = vector.broadcast %cst_130 : bf16 to vector<8x32xbf16>
    %338 = arith.addf %336, %337 : vector<8x32xbf16>
    %339 = arith.extf %328 : vector<8x32xbf16> to vector<8x32xf32>
    %340 = arith.mulf %339, %248 : vector<8x32xf32>
    %341 = arith.mulf %320, %330 : vector<8x32xbf16>
    %342 = arith.extf %341 : vector<8x32xbf16> to vector<8x32xf32>
    %343 = arith.addf %340, %342 : vector<8x32xf32>
    %344 = math.tanh %343 : vector<8x32xf32>
    %345 = arith.extf %338 : vector<8x32xbf16> to vector<8x32xf32>
    %346 = arith.mulf %345, %344 : vector<8x32xf32>
    %347 = arith.truncf %311 : vector<8x32xf32> to vector<8x32xbf16>
    %348 = arith.index_cast %c2_i32 : i32 to index
    %c0_131 = arith.constant 0 : index
    %c0_132 = arith.constant 0 : index
    %349 = vector.load %arg16[%348, %c0_131, %c0_132] : memref<8x8x32xbf16, #tpu.memory_space<vmem>>, vector<1x8x32xbf16>
    %350 = vector.shape_cast %349 : vector<1x8x32xbf16> to vector<8x32xbf16>
    %351 = vector.shape_cast %347 : vector<8x32xbf16> to vector<1x8x32xbf16>
    tpu.vector_store %arg16[%348, %c0_131, %c0_132], %351 {strides = array<i32>} : memref<8x8x32xbf16, #tpu.memory_space<vmem>>, vector<1x8x32xbf16>,
    %352 = arith.truncf %346 : vector<8x32xf32> to vector<8x32xbf16>
    %353 = arith.index_cast %269 : i32 to index
    %c0_133 = arith.constant 0 : index
    %c0_134 = arith.constant 0 : index
    %354 = vector.load %arg17[%353, %c0_133, %c0_134] : memref<8x8x32xbf16, #tpu.memory_space<vmem>>, vector<1x8x32xbf16>
    %355 = vector.shape_cast %354 : vector<1x8x32xbf16> to vector<8x32xbf16>
    %356 = vector.shape_cast %352 : vector<8x32xbf16> to vector<1x8x32xbf16>
    tpu.vector_store %arg17[%353, %c0_133, %c0_134], %356 {strides = array<i32>} : memref<8x8x32xbf16, #tpu.memory_space<vmem>>, vector<1x8x32xbf16>,
    %c3_i32 = arith.constant 3 : i32
    %357 = arith.index_cast %c3_i32 : i32 to index
    %c0_135 = arith.constant 0 : index
    %c0_136 = arith.constant 0 : index
    %358 = vector.load %arg14[%357, %c0_135, %c0_136] : memref<8x8x128xbf16, #tpu.memory_space<vmem>>, vector<1x8x128xbf16>
    %359 = vector.shape_cast %358 : vector<1x8x128xbf16> to vector<8x128xbf16>
    %360 = arith.extf %359 : vector<8x128xbf16> to vector<8x128xf32>
    %361 = arith.truncf %311 : vector<8x32xf32> to vector<8x32xbf16>
    %cst_137 = arith.constant dense<0.000000e+00> : vector<8x128xf32>
    %362 = tpu.matmul %361, %39, %cst_137 {dimension_numbers = #tpu.dot_dimension_numbers<[1], [0], [0], [1], [0, 0, 1, 1], [], []>} : vector<8x32xbf16>, vector<32x128xbf16>, vector<8x128xf32> -> vector<8x128xf32>
    %363 = arith.addf %360, %362 : vector<8x128xf32>
    %c7_i32_138 = arith.constant 7 : i32
    %364 = arith.subi %c7_i32_138, %c3_i32 : i32
    %365 = arith.index_cast %364 : i32 to index
    %c0_139 = arith.constant 0 : index
    %c0_140 = arith.constant 0 : index
    %366 = vector.load %arg15[%365, %c0_139, %c0_140] : memref<8x8x128xbf16, #tpu.memory_space<vmem>>, vector<1x8x128xbf16>
    %367 = vector.shape_cast %366 : vector<1x8x128xbf16> to vector<8x128xbf16>
    %368 = arith.extf %367 : vector<8x128xbf16> to vector<8x128xf32>
    %369 = arith.truncf %346 : vector<8x32xf32> to vector<8x32xbf16>
    %cst_141 = arith.constant dense<0.000000e+00> : vector<8x128xf32>
    %370 = tpu.matmul %369, %40, %cst_141 {dimension_numbers = #tpu.dot_dimension_numbers<[1], [0], [0], [1], [0, 0, 1, 1], [], []>} : vector<8x32xbf16>, vector<32x128xbf16>, vector<8x128xf32> -> vector<8x128xf32>
    %371 = arith.addf %368, %370 : vector<8x128xf32>
    %372 = arith.truncf %363 : vector<8x128xf32> to vector<8x128xbf16>
    %373 = vector.extract_strided_slice %372 {offsets = [0, 0], sizes = [8, 32], strides = [1, 1]} : vector<8x128xbf16> to vector<8x32xbf16>
    %cst_142 = arith.constant 5.000000e-01 : bf16
    %374 = vector.broadcast %cst_142 : bf16 to vector<8x32xbf16>
    %375 = arith.mulf %374, %373 : vector<8x32xbf16>
    %376 = math.tanh %375 : vector<8x32xbf16>
    %cst_143 = arith.constant 5.000000e-01 : bf16
    %377 = vector.broadcast %cst_143 : bf16 to vector<8x32xbf16>
    %378 = arith.mulf %377, %376 : vector<8x32xbf16>
    %cst_144 = arith.constant 5.000000e-01 : bf16
    %379 = vector.broadcast %cst_144 : bf16 to vector<8x32xbf16>
    %380 = arith.addf %378, %379 : vector<8x32xbf16>
    %381 = vector.extract_strided_slice %372 {offsets = [0, 32], sizes = [8, 32], strides = [1, 1]} : vector<8x128xbf16> to vector<8x32xbf16>
    %cst_145 = arith.constant 5.000000e-01 : bf16
    %382 = vector.broadcast %cst_145 : bf16 to vector<8x32xbf16>
    %383 = arith.mulf %382, %381 : vector<8x32xbf16>
    %384 = math.tanh %383 : vector<8x32xbf16>
    %cst_146 = arith.constant 5.000000e-01 : bf16
    %385 = vector.broadcast %cst_146 : bf16 to vector<8x32xbf16>
    %386 = arith.mulf %385, %384 : vector<8x32xbf16>
    %cst_147 = arith.constant 5.000000e-01 : bf16
    %387 = vector.broadcast %cst_147 : bf16 to vector<8x32xbf16>
    %388 = arith.addf %386, %387 : vector<8x32xbf16>
    %389 = vector.extract_strided_slice %372 {offsets = [0, 64], sizes = [8, 32], strides = [1, 1]} : vector<8x128xbf16> to vector<8x32xbf16>
    %390 = math.tanh %389 : vector<8x32xbf16>
    %391 = vector.extract_strided_slice %372 {offsets = [0, 96], sizes = [8, 32], strides = [1, 1]} : vector<8x128xbf16> to vector<8x32xbf16>
    %cst_148 = arith.constant 5.000000e-01 : bf16
    %392 = vector.broadcast %cst_148 : bf16 to vector<8x32xbf16>
    %393 = arith.mulf %392, %391 : vector<8x32xbf16>
    %394 = math.tanh %393 : vector<8x32xbf16>
    %cst_149 = arith.constant 5.000000e-01 : bf16
    %395 = vector.broadcast %cst_149 : bf16 to vector<8x32xbf16>
    %396 = arith.mulf %395, %394 : vector<8x32xbf16>
    %cst_150 = arith.constant 5.000000e-01 : bf16
    %397 = vector.broadcast %cst_150 : bf16 to vector<8x32xbf16>
    %398 = arith.addf %396, %397 : vector<8x32xbf16>
    %399 = arith.extf %388 : vector<8x32xbf16> to vector<8x32xf32>
    %400 = arith.mulf %399, %308 : vector<8x32xf32>
    %401 = arith.mulf %380, %390 : vector<8x32xbf16>
    %402 = arith.extf %401 : vector<8x32xbf16> to vector<8x32xf32>
    %403 = arith.addf %400, %402 : vector<8x32xf32>
    %404 = math.tanh %403 : vector<8x32xf32>
    %405 = arith.extf %398 : vector<8x32xbf16> to vector<8x32xf32>
    %406 = arith.mulf %405, %404 : vector<8x32xf32>
    %407 = arith.truncf %371 : vector<8x128xf32> to vector<8x128xbf16>
    %408 = vector.extract_strided_slice %407 {offsets = [0, 0], sizes = [8, 32], strides = [1, 1]} : vector<8x128xbf16> to vector<8x32xbf16>
    %cst_151 = arith.constant 5.000000e-01 : bf16
    %409 = vector.broadcast %cst_151 : bf16 to vector<8x32xbf16>
    %410 = arith.mulf %409, %408 : vector<8x32xbf16>
    %411 = math.tanh %410 : vector<8x32xbf16>
    %cst_152 = arith.constant 5.000000e-01 : bf16
    %412 = vector.broadcast %cst_152 : bf16 to vector<8x32xbf16>
    %413 = arith.mulf %412, %411 : vector<8x32xbf16>
    %cst_153 = arith.constant 5.000000e-01 : bf16
    %414 = vector.broadcast %cst_153 : bf16 to vector<8x32xbf16>
    %415 = arith.addf %413, %414 : vector<8x32xbf16>
    %416 = vector.extract_strided_slice %407 {offsets = [0, 32], sizes = [8, 32], strides = [1, 1]} : vector<8x128xbf16> to vector<8x32xbf16>
    %cst_154 = arith.constant 5.000000e-01 : bf16
    %417 = vector.broadcast %cst_154 : bf16 to vector<8x32xbf16>
    %418 = arith.mulf %417, %416 : vector<8x32xbf16>
    %419 = math.tanh %418 : vector<8x32xbf16>
    %cst_155 = arith.constant 5.000000e-01 : bf16
    %420 = vector.broadcast %cst_155 : bf16 to vector<8x32xbf16>
    %421 = arith.mulf %420, %419 : vector<8x32xbf16>
    %cst_156 = arith.constant 5.000000e-01 : bf16
    %422 = vector.broadcast %cst_156 : bf16 to vector<8x32xbf16>
    %423 = arith.addf %421, %422 : vector<8x32xbf16>
    %424 = vector.extract_strided_slice %407 {offsets = [0, 64], sizes = [8, 32], strides = [1, 1]} : vector<8x128xbf16> to vector<8x32xbf16>
    %425 = math.tanh %424 : vector<8x32xbf16>
    %426 = vector.extract_strided_slice %407 {offsets = [0, 96], sizes = [8, 32], strides = [1, 1]} : vector<8x128xbf16> to vector<8x32xbf16>
    %cst_157 = arith.constant 5.000000e-01 : bf16
    %427 = vector.broadcast %cst_157 : bf16 to vector<8x32xbf16>
    %428 = arith.mulf %427, %426 : vector<8x32xbf16>
    %429 = math.tanh %428 : vector<8x32xbf16>
    %cst_158 = arith.constant 5.000000e-01 : bf16
    %430 = vector.broadcast %cst_158 : bf16 to vector<8x32xbf16>
    %431 = arith.mulf %430, %429 : vector<8x32xbf16>
    %cst_159 = arith.constant 5.000000e-01 : bf16
    %432 = vector.broadcast %cst_159 : bf16 to vector<8x32xbf16>
    %433 = arith.addf %431, %432 : vector<8x32xbf16>
    %434 = arith.extf %423 : vector<8x32xbf16> to vector<8x32xf32>
    %435 = arith.mulf %434, %343 : vector<8x32xf32>
    %436 = arith.mulf %415, %425 : vector<8x32xbf16>
    %437 = arith.extf %436 : vector<8x32xbf16> to vector<8x32xf32>
    %438 = arith.addf %435, %437 : vector<8x32xf32>
    %439 = math.tanh %438 : vector<8x32xf32>
    %440 = arith.extf %433 : vector<8x32xbf16> to vector<8x32xf32>
    %441 = arith.mulf %440, %439 : vector<8x32xf32>
    %442 = arith.truncf %406 : vector<8x32xf32> to vector<8x32xbf16>
    %443 = arith.index_cast %c3_i32 : i32 to index
    %c0_160 = arith.constant 0 : index
    %c0_161 = arith.constant 0 : index
    %444 = vector.load %arg16[%443, %c0_160, %c0_161] : memref<8x8x32xbf16, #tpu.memory_space<vmem>>, vector<1x8x32xbf16>
    %445 = vector.shape_cast %444 : vector<1x8x32xbf16> to vector<8x32xbf16>
    %446 = vector.shape_cast %442 : vector<8x32xbf16> to vector<1x8x32xbf16>
    tpu.vector_store %arg16[%443, %c0_160, %c0_161], %446 {strides = array<i32>} : memref<8x8x32xbf16, #tpu.memory_space<vmem>>, vector<1x8x32xbf16>,
    %447 = arith.truncf %441 : vector<8x32xf32> to vector<8x32xbf16>
    %448 = arith.index_cast %364 : i32 to index
    %c0_162 = arith.constant 0 : index
    %c0_163 = arith.constant 0 : index
    %449 = vector.load %arg17[%448, %c0_162, %c0_163] : memref<8x8x32xbf16, #tpu.memory_space<vmem>>, vector<1x8x32xbf16>
    %450 = vector.shape_cast %449 : vector<1x8x32xbf16> to vector<8x32xbf16>
    %451 = vector.shape_cast %447 : vector<8x32xbf16> to vector<1x8x32xbf16>
    tpu.vector_store %arg17[%448, %c0_162, %c0_163], %451 {strides = array<i32>} : memref<8x8x32xbf16, #tpu.memory_space<vmem>>, vector<1x8x32xbf16>,
    %c4_i32 = arith.constant 4 : i32
    %452 = arith.index_cast %c4_i32 : i32 to index
    %c0_164 = arith.constant 0 : index
    %c0_165 = arith.constant 0 : index
    %453 = vector.load %arg14[%452, %c0_164, %c0_165] : memref<8x8x128xbf16, #tpu.memory_space<vmem>>, vector<1x8x128xbf16>
    %454 = vector.shape_cast %453 : vector<1x8x128xbf16> to vector<8x128xbf16>
    %455 = arith.extf %454 : vector<8x128xbf16> to vector<8x128xf32>
    %456 = arith.truncf %406 : vector<8x32xf32> to vector<8x32xbf16>
    %cst_166 = arith.constant dense<0.000000e+00> : vector<8x128xf32>
    %457 = tpu.matmul %456, %39, %cst_166 {dimension_numbers = #tpu.dot_dimension_numbers<[1], [0], [0], [1], [0, 0, 1, 1], [], []>} : vector<8x32xbf16>, vector<32x128xbf16>, vector<8x128xf32> -> vector<8x128xf32>
    %458 = arith.addf %455, %457 : vector<8x128xf32>
    %c7_i32_167 = arith.constant 7 : i32
    %459 = arith.subi %c7_i32_167, %c4_i32 : i32
    %460 = arith.index_cast %459 : i32 to index
    %c0_168 = arith.constant 0 : index
    %c0_169 = arith.constant 0 : index
    %461 = vector.load %arg15[%460, %c0_168, %c0_169] : memref<8x8x128xbf16, #tpu.memory_space<vmem>>, vector<1x8x128xbf16>
    %462 = vector.shape_cast %461 : vector<1x8x128xbf16> to vector<8x128xbf16>
    %463 = arith.extf %462 : vector<8x128xbf16> to vector<8x128xf32>
    %464 = arith.truncf %441 : vector<8x32xf32> to vector<8x32xbf16>
    %cst_170 = arith.constant dense<0.000000e+00> : vector<8x128xf32>
    %465 = tpu.matmul %464, %40, %cst_170 {dimension_numbers = #tpu.dot_dimension_numbers<[1], [0], [0], [1], [0, 0, 1, 1], [], []>} : vector<8x32xbf16>, vector<32x128xbf16>, vector<8x128xf32> -> vector<8x128xf32>
    %466 = arith.addf %463, %465 : vector<8x128xf32>
    %467 = arith.truncf %458 : vector<8x128xf32> to vector<8x128xbf16>
    %468 = vector.extract_strided_slice %467 {offsets = [0, 0], sizes = [8, 32], strides = [1, 1]} : vector<8x128xbf16> to vector<8x32xbf16>
    %cst_171 = arith.constant 5.000000e-01 : bf16
    %469 = vector.broadcast %cst_171 : bf16 to vector<8x32xbf16>
    %470 = arith.mulf %469, %468 : vector<8x32xbf16>
    %471 = math.tanh %470 : vector<8x32xbf16>
    %cst_172 = arith.constant 5.000000e-01 : bf16
    %472 = vector.broadcast %cst_172 : bf16 to vector<8x32xbf16>
    %473 = arith.mulf %472, %471 : vector<8x32xbf16>
    %cst_173 = arith.constant 5.000000e-01 : bf16
    %474 = vector.broadcast %cst_173 : bf16 to vector<8x32xbf16>
    %475 = arith.addf %473, %474 : vector<8x32xbf16>
    %476 = vector.extract_strided_slice %467 {offsets = [0, 32], sizes = [8, 32], strides = [1, 1]} : vector<8x128xbf16> to vector<8x32xbf16>
    %cst_174 = arith.constant 5.000000e-01 : bf16
    %477 = vector.broadcast %cst_174 : bf16 to vector<8x32xbf16>
    %478 = arith.mulf %477, %476 : vector<8x32xbf16>
    %479 = math.tanh %478 : vector<8x32xbf16>
    %cst_175 = arith.constant 5.000000e-01 : bf16
    %480 = vector.broadcast %cst_175 : bf16 to vector<8x32xbf16>
    %481 = arith.mulf %480, %479 : vector<8x32xbf16>
    %cst_176 = arith.constant 5.000000e-01 : bf16
    %482 = vector.broadcast %cst_176 : bf16 to vector<8x32xbf16>
    %483 = arith.addf %481, %482 : vector<8x32xbf16>
    %484 = vector.extract_strided_slice %467 {offsets = [0, 64], sizes = [8, 32], strides = [1, 1]} : vector<8x128xbf16> to vector<8x32xbf16>
    %485 = math.tanh %484 : vector<8x32xbf16>
    %486 = vector.extract_strided_slice %467 {offsets = [0, 96], sizes = [8, 32], strides = [1, 1]} : vector<8x128xbf16> to vector<8x32xbf16>
    %cst_177 = arith.constant 5.000000e-01 : bf16
    %487 = vector.broadcast %cst_177 : bf16 to vector<8x32xbf16>
    %488 = arith.mulf %487, %486 : vector<8x32xbf16>
    %489 = math.tanh %488 : vector<8x32xbf16>
    %cst_178 = arith.constant 5.000000e-01 : bf16
    %490 = vector.broadcast %cst_178 : bf16 to vector<8x32xbf16>
    %491 = arith.mulf %490, %489 : vector<8x32xbf16>
    %cst_179 = arith.constant 5.000000e-01 : bf16
    %492 = vector.broadcast %cst_179 : bf16 to vector<8x32xbf16>
    %493 = arith.addf %491, %492 : vector<8x32xbf16>
    %494 = arith.extf %483 : vector<8x32xbf16> to vector<8x32xf32>
    %495 = arith.mulf %494, %403 : vector<8x32xf32>
    %496 = arith.mulf %475, %485 : vector<8x32xbf16>
    %497 = arith.extf %496 : vector<8x32xbf16> to vector<8x32xf32>
    %498 = arith.addf %495, %497 : vector<8x32xf32>
    %499 = math.tanh %498 : vector<8x32xf32>
    %500 = arith.extf %493 : vector<8x32xbf16> to vector<8x32xf32>
    %501 = arith.mulf %500, %499 : vector<8x32xf32>
    %502 = arith.truncf %466 : vector<8x128xf32> to vector<8x128xbf16>
    %503 = vector.extract_strided_slice %502 {offsets = [0, 0], sizes = [8, 32], strides = [1, 1]} : vector<8x128xbf16> to vector<8x32xbf16>
    %cst_180 = arith.constant 5.000000e-01 : bf16
    %504 = vector.broadcast %cst_180 : bf16 to vector<8x32xbf16>
    %505 = arith.mulf %504, %503 : vector<8x32xbf16>
    %506 = math.tanh %505 : vector<8x32xbf16>
    %cst_181 = arith.constant 5.000000e-01 : bf16
    %507 = vector.broadcast %cst_181 : bf16 to vector<8x32xbf16>
    %508 = arith.mulf %507, %506 : vector<8x32xbf16>
    %cst_182 = arith.constant 5.000000e-01 : bf16
    %509 = vector.broadcast %cst_182 : bf16 to vector<8x32xbf16>
    %510 = arith.addf %508, %509 : vector<8x32xbf16>
    %511 = vector.extract_strided_slice %502 {offsets = [0, 32], sizes = [8, 32], strides = [1, 1]} : vector<8x128xbf16> to vector<8x32xbf16>
    %cst_183 = arith.constant 5.000000e-01 : bf16
    %512 = vector.broadcast %cst_183 : bf16 to vector<8x32xbf16>
    %513 = arith.mulf %512, %511 : vector<8x32xbf16>
    %514 = math.tanh %513 : vector<8x32xbf16>
    %cst_184 = arith.constant 5.000000e-01 : bf16
    %515 = vector.broadcast %cst_184 : bf16 to vector<8x32xbf16>
    %516 = arith.mulf %515, %514 : vector<8x32xbf16>
    %cst_185 = arith.constant 5.000000e-01 : bf16
    %517 = vector.broadcast %cst_185 : bf16 to vector<8x32xbf16>
    %518 = arith.addf %516, %517 : vector<8x32xbf16>
    %519 = vector.extract_strided_slice %502 {offsets = [0, 64], sizes = [8, 32], strides = [1, 1]} : vector<8x128xbf16> to vector<8x32xbf16>
    %520 = math.tanh %519 : vector<8x32xbf16>
    %521 = vector.extract_strided_slice %502 {offsets = [0, 96], sizes = [8, 32], strides = [1, 1]} : vector<8x128xbf16> to vector<8x32xbf16>
    %cst_186 = arith.constant 5.000000e-01 : bf16
    %522 = vector.broadcast %cst_186 : bf16 to vector<8x32xbf16>
    %523 = arith.mulf %522, %521 : vector<8x32xbf16>
    %524 = math.tanh %523 : vector<8x32xbf16>
    %cst_187 = arith.constant 5.000000e-01 : bf16
    %525 = vector.broadcast %cst_187 : bf16 to vector<8x32xbf16>
    %526 = arith.mulf %525, %524 : vector<8x32xbf16>
    %cst_188 = arith.constant 5.000000e-01 : bf16
    %527 = vector.broadcast %cst_188 : bf16 to vector<8x32xbf16>
    %528 = arith.addf %526, %527 : vector<8x32xbf16>
    %529 = arith.extf %518 : vector<8x32xbf16> to vector<8x32xf32>
    %530 = arith.mulf %529, %438 : vector<8x32xf32>
    %531 = arith.mulf %510, %520 : vector<8x32xbf16>
    %532 = arith.extf %531 : vector<8x32xbf16> to vector<8x32xf32>
    %533 = arith.addf %530, %532 : vector<8x32xf32>
    %534 = math.tanh %533 : vector<8x32xf32>
    %535 = arith.extf %528 : vector<8x32xbf16> to vector<8x32xf32>
    %536 = arith.mulf %535, %534 : vector<8x32xf32>
    %537 = arith.truncf %501 : vector<8x32xf32> to vector<8x32xbf16>
    %538 = arith.index_cast %c4_i32 : i32 to index
    %c0_189 = arith.constant 0 : index
    %c0_190 = arith.constant 0 : index
    %539 = vector.load %arg16[%538, %c0_189, %c0_190] : memref<8x8x32xbf16, #tpu.memory_space<vmem>>, vector<1x8x32xbf16>
    %540 = vector.shape_cast %539 : vector<1x8x32xbf16> to vector<8x32xbf16>
    %541 = vector.shape_cast %537 : vector<8x32xbf16> to vector<1x8x32xbf16>
    tpu.vector_store %arg16[%538, %c0_189, %c0_190], %541 {strides = array<i32>} : memref<8x8x32xbf16, #tpu.memory_space<vmem>>, vector<1x8x32xbf16>,
    %542 = arith.truncf %536 : vector<8x32xf32> to vector<8x32xbf16>
    %543 = arith.index_cast %459 : i32 to index
    %c0_191 = arith.constant 0 : index
    %c0_192 = arith.constant 0 : index
    %544 = vector.load %arg17[%543, %c0_191, %c0_192] : memref<8x8x32xbf16, #tpu.memory_space<vmem>>, vector<1x8x32xbf16>
    %545 = vector.shape_cast %544 : vector<1x8x32xbf16> to vector<8x32xbf16>
    %546 = vector.shape_cast %542 : vector<8x32xbf16> to vector<1x8x32xbf16>
    tpu.vector_store %arg17[%543, %c0_191, %c0_192], %546 {strides = array<i32>} : memref<8x8x32xbf16, #tpu.memory_space<vmem>>, vector<1x8x32xbf16>,
    %c5_i32 = arith.constant 5 : i32
    %547 = arith.index_cast %c5_i32 : i32 to index
    %c0_193 = arith.constant 0 : index
    %c0_194 = arith.constant 0 : index
    %548 = vector.load %arg14[%547, %c0_193, %c0_194] : memref<8x8x128xbf16, #tpu.memory_space<vmem>>, vector<1x8x128xbf16>
    %549 = vector.shape_cast %548 : vector<1x8x128xbf16> to vector<8x128xbf16>
    %550 = arith.extf %549 : vector<8x128xbf16> to vector<8x128xf32>
    %551 = arith.truncf %501 : vector<8x32xf32> to vector<8x32xbf16>
    %cst_195 = arith.constant dense<0.000000e+00> : vector<8x128xf32>
    %552 = tpu.matmul %551, %39, %cst_195 {dimension_numbers = #tpu.dot_dimension_numbers<[1], [0], [0], [1], [0, 0, 1, 1], [], []>} : vector<8x32xbf16>, vector<32x128xbf16>, vector<8x128xf32> -> vector<8x128xf32>
    %553 = arith.addf %550, %552 : vector<8x128xf32>
    %c7_i32_196 = arith.constant 7 : i32
    %554 = arith.subi %c7_i32_196, %c5_i32 : i32
    %555 = arith.index_cast %554 : i32 to index
    %c0_197 = arith.constant 0 : index
    %c0_198 = arith.constant 0 : index
    %556 = vector.load %arg15[%555, %c0_197, %c0_198] : memref<8x8x128xbf16, #tpu.memory_space<vmem>>, vector<1x8x128xbf16>
    %557 = vector.shape_cast %556 : vector<1x8x128xbf16> to vector<8x128xbf16>
    %558 = arith.extf %557 : vector<8x128xbf16> to vector<8x128xf32>
    %559 = arith.truncf %536 : vector<8x32xf32> to vector<8x32xbf16>
    %cst_199 = arith.constant dense<0.000000e+00> : vector<8x128xf32>
    %560 = tpu.matmul %559, %40, %cst_199 {dimension_numbers = #tpu.dot_dimension_numbers<[1], [0], [0], [1], [0, 0, 1, 1], [], []>} : vector<8x32xbf16>, vector<32x128xbf16>, vector<8x128xf32> -> vector<8x128xf32>
    %561 = arith.addf %558, %560 : vector<8x128xf32>
    %562 = arith.truncf %553 : vector<8x128xf32> to vector<8x128xbf16>
    %563 = vector.extract_strided_slice %562 {offsets = [0, 0], sizes = [8, 32], strides = [1, 1]} : vector<8x128xbf16> to vector<8x32xbf16>
    %cst_200 = arith.constant 5.000000e-01 : bf16
    %564 = vector.broadcast %cst_200 : bf16 to vector<8x32xbf16>
    %565 = arith.mulf %564, %563 : vector<8x32xbf16>
    %566 = math.tanh %565 : vector<8x32xbf16>
    %cst_201 = arith.constant 5.000000e-01 : bf16
    %567 = vector.broadcast %cst_201 : bf16 to vector<8x32xbf16>
    %568 = arith.mulf %567, %566 : vector<8x32xbf16>
    %cst_202 = arith.constant 5.000000e-01 : bf16
    %569 = vector.broadcast %cst_202 : bf16 to vector<8x32xbf16>
    %570 = arith.addf %568, %569 : vector<8x32xbf16>
    %571 = vector.extract_strided_slice %562 {offsets = [0, 32], sizes = [8, 32], strides = [1, 1]} : vector<8x128xbf16> to vector<8x32xbf16>
    %cst_203 = arith.constant 5.000000e-01 : bf16
    %572 = vector.broadcast %cst_203 : bf16 to vector<8x32xbf16>
    %573 = arith.mulf %572, %571 : vector<8x32xbf16>
    %574 = math.tanh %573 : vector<8x32xbf16>
    %cst_204 = arith.constant 5.000000e-01 : bf16
    %575 = vector.broadcast %cst_204 : bf16 to vector<8x32xbf16>
    %576 = arith.mulf %575, %574 : vector<8x32xbf16>
    %cst_205 = arith.constant 5.000000e-01 : bf16
    %577 = vector.broadcast %cst_205 : bf16 to vector<8x32xbf16>
    %578 = arith.addf %576, %577 : vector<8x32xbf16>
    %579 = vector.extract_strided_slice %562 {offsets = [0, 64], sizes = [8, 32], strides = [1, 1]} : vector<8x128xbf16> to vector<8x32xbf16>
    %580 = math.tanh %579 : vector<8x32xbf16>
    %581 = vector.extract_strided_slice %562 {offsets = [0, 96], sizes = [8, 32], strides = [1, 1]} : vector<8x128xbf16> to vector<8x32xbf16>
    %cst_206 = arith.constant 5.000000e-01 : bf16
    %582 = vector.broadcast %cst_206 : bf16 to vector<8x32xbf16>
    %583 = arith.mulf %582, %581 : vector<8x32xbf16>
    %584 = math.tanh %583 : vector<8x32xbf16>
    %cst_207 = arith.constant 5.000000e-01 : bf16
    %585 = vector.broadcast %cst_207 : bf16 to vector<8x32xbf16>
    %586 = arith.mulf %585, %584 : vector<8x32xbf16>
    %cst_208 = arith.constant 5.000000e-01 : bf16
    %587 = vector.broadcast %cst_208 : bf16 to vector<8x32xbf16>
    %588 = arith.addf %586, %587 : vector<8x32xbf16>
    %589 = arith.extf %578 : vector<8x32xbf16> to vector<8x32xf32>
    %590 = arith.mulf %589, %498 : vector<8x32xf32>
    %591 = arith.mulf %570, %580 : vector<8x32xbf16>
    %592 = arith.extf %591 : vector<8x32xbf16> to vector<8x32xf32>
    %593 = arith.addf %590, %592 : vector<8x32xf32>
    %594 = math.tanh %593 : vector<8x32xf32>
    %595 = arith.extf %588 : vector<8x32xbf16> to vector<8x32xf32>
    %596 = arith.mulf %595, %594 : vector<8x32xf32>
    %597 = arith.truncf %561 : vector<8x128xf32> to vector<8x128xbf16>
    %598 = vector.extract_strided_slice %597 {offsets = [0, 0], sizes = [8, 32], strides = [1, 1]} : vector<8x128xbf16> to vector<8x32xbf16>
    %cst_209 = arith.constant 5.000000e-01 : bf16
    %599 = vector.broadcast %cst_209 : bf16 to vector<8x32xbf16>
    %600 = arith.mulf %599, %598 : vector<8x32xbf16>
    %601 = math.tanh %600 : vector<8x32xbf16>
    %cst_210 = arith.constant 5.000000e-01 : bf16
    %602 = vector.broadcast %cst_210 : bf16 to vector<8x32xbf16>
    %603 = arith.mulf %602, %601 : vector<8x32xbf16>
    %cst_211 = arith.constant 5.000000e-01 : bf16
    %604 = vector.broadcast %cst_211 : bf16 to vector<8x32xbf16>
    %605 = arith.addf %603, %604 : vector<8x32xbf16>
    %606 = vector.extract_strided_slice %597 {offsets = [0, 32], sizes = [8, 32], strides = [1, 1]} : vector<8x128xbf16> to vector<8x32xbf16>
    %cst_212 = arith.constant 5.000000e-01 : bf16
    %607 = vector.broadcast %cst_212 : bf16 to vector<8x32xbf16>
    %608 = arith.mulf %607, %606 : vector<8x32xbf16>
    %609 = math.tanh %608 : vector<8x32xbf16>
    %cst_213 = arith.constant 5.000000e-01 : bf16
    %610 = vector.broadcast %cst_213 : bf16 to vector<8x32xbf16>
    %611 = arith.mulf %610, %609 : vector<8x32xbf16>
    %cst_214 = arith.constant 5.000000e-01 : bf16
    %612 = vector.broadcast %cst_214 : bf16 to vector<8x32xbf16>
    %613 = arith.addf %611, %612 : vector<8x32xbf16>
    %614 = vector.extract_strided_slice %597 {offsets = [0, 64], sizes = [8, 32], strides = [1, 1]} : vector<8x128xbf16> to vector<8x32xbf16>
    %615 = math.tanh %614 : vector<8x32xbf16>
    %616 = vector.extract_strided_slice %597 {offsets = [0, 96], sizes = [8, 32], strides = [1, 1]} : vector<8x128xbf16> to vector<8x32xbf16>
    %cst_215 = arith.constant 5.000000e-01 : bf16
    %617 = vector.broadcast %cst_215 : bf16 to vector<8x32xbf16>
    %618 = arith.mulf %617, %616 : vector<8x32xbf16>
    %619 = math.tanh %618 : vector<8x32xbf16>
    %cst_216 = arith.constant 5.000000e-01 : bf16
    %620 = vector.broadcast %cst_216 : bf16 to vector<8x32xbf16>
    %621 = arith.mulf %620, %619 : vector<8x32xbf16>
    %cst_217 = arith.constant 5.000000e-01 : bf16
    %622 = vector.broadcast %cst_217 : bf16 to vector<8x32xbf16>
    %623 = arith.addf %621, %622 : vector<8x32xbf16>
    %624 = arith.extf %613 : vector<8x32xbf16> to vector<8x32xf32>
    %625 = arith.mulf %624, %533 : vector<8x32xf32>
    %626 = arith.mulf %605, %615 : vector<8x32xbf16>
    %627 = arith.extf %626 : vector<8x32xbf16> to vector<8x32xf32>
    %628 = arith.addf %625, %627 : vector<8x32xf32>
    %629 = math.tanh %628 : vector<8x32xf32>
    %630 = arith.extf %623 : vector<8x32xbf16> to vector<8x32xf32>
    %631 = arith.mulf %630, %629 : vector<8x32xf32>
    %632 = arith.truncf %596 : vector<8x32xf32> to vector<8x32xbf16>
    %633 = arith.index_cast %c5_i32 : i32 to index
    %c0_218 = arith.constant 0 : index
    %c0_219 = arith.constant 0 : index
    %634 = vector.load %arg16[%633, %c0_218, %c0_219] : memref<8x8x32xbf16, #tpu.memory_space<vmem>>, vector<1x8x32xbf16>
    %635 = vector.shape_cast %634 : vector<1x8x32xbf16> to vector<8x32xbf16>
    %636 = vector.shape_cast %632 : vector<8x32xbf16> to vector<1x8x32xbf16>
    tpu.vector_store %arg16[%633, %c0_218, %c0_219], %636 {strides = array<i32>} : memref<8x8x32xbf16, #tpu.memory_space<vmem>>, vector<1x8x32xbf16>,
    %637 = arith.truncf %631 : vector<8x32xf32> to vector<8x32xbf16>
    %638 = arith.index_cast %554 : i32 to index
    %c0_220 = arith.constant 0 : index
    %c0_221 = arith.constant 0 : index
    %639 = vector.load %arg17[%638, %c0_220, %c0_221] : memref<8x8x32xbf16, #tpu.memory_space<vmem>>, vector<1x8x32xbf16>
    %640 = vector.shape_cast %639 : vector<1x8x32xbf16> to vector<8x32xbf16>
    %641 = vector.shape_cast %637 : vector<8x32xbf16> to vector<1x8x32xbf16>
    tpu.vector_store %arg17[%638, %c0_220, %c0_221], %641 {strides = array<i32>} : memref<8x8x32xbf16, #tpu.memory_space<vmem>>, vector<1x8x32xbf16>,
    %c6_i32 = arith.constant 6 : i32
    %642 = arith.index_cast %c6_i32 : i32 to index
    %c0_222 = arith.constant 0 : index
    %c0_223 = arith.constant 0 : index
    %643 = vector.load %arg14[%642, %c0_222, %c0_223] : memref<8x8x128xbf16, #tpu.memory_space<vmem>>, vector<1x8x128xbf16>
    %644 = vector.shape_cast %643 : vector<1x8x128xbf16> to vector<8x128xbf16>
    %645 = arith.extf %644 : vector<8x128xbf16> to vector<8x128xf32>
    %646 = arith.truncf %596 : vector<8x32xf32> to vector<8x32xbf16>
    %cst_224 = arith.constant dense<0.000000e+00> : vector<8x128xf32>
    %647 = tpu.matmul %646, %39, %cst_224 {dimension_numbers = #tpu.dot_dimension_numbers<[1], [0], [0], [1], [0, 0, 1, 1], [], []>} : vector<8x32xbf16>, vector<32x128xbf16>, vector<8x128xf32> -> vector<8x128xf32>
    %648 = arith.addf %645, %647 : vector<8x128xf32>
    %c7_i32_225 = arith.constant 7 : i32
    %649 = arith.subi %c7_i32_225, %c6_i32 : i32
    %650 = arith.index_cast %649 : i32 to index
    %c0_226 = arith.constant 0 : index
    %c0_227 = arith.constant 0 : index
    %651 = vector.load %arg15[%650, %c0_226, %c0_227] : memref<8x8x128xbf16, #tpu.memory_space<vmem>>, vector<1x8x128xbf16>
    %652 = vector.shape_cast %651 : vector<1x8x128xbf16> to vector<8x128xbf16>
    %653 = arith.extf %652 : vector<8x128xbf16> to vector<8x128xf32>
    %654 = arith.truncf %631 : vector<8x32xf32> to vector<8x32xbf16>
    %cst_228 = arith.constant dense<0.000000e+00> : vector<8x128xf32>
    %655 = tpu.matmul %654, %40, %cst_228 {dimension_numbers = #tpu.dot_dimension_numbers<[1], [0], [0], [1], [0, 0, 1, 1], [], []>} : vector<8x32xbf16>, vector<32x128xbf16>, vector<8x128xf32> -> vector<8x128xf32>
    %656 = arith.addf %653, %655 : vector<8x128xf32>
    %657 = arith.truncf %648 : vector<8x128xf32> to vector<8x128xbf16>
    %658 = vector.extract_strided_slice %657 {offsets = [0, 0], sizes = [8, 32], strides = [1, 1]} : vector<8x128xbf16> to vector<8x32xbf16>
    %cst_229 = arith.constant 5.000000e-01 : bf16
    %659 = vector.broadcast %cst_229 : bf16 to vector<8x32xbf16>
    %660 = arith.mulf %659, %658 : vector<8x32xbf16>
    %661 = math.tanh %660 : vector<8x32xbf16>
    %cst_230 = arith.constant 5.000000e-01 : bf16
    %662 = vector.broadcast %cst_230 : bf16 to vector<8x32xbf16>
    %663 = arith.mulf %662, %661 : vector<8x32xbf16>
    %cst_231 = arith.constant 5.000000e-01 : bf16
    %664 = vector.broadcast %cst_231 : bf16 to vector<8x32xbf16>
    %665 = arith.addf %663, %664 : vector<8x32xbf16>
    %666 = vector.extract_strided_slice %657 {offsets = [0, 32], sizes = [8, 32], strides = [1, 1]} : vector<8x128xbf16> to vector<8x32xbf16>
    %cst_232 = arith.constant 5.000000e-01 : bf16
    %667 = vector.broadcast %cst_232 : bf16 to vector<8x32xbf16>
    %668 = arith.mulf %667, %666 : vector<8x32xbf16>
    %669 = math.tanh %668 : vector<8x32xbf16>
    %cst_233 = arith.constant 5.000000e-01 : bf16
    %670 = vector.broadcast %cst_233 : bf16 to vector<8x32xbf16>
    %671 = arith.mulf %670, %669 : vector<8x32xbf16>
    %cst_234 = arith.constant 5.000000e-01 : bf16
    %672 = vector.broadcast %cst_234 : bf16 to vector<8x32xbf16>
    %673 = arith.addf %671, %672 : vector<8x32xbf16>
    %674 = vector.extract_strided_slice %657 {offsets = [0, 64], sizes = [8, 32], strides = [1, 1]} : vector<8x128xbf16> to vector<8x32xbf16>
    %675 = math.tanh %674 : vector<8x32xbf16>
    %676 = vector.extract_strided_slice %657 {offsets = [0, 96], sizes = [8, 32], strides = [1, 1]} : vector<8x128xbf16> to vector<8x32xbf16>
    %cst_235 = arith.constant 5.000000e-01 : bf16
    %677 = vector.broadcast %cst_235 : bf16 to vector<8x32xbf16>
    %678 = arith.mulf %677, %676 : vector<8x32xbf16>
    %679 = math.tanh %678 : vector<8x32xbf16>
    %cst_236 = arith.constant 5.000000e-01 : bf16
    %680 = vector.broadcast %cst_236 : bf16 to vector<8x32xbf16>
    %681 = arith.mulf %680, %679 : vector<8x32xbf16>
    %cst_237 = arith.constant 5.000000e-01 : bf16
    %682 = vector.broadcast %cst_237 : bf16 to vector<8x32xbf16>
    %683 = arith.addf %681, %682 : vector<8x32xbf16>
    %684 = arith.extf %673 : vector<8x32xbf16> to vector<8x32xf32>
    %685 = arith.mulf %684, %593 : vector<8x32xf32>
    %686 = arith.mulf %665, %675 : vector<8x32xbf16>
    %687 = arith.extf %686 : vector<8x32xbf16> to vector<8x32xf32>
    %688 = arith.addf %685, %687 : vector<8x32xf32>
    %689 = math.tanh %688 : vector<8x32xf32>
    %690 = arith.extf %683 : vector<8x32xbf16> to vector<8x32xf32>
    %691 = arith.mulf %690, %689 : vector<8x32xf32>
    %692 = arith.truncf %656 : vector<8x128xf32> to vector<8x128xbf16>
    %693 = vector.extract_strided_slice %692 {offsets = [0, 0], sizes = [8, 32], strides = [1, 1]} : vector<8x128xbf16> to vector<8x32xbf16>
    %cst_238 = arith.constant 5.000000e-01 : bf16
    %694 = vector.broadcast %cst_238 : bf16 to vector<8x32xbf16>
    %695 = arith.mulf %694, %693 : vector<8x32xbf16>
    %696 = math.tanh %695 : vector<8x32xbf16>
    %cst_239 = arith.constant 5.000000e-01 : bf16
    %697 = vector.broadcast %cst_239 : bf16 to vector<8x32xbf16>
    %698 = arith.mulf %697, %696 : vector<8x32xbf16>
    %cst_240 = arith.constant 5.000000e-01 : bf16
    %699 = vector.broadcast %cst_240 : bf16 to vector<8x32xbf16>
    %700 = arith.addf %698, %699 : vector<8x32xbf16>
    %701 = vector.extract_strided_slice %692 {offsets = [0, 32], sizes = [8, 32], strides = [1, 1]} : vector<8x128xbf16> to vector<8x32xbf16>
    %cst_241 = arith.constant 5.000000e-01 : bf16
    %702 = vector.broadcast %cst_241 : bf16 to vector<8x32xbf16>
    %703 = arith.mulf %702, %701 : vector<8x32xbf16>
    %704 = math.tanh %703 : vector<8x32xbf16>
    %cst_242 = arith.constant 5.000000e-01 : bf16
    %705 = vector.broadcast %cst_242 : bf16 to vector<8x32xbf16>
    %706 = arith.mulf %705, %704 : vector<8x32xbf16>
    %cst_243 = arith.constant 5.000000e-01 : bf16
    %707 = vector.broadcast %cst_243 : bf16 to vector<8x32xbf16>
    %708 = arith.addf %706, %707 : vector<8x32xbf16>
    %709 = vector.extract_strided_slice %692 {offsets = [0, 64], sizes = [8, 32], strides = [1, 1]} : vector<8x128xbf16> to vector<8x32xbf16>
    %710 = math.tanh %709 : vector<8x32xbf16>
    %711 = vector.extract_strided_slice %692 {offsets = [0, 96], sizes = [8, 32], strides = [1, 1]} : vector<8x128xbf16> to vector<8x32xbf16>
    %cst_244 = arith.constant 5.000000e-01 : bf16
    %712 = vector.broadcast %cst_244 : bf16 to vector<8x32xbf16>
    %713 = arith.mulf %712, %711 : vector<8x32xbf16>
    %714 = math.tanh %713 : vector<8x32xbf16>
    %cst_245 = arith.constant 5.000000e-01 : bf16
    %715 = vector.broadcast %cst_245 : bf16 to vector<8x32xbf16>
    %716 = arith.mulf %715, %714 : vector<8x32xbf16>
    %cst_246 = arith.constant 5.000000e-01 : bf16
    %717 = vector.broadcast %cst_246 : bf16 to vector<8x32xbf16>
    %718 = arith.addf %716, %717 : vector<8x32xbf16>
    %719 = arith.extf %708 : vector<8x32xbf16> to vector<8x32xf32>
    %720 = arith.mulf %719, %628 : vector<8x32xf32>
    %721 = arith.mulf %700, %710 : vector<8x32xbf16>
    %722 = arith.extf %721 : vector<8x32xbf16> to vector<8x32xf32>
    %723 = arith.addf %720, %722 : vector<8x32xf32>
    %724 = math.tanh %723 : vector<8x32xf32>
    %725 = arith.extf %718 : vector<8x32xbf16> to vector<8x32xf32>
    %726 = arith.mulf %725, %724 : vector<8x32xf32>
    %727 = arith.truncf %691 : vector<8x32xf32> to vector<8x32xbf16>
    %728 = arith.index_cast %c6_i32 : i32 to index
    %c0_247 = arith.constant 0 : index
    %c0_248 = arith.constant 0 : index
    %729 = vector.load %arg16[%728, %c0_247, %c0_248] : memref<8x8x32xbf16, #tpu.memory_space<vmem>>, vector<1x8x32xbf16>
    %730 = vector.shape_cast %729 : vector<1x8x32xbf16> to vector<8x32xbf16>
    %731 = vector.shape_cast %727 : vector<8x32xbf16> to vector<1x8x32xbf16>
    tpu.vector_store %arg16[%728, %c0_247, %c0_248], %731 {strides = array<i32>} : memref<8x8x32xbf16, #tpu.memory_space<vmem>>, vector<1x8x32xbf16>,
    %732 = arith.truncf %726 : vector<8x32xf32> to vector<8x32xbf16>
    %733 = arith.index_cast %649 : i32 to index
    %c0_249 = arith.constant 0 : index
    %c0_250 = arith.constant 0 : index
    %734 = vector.load %arg17[%733, %c0_249, %c0_250] : memref<8x8x32xbf16, #tpu.memory_space<vmem>>, vector<1x8x32xbf16>
    %735 = vector.shape_cast %734 : vector<1x8x32xbf16> to vector<8x32xbf16>
    %736 = vector.shape_cast %732 : vector<8x32xbf16> to vector<1x8x32xbf16>
    tpu.vector_store %arg17[%733, %c0_249, %c0_250], %736 {strides = array<i32>} : memref<8x8x32xbf16, #tpu.memory_space<vmem>>, vector<1x8x32xbf16>,
    %c7_i32_251 = arith.constant 7 : i32
    %737 = arith.index_cast %c7_i32_251 : i32 to index
    %c0_252 = arith.constant 0 : index
    %c0_253 = arith.constant 0 : index
    %738 = vector.load %arg14[%737, %c0_252, %c0_253] : memref<8x8x128xbf16, #tpu.memory_space<vmem>>, vector<1x8x128xbf16>
    %739 = vector.shape_cast %738 : vector<1x8x128xbf16> to vector<8x128xbf16>
    %740 = arith.extf %739 : vector<8x128xbf16> to vector<8x128xf32>
    %741 = arith.truncf %691 : vector<8x32xf32> to vector<8x32xbf16>
    %cst_254 = arith.constant dense<0.000000e+00> : vector<8x128xf32>
    %742 = tpu.matmul %741, %39, %cst_254 {dimension_numbers = #tpu.dot_dimension_numbers<[1], [0], [0], [1], [0, 0, 1, 1], [], []>} : vector<8x32xbf16>, vector<32x128xbf16>, vector<8x128xf32> -> vector<8x128xf32>
    %743 = arith.addf %740, %742 : vector<8x128xf32>
    %c7_i32_255 = arith.constant 7 : i32
    %744 = arith.subi %c7_i32_255, %c7_i32_251 : i32
    %745 = arith.index_cast %744 : i32 to index
    %c0_256 = arith.constant 0 : index
    %c0_257 = arith.constant 0 : index
    %746 = vector.load %arg15[%745, %c0_256, %c0_257] : memref<8x8x128xbf16, #tpu.memory_space<vmem>>, vector<1x8x128xbf16>
    %747 = vector.shape_cast %746 : vector<1x8x128xbf16> to vector<8x128xbf16>
    %748 = arith.extf %747 : vector<8x128xbf16> to vector<8x128xf32>
    %749 = arith.truncf %726 : vector<8x32xf32> to vector<8x32xbf16>
    %cst_258 = arith.constant dense<0.000000e+00> : vector<8x128xf32>
    %750 = tpu.matmul %749, %40, %cst_258 {dimension_numbers = #tpu.dot_dimension_numbers<[1], [0], [0], [1], [0, 0, 1, 1], [], []>} : vector<8x32xbf16>, vector<32x128xbf16>, vector<8x128xf32> -> vector<8x128xf32>
    %751 = arith.addf %748, %750 : vector<8x128xf32>
    %752 = arith.truncf %743 : vector<8x128xf32> to vector<8x128xbf16>
    %753 = vector.extract_strided_slice %752 {offsets = [0, 0], sizes = [8, 32], strides = [1, 1]} : vector<8x128xbf16> to vector<8x32xbf16>
    %cst_259 = arith.constant 5.000000e-01 : bf16
    %754 = vector.broadcast %cst_259 : bf16 to vector<8x32xbf16>
    %755 = arith.mulf %754, %753 : vector<8x32xbf16>
    %756 = math.tanh %755 : vector<8x32xbf16>
    %cst_260 = arith.constant 5.000000e-01 : bf16
    %757 = vector.broadcast %cst_260 : bf16 to vector<8x32xbf16>
    %758 = arith.mulf %757, %756 : vector<8x32xbf16>
    %cst_261 = arith.constant 5.000000e-01 : bf16
    %759 = vector.broadcast %cst_261 : bf16 to vector<8x32xbf16>
    %760 = arith.addf %758, %759 : vector<8x32xbf16>
    %761 = vector.extract_strided_slice %752 {offsets = [0, 32], sizes = [8, 32], strides = [1, 1]} : vector<8x128xbf16> to vector<8x32xbf16>
    %cst_262 = arith.constant 5.000000e-01 : bf16
    %762 = vector.broadcast %cst_262 : bf16 to vector<8x32xbf16>
    %763 = arith.mulf %762, %761 : vector<8x32xbf16>
    %764 = math.tanh %763 : vector<8x32xbf16>
    %cst_263 = arith.constant 5.000000e-01 : bf16
    %765 = vector.broadcast %cst_263 : bf16 to vector<8x32xbf16>
    %766 = arith.mulf %765, %764 : vector<8x32xbf16>
    %cst_264 = arith.constant 5.000000e-01 : bf16
    %767 = vector.broadcast %cst_264 : bf16 to vector<8x32xbf16>
    %768 = arith.addf %766, %767 : vector<8x32xbf16>
    %769 = vector.extract_strided_slice %752 {offsets = [0, 64], sizes = [8, 32], strides = [1, 1]} : vector<8x128xbf16> to vector<8x32xbf16>
    %770 = math.tanh %769 : vector<8x32xbf16>
    %771 = vector.extract_strided_slice %752 {offsets = [0, 96], sizes = [8, 32], strides = [1, 1]} : vector<8x128xbf16> to vector<8x32xbf16>
    %cst_265 = arith.constant 5.000000e-01 : bf16
    %772 = vector.broadcast %cst_265 : bf16 to vector<8x32xbf16>
    %773 = arith.mulf %772, %771 : vector<8x32xbf16>
    %774 = math.tanh %773 : vector<8x32xbf16>
    %cst_266 = arith.constant 5.000000e-01 : bf16
    %775 = vector.broadcast %cst_266 : bf16 to vector<8x32xbf16>
    %776 = arith.mulf %775, %774 : vector<8x32xbf16>
    %cst_267 = arith.constant 5.000000e-01 : bf16
    %777 = vector.broadcast %cst_267 : bf16 to vector<8x32xbf16>
    %778 = arith.addf %776, %777 : vector<8x32xbf16>
    %779 = arith.extf %768 : vector<8x32xbf16> to vector<8x32xf32>
    %780 = arith.mulf %779, %688 : vector<8x32xf32>
    %781 = arith.mulf %760, %770 : vector<8x32xbf16>
    %782 = arith.extf %781 : vector<8x32xbf16> to vector<8x32xf32>
    %783 = arith.addf %780, %782 : vector<8x32xf32>
    %784 = math.tanh %783 : vector<8x32xf32>
    %785 = arith.extf %778 : vector<8x32xbf16> to vector<8x32xf32>
    %786 = arith.mulf %785, %784 : vector<8x32xf32>
    %787 = arith.truncf %751 : vector<8x128xf32> to vector<8x128xbf16>
    %788 = vector.extract_strided_slice %787 {offsets = [0, 0], sizes = [8, 32], strides = [1, 1]} : vector<8x128xbf16> to vector<8x32xbf16>
    %cst_268 = arith.constant 5.000000e-01 : bf16
    %789 = vector.broadcast %cst_268 : bf16 to vector<8x32xbf16>
    %790 = arith.mulf %789, %788 : vector<8x32xbf16>
    %791 = math.tanh %790 : vector<8x32xbf16>
    %cst_269 = arith.constant 5.000000e-01 : bf16
    %792 = vector.broadcast %cst_269 : bf16 to vector<8x32xbf16>
    %793 = arith.mulf %792, %791 : vector<8x32xbf16>
    %cst_270 = arith.constant 5.000000e-01 : bf16
    %794 = vector.broadcast %cst_270 : bf16 to vector<8x32xbf16>
    %795 = arith.addf %793, %794 : vector<8x32xbf16>
    %796 = vector.extract_strided_slice %787 {offsets = [0, 32], sizes = [8, 32], strides = [1, 1]} : vector<8x128xbf16> to vector<8x32xbf16>
    %cst_271 = arith.constant 5.000000e-01 : bf16
    %797 = vector.broadcast %cst_271 : bf16 to vector<8x32xbf16>
    %798 = arith.mulf %797, %796 : vector<8x32xbf16>
    %799 = math.tanh %798 : vector<8x32xbf16>
    %cst_272 = arith.constant 5.000000e-01 : bf16
    %800 = vector.broadcast %cst_272 : bf16 to vector<8x32xbf16>
    %801 = arith.mulf %800, %799 : vector<8x32xbf16>
    %cst_273 = arith.constant 5.000000e-01 : bf16
    %802 = vector.broadcast %cst_273 : bf16 to vector<8x32xbf16>
    %803 = arith.addf %801, %802 : vector<8x32xbf16>
    %804 = vector.extract_strided_slice %787 {offsets = [0, 64], sizes = [8, 32], strides = [1, 1]} : vector<8x128xbf16> to vector<8x32xbf16>
    %805 = math.tanh %804 : vector<8x32xbf16>
    %806 = vector.extract_strided_slice %787 {offsets = [0, 96], sizes = [8, 32], strides = [1, 1]} : vector<8x128xbf16> to vector<8x32xbf16>
    %cst_274 = arith.constant 5.000000e-01 : bf16
    %807 = vector.broadcast %cst_274 : bf16 to vector<8x32xbf16>
    %808 = arith.mulf %807, %806 : vector<8x32xbf16>
    %809 = math.tanh %808 : vector<8x32xbf16>
    %cst_275 = arith.constant 5.000000e-01 : bf16
    %810 = vector.broadcast %cst_275 : bf16 to vector<8x32xbf16>
    %811 = arith.mulf %810, %809 : vector<8x32xbf16>
    %cst_276 = arith.constant 5.000000e-01 : bf16
    %812 = vector.broadcast %cst_276 : bf16 to vector<8x32xbf16>
    %813 = arith.addf %811, %812 : vector<8x32xbf16>
    %814 = arith.extf %803 : vector<8x32xbf16> to vector<8x32xf32>
    %815 = arith.mulf %814, %723 : vector<8x32xf32>
    %816 = arith.mulf %795, %805 : vector<8x32xbf16>
    %817 = arith.extf %816 : vector<8x32xbf16> to vector<8x32xf32>
    %818 = arith.addf %815, %817 : vector<8x32xf32>
    %819 = math.tanh %818 : vector<8x32xf32>
    %820 = arith.extf %813 : vector<8x32xbf16> to vector<8x32xf32>
    %821 = arith.mulf %820, %819 : vector<8x32xf32>
    %822 = arith.truncf %786 : vector<8x32xf32> to vector<8x32xbf16>
    %823 = arith.index_cast %c7_i32_251 : i32 to index
    %c0_277 = arith.constant 0 : index
    %c0_278 = arith.constant 0 : index
    %824 = vector.load %arg16[%823, %c0_277, %c0_278] : memref<8x8x32xbf16, #tpu.memory_space<vmem>>, vector<1x8x32xbf16>
    %825 = vector.shape_cast %824 : vector<1x8x32xbf16> to vector<8x32xbf16>
    %826 = vector.shape_cast %822 : vector<8x32xbf16> to vector<1x8x32xbf16>
    tpu.vector_store %arg16[%823, %c0_277, %c0_278], %826 {strides = array<i32>} : memref<8x8x32xbf16, #tpu.memory_space<vmem>>, vector<1x8x32xbf16>,
    %827 = arith.truncf %821 : vector<8x32xf32> to vector<8x32xbf16>
    %828 = arith.index_cast %744 : i32 to index
    %c0_279 = arith.constant 0 : index
    %c0_280 = arith.constant 0 : index
    %829 = vector.load %arg17[%828, %c0_279, %c0_280] : memref<8x8x32xbf16, #tpu.memory_space<vmem>>, vector<1x8x32xbf16>
    %830 = vector.shape_cast %829 : vector<1x8x32xbf16> to vector<8x32xbf16>
    %831 = vector.shape_cast %827 : vector<8x32xbf16> to vector<1x8x32xbf16>
    tpu.vector_store %arg17[%828, %c0_279, %c0_280], %831 {strides = array<i32>} : memref<8x8x32xbf16, #tpu.memory_space<vmem>>, vector<1x8x32xbf16>,
    %c8_i32 = arith.constant 8 : i32
    %c0_281 = arith.constant 0 : index
    %c0_282 = arith.constant 0 : index
    %c0_283 = arith.constant 0 : index
    %832 = vector.load %arg16[%c0_281, %c0_282, %c0_283] : memref<8x8x32xbf16, #tpu.memory_space<vmem>>, vector<8x8x32xbf16>
    %833 = vector.shape_cast %832 : vector<8x8x32xbf16> to vector<64x32xbf16>
    %cst_284 = arith.constant dense<0.000000e+00> : vector<64x16xf32>
    %834 = tpu.matmul %833, %41, %cst_284 {dimension_numbers = #tpu.dot_dimension_numbers<[1], [0], [0], [1], [0, 0, 1, 1], [], []>} : vector<64x32xbf16>, vector<32x16xbf16>, vector<64x16xf32> -> vector<64x16xf32>
    %c0_285 = arith.constant 0 : index
    %c0_286 = arith.constant 0 : index
    %c0_287 = arith.constant 0 : index
    %835 = vector.load %arg13[%c0_285, %c0_286, %c0_287] : memref<8x8x16xf32, #tpu.memory_space<vmem>>, vector<8x8x16xf32>
    %836 = vector.shape_cast %834 : vector<64x16xf32> to vector<8x8x16xf32>
    %837 = arith.addf %835, %836 : vector<8x8x16xf32>
    %c0_288 = arith.constant 0 : index
    %c0_289 = arith.constant 0 : index
    %c0_290 = arith.constant 0 : index
    %838 = vector.load %arg13[%c0_288, %c0_289, %c0_290] : memref<8x8x16xf32, #tpu.memory_space<vmem>>, vector<8x8x16xf32>
    tpu.vector_store %arg13[%c0_288, %c0_289, %c0_290], %837 {strides = array<i32>} : memref<8x8x16xf32, #tpu.memory_space<vmem>>, vector<8x8x16xf32>,
    %c0_291 = arith.constant 0 : index
    %c0_292 = arith.constant 0 : index
    %c0_293 = arith.constant 0 : index
    %839 = vector.load %arg17[%c0_291, %c0_292, %c0_293] : memref<8x8x32xbf16, #tpu.memory_space<vmem>>, vector<8x8x32xbf16>
    %840 = vector.shape_cast %839 : vector<8x8x32xbf16> to vector<64x32xbf16>
    %cst_294 = arith.constant dense<0.000000e+00> : vector<64x16xf32>
    %841 = tpu.matmul %840, %42, %cst_294 {dimension_numbers = #tpu.dot_dimension_numbers<[1], [0], [0], [1], [0, 0, 1, 1], [], []>} : vector<64x32xbf16>, vector<32x16xbf16>, vector<64x16xf32> -> vector<64x16xf32>
    %c0_295 = arith.constant 0 : index
    %c0_296 = arith.constant 0 : index
    %c0_297 = arith.constant 0 : index
    %842 = vector.load %arg13[%c0_295, %c0_296, %c0_297] : memref<8x8x16xf32, #tpu.memory_space<vmem>>, vector<8x8x16xf32>
    %843 = vector.shape_cast %841 : vector<64x16xf32> to vector<8x8x16xf32>
    %844 = arith.addf %842, %843 : vector<8x8x16xf32>
    %c0_298 = arith.constant 0 : index
    %c0_299 = arith.constant 0 : index
    %c0_300 = arith.constant 0 : index
    %845 = vector.load %arg13[%c0_298, %c0_299, %c0_300] : memref<8x8x16xf32, #tpu.memory_space<vmem>>, vector<8x8x16xf32>
    tpu.vector_store %arg13[%c0_298, %c0_299, %c0_300], %844 {strides = array<i32>} : memref<8x8x16xf32, #tpu.memory_space<vmem>>, vector<8x8x16xf32>,
    return
  }
  func.func @transform_0(%arg0: i32) -> (i32, i32, i32) {
    %c0_i32 = arith.constant 0 : i32
    %c0_i32_0 = arith.constant 0 : i32
    %c0_i32_1 = arith.constant 0 : i32
    return %c0_i32, %arg0, %c0_i32_0 : i32, i32, i32
  }
  func.func @transform_1(%arg0: i32) -> (i32, i32) {
    %c0_i32 = arith.constant 0 : i32
    %c0_i32_0 = arith.constant 0 : i32
    %c0_i32_1 = arith.constant 0 : i32
    return %c0_i32, %c0_i32_0 : i32, i32
  }
  func.func @transform_2(%arg0: i32) -> (i32, i32) {
    %c0_i32 = arith.constant 0 : i32
    %c0_i32_0 = arith.constant 0 : i32
    %c0_i32_1 = arith.constant 0 : i32
    return %c0_i32, %c0_i32_0 : i32, i32
  }
  func.func @transform_3(%arg0: i32) -> (i32, i32) {
    %c0_i32 = arith.constant 0 : i32
    %c0_i32_0 = arith.constant 0 : i32
    %c0_i32_1 = arith.constant 0 : i32
    return %c0_i32, %c0_i32_0 : i32, i32
  }
  func.func @transform_4(%arg0: i32) -> (i32, i32) {
    %c0_i32 = arith.constant 0 : i32
    %c0_i32_0 = arith.constant 0 : i32
    %c0_i32_1 = arith.constant 0 : i32
    return %c0_i32, %c0_i32_0 : i32, i32
  }
  func.func @transform_5(%arg0: i32) -> (i32, i32) {
    %c0_i32 = arith.constant 0 : i32
    %c0_i32_0 = arith.constant 0 : i32
    %c0_i32_1 = arith.constant 0 : i32
    return %c0_i32, %c0_i32_0 : i32, i32
  }
  func.func @transform_6(%arg0: i32) -> (i32, i32) {
    %c0_i32 = arith.constant 0 : i32
    %c0_i32_0 = arith.constant 0 : i32
    %c0_i32_1 = arith.constant 0 : i32
    return %c0_i32, %c0_i32_0 : i32, i32
  }
  func.func @transform_7(%arg0: i32) -> (i32, i32) {
    %c0_i32 = arith.constant 0 : i32
    %c0_i32_0 = arith.constant 0 : i32
    %c0_i32_1 = arith.constant 0 : i32
    return %c0_i32, %c0_i32_0 : i32, i32
  }
  func.func @transform_8(%arg0: i32) -> (i32, i32) {
    %c0_i32 = arith.constant 0 : i32
    %c0_i32_0 = arith.constant 0 : i32
    %c0_i32_1 = arith.constant 0 : i32
    return %c0_i32, %c0_i32_0 : i32, i32
  }
  func.func @transform_9(%arg0: i32) -> (i32, i32) {
    %c0_i32 = arith.constant 0 : i32
    %c0_i32_0 = arith.constant 0 : i32
    %c0_i32_1 = arith.constant 0 : i32
    return %c0_i32, %c0_i32_0 : i32, i32
  }
  func.func @transform_10(%arg0: i32) -> (i32, i32) {
    %c0_i32 = arith.constant 0 : i32
    %c0_i32_0 = arith.constant 0 : i32
    %c0_i32_1 = arith.constant 0 : i32
    return %c0_i32, %c0_i32_0 : i32, i32
  }
  func.func @transform_11(%arg0: i32) -> (i32, i32) {
    %c0_i32 = arith.constant 0 : i32
    %c0_i32_0 = arith.constant 0 : i32
    %c0_i32_1 = arith.constant 0 : i32
    return %c0_i32, %c0_i32_0 : i32, i32
  }
  func.func @transform_12(%arg0: i32) -> (i32, i32, i32) {
    %c0_i32 = arith.constant 0 : i32
    %c0_i32_0 = arith.constant 0 : i32
    %c0_i32_1 = arith.constant 0 : i32
    return %c0_i32, %arg0, %c0_i32_0 : i32, i32, i32
  }
}

module attributes {stable_mosaic.version = 11 : i64} {
  func.func @kernel(%arg0: i32, %arg1: memref<8x8x16xf32, #tpu.memory_space<vmem>>, %arg2: memref<1x16xf32, #tpu.memory_space<vmem>>, %arg3: memref<1x16xf32, #tpu.memory_space<vmem>>, %arg4: memref<16x128xbf16, #tpu.memory_space<vmem>>, %arg5: memref<1x128xf32, #tpu.memory_space<vmem>>, %arg6: memref<32x128xbf16, #tpu.memory_space<vmem>>, %arg7: memref<16x128xbf16, #tpu.memory_space<vmem>>, %arg8: memref<1x128xf32, #tpu.memory_space<vmem>>, %arg9: memref<32x128xbf16, #tpu.memory_space<vmem>>, %arg10: memref<32x16xbf16, #tpu.memory_space<vmem>>, %arg11: memref<32x16xbf16, #tpu.memory_space<vmem>>, %arg12: memref<1x16xf32, #tpu.memory_space<vmem>>, %arg13: memref<8x8x16xf32, #tpu.memory_space<vmem>>, %arg14: memref<8x8x128xbf16, #tpu.memory_space<vmem>>, %arg15: memref<8x8x128xbf16, #tpu.memory_space<vmem>>, %arg16: memref<8x8x32xbf16, #tpu.memory_space<vmem>>, %arg17: memref<8x8x32xbf16, #tpu.memory_space<vmem>>) attributes {dimension_semantics = [#tpu.dimension_semantics<parallel>], iteration_bounds = array<i64: 1>, scalar_prefetch = 0 : i64, scratch_operands = 4 : i64, tpu.core_type = #tpu.core_type<tc>, window_params = [{transform_indices = @transform_0, window_bounds = array<i64: 8, 8, 16>}, {pipeline_mode = #tpu.pipeline_mode<synchronous>, transform_indices = @transform_1, window_bounds = array<i64: 1, 16>}, {pipeline_mode = #tpu.pipeline_mode<synchronous>, transform_indices = @transform_2, window_bounds = array<i64: 1, 16>}, {pipeline_mode = #tpu.pipeline_mode<synchronous>, transform_indices = @transform_3, window_bounds = array<i64: 16, 128>}, {pipeline_mode = #tpu.pipeline_mode<synchronous>, transform_indices = @transform_4, window_bounds = array<i64: 1, 128>}, {pipeline_mode = #tpu.pipeline_mode<synchronous>, transform_indices = @transform_5, window_bounds = array<i64: 32, 128>}, {pipeline_mode = #tpu.pipeline_mode<synchronous>, transform_indices = @transform_6, window_bounds = array<i64: 16, 128>}, {pipeline_mode = #tpu.pipeline_mode<synchronous>, transform_indices = @transform_7, window_bounds = array<i64: 1, 128>}, {pipeline_mode = #tpu.pipeline_mode<synchronous>, transform_indices = @transform_8, window_bounds = array<i64: 32, 128>}, {pipeline_mode = #tpu.pipeline_mode<synchronous>, transform_indices = @transform_9, window_bounds = array<i64: 32, 16>}, {pipeline_mode = #tpu.pipeline_mode<synchronous>, transform_indices = @transform_10, window_bounds = array<i64: 32, 16>}, {pipeline_mode = #tpu.pipeline_mode<synchronous>, transform_indices = @transform_11, window_bounds = array<i64: 1, 16>}, {transform_indices = @transform_12, window_bounds = array<i64: 8, 8, 16>}]} {
    %c0 = arith.constant 0 : index
    %c0_0 = arith.constant 0 : index
    %0 = vector.load %arg12[%c0, %c0_0] : memref<1x16xf32, #tpu.memory_space<vmem>>, vector<1x16xf32>
    %1 = vector.shape_cast %0 : vector<1x16xf32> to vector<1x1x16xf32>
    %cst = arith.constant 0.000000e+00 : f32
    %2 = vector.broadcast %cst : f32 to vector<1x8x1xf32>
    %cst_1 = arith.constant 0.000000e+00 : f32
    %3 = vector.broadcast %cst_1 : f32 to vector<1x8x1xf32>
    %c0_2 = arith.constant 0 : index
    %c0_3 = arith.constant 0 : index
    %c0_4 = arith.constant 0 : index
    %4 = vector.load %arg1[%c0_2, %c0_3, %c0_4] : memref<8x8x16xf32, #tpu.memory_space<vmem>>, vector<8x8x16xf32>
    %cst_5 = arith.constant dense<0.000000e+00> : vector<8xf32>
    %5 = vector.multi_reduction <add>, %4, %cst_5 [0, 2] : vector<8x8x16xf32> to vector<8xf32>
    %6 = vector.shape_cast %5 : vector<8xf32> to vector<1x8x1xf32>
    %7 = arith.addf %2, %6 : vector<1x8x1xf32>
    %8 = arith.mulf %4, %4 : vector<8x8x16xf32>
    %cst_6 = arith.constant dense<0.000000e+00> : vector<8xf32>
    %9 = vector.multi_reduction <add>, %8, %cst_6 [0, 2] : vector<8x8x16xf32> to vector<8xf32>
    %10 = vector.shape_cast %9 : vector<8xf32> to vector<1x8x1xf32>
    %11 = arith.addf %3, %10 : vector<1x8x1xf32>
    %12 = vector.broadcast %1 : vector<1x1x16xf32> to vector<8x8x16xf32>
    %13 = arith.addf %4, %12 : vector<8x8x16xf32>
    %c0_7 = arith.constant 0 : index
    %c0_8 = arith.constant 0 : index
    %c0_9 = arith.constant 0 : index
    %14 = vector.load %arg13[%c0_7, %c0_8, %c0_9] : memref<8x8x16xf32, #tpu.memory_space<vmem>>, vector<8x8x16xf32>
    tpu.vector_store %arg13[%c0_7, %c0_8, %c0_9], %13 {strides = array<i32>} : memref<8x8x16xf32, #tpu.memory_space<vmem>>, vector<8x8x16xf32>,
    %cst_10 = arith.constant 1.280000e+02 : f32
    %15 = vector.broadcast %cst_10 : f32 to vector<1x8x1xf32>
    %16 = arith.divf %7, %15 : vector<1x8x1xf32>
    %cst_11 = arith.constant 1.280000e+02 : f32
    %17 = vector.broadcast %cst_11 : f32 to vector<1x8x1xf32>
    %18 = arith.divf %11, %17 : vector<1x8x1xf32>
    %19 = arith.mulf %16, %16 : vector<1x8x1xf32>
    %20 = arith.subf %18, %19 : vector<1x8x1xf32>
    %cst_12 = arith.constant 0.000000e+00 : f32
    %21 = vector.broadcast %cst_12 : f32 to vector<1x8x1xf32>
    %22 = arith.maximumf %20, %21 : vector<1x8x1xf32>
    %cst_13 = arith.constant 1.1920929E-7 : f32
    %23 = vector.broadcast %cst_13 : f32 to vector<1x8x1xf32>
    %24 = arith.addf %22, %23 : vector<1x8x1xf32>
    %25 = math.rsqrt %24 : vector<1x8x1xf32>
    %c0_14 = arith.constant 0 : index
    %c0_15 = arith.constant 0 : index
    %26 = vector.load %arg2[%c0_14, %c0_15] : memref<1x16xf32, #tpu.memory_space<vmem>>, vector<1x16xf32>
    %27 = vector.shape_cast %26 : vector<1x16xf32> to vector<1x1x16xf32>
    %28 = vector.broadcast %25 : vector<1x8x1xf32> to vector<1x8x16xf32>
    %29 = vector.broadcast %27 : vector<1x1x16xf32> to vector<1x8x16xf32>
    %30 = arith.mulf %28, %29 : vector<1x8x16xf32>
    %c0_16 = arith.constant 0 : index
    %c0_17 = arith.constant 0 : index
    %31 = vector.load %arg3[%c0_16, %c0_17] : memref<1x16xf32, #tpu.memory_space<vmem>>, vector<1x16xf32>
    %32 = vector.shape_cast %31 : vector<1x16xf32> to vector<1x1x16xf32>
    %33 = vector.broadcast %16 : vector<1x8x1xf32> to vector<1x8x16xf32>
    %34 = arith.mulf %33, %30 : vector<1x8x16xf32>
    %35 = vector.broadcast %32 : vector<1x1x16xf32> to vector<1x8x16xf32>
    %36 = arith.subf %35, %34 : vector<1x8x16xf32>
    %c0_18 = arith.constant 0 : index
    %c0_19 = arith.constant 0 : index
    %37 = vector.load %arg4[%c0_18, %c0_19] : memref<16x128xbf16, #tpu.memory_space<vmem>>, vector<16x128xbf16>
    %c0_20 = arith.constant 0 : index
    %c0_21 = arith.constant 0 : index
    %38 = vector.load %arg7[%c0_20, %c0_21] : memref<16x128xbf16, #tpu.memory_space<vmem>>, vector<16x128xbf16>
    %c0_22 = arith.constant 0 : index
    %c0_23 = arith.constant 0 : index
    %39 = vector.load %arg6[%c0_22, %c0_23] : memref<32x128xbf16, #tpu.memory_space<vmem>>, vector<32x128xbf16>
    %c0_24 = arith.constant 0 : index
    %c0_25 = arith.constant 0 : index
    %40 = vector.load %arg9[%c0_24, %c0_25] : memref<32x128xbf16, #tpu.memory_space<vmem>>, vector<32x128xbf16>
    %c0_26 = arith.constant 0 : index
    %c0_27 = arith.constant 0 : index
    %41 = vector.load %arg10[%c0_26, %c0_27] : memref<32x16xbf16, #tpu.memory_space<vmem>>, vector<32x16xbf16>
    %c0_28 = arith.constant 0 : index
    %c0_29 = arith.constant 0 : index
    %42 = vector.load %arg11[%c0_28, %c0_29] : memref<32x16xbf16, #tpu.memory_space<vmem>>, vector<32x16xbf16>
    %c0_30 = arith.constant 0 : index
    %c0_31 = arith.constant 0 : index
    %43 = vector.load %arg5[%c0_30, %c0_31] : memref<1x128xf32, #tpu.memory_space<vmem>>, vector<1x128xf32>
    %c0_32 = arith.constant 0 : index
    %c0_33 = arith.constant 0 : index
    %44 = vector.load %arg8[%c0_32, %c0_33] : memref<1x128xf32, #tpu.memory_space<vmem>>, vector<1x128xf32>
    %cst_34 = arith.constant 0.000000e+00 : f32
    %45 = vector.broadcast %cst_34 : f32 to vector<8x32xf32>
    %c0_35 = arith.constant 0 : index
    %c0_36 = arith.constant 0 : index
    %c0_37 = arith.constant 0 : index
    %46 = vector.load %arg1[%c0_35, %c0_36, %c0_37] : memref<8x8x16xf32, #tpu.memory_space<vmem>>, vector<8x8x16xf32>
    %47 = vector.broadcast %30 : vector<1x8x16xf32> to vector<8x8x16xf32>
    %48 = arith.mulf %46, %47 : vector<8x8x16xf32>
    %49 = vector.broadcast %36 : vector<1x8x16xf32> to vector<8x8x16xf32>
    %50 = arith.addf %48, %49 : vector<8x8x16xf32>
    %51 = arith.truncf %50 : vector<8x8x16xf32> to vector<8x8x16xbf16>
    %52 = vector.shape_cast %51 : vector<8x8x16xbf16> to vector<64x16xbf16>
    %cst_38 = arith.constant dense<0.000000e+00> : vector<64x128xf32>
    %53 = tpu.matmul %52, %37, %cst_38 {dimension_numbers = #tpu.dot_dimension_numbers<[1], [0], [0], [1], [0, 0, 1, 1], [], []>} : vector<64x16xbf16>, vector<16x128xbf16>, vector<64x128xf32> -> vector<64x128xf32>
    %54 = vector.broadcast %43 : vector<1x128xf32> to vector<64x128xf32>
    %55 = arith.addf %53, %54 : vector<64x128xf32>
    %56 = vector.shape_cast %55 : vector<64x128xf32> to vector<8x8x128xf32>
    %57 = arith.truncf %56 : vector<8x8x128xf32> to vector<8x8x128xbf16>
    %c0_39 = arith.constant 0 : index
    %c0_40 = arith.constant 0 : index
    %c0_41 = arith.constant 0 : index
    %58 = vector.load %arg14[%c0_39, %c0_40, %c0_41] : memref<8x8x128xbf16, #tpu.memory_space<vmem>>, vector<8x8x128xbf16>
    tpu.vector_store %arg14[%c0_39, %c0_40, %c0_41], %57 {strides = array<i32>} : memref<8x8x128xbf16, #tpu.memory_space<vmem>>, vector<8x8x128xbf16>,
    %c0_42 = arith.constant 0 : index
    %c0_43 = arith.constant 0 : index
    %c0_44 = arith.constant 0 : index
    %59 = vector.load %arg1[%c0_42, %c0_43, %c0_44] : memref<8x8x16xf32, #tpu.memory_space<vmem>>, vector<8x8x16xf32>
    %60 = vector.broadcast %30 : vector<1x8x16xf32> to vector<8x8x16xf32>
    %61 = arith.mulf %59, %60 : vector<8x8x16xf32>
    %62 = vector.broadcast %36 : vector<1x8x16xf32> to vector<8x8x16xf32>
    %63 = arith.addf %61, %62 : vector<8x8x16xf32>
    %64 = arith.truncf %63 : vector<8x8x16xf32> to vector<8x8x16xbf16>
    %65 = vector.shape_cast %64 : vector<8x8x16xbf16> to vector<64x16xbf16>
    %cst_45 = arith.constant dense<0.000000e+00> : vector<64x128xf32>
    %66 = tpu.matmul %65, %38, %cst_45 {dimension_numbers = #tpu.dot_dimension_numbers<[1], [0], [0], [1], [0, 0, 1, 1], [], []>} : vector<64x16xbf16>, vector<16x128xbf16>, vector<64x128xf32> -> vector<64x128xf32>
    %67 = vector.broadcast %44 : vector<1x128xf32> to vector<64x128xf32>
    %68 = arith.addf %66, %67 : vector<64x128xf32>
    %69 = vector.shape_cast %68 : vector<64x128xf32> to vector<8x8x128xf32>
    %70 = arith.truncf %69 : vector<8x8x128xf32> to vector<8x8x128xbf16>
    %c0_46 = arith.constant 0 : index
    %c0_47 = arith.constant 0 : index
    %c0_48 = arith.constant 0 : index
    %71 = vector.load %arg15[%c0_46, %c0_47, %c0_48] : memref<8x8x128xbf16, #tpu.memory_space<vmem>>, vector<8x8x128xbf16>
    tpu.vector_store %arg15[%c0_46, %c0_47, %c0_48], %70 {strides = array<i32>} : memref<8x8x128xbf16, #tpu.memory_space<vmem>>, vector<8x8x128xbf16>,
    %c0_i32 = arith.constant 0 : i32
    %72 = arith.index_cast %c0_i32 : i32 to index
    %c0_49 = arith.constant 0 : index
    %c0_50 = arith.constant 0 : index
    %73 = vector.load %arg14[%72, %c0_49, %c0_50] : memref<8x8x128xbf16, #tpu.memory_space<vmem>>, vector<1x8x128xbf16>
    %74 = vector.shape_cast %73 : vector<1x8x128xbf16> to vector<8x128xbf16>
    %75 = arith.extf %74 : vector<8x128xbf16> to vector<8x128xf32>
    %76 = arith.truncf %45 : vector<8x32xf32> to vector<8x32xbf16>
    %cst_51 = arith.constant dense<0.000000e+00> : vector<8x128xf32>
    %77 = tpu.matmul %76, %39, %cst_51 {dimension_numbers = #tpu.dot_dimension_numbers<[1], [0], [0], [1], [0, 0, 1, 1], [], []>} : vector<8x32xbf16>, vector<32x128xbf16>, vector<8x128xf32> -> vector<8x128xf32>
    %78 = arith.addf %75, %77 : vector<8x128xf32>
    %c7_i32 = arith.constant 7 : i32
    %79 = arith.subi %c7_i32, %c0_i32 : i32
    %80 = arith.index_cast %79 : i32 to index
    %c0_52 = arith.constant 0 : index
    %c0_53 = arith.constant 0 : index
    %81 = vector.load %arg15[%80, %c0_52, %c0_53] : memref<8x8x128xbf16, #tpu.memory_space<vmem>>, vector<1x8x128xbf16>
    %82 = vector.shape_cast %81 : vector<1x8x128xbf16> to vector<8x128xbf16>
    %83 = arith.extf %82 : vector<8x128xbf16> to vector<8x128xf32>
    %84 = arith.truncf %45 : vector<8x32xf32> to vector<8x32xbf16>
    %cst_54 = arith.constant dense<0.000000e+00> : vector<8x128xf32>
    %85 = tpu.matmul %84, %40, %cst_54 {dimension_numbers = #tpu.dot_dimension_numbers<[1], [0], [0], [1], [0, 0, 1, 1], [], []>} : vector<8x32xbf16>, vector<32x128xbf16>, vector<8x128xf32> -> vector<8x128xf32>
    %86 = arith.addf %83, %85 : vector<8x128xf32>
    %87 = arith.truncf %78 : vector<8x128xf32> to vector<8x128xbf16>
    %88 = vector.extract_strided_slice %87 {offsets = [0, 0], sizes = [8, 32], strides = [1, 1]} : vector<8x128xbf16> to vector<8x32xbf16>
    %cst_55 = arith.constant 5.000000e-01 : bf16
    %89 = vector.broadcast %cst_55 : bf16 to vector<8x32xbf16>
    %90 = arith.mulf %89, %88 : vector<8x32xbf16>
    %91 = math.tanh %90 : vector<8x32xbf16>
    %cst_56 = arith.constant 5.000000e-01 : bf16
    %92 = vector.broadcast %cst_56 : bf16 to vector<8x32xbf16>
    %93 = arith.mulf %92, %91 : vector<8x32xbf16>
    %cst_57 = arith.constant 5.000000e-01 : bf16
    %94 = vector.broadcast %cst_57 : bf16 to vector<8x32xbf16>
    %95 = arith.addf %93, %94 : vector<8x32xbf16>
    %96 = vector.extract_strided_slice %87 {offsets = [0, 32], sizes = [8, 32], strides = [1, 1]} : vector<8x128xbf16> to vector<8x32xbf16>
    %cst_58 = arith.constant 5.000000e-01 : bf16
    %97 = vector.broadcast %cst_58 : bf16 to vector<8x32xbf16>
    %98 = arith.mulf %97, %96 : vector<8x32xbf16>
    %99 = math.tanh %98 : vector<8x32xbf16>
    %cst_59 = arith.constant 5.000000e-01 : bf16
    %100 = vector.broadcast %cst_59 : bf16 to vector<8x32xbf16>
    %101 = arith.mulf %100, %99 : vector<8x32xbf16>
    %cst_60 = arith.constant 5.000000e-01 : bf16
    %102 = vector.broadcast %cst_60 : bf16 to vector<8x32xbf16>
    %103 = arith.addf %101, %102 : vector<8x32xbf16>
    %104 = vector.extract_strided_slice %87 {offsets = [0, 64], sizes = [8, 32], strides = [1, 1]} : vector<8x128xbf16> to vector<8x32xbf16>
    %105 = math.tanh %104 : vector<8x32xbf16>
    %106 = vector.extract_strided_slice %87 {offsets = [0, 96], sizes = [8, 32], strides = [1, 1]} : vector<8x128xbf16> to vector<8x32xbf16>
    %cst_61 = arith.constant 5.000000e-01 : bf16
    %107 = vector.broadcast %cst_61 : bf16 to vector<8x32xbf16>
    %108 = arith.mulf %107, %106 : vector<8x32xbf16>
    %109 = math.tanh %108 : vector<8x32xbf16>
    %cst_62 = arith.constant 5.000000e-01 : bf16
    %110 = vector.broadcast %cst_62 : bf16 to vector<8x32xbf16>
    %111 = arith.mulf %110, %109 : vector<8x32xbf16>
    %cst_63 = arith.constant 5.000000e-01 : bf16
    %112 = vector.broadcast %cst_63 : bf16 to vector<8x32xbf16>
    %113 = arith.addf %111, %112 : vector<8x32xbf16>
    %114 = arith.extf %103 : vector<8x32xbf16> to vector<8x32xf32>
    %115 = arith.mulf %114, %45 : vector<8x32xf32>
    %116 = arith.mulf %95, %105 : vector<8x32xbf16>
    %117 = arith.extf %116 : vector<8x32xbf16> to vector<8x32xf32>
    %118 = arith.addf %115, %117 : vector<8x32xf32>
    %119 = math.tanh %118 : vector<8x32xf32>
    %120 = arith.extf %113 : vector<8x32xbf16> to vector<8x32xf32>
    %121 = arith.mulf %120, %119 : vector<8x32xf32>
    %122 = arith.truncf %86 : vector<8x128xf32> to vector<8x128xbf16>
    %123 = vector.extract_strided_slice %122 {offsets = [0, 0], sizes = [8, 32], strides = [1, 1]} : vector<8x128xbf16> to vector<8x32xbf16>
    %cst_64 = arith.constant 5.000000e-01 : bf16
    %124 = vector.broadcast %cst_64 : bf16 to vector<8x32xbf16>
    %125 = arith.mulf %124, %123 : vector<8x32xbf16>
    %126 = math.tanh %125 : vector<8x32xbf16>
    %cst_65 = arith.constant 5.000000e-01 : bf16
    %127 = vector.broadcast %cst_65 : bf16 to vector<8x32xbf16>
    %128 = arith.mulf %127, %126 : vector<8x32xbf16>
    %cst_66 = arith.constant 5.000000e-01 : bf16
    %129 = vector.broadcast %cst_66 : bf16 to vector<8x32xbf16>
    %130 = arith.addf %128, %129 : vector<8x32xbf16>
    %131 = vector.extract_strided_slice %122 {offsets = [0, 32], sizes = [8, 32], strides = [1, 1]} : vector<8x128xbf16> to vector<8x32xbf16>
    %cst_67 = arith.constant 5.000000e-01 : bf16
    %132 = vector.broadcast %cst_67 : bf16 to vector<8x32xbf16>
    %133 = arith.mulf %132, %131 : vector<8x32xbf16>
    %134 = math.tanh %133 : vector<8x32xbf16>
    %cst_68 = arith.constant 5.000000e-01 : bf16
    %135 = vector.broadcast %cst_68 : bf16 to vector<8x32xbf16>
    %136 = arith.mulf %135, %134 : vector<8x32xbf16>
    %cst_69 = arith.constant 5.000000e-01 : bf16
    %137 = vector.broadcast %cst_69 : bf16 to vector<8x32xbf16>
    %138 = arith.addf %136, %137 : vector<8x32xbf16>
    %139 = vector.extract_strided_slice %122 {offsets = [0, 64], sizes = [8, 32], strides = [1, 1]} : vector<8x128xbf16> to vector<8x32xbf16>
    %140 = math.tanh %139 : vector<8x32xbf16>
    %141 = vector.extract_strided_slice %122 {offsets = [0, 96], sizes = [8, 32], strides = [1, 1]} : vector<8x128xbf16> to vector<8x32xbf16>
    %cst_70 = arith.constant 5.000000e-01 : bf16
    %142 = vector.broadcast %cst_70 : bf16 to vector<8x32xbf16>
    %143 = arith.mulf %142, %141 : vector<8x32xbf16>
    %144 = math.tanh %143 : vector<8x32xbf16>
    %cst_71 = arith.constant 5.000000e-01 : bf16
    %145 = vector.broadcast %cst_71 : bf16 to vector<8x32xbf16>
    %146 = arith.mulf %145, %144 : vector<8x32xbf16>
    %cst_72 = arith.constant 5.000000e-01 : bf16
    %147 = vector.broadcast %cst_72 : bf16 to vector<8x32xbf16>
    %148 = arith.addf %146, %147 : vector<8x32xbf16>
    %149 = arith.extf %138 : vector<8x32xbf16> to vector<8x32xf32>
    %150 = arith.mulf %149, %45 : vector<8x32xf32>
    %151 = arith.mulf %130, %140 : vector<8x32xbf16>
    %152 = arith.extf %151 : vector<8x32xbf16> to vector<8x32xf32>
    %153 = arith.addf %150, %152 : vector<8x32xf32>
    %154 = math.tanh %153 : vector<8x32xf32>
    %155 = arith.extf %148 : vector<8x32xbf16> to vector<8x32xf32>
    %156 = arith.mulf %155, %154 : vector<8x32xf32>
    %157 = arith.truncf %121 : vector<8x32xf32> to vector<8x32xbf16>
    %158 = arith.index_cast %c0_i32 : i32 to index
    %c0_73 = arith.constant 0 : index
    %c0_74 = arith.constant 0 : index
    %159 = vector.load %arg16[%158, %c0_73, %c0_74] : memref<8x8x32xbf16, #tpu.memory_space<vmem>>, vector<1x8x32xbf16>
    %160 = vector.shape_cast %159 : vector<1x8x32xbf16> to vector<8x32xbf16>
    %161 = vector.shape_cast %157 : vector<8x32xbf16> to vector<1x8x32xbf16>
    tpu.vector_store %arg16[%158, %c0_73, %c0_74], %161 {strides = array<i32>} : memref<8x8x32xbf16, #tpu.memory_space<vmem>>, vector<1x8x32xbf16>,
    %162 = arith.truncf %156 : vector<8x32xf32> to vector<8x32xbf16>
    %163 = arith.index_cast %79 : i32 to index
    %c0_75 = arith.constant 0 : index
    %c0_76 = arith.constant 0 : index
    %164 = vector.load %arg17[%163, %c0_75, %c0_76] : memref<8x8x32xbf16, #tpu.memory_space<vmem>>, vector<1x8x32xbf16>
    %165 = vector.shape_cast %164 : vector<1x8x32xbf16> to vector<8x32xbf16>
    %166 = vector.shape_cast %162 : vector<8x32xbf16> to vector<1x8x32xbf16>
    tpu.vector_store %arg17[%163, %c0_75, %c0_76], %166 {strides = array<i32>} : memref<8x8x32xbf16, #tpu.memory_space<vmem>>, vector<1x8x32xbf16>,
    %c1_i32 = arith.constant 1 : i32
    %167 = arith.index_cast %c1_i32 : i32 to index
    %c0_77 = arith.constant 0 : index
    %c0_78 = arith.constant 0 : index
    %168 = vector.load %arg14[%167, %c0_77, %c0_78] : memref<8x8x128xbf16, #tpu.memory_space<vmem>>, vector<1x8x128xbf16>
    %169 = vector.shape_cast %168 : vector<1x8x128xbf16> to vector<8x128xbf16>
    %170 = arith.extf %169 : vector<8x128xbf16> to vector<8x128xf32>
    %171 = arith.truncf %121 : vector<8x32xf32> to vector<8x32xbf16>
    %cst_79 = arith.constant dense<0.000000e+00> : vector<8x128xf32>
    %172 = tpu.matmul %171, %39, %cst_79 {dimension_numbers = #tpu.dot_dimension_numbers<[1], [0], [0], [1], [0, 0, 1, 1], [], []>} : vector<8x32xbf16>, vector<32x128xbf16>, vector<8x128xf32> -> vector<8x128xf32>
    %173 = arith.addf %170, %172 : vector<8x128xf32>
    %c7_i32_80 = arith.constant 7 : i32
    %174 = arith.subi %c7_i32_80, %c1_i32 : i32
    %175 = arith.index_cast %174 : i32 to index
    %c0_81 = arith.constant 0 : index
    %c0_82 = arith.constant 0 : index
    %176 = vector.load %arg15[%175, %c0_81, %c0_82] : memref<8x8x128xbf16, #tpu.memory_space<vmem>>, vector<1x8x128xbf16>
    %177 = vector.shape_cast %176 : vector<1x8x128xbf16> to vector<8x128xbf16>
    %178 = arith.extf %177 : vector<8x128xbf16> to vector<8x128xf32>
    %179 = arith.truncf %156 : vector<8x32xf32> to vector<8x32xbf16>
    %cst_83 = arith.constant dense<0.000000e+00> : vector<8x128xf32>
    %180 = tpu.matmul %179, %40, %cst_83 {dimension_numbers = #tpu.dot_dimension_numbers<[1], [0], [0], [1], [0, 0, 1, 1], [], []>} : vector<8x32xbf16>, vector<32x128xbf16>, vector<8x128xf32> -> vector<8x128xf32>
    %181 = arith.addf %178, %180 : vector<8x128xf32>
    %182 = arith.truncf %173 : vector<8x128xf32> to vector<8x128xbf16>
    %183 = vector.extract_strided_slice %182 {offsets = [0, 0], sizes = [8, 32], strides = [1, 1]} : vector<8x128xbf16> to vector<8x32xbf16>
    %cst_84 = arith.constant 5.000000e-01 : bf16
    %184 = vector.broadcast %cst_84 : bf16 to vector<8x32xbf16>
    %185 = arith.mulf %184, %183 : vector<8x32xbf16>
    %186 = math.tanh %185 : vector<8x32xbf16>
    %cst_85 = arith.constant 5.000000e-01 : bf16
    %187 = vector.broadcast %cst_85 : bf16 to vector<8x32xbf16>
    %188 = arith.mulf %187, %186 : vector<8x32xbf16>
    %cst_86 = arith.constant 5.000000e-01 : bf16
    %189 = vector.broadcast %cst_86 : bf16 to vector<8x32xbf16>
    %190 = arith.addf %188, %189 : vector<8x32xbf16>
    %191 = vector.extract_strided_slice %182 {offsets = [0, 32], sizes = [8, 32], strides = [1, 1]} : vector<8x128xbf16> to vector<8x32xbf16>
    %cst_87 = arith.constant 5.000000e-01 : bf16
    %192 = vector.broadcast %cst_87 : bf16 to vector<8x32xbf16>
    %193 = arith.mulf %192, %191 : vector<8x32xbf16>
    %194 = math.tanh %193 : vector<8x32xbf16>
    %cst_88 = arith.constant 5.000000e-01 : bf16
    %195 = vector.broadcast %cst_88 : bf16 to vector<8x32xbf16>
    %196 = arith.mulf %195, %194 : vector<8x32xbf16>
    %cst_89 = arith.constant 5.000000e-01 : bf16
    %197 = vector.broadcast %cst_89 : bf16 to vector<8x32xbf16>
    %198 = arith.addf %196, %197 : vector<8x32xbf16>
    %199 = vector.extract_strided_slice %182 {offsets = [0, 64], sizes = [8, 32], strides = [1, 1]} : vector<8x128xbf16> to vector<8x32xbf16>
    %200 = math.tanh %199 : vector<8x32xbf16>
    %201 = vector.extract_strided_slice %182 {offsets = [0, 96], sizes = [8, 32], strides = [1, 1]} : vector<8x128xbf16> to vector<8x32xbf16>
    %cst_90 = arith.constant 5.000000e-01 : bf16
    %202 = vector.broadcast %cst_90 : bf16 to vector<8x32xbf16>
    %203 = arith.mulf %202, %201 : vector<8x32xbf16>
    %204 = math.tanh %203 : vector<8x32xbf16>
    %cst_91 = arith.constant 5.000000e-01 : bf16
    %205 = vector.broadcast %cst_91 : bf16 to vector<8x32xbf16>
    %206 = arith.mulf %205, %204 : vector<8x32xbf16>
    %cst_92 = arith.constant 5.000000e-01 : bf16
    %207 = vector.broadcast %cst_92 : bf16 to vector<8x32xbf16>
    %208 = arith.addf %206, %207 : vector<8x32xbf16>
    %209 = arith.extf %198 : vector<8x32xbf16> to vector<8x32xf32>
    %210 = arith.mulf %209, %118 : vector<8x32xf32>
    %211 = arith.mulf %190, %200 : vector<8x32xbf16>
    %212 = arith.extf %211 : vector<8x32xbf16> to vector<8x32xf32>
    %213 = arith.addf %210, %212 : vector<8x32xf32>
    %214 = math.tanh %213 : vector<8x32xf32>
    %215 = arith.extf %208 : vector<8x32xbf16> to vector<8x32xf32>
    %216 = arith.mulf %215, %214 : vector<8x32xf32>
    %217 = arith.truncf %181 : vector<8x128xf32> to vector<8x128xbf16>
    %218 = vector.extract_strided_slice %217 {offsets = [0, 0], sizes = [8, 32], strides = [1, 1]} : vector<8x128xbf16> to vector<8x32xbf16>
    %cst_93 = arith.constant 5.000000e-01 : bf16
    %219 = vector.broadcast %cst_93 : bf16 to vector<8x32xbf16>
    %220 = arith.mulf %219, %218 : vector<8x32xbf16>
    %221 = math.tanh %220 : vector<8x32xbf16>
    %cst_94 = arith.constant 5.000000e-01 : bf16
    %222 = vector.broadcast %cst_94 : bf16 to vector<8x32xbf16>
    %223 = arith.mulf %222, %221 : vector<8x32xbf16>
    %cst_95 = arith.constant 5.000000e-01 : bf16
    %224 = vector.broadcast %cst_95 : bf16 to vector<8x32xbf16>
    %225 = arith.addf %223, %224 : vector<8x32xbf16>
    %226 = vector.extract_strided_slice %217 {offsets = [0, 32], sizes = [8, 32], strides = [1, 1]} : vector<8x128xbf16> to vector<8x32xbf16>
    %cst_96 = arith.constant 5.000000e-01 : bf16
    %227 = vector.broadcast %cst_96 : bf16 to vector<8x32xbf16>
    %228 = arith.mulf %227, %226 : vector<8x32xbf16>
    %229 = math.tanh %228 : vector<8x32xbf16>
    %cst_97 = arith.constant 5.000000e-01 : bf16
    %230 = vector.broadcast %cst_97 : bf16 to vector<8x32xbf16>
    %231 = arith.mulf %230, %229 : vector<8x32xbf16>
    %cst_98 = arith.constant 5.000000e-01 : bf16
    %232 = vector.broadcast %cst_98 : bf16 to vector<8x32xbf16>
    %233 = arith.addf %231, %232 : vector<8x32xbf16>
    %234 = vector.extract_strided_slice %217 {offsets = [0, 64], sizes = [8, 32], strides = [1, 1]} : vector<8x128xbf16> to vector<8x32xbf16>
    %235 = math.tanh %234 : vector<8x32xbf16>
    %236 = vector.extract_strided_slice %217 {offsets = [0, 96], sizes = [8, 32], strides = [1, 1]} : vector<8x128xbf16> to vector<8x32xbf16>
    %cst_99 = arith.constant 5.000000e-01 : bf16
    %237 = vector.broadcast %cst_99 : bf16 to vector<8x32xbf16>
    %238 = arith.mulf %237, %236 : vector<8x32xbf16>
    %239 = math.tanh %238 : vector<8x32xbf16>
    %cst_100 = arith.constant 5.000000e-01 : bf16
    %240 = vector.broadcast %cst_100 : bf16 to vector<8x32xbf16>
    %241 = arith.mulf %240, %239 : vector<8x32xbf16>
    %cst_101 = arith.constant 5.000000e-01 : bf16
    %242 = vector.broadcast %cst_101 : bf16 to vector<8x32xbf16>
    %243 = arith.addf %241, %242 : vector<8x32xbf16>
    %244 = arith.extf %233 : vector<8x32xbf16> to vector<8x32xf32>
    %245 = arith.mulf %244, %153 : vector<8x32xf32>
    %246 = arith.mulf %225, %235 : vector<8x32xbf16>
    %247 = arith.extf %246 : vector<8x32xbf16> to vector<8x32xf32>
    %248 = arith.addf %245, %247 : vector<8x32xf32>
    %249 = math.tanh %248 : vector<8x32xf32>
    %250 = arith.extf %243 : vector<8x32xbf16> to vector<8x32xf32>
    %251 = arith.mulf %250, %249 : vector<8x32xf32>
    %252 = arith.truncf %216 : vector<8x32xf32> to vector<8x32xbf16>
    %253 = arith.index_cast %c1_i32 : i32 to index
    %c0_102 = arith.constant 0 : index
    %c0_103 = arith.constant 0 : index
    %254 = vector.load %arg16[%253, %c0_102, %c0_103] : memref<8x8x32xbf16, #tpu.memory_space<vmem>>, vector<1x8x32xbf16>
    %255 = vector.shape_cast %254 : vector<1x8x32xbf16> to vector<8x32xbf16>
    %256 = vector.shape_cast %252 : vector<8x32xbf16> to vector<1x8x32xbf16>
    tpu.vector_store %arg16[%253, %c0_102, %c0_103], %256 {strides = array<i32>} : memref<8x8x32xbf16, #tpu.memory_space<vmem>>, vector<1x8x32xbf16>,
    %257 = arith.truncf %251 : vector<8x32xf32> to vector<8x32xbf16>
    %258 = arith.index_cast %174 : i32 to index
    %c0_104 = arith.constant 0 : index
    %c0_105 = arith.constant 0 : index
    %259 = vector.load %arg17[%258, %c0_104, %c0_105] : memref<8x8x32xbf16, #tpu.memory_space<vmem>>, vector<1x8x32xbf16>
    %260 = vector.shape_cast %259 : vector<1x8x32xbf16> to vector<8x32xbf16>
    %261 = vector.shape_cast %257 : vector<8x32xbf16> to vector<1x8x32xbf16>
    tpu.vector_store %arg17[%258, %c0_104, %c0_105], %261 {strides = array<i32>} : memref<8x8x32xbf16, #tpu.memory_space<vmem>>, vector<1x8x32xbf16>,
    %c2_i32 = arith.constant 2 : i32
    %262 = arith.index_cast %c2_i32 : i32 to index
    %c0_106 = arith.constant 0 : index
    %c0_107 = arith.constant 0 : index
    %263 = vector.load %arg14[%262, %c0_106, %c0_107] : memref<8x8x128xbf16, #tpu.memory_space<vmem>>, vector<1x8x128xbf16>
    %264 = vector.shape_cast %263 : vector<1x8x128xbf16> to vector<8x128xbf16>
    %265 = arith.extf %264 : vector<8x128xbf16> to vector<8x128xf32>
    %266 = arith.truncf %216 : vector<8x32xf32> to vector<8x32xbf16>
    %cst_108 = arith.constant dense<0.000000e+00> : vector<8x128xf32>
    %267 = tpu.matmul %266, %39, %cst_108 {dimension_numbers = #tpu.dot_dimension_numbers<[1], [0], [0], [1], [0, 0, 1, 1], [], []>} : vector<8x32xbf16>, vector<32x128xbf16>, vector<8x128xf32> -> vector<8x128xf32>
    %268 = arith.addf %265, %267 : vector<8x128xf32>
    %c7_i32_109 = arith.constant 7 : i32
    %269 = arith.subi %c7_i32_109, %c2_i32 : i32
    %270 = arith.index_cast %269 : i32 to index
    %c0_110 = arith.constant 0 : index
    %c0_111 = arith.constant 0 : index
    %271 = vector.load %arg15[%270, %c0_110, %c0_111] : memref<8x8x128xbf16, #tpu.memory_space<vmem>>, vector<1x8x128xbf16>
    %272 = vector.shape_cast %271 : vector<1x8x128xbf16> to vector<8x128xbf16>
    %273 = arith.extf %272 : vector<8x128xbf16> to vector<8x128xf32>
    %274 = arith.truncf %251 : vector<8x32xf32> to vector<8x32xbf16>
    %cst_112 = arith.constant dense<0.000000e+00> : vector<8x128xf32>
    %275 = tpu.matmul %274, %40, %cst_112 {dimension_numbers = #tpu.dot_dimension_numbers<[1], [0], [0], [1], [0, 0, 1, 1], [], []>} : vector<8x32xbf16>, vector<32x128xbf16>, vector<8x128xf32> -> vector<8x128xf32>
    %276 = arith.addf %273, %275 : vector<8x128xf32>
    %277 = arith.truncf %268 : vector<8x128xf32> to vector<8x128xbf16>
    %278 = vector.extract_strided_slice %277 {offsets = [0, 0], sizes = [8, 32], strides = [1, 1]} : vector<8x128xbf16> to vector<8x32xbf16>
    %cst_113 = arith.constant 5.000000e-01 : bf16
    %279 = vector.broadcast %cst_113 : bf16 to vector<8x32xbf16>
    %280 = arith.mulf %279, %278 : vector<8x32xbf16>
    %281 = math.tanh %280 : vector<8x32xbf16>
    %cst_114 = arith.constant 5.000000e-01 : bf16
    %282 = vector.broadcast %cst_114 : bf16 to vector<8x32xbf16>
    %283 = arith.mulf %282, %281 : vector<8x32xbf16>
    %cst_115 = arith.constant 5.000000e-01 : bf16
    %284 = vector.broadcast %cst_115 : bf16 to vector<8x32xbf16>
    %285 = arith.addf %283, %284 : vector<8x32xbf16>
    %286 = vector.extract_strided_slice %277 {offsets = [0, 32], sizes = [8, 32], strides = [1, 1]} : vector<8x128xbf16> to vector<8x32xbf16>
    %cst_116 = arith.constant 5.000000e-01 : bf16
    %287 = vector.broadcast %cst_116 : bf16 to vector<8x32xbf16>
    %288 = arith.mulf %287, %286 : vector<8x32xbf16>
    %289 = math.tanh %288 : vector<8x32xbf16>
    %cst_117 = arith.constant 5.000000e-01 : bf16
    %290 = vector.broadcast %cst_117 : bf16 to vector<8x32xbf16>
    %291 = arith.mulf %290, %289 : vector<8x32xbf16>
    %cst_118 = arith.constant 5.000000e-01 : bf16
    %292 = vector.broadcast %cst_118 : bf16 to vector<8x32xbf16>
    %293 = arith.addf %291, %292 : vector<8x32xbf16>
    %294 = vector.extract_strided_slice %277 {offsets = [0, 64], sizes = [8, 32], strides = [1, 1]} : vector<8x128xbf16> to vector<8x32xbf16>
    %295 = math.tanh %294 : vector<8x32xbf16>
    %296 = vector.extract_strided_slice %277 {offsets = [0, 96], sizes = [8, 32], strides = [1, 1]} : vector<8x128xbf16> to vector<8x32xbf16>
    %cst_119 = arith.constant 5.000000e-01 : bf16
    %297 = vector.broadcast %cst_119 : bf16 to vector<8x32xbf16>
    %298 = arith.mulf %297, %296 : vector<8x32xbf16>
    %299 = math.tanh %298 : vector<8x32xbf16>
    %cst_120 = arith.constant 5.000000e-01 : bf16
    %300 = vector.broadcast %cst_120 : bf16 to vector<8x32xbf16>
    %301 = arith.mulf %300, %299 : vector<8x32xbf16>
    %cst_121 = arith.constant 5.000000e-01 : bf16
    %302 = vector.broadcast %cst_121 : bf16 to vector<8x32xbf16>
    %303 = arith.addf %301, %302 : vector<8x32xbf16>
    %304 = arith.extf %293 : vector<8x32xbf16> to vector<8x32xf32>
    %305 = arith.mulf %304, %213 : vector<8x32xf32>
    %306 = arith.mulf %285, %295 : vector<8x32xbf16>
    %307 = arith.extf %306 : vector<8x32xbf16> to vector<8x32xf32>
    %308 = arith.addf %305, %307 : vector<8x32xf32>
    %309 = math.tanh %308 : vector<8x32xf32>
    %310 = arith.extf %303 : vector<8x32xbf16> to vector<8x32xf32>
    %311 = arith.mulf %310, %309 : vector<8x32xf32>
    %312 = arith.truncf %276 : vector<8x128xf32> to vector<8x128xbf16>
    %313 = vector.extract_strided_slice %312 {offsets = [0, 0], sizes = [8, 32], strides = [1, 1]} : vector<8x128xbf16> to vector<8x32xbf16>
    %cst_122 = arith.constant 5.000000e-01 : bf16
    %314 = vector.broadcast %cst_122 : bf16 to vector<8x32xbf16>
    %315 = arith.mulf %314, %313 : vector<8x32xbf16>
    %316 = math.tanh %315 : vector<8x32xbf16>
    %cst_123 = arith.constant 5.000000e-01 : bf16
    %317 = vector.broadcast %cst_123 : bf16 to vector<8x32xbf16>
    %318 = arith.mulf %317, %316 : vector<8x32xbf16>
    %cst_124 = arith.constant 5.000000e-01 : bf16
    %319 = vector.broadcast %cst_124 : bf16 to vector<8x32xbf16>
    %320 = arith.addf %318, %319 : vector<8x32xbf16>
    %321 = vector.extract_strided_slice %312 {offsets = [0, 32], sizes = [8, 32], strides = [1, 1]} : vector<8x128xbf16> to vector<8x32xbf16>
    %cst_125 = arith.constant 5.000000e-01 : bf16
    %322 = vector.broadcast %cst_125 : bf16 to vector<8x32xbf16>
    %323 = arith.mulf %322, %321 : vector<8x32xbf16>
    %324 = math.tanh %323 : vector<8x32xbf16>
    %cst_126 = arith.constant 5.000000e-01 : bf16
    %325 = vector.broadcast %cst_126 : bf16 to vector<8x32xbf16>
    %326 = arith.mulf %325, %324 : vector<8x32xbf16>
    %cst_127 = arith.constant 5.000000e-01 : bf16
    %327 = vector.broadcast %cst_127 : bf16 to vector<8x32xbf16>
    %328 = arith.addf %326, %327 : vector<8x32xbf16>
    %329 = vector.extract_strided_slice %312 {offsets = [0, 64], sizes = [8, 32], strides = [1, 1]} : vector<8x128xbf16> to vector<8x32xbf16>
    %330 = math.tanh %329 : vector<8x32xbf16>
    %331 = vector.extract_strided_slice %312 {offsets = [0, 96], sizes = [8, 32], strides = [1, 1]} : vector<8x128xbf16> to vector<8x32xbf16>
    %cst_128 = arith.constant 5.000000e-01 : bf16
    %332 = vector.broadcast %cst_128 : bf16 to vector<8x32xbf16>
    %333 = arith.mulf %332, %331 : vector<8x32xbf16>
    %334 = math.tanh %333 : vector<8x32xbf16>
    %cst_129 = arith.constant 5.000000e-01 : bf16
    %335 = vector.broadcast %cst_129 : bf16 to vector<8x32xbf16>
    %336 = arith.mulf %335, %334 : vector<8x32xbf16>
    %cst_130 = arith.constant 5.000000e-01 : bf16
    %337 = vector.broadcast %cst_130 : bf16 to vector<8x32xbf16>
    %338 = arith.addf %336, %337 : vector<8x32xbf16>
    %339 = arith.extf %328 : vector<8x32xbf16> to vector<8x32xf32>
    %340 = arith.mulf %339, %248 : vector<8x32xf32>
    %341 = arith.mulf %320, %330 : vector<8x32xbf16>
    %342 = arith.extf %341 : vector<8x32xbf16> to vector<8x32xf32>
    %343 = arith.addf %340, %342 : vector<8x32xf32>
    %344 = math.tanh %343 : vector<8x32xf32>
    %345 = arith.extf %338 : vector<8x32xbf16> to vector<8x32xf32>
    %346 = arith.mulf %345, %344 : vector<8x32xf32>
    %347 = arith.truncf %311 : vector<8x32xf32> to vector<8x32xbf16>
    %348 = arith.index_cast %c2_i32 : i32 to index
    %c0_131 = arith.constant 0 : index
    %c0_132 = arith.constant 0 : index
    %349 = vector.load %arg16[%348, %c0_131, %c0_132] : memref<8x8x32xbf16, #tpu.memory_space<vmem>>, vector<1x8x32xbf16>
    %350 = vector.shape_cast %349 : vector<1x8x32xbf16> to vector<8x32xbf16>
    %351 = vector.shape_cast %347 : vector<8x32xbf16> to vector<1x8x32xbf16>
    tpu.vector_store %arg16[%348, %c0_131, %c0_132], %351 {strides = array<i32>} : memref<8x8x32xbf16, #tpu.memory_space<vmem>>, vector<1x8x32xbf16>,
    %352 = arith.truncf %346 : vector<8x32xf32> to vector<8x32xbf16>
    %353 = arith.index_cast %269 : i32 to index
    %c0_133 = arith.constant 0 : index
    %c0_134 = arith.constant 0 : index
    %354 = vector.load %arg17[%353, %c0_133, %c0_134] : memref<8x8x32xbf16, #tpu.memory_space<vmem>>, vector<1x8x32xbf16>
    %355 = vector.shape_cast %354 : vector<1x8x32xbf16> to vector<8x32xbf16>
    %356 = vector.shape_cast %352 : vector<8x32xbf16> to vector<1x8x32xbf16>
    tpu.vector_store %arg17[%353, %c0_133, %c0_134], %356 {strides = array<i32>} : memref<8x8x32xbf16, #tpu.memory_space<vmem>>, vector<1x8x32xbf16>,
    %c3_i32 = arith.constant 3 : i32
    %357 = arith.index_cast %c3_i32 : i32 to index
    %c0_135 = arith.constant 0 : index
    %c0_136 = arith.constant 0 : index
    %358 = vector.load %arg14[%357, %c0_135, %c0_136] : memref<8x8x128xbf16, #tpu.memory_space<vmem>>, vector<1x8x128xbf16>
    %359 = vector.shape_cast %358 : vector<1x8x128xbf16> to vector<8x128xbf16>
    %360 = arith.extf %359 : vector<8x128xbf16> to vector<8x128xf32>
    %361 = arith.truncf %311 : vector<8x32xf32> to vector<8x32xbf16>
    %cst_137 = arith.constant dense<0.000000e+00> : vector<8x128xf32>
    %362 = tpu.matmul %361, %39, %cst_137 {dimension_numbers = #tpu.dot_dimension_numbers<[1], [0], [0], [1], [0, 0, 1, 1], [], []>} : vector<8x32xbf16>, vector<32x128xbf16>, vector<8x128xf32> -> vector<8x128xf32>
    %363 = arith.addf %360, %362 : vector<8x128xf32>
    %c7_i32_138 = arith.constant 7 : i32
    %364 = arith.subi %c7_i32_138, %c3_i32 : i32
    %365 = arith.index_cast %364 : i32 to index
    %c0_139 = arith.constant 0 : index
    %c0_140 = arith.constant 0 : index
    %366 = vector.load %arg15[%365, %c0_139, %c0_140] : memref<8x8x128xbf16, #tpu.memory_space<vmem>>, vector<1x8x128xbf16>
    %367 = vector.shape_cast %366 : vector<1x8x128xbf16> to vector<8x128xbf16>
    %368 = arith.extf %367 : vector<8x128xbf16> to vector<8x128xf32>
    %369 = arith.truncf %346 : vector<8x32xf32> to vector<8x32xbf16>
    %cst_141 = arith.constant dense<0.000000e+00> : vector<8x128xf32>
    %370 = tpu.matmul %369, %40, %cst_141 {dimension_numbers = #tpu.dot_dimension_numbers<[1], [0], [0], [1], [0, 0, 1, 1], [], []>} : vector<8x32xbf16>, vector<32x128xbf16>, vector<8x128xf32> -> vector<8x128xf32>
    %371 = arith.addf %368, %370 : vector<8x128xf32>
    %372 = arith.truncf %363 : vector<8x128xf32> to vector<8x128xbf16>
    %373 = vector.extract_strided_slice %372 {offsets = [0, 0], sizes = [8, 32], strides = [1, 1]} : vector<8x128xbf16> to vector<8x32xbf16>
    %cst_142 = arith.constant 5.000000e-01 : bf16
    %374 = vector.broadcast %cst_142 : bf16 to vector<8x32xbf16>
    %375 = arith.mulf %374, %373 : vector<8x32xbf16>
    %376 = math.tanh %375 : vector<8x32xbf16>
    %cst_143 = arith.constant 5.000000e-01 : bf16
    %377 = vector.broadcast %cst_143 : bf16 to vector<8x32xbf16>
    %378 = arith.mulf %377, %376 : vector<8x32xbf16>
    %cst_144 = arith.constant 5.000000e-01 : bf16
    %379 = vector.broadcast %cst_144 : bf16 to vector<8x32xbf16>
    %380 = arith.addf %378, %379 : vector<8x32xbf16>
    %381 = vector.extract_strided_slice %372 {offsets = [0, 32], sizes = [8, 32], strides = [1, 1]} : vector<8x128xbf16> to vector<8x32xbf16>
    %cst_145 = arith.constant 5.000000e-01 : bf16
    %382 = vector.broadcast %cst_145 : bf16 to vector<8x32xbf16>
    %383 = arith.mulf %382, %381 : vector<8x32xbf16>
    %384 = math.tanh %383 : vector<8x32xbf16>
    %cst_146 = arith.constant 5.000000e-01 : bf16
    %385 = vector.broadcast %cst_146 : bf16 to vector<8x32xbf16>
    %386 = arith.mulf %385, %384 : vector<8x32xbf16>
    %cst_147 = arith.constant 5.000000e-01 : bf16
    %387 = vector.broadcast %cst_147 : bf16 to vector<8x32xbf16>
    %388 = arith.addf %386, %387 : vector<8x32xbf16>
    %389 = vector.extract_strided_slice %372 {offsets = [0, 64], sizes = [8, 32], strides = [1, 1]} : vector<8x128xbf16> to vector<8x32xbf16>
    %390 = math.tanh %389 : vector<8x32xbf16>
    %391 = vector.extract_strided_slice %372 {offsets = [0, 96], sizes = [8, 32], strides = [1, 1]} : vector<8x128xbf16> to vector<8x32xbf16>
    %cst_148 = arith.constant 5.000000e-01 : bf16
    %392 = vector.broadcast %cst_148 : bf16 to vector<8x32xbf16>
    %393 = arith.mulf %392, %391 : vector<8x32xbf16>
    %394 = math.tanh %393 : vector<8x32xbf16>
    %cst_149 = arith.constant 5.000000e-01 : bf16
    %395 = vector.broadcast %cst_149 : bf16 to vector<8x32xbf16>
    %396 = arith.mulf %395, %394 : vector<8x32xbf16>
    %cst_150 = arith.constant 5.000000e-01 : bf16
    %397 = vector.broadcast %cst_150 : bf16 to vector<8x32xbf16>
    %398 = arith.addf %396, %397 : vector<8x32xbf16>
    %399 = arith.extf %388 : vector<8x32xbf16> to vector<8x32xf32>
    %400 = arith.mulf %399, %308 : vector<8x32xf32>
    %401 = arith.mulf %380, %390 : vector<8x32xbf16>
    %402 = arith.extf %401 : vector<8x32xbf16> to vector<8x32xf32>
    %403 = arith.addf %400, %402 : vector<8x32xf32>
    %404 = math.tanh %403 : vector<8x32xf32>
    %405 = arith.extf %398 : vector<8x32xbf16> to vector<8x32xf32>
    %406 = arith.mulf %405, %404 : vector<8x32xf32>
    %407 = arith.truncf %371 : vector<8x128xf32> to vector<8x128xbf16>
    %408 = vector.extract_strided_slice %407 {offsets = [0, 0], sizes = [8, 32], strides = [1, 1]} : vector<8x128xbf16> to vector<8x32xbf16>
    %cst_151 = arith.constant 5.000000e-01 : bf16
    %409 = vector.broadcast %cst_151 : bf16 to vector<8x32xbf16>
    %410 = arith.mulf %409, %408 : vector<8x32xbf16>
    %411 = math.tanh %410 : vector<8x32xbf16>
    %cst_152 = arith.constant 5.000000e-01 : bf16
    %412 = vector.broadcast %cst_152 : bf16 to vector<8x32xbf16>
    %413 = arith.mulf %412, %411 : vector<8x32xbf16>
    %cst_153 = arith.constant 5.000000e-01 : bf16
    %414 = vector.broadcast %cst_153 : bf16 to vector<8x32xbf16>
    %415 = arith.addf %413, %414 : vector<8x32xbf16>
    %416 = vector.extract_strided_slice %407 {offsets = [0, 32], sizes = [8, 32], strides = [1, 1]} : vector<8x128xbf16> to vector<8x32xbf16>
    %cst_154 = arith.constant 5.000000e-01 : bf16
    %417 = vector.broadcast %cst_154 : bf16 to vector<8x32xbf16>
    %418 = arith.mulf %417, %416 : vector<8x32xbf16>
    %419 = math.tanh %418 : vector<8x32xbf16>
    %cst_155 = arith.constant 5.000000e-01 : bf16
    %420 = vector.broadcast %cst_155 : bf16 to vector<8x32xbf16>
    %421 = arith.mulf %420, %419 : vector<8x32xbf16>
    %cst_156 = arith.constant 5.000000e-01 : bf16
    %422 = vector.broadcast %cst_156 : bf16 to vector<8x32xbf16>
    %423 = arith.addf %421, %422 : vector<8x32xbf16>
    %424 = vector.extract_strided_slice %407 {offsets = [0, 64], sizes = [8, 32], strides = [1, 1]} : vector<8x128xbf16> to vector<8x32xbf16>
    %425 = math.tanh %424 : vector<8x32xbf16>
    %426 = vector.extract_strided_slice %407 {offsets = [0, 96], sizes = [8, 32], strides = [1, 1]} : vector<8x128xbf16> to vector<8x32xbf16>
    %cst_157 = arith.constant 5.000000e-01 : bf16
    %427 = vector.broadcast %cst_157 : bf16 to vector<8x32xbf16>
    %428 = arith.mulf %427, %426 : vector<8x32xbf16>
    %429 = math.tanh %428 : vector<8x32xbf16>
    %cst_158 = arith.constant 5.000000e-01 : bf16
    %430 = vector.broadcast %cst_158 : bf16 to vector<8x32xbf16>
    %431 = arith.mulf %430, %429 : vector<8x32xbf16>
    %cst_159 = arith.constant 5.000000e-01 : bf16
    %432 = vector.broadcast %cst_159 : bf16 to vector<8x32xbf16>
    %433 = arith.addf %431, %432 : vector<8x32xbf16>
    %434 = arith.extf %423 : vector<8x32xbf16> to vector<8x32xf32>
    %435 = arith.mulf %434, %343 : vector<8x32xf32>
    %436 = arith.mulf %415, %425 : vector<8x32xbf16>
    %437 = arith.extf %436 : vector<8x32xbf16> to vector<8x32xf32>
    %438 = arith.addf %435, %437 : vector<8x32xf32>
    %439 = math.tanh %438 : vector<8x32xf32>
    %440 = arith.extf %433 : vector<8x32xbf16> to vector<8x32xf32>
    %441 = arith.mulf %440, %439 : vector<8x32xf32>
    %442 = arith.truncf %406 : vector<8x32xf32> to vector<8x32xbf16>
    %443 = arith.index_cast %c3_i32 : i32 to index
    %c0_160 = arith.constant 0 : index
    %c0_161 = arith.constant 0 : index
    %444 = vector.load %arg16[%443, %c0_160, %c0_161] : memref<8x8x32xbf16, #tpu.memory_space<vmem>>, vector<1x8x32xbf16>
    %445 = vector.shape_cast %444 : vector<1x8x32xbf16> to vector<8x32xbf16>
    %446 = vector.shape_cast %442 : vector<8x32xbf16> to vector<1x8x32xbf16>
    tpu.vector_store %arg16[%443, %c0_160, %c0_161], %446 {strides = array<i32>} : memref<8x8x32xbf16, #tpu.memory_space<vmem>>, vector<1x8x32xbf16>,
    %447 = arith.truncf %441 : vector<8x32xf32> to vector<8x32xbf16>
    %448 = arith.index_cast %364 : i32 to index
    %c0_162 = arith.constant 0 : index
    %c0_163 = arith.constant 0 : index
    %449 = vector.load %arg17[%448, %c0_162, %c0_163] : memref<8x8x32xbf16, #tpu.memory_space<vmem>>, vector<1x8x32xbf16>
    %450 = vector.shape_cast %449 : vector<1x8x32xbf16> to vector<8x32xbf16>
    %451 = vector.shape_cast %447 : vector<8x32xbf16> to vector<1x8x32xbf16>
    tpu.vector_store %arg17[%448, %c0_162, %c0_163], %451 {strides = array<i32>} : memref<8x8x32xbf16, #tpu.memory_space<vmem>>, vector<1x8x32xbf16>,
    %c4_i32 = arith.constant 4 : i32
    %452 = arith.index_cast %c4_i32 : i32 to index
    %c0_164 = arith.constant 0 : index
    %c0_165 = arith.constant 0 : index
    %453 = vector.load %arg14[%452, %c0_164, %c0_165] : memref<8x8x128xbf16, #tpu.memory_space<vmem>>, vector<1x8x128xbf16>
    %454 = vector.shape_cast %453 : vector<1x8x128xbf16> to vector<8x128xbf16>
    %455 = arith.extf %454 : vector<8x128xbf16> to vector<8x128xf32>
    %456 = arith.truncf %406 : vector<8x32xf32> to vector<8x32xbf16>
    %cst_166 = arith.constant dense<0.000000e+00> : vector<8x128xf32>
    %457 = tpu.matmul %456, %39, %cst_166 {dimension_numbers = #tpu.dot_dimension_numbers<[1], [0], [0], [1], [0, 0, 1, 1], [], []>} : vector<8x32xbf16>, vector<32x128xbf16>, vector<8x128xf32> -> vector<8x128xf32>
    %458 = arith.addf %455, %457 : vector<8x128xf32>
    %c7_i32_167 = arith.constant 7 : i32
    %459 = arith.subi %c7_i32_167, %c4_i32 : i32
    %460 = arith.index_cast %459 : i32 to index
    %c0_168 = arith.constant 0 : index
    %c0_169 = arith.constant 0 : index
    %461 = vector.load %arg15[%460, %c0_168, %c0_169] : memref<8x8x128xbf16, #tpu.memory_space<vmem>>, vector<1x8x128xbf16>
    %462 = vector.shape_cast %461 : vector<1x8x128xbf16> to vector<8x128xbf16>
    %463 = arith.extf %462 : vector<8x128xbf16> to vector<8x128xf32>
    %464 = arith.truncf %441 : vector<8x32xf32> to vector<8x32xbf16>
    %cst_170 = arith.constant dense<0.000000e+00> : vector<8x128xf32>
    %465 = tpu.matmul %464, %40, %cst_170 {dimension_numbers = #tpu.dot_dimension_numbers<[1], [0], [0], [1], [0, 0, 1, 1], [], []>} : vector<8x32xbf16>, vector<32x128xbf16>, vector<8x128xf32> -> vector<8x128xf32>
    %466 = arith.addf %463, %465 : vector<8x128xf32>
    %467 = arith.truncf %458 : vector<8x128xf32> to vector<8x128xbf16>
    %468 = vector.extract_strided_slice %467 {offsets = [0, 0], sizes = [8, 32], strides = [1, 1]} : vector<8x128xbf16> to vector<8x32xbf16>
    %cst_171 = arith.constant 5.000000e-01 : bf16
    %469 = vector.broadcast %cst_171 : bf16 to vector<8x32xbf16>
    %470 = arith.mulf %469, %468 : vector<8x32xbf16>
    %471 = math.tanh %470 : vector<8x32xbf16>
    %cst_172 = arith.constant 5.000000e-01 : bf16
    %472 = vector.broadcast %cst_172 : bf16 to vector<8x32xbf16>
    %473 = arith.mulf %472, %471 : vector<8x32xbf16>
    %cst_173 = arith.constant 5.000000e-01 : bf16
    %474 = vector.broadcast %cst_173 : bf16 to vector<8x32xbf16>
    %475 = arith.addf %473, %474 : vector<8x32xbf16>
    %476 = vector.extract_strided_slice %467 {offsets = [0, 32], sizes = [8, 32], strides = [1, 1]} : vector<8x128xbf16> to vector<8x32xbf16>
    %cst_174 = arith.constant 5.000000e-01 : bf16
    %477 = vector.broadcast %cst_174 : bf16 to vector<8x32xbf16>
    %478 = arith.mulf %477, %476 : vector<8x32xbf16>
    %479 = math.tanh %478 : vector<8x32xbf16>
    %cst_175 = arith.constant 5.000000e-01 : bf16
    %480 = vector.broadcast %cst_175 : bf16 to vector<8x32xbf16>
    %481 = arith.mulf %480, %479 : vector<8x32xbf16>
    %cst_176 = arith.constant 5.000000e-01 : bf16
    %482 = vector.broadcast %cst_176 : bf16 to vector<8x32xbf16>
    %483 = arith.addf %481, %482 : vector<8x32xbf16>
    %484 = vector.extract_strided_slice %467 {offsets = [0, 64], sizes = [8, 32], strides = [1, 1]} : vector<8x128xbf16> to vector<8x32xbf16>
    %485 = math.tanh %484 : vector<8x32xbf16>
    %486 = vector.extract_strided_slice %467 {offsets = [0, 96], sizes = [8, 32], strides = [1, 1]} : vector<8x128xbf16> to vector<8x32xbf16>
    %cst_177 = arith.constant 5.000000e-01 : bf16
    %487 = vector.broadcast %cst_177 : bf16 to vector<8x32xbf16>
    %488 = arith.mulf %487, %486 : vector<8x32xbf16>
    %489 = math.tanh %488 : vector<8x32xbf16>
    %cst_178 = arith.constant 5.000000e-01 : bf16
    %490 = vector.broadcast %cst_178 : bf16 to vector<8x32xbf16>
    %491 = arith.mulf %490, %489 : vector<8x32xbf16>
    %cst_179 = arith.constant 5.000000e-01 : bf16
    %492 = vector.broadcast %cst_179 : bf16 to vector<8x32xbf16>
    %493 = arith.addf %491, %492 : vector<8x32xbf16>
    %494 = arith.extf %483 : vector<8x32xbf16> to vector<8x32xf32>
    %495 = arith.mulf %494, %403 : vector<8x32xf32>
    %496 = arith.mulf %475, %485 : vector<8x32xbf16>
    %497 = arith.extf %496 : vector<8x32xbf16> to vector<8x32xf32>
    %498 = arith.addf %495, %497 : vector<8x32xf32>
    %499 = math.tanh %498 : vector<8x32xf32>
    %500 = arith.extf %493 : vector<8x32xbf16> to vector<8x32xf32>
    %501 = arith.mulf %500, %499 : vector<8x32xf32>
    %502 = arith.truncf %466 : vector<8x128xf32> to vector<8x128xbf16>
    %503 = vector.extract_strided_slice %502 {offsets = [0, 0], sizes = [8, 32], strides = [1, 1]} : vector<8x128xbf16> to vector<8x32xbf16>
    %cst_180 = arith.constant 5.000000e-01 : bf16
    %504 = vector.broadcast %cst_180 : bf16 to vector<8x32xbf16>
    %505 = arith.mulf %504, %503 : vector<8x32xbf16>
    %506 = math.tanh %505 : vector<8x32xbf16>
    %cst_181 = arith.constant 5.000000e-01 : bf16
    %507 = vector.broadcast %cst_181 : bf16 to vector<8x32xbf16>
    %508 = arith.mulf %507, %506 : vector<8x32xbf16>
    %cst_182 = arith.constant 5.000000e-01 : bf16
    %509 = vector.broadcast %cst_182 : bf16 to vector<8x32xbf16>
    %510 = arith.addf %508, %509 : vector<8x32xbf16>
    %511 = vector.extract_strided_slice %502 {offsets = [0, 32], sizes = [8, 32], strides = [1, 1]} : vector<8x128xbf16> to vector<8x32xbf16>
    %cst_183 = arith.constant 5.000000e-01 : bf16
    %512 = vector.broadcast %cst_183 : bf16 to vector<8x32xbf16>
    %513 = arith.mulf %512, %511 : vector<8x32xbf16>
    %514 = math.tanh %513 : vector<8x32xbf16>
    %cst_184 = arith.constant 5.000000e-01 : bf16
    %515 = vector.broadcast %cst_184 : bf16 to vector<8x32xbf16>
    %516 = arith.mulf %515, %514 : vector<8x32xbf16>
    %cst_185 = arith.constant 5.000000e-01 : bf16
    %517 = vector.broadcast %cst_185 : bf16 to vector<8x32xbf16>
    %518 = arith.addf %516, %517 : vector<8x32xbf16>
    %519 = vector.extract_strided_slice %502 {offsets = [0, 64], sizes = [8, 32], strides = [1, 1]} : vector<8x128xbf16> to vector<8x32xbf16>
    %520 = math.tanh %519 : vector<8x32xbf16>
    %521 = vector.extract_strided_slice %502 {offsets = [0, 96], sizes = [8, 32], strides = [1, 1]} : vector<8x128xbf16> to vector<8x32xbf16>
    %cst_186 = arith.constant 5.000000e-01 : bf16
    %522 = vector.broadcast %cst_186 : bf16 to vector<8x32xbf16>
    %523 = arith.mulf %522, %521 : vector<8x32xbf16>
    %524 = math.tanh %523 : vector<8x32xbf16>
    %cst_187 = arith.constant 5.000000e-01 : bf16
    %525 = vector.broadcast %cst_187 : bf16 to vector<8x32xbf16>
    %526 = arith.mulf %525, %524 : vector<8x32xbf16>
    %cst_188 = arith.constant 5.000000e-01 : bf16
    %527 = vector.broadcast %cst_188 : bf16 to vector<8x32xbf16>
    %528 = arith.addf %526, %527 : vector<8x32xbf16>
    %529 = arith.extf %518 : vector<8x32xbf16> to vector<8x32xf32>
    %530 = arith.mulf %529, %438 : vector<8x32xf32>
    %531 = arith.mulf %510, %520 : vector<8x32xbf16>
    %532 = arith.extf %531 : vector<8x32xbf16> to vector<8x32xf32>
    %533 = arith.addf %530, %532 : vector<8x32xf32>
    %534 = math.tanh %533 : vector<8x32xf32>
    %535 = arith.extf %528 : vector<8x32xbf16> to vector<8x32xf32>
    %536 = arith.mulf %535, %534 : vector<8x32xf32>
    %537 = arith.truncf %501 : vector<8x32xf32> to vector<8x32xbf16>
    %538 = arith.index_cast %c4_i32 : i32 to index
    %c0_189 = arith.constant 0 : index
    %c0_190 = arith.constant 0 : index
    %539 = vector.load %arg16[%538, %c0_189, %c0_190] : memref<8x8x32xbf16, #tpu.memory_space<vmem>>, vector<1x8x32xbf16>
    %540 = vector.shape_cast %539 : vector<1x8x32xbf16> to vector<8x32xbf16>
    %541 = vector.shape_cast %537 : vector<8x32xbf16> to vector<1x8x32xbf16>
    tpu.vector_store %arg16[%538, %c0_189, %c0_190], %541 {strides = array<i32>} : memref<8x8x32xbf16, #tpu.memory_space<vmem>>, vector<1x8x32xbf16>,
    %542 = arith.truncf %536 : vector<8x32xf32> to vector<8x32xbf16>
    %543 = arith.index_cast %459 : i32 to index
    %c0_191 = arith.constant 0 : index
    %c0_192 = arith.constant 0 : index
    %544 = vector.load %arg17[%543, %c0_191, %c0_192] : memref<8x8x32xbf16, #tpu.memory_space<vmem>>, vector<1x8x32xbf16>
    %545 = vector.shape_cast %544 : vector<1x8x32xbf16> to vector<8x32xbf16>
    %546 = vector.shape_cast %542 : vector<8x32xbf16> to vector<1x8x32xbf16>
    tpu.vector_store %arg17[%543, %c0_191, %c0_192], %546 {strides = array<i32>} : memref<8x8x32xbf16, #tpu.memory_space<vmem>>, vector<1x8x32xbf16>,
    %c5_i32 = arith.constant 5 : i32
    %547 = arith.index_cast %c5_i32 : i32 to index
    %c0_193 = arith.constant 0 : index
    %c0_194 = arith.constant 0 : index
    %548 = vector.load %arg14[%547, %c0_193, %c0_194] : memref<8x8x128xbf16, #tpu.memory_space<vmem>>, vector<1x8x128xbf16>
    %549 = vector.shape_cast %548 : vector<1x8x128xbf16> to vector<8x128xbf16>
    %550 = arith.extf %549 : vector<8x128xbf16> to vector<8x128xf32>
    %551 = arith.truncf %501 : vector<8x32xf32> to vector<8x32xbf16>
    %cst_195 = arith.constant dense<0.000000e+00> : vector<8x128xf32>
    %552 = tpu.matmul %551, %39, %cst_195 {dimension_numbers = #tpu.dot_dimension_numbers<[1], [0], [0], [1], [0, 0, 1, 1], [], []>} : vector<8x32xbf16>, vector<32x128xbf16>, vector<8x128xf32> -> vector<8x128xf32>
    %553 = arith.addf %550, %552 : vector<8x128xf32>
    %c7_i32_196 = arith.constant 7 : i32
    %554 = arith.subi %c7_i32_196, %c5_i32 : i32
    %555 = arith.index_cast %554 : i32 to index
    %c0_197 = arith.constant 0 : index
    %c0_198 = arith.constant 0 : index
    %556 = vector.load %arg15[%555, %c0_197, %c0_198] : memref<8x8x128xbf16, #tpu.memory_space<vmem>>, vector<1x8x128xbf16>
    %557 = vector.shape_cast %556 : vector<1x8x128xbf16> to vector<8x128xbf16>
    %558 = arith.extf %557 : vector<8x128xbf16> to vector<8x128xf32>
    %559 = arith.truncf %536 : vector<8x32xf32> to vector<8x32xbf16>
    %cst_199 = arith.constant dense<0.000000e+00> : vector<8x128xf32>
    %560 = tpu.matmul %559, %40, %cst_199 {dimension_numbers = #tpu.dot_dimension_numbers<[1], [0], [0], [1], [0, 0, 1, 1], [], []>} : vector<8x32xbf16>, vector<32x128xbf16>, vector<8x128xf32> -> vector<8x128xf32>
    %561 = arith.addf %558, %560 : vector<8x128xf32>
    %562 = arith.truncf %553 : vector<8x128xf32> to vector<8x128xbf16>
    %563 = vector.extract_strided_slice %562 {offsets = [0, 0], sizes = [8, 32], strides = [1, 1]} : vector<8x128xbf16> to vector<8x32xbf16>
    %cst_200 = arith.constant 5.000000e-01 : bf16
    %564 = vector.broadcast %cst_200 : bf16 to vector<8x32xbf16>
    %565 = arith.mulf %564, %563 : vector<8x32xbf16>
    %566 = math.tanh %565 : vector<8x32xbf16>
    %cst_201 = arith.constant 5.000000e-01 : bf16
    %567 = vector.broadcast %cst_201 : bf16 to vector<8x32xbf16>
    %568 = arith.mulf %567, %566 : vector<8x32xbf16>
    %cst_202 = arith.constant 5.000000e-01 : bf16
    %569 = vector.broadcast %cst_202 : bf16 to vector<8x32xbf16>
    %570 = arith.addf %568, %569 : vector<8x32xbf16>
    %571 = vector.extract_strided_slice %562 {offsets = [0, 32], sizes = [8, 32], strides = [1, 1]} : vector<8x128xbf16> to vector<8x32xbf16>
    %cst_203 = arith.constant 5.000000e-01 : bf16
    %572 = vector.broadcast %cst_203 : bf16 to vector<8x32xbf16>
    %573 = arith.mulf %572, %571 : vector<8x32xbf16>
    %574 = math.tanh %573 : vector<8x32xbf16>
    %cst_204 = arith.constant 5.000000e-01 : bf16
    %575 = vector.broadcast %cst_204 : bf16 to vector<8x32xbf16>
    %576 = arith.mulf %575, %574 : vector<8x32xbf16>
    %cst_205 = arith.constant 5.000000e-01 : bf16
    %577 = vector.broadcast %cst_205 : bf16 to vector<8x32xbf16>
    %578 = arith.addf %576, %577 : vector<8x32xbf16>
    %579 = vector.extract_strided_slice %562 {offsets = [0, 64], sizes = [8, 32], strides = [1, 1]} : vector<8x128xbf16> to vector<8x32xbf16>
    %580 = math.tanh %579 : vector<8x32xbf16>
    %581 = vector.extract_strided_slice %562 {offsets = [0, 96], sizes = [8, 32], strides = [1, 1]} : vector<8x128xbf16> to vector<8x32xbf16>
    %cst_206 = arith.constant 5.000000e-01 : bf16
    %582 = vector.broadcast %cst_206 : bf16 to vector<8x32xbf16>
    %583 = arith.mulf %582, %581 : vector<8x32xbf16>
    %584 = math.tanh %583 : vector<8x32xbf16>
    %cst_207 = arith.constant 5.000000e-01 : bf16
    %585 = vector.broadcast %cst_207 : bf16 to vector<8x32xbf16>
    %586 = arith.mulf %585, %584 : vector<8x32xbf16>
    %cst_208 = arith.constant 5.000000e-01 : bf16
    %587 = vector.broadcast %cst_208 : bf16 to vector<8x32xbf16>
    %588 = arith.addf %586, %587 : vector<8x32xbf16>
    %589 = arith.extf %578 : vector<8x32xbf16> to vector<8x32xf32>
    %590 = arith.mulf %589, %498 : vector<8x32xf32>
    %591 = arith.mulf %570, %580 : vector<8x32xbf16>
    %592 = arith.extf %591 : vector<8x32xbf16> to vector<8x32xf32>
    %593 = arith.addf %590, %592 : vector<8x32xf32>
    %594 = math.tanh %593 : vector<8x32xf32>
    %595 = arith.extf %588 : vector<8x32xbf16> to vector<8x32xf32>
    %596 = arith.mulf %595, %594 : vector<8x32xf32>
    %597 = arith.truncf %561 : vector<8x128xf32> to vector<8x128xbf16>
    %598 = vector.extract_strided_slice %597 {offsets = [0, 0], sizes = [8, 32], strides = [1, 1]} : vector<8x128xbf16> to vector<8x32xbf16>
    %cst_209 = arith.constant 5.000000e-01 : bf16
    %599 = vector.broadcast %cst_209 : bf16 to vector<8x32xbf16>
    %600 = arith.mulf %599, %598 : vector<8x32xbf16>
    %601 = math.tanh %600 : vector<8x32xbf16>
    %cst_210 = arith.constant 5.000000e-01 : bf16
    %602 = vector.broadcast %cst_210 : bf16 to vector<8x32xbf16>
    %603 = arith.mulf %602, %601 : vector<8x32xbf16>
    %cst_211 = arith.constant 5.000000e-01 : bf16
    %604 = vector.broadcast %cst_211 : bf16 to vector<8x32xbf16>
    %605 = arith.addf %603, %604 : vector<8x32xbf16>
    %606 = vector.extract_strided_slice %597 {offsets = [0, 32], sizes = [8, 32], strides = [1, 1]} : vector<8x128xbf16> to vector<8x32xbf16>
    %cst_212 = arith.constant 5.000000e-01 : bf16
    %607 = vector.broadcast %cst_212 : bf16 to vector<8x32xbf16>
    %608 = arith.mulf %607, %606 : vector<8x32xbf16>
    %609 = math.tanh %608 : vector<8x32xbf16>
    %cst_213 = arith.constant 5.000000e-01 : bf16
    %610 = vector.broadcast %cst_213 : bf16 to vector<8x32xbf16>
    %611 = arith.mulf %610, %609 : vector<8x32xbf16>
    %cst_214 = arith.constant 5.000000e-01 : bf16
    %612 = vector.broadcast %cst_214 : bf16 to vector<8x32xbf16>
    %613 = arith.addf %611, %612 : vector<8x32xbf16>
    %614 = vector.extract_strided_slice %597 {offsets = [0, 64], sizes = [8, 32], strides = [1, 1]} : vector<8x128xbf16> to vector<8x32xbf16>
    %615 = math.tanh %614 : vector<8x32xbf16>
    %616 = vector.extract_strided_slice %597 {offsets = [0, 96], sizes = [8, 32], strides = [1, 1]} : vector<8x128xbf16> to vector<8x32xbf16>
    %cst_215 = arith.constant 5.000000e-01 : bf16
    %617 = vector.broadcast %cst_215 : bf16 to vector<8x32xbf16>
    %618 = arith.mulf %617, %616 : vector<8x32xbf16>
    %619 = math.tanh %618 : vector<8x32xbf16>
    %cst_216 = arith.constant 5.000000e-01 : bf16
    %620 = vector.broadcast %cst_216 : bf16 to vector<8x32xbf16>
    %621 = arith.mulf %620, %619 : vector<8x32xbf16>
    %cst_217 = arith.constant 5.000000e-01 : bf16
    %622 = vector.broadcast %cst_217 : bf16 to vector<8x32xbf16>
    %623 = arith.addf %621, %622 : vector<8x32xbf16>
    %624 = arith.extf %613 : vector<8x32xbf16> to vector<8x32xf32>
    %625 = arith.mulf %624, %533 : vector<8x32xf32>
    %626 = arith.mulf %605, %615 : vector<8x32xbf16>
    %627 = arith.extf %626 : vector<8x32xbf16> to vector<8x32xf32>
    %628 = arith.addf %625, %627 : vector<8x32xf32>
    %629 = math.tanh %628 : vector<8x32xf32>
    %630 = arith.extf %623 : vector<8x32xbf16> to vector<8x32xf32>
    %631 = arith.mulf %630, %629 : vector<8x32xf32>
    %632 = arith.truncf %596 : vector<8x32xf32> to vector<8x32xbf16>
    %633 = arith.index_cast %c5_i32 : i32 to index
    %c0_218 = arith.constant 0 : index
    %c0_219 = arith.constant 0 : index
    %634 = vector.load %arg16[%633, %c0_218, %c0_219] : memref<8x8x32xbf16, #tpu.memory_space<vmem>>, vector<1x8x32xbf16>
    %635 = vector.shape_cast %634 : vector<1x8x32xbf16> to vector<8x32xbf16>
    %636 = vector.shape_cast %632 : vector<8x32xbf16> to vector<1x8x32xbf16>
    tpu.vector_store %arg16[%633, %c0_218, %c0_219], %636 {strides = array<i32>} : memref<8x8x32xbf16, #tpu.memory_space<vmem>>, vector<1x8x32xbf16>,
    %637 = arith.truncf %631 : vector<8x32xf32> to vector<8x32xbf16>
    %638 = arith.index_cast %554 : i32 to index
    %c0_220 = arith.constant 0 : index
    %c0_221 = arith.constant 0 : index
    %639 = vector.load %arg17[%638, %c0_220, %c0_221] : memref<8x8x32xbf16, #tpu.memory_space<vmem>>, vector<1x8x32xbf16>
    %640 = vector.shape_cast %639 : vector<1x8x32xbf16> to vector<8x32xbf16>
    %641 = vector.shape_cast %637 : vector<8x32xbf16> to vector<1x8x32xbf16>
    tpu.vector_store %arg17[%638, %c0_220, %c0_221], %641 {strides = array<i32>} : memref<8x8x32xbf16, #tpu.memory_space<vmem>>, vector<1x8x32xbf16>,
    %c6_i32 = arith.constant 6 : i32
    %642 = arith.index_cast %c6_i32 : i32 to index
    %c0_222 = arith.constant 0 : index
    %c0_223 = arith.constant 0 : index
    %643 = vector.load %arg14[%642, %c0_222, %c0_223] : memref<8x8x128xbf16, #tpu.memory_space<vmem>>, vector<1x8x128xbf16>
    %644 = vector.shape_cast %643 : vector<1x8x128xbf16> to vector<8x128xbf16>
    %645 = arith.extf %644 : vector<8x128xbf16> to vector<8x128xf32>
    %646 = arith.truncf %596 : vector<8x32xf32> to vector<8x32xbf16>
    %cst_224 = arith.constant dense<0.000000e+00> : vector<8x128xf32>
    %647 = tpu.matmul %646, %39, %cst_224 {dimension_numbers = #tpu.dot_dimension_numbers<[1], [0], [0], [1], [0, 0, 1, 1], [], []>} : vector<8x32xbf16>, vector<32x128xbf16>, vector<8x128xf32> -> vector<8x128xf32>
    %648 = arith.addf %645, %647 : vector<8x128xf32>
    %c7_i32_225 = arith.constant 7 : i32
    %649 = arith.subi %c7_i32_225, %c6_i32 : i32
    %650 = arith.index_cast %649 : i32 to index
    %c0_226 = arith.constant 0 : index
    %c0_227 = arith.constant 0 : index
    %651 = vector.load %arg15[%650, %c0_226, %c0_227] : memref<8x8x128xbf16, #tpu.memory_space<vmem>>, vector<1x8x128xbf16>
    %652 = vector.shape_cast %651 : vector<1x8x128xbf16> to vector<8x128xbf16>
    %653 = arith.extf %652 : vector<8x128xbf16> to vector<8x128xf32>
    %654 = arith.truncf %631 : vector<8x32xf32> to vector<8x32xbf16>
    %cst_228 = arith.constant dense<0.000000e+00> : vector<8x128xf32>
    %655 = tpu.matmul %654, %40, %cst_228 {dimension_numbers = #tpu.dot_dimension_numbers<[1], [0], [0], [1], [0, 0, 1, 1], [], []>} : vector<8x32xbf16>, vector<32x128xbf16>, vector<8x128xf32> -> vector<8x128xf32>
    %656 = arith.addf %653, %655 : vector<8x128xf32>
    %657 = arith.truncf %648 : vector<8x128xf32> to vector<8x128xbf16>
    %658 = vector.extract_strided_slice %657 {offsets = [0, 0], sizes = [8, 32], strides = [1, 1]} : vector<8x128xbf16> to vector<8x32xbf16>
    %cst_229 = arith.constant 5.000000e-01 : bf16
    %659 = vector.broadcast %cst_229 : bf16 to vector<8x32xbf16>
    %660 = arith.mulf %659, %658 : vector<8x32xbf16>
    %661 = math.tanh %660 : vector<8x32xbf16>
    %cst_230 = arith.constant 5.000000e-01 : bf16
    %662 = vector.broadcast %cst_230 : bf16 to vector<8x32xbf16>
    %663 = arith.mulf %662, %661 : vector<8x32xbf16>
    %cst_231 = arith.constant 5.000000e-01 : bf16
    %664 = vector.broadcast %cst_231 : bf16 to vector<8x32xbf16>
    %665 = arith.addf %663, %664 : vector<8x32xbf16>
    %666 = vector.extract_strided_slice %657 {offsets = [0, 32], sizes = [8, 32], strides = [1, 1]} : vector<8x128xbf16> to vector<8x32xbf16>
    %cst_232 = arith.constant 5.000000e-01 : bf16
    %667 = vector.broadcast %cst_232 : bf16 to vector<8x32xbf16>
    %668 = arith.mulf %667, %666 : vector<8x32xbf16>
    %669 = math.tanh %668 : vector<8x32xbf16>
    %cst_233 = arith.constant 5.000000e-01 : bf16
    %670 = vector.broadcast %cst_233 : bf16 to vector<8x32xbf16>
    %671 = arith.mulf %670, %669 : vector<8x32xbf16>
    %cst_234 = arith.constant 5.000000e-01 : bf16
    %672 = vector.broadcast %cst_234 : bf16 to vector<8x32xbf16>
    %673 = arith.addf %671, %672 : vector<8x32xbf16>
    %674 = vector.extract_strided_slice %657 {offsets = [0, 64], sizes = [8, 32], strides = [1, 1]} : vector<8x128xbf16> to vector<8x32xbf16>
    %675 = math.tanh %674 : vector<8x32xbf16>
    %676 = vector.extract_strided_slice %657 {offsets = [0, 96], sizes = [8, 32], strides = [1, 1]} : vector<8x128xbf16> to vector<8x32xbf16>
    %cst_235 = arith.constant 5.000000e-01 : bf16
    %677 = vector.broadcast %cst_235 : bf16 to vector<8x32xbf16>
    %678 = arith.mulf %677, %676 : vector<8x32xbf16>
    %679 = math.tanh %678 : vector<8x32xbf16>
    %cst_236 = arith.constant 5.000000e-01 : bf16
    %680 = vector.broadcast %cst_236 : bf16 to vector<8x32xbf16>
    %681 = arith.mulf %680, %679 : vector<8x32xbf16>
    %cst_237 = arith.constant 5.000000e-01 : bf16
    %682 = vector.broadcast %cst_237 : bf16 to vector<8x32xbf16>
    %683 = arith.addf %681, %682 : vector<8x32xbf16>
    %684 = arith.extf %673 : vector<8x32xbf16> to vector<8x32xf32>
    %685 = arith.mulf %684, %593 : vector<8x32xf32>
    %686 = arith.mulf %665, %675 : vector<8x32xbf16>
    %687 = arith.extf %686 : vector<8x32xbf16> to vector<8x32xf32>
    %688 = arith.addf %685, %687 : vector<8x32xf32>
    %689 = math.tanh %688 : vector<8x32xf32>
    %690 = arith.extf %683 : vector<8x32xbf16> to vector<8x32xf32>
    %691 = arith.mulf %690, %689 : vector<8x32xf32>
    %692 = arith.truncf %656 : vector<8x128xf32> to vector<8x128xbf16>
    %693 = vector.extract_strided_slice %692 {offsets = [0, 0], sizes = [8, 32], strides = [1, 1]} : vector<8x128xbf16> to vector<8x32xbf16>
    %cst_238 = arith.constant 5.000000e-01 : bf16
    %694 = vector.broadcast %cst_238 : bf16 to vector<8x32xbf16>
    %695 = arith.mulf %694, %693 : vector<8x32xbf16>
    %696 = math.tanh %695 : vector<8x32xbf16>
    %cst_239 = arith.constant 5.000000e-01 : bf16
    %697 = vector.broadcast %cst_239 : bf16 to vector<8x32xbf16>
    %698 = arith.mulf %697, %696 : vector<8x32xbf16>
    %cst_240 = arith.constant 5.000000e-01 : bf16
    %699 = vector.broadcast %cst_240 : bf16 to vector<8x32xbf16>
    %700 = arith.addf %698, %699 : vector<8x32xbf16>
    %701 = vector.extract_strided_slice %692 {offsets = [0, 32], sizes = [8, 32], strides = [1, 1]} : vector<8x128xbf16> to vector<8x32xbf16>
    %cst_241 = arith.constant 5.000000e-01 : bf16
    %702 = vector.broadcast %cst_241 : bf16 to vector<8x32xbf16>
    %703 = arith.mulf %702, %701 : vector<8x32xbf16>
    %704 = math.tanh %703 : vector<8x32xbf16>
    %cst_242 = arith.constant 5.000000e-01 : bf16
    %705 = vector.broadcast %cst_242 : bf16 to vector<8x32xbf16>
    %706 = arith.mulf %705, %704 : vector<8x32xbf16>
    %cst_243 = arith.constant 5.000000e-01 : bf16
    %707 = vector.broadcast %cst_243 : bf16 to vector<8x32xbf16>
    %708 = arith.addf %706, %707 : vector<8x32xbf16>
    %709 = vector.extract_strided_slice %692 {offsets = [0, 64], sizes = [8, 32], strides = [1, 1]} : vector<8x128xbf16> to vector<8x32xbf16>
    %710 = math.tanh %709 : vector<8x32xbf16>
    %711 = vector.extract_strided_slice %692 {offsets = [0, 96], sizes = [8, 32], strides = [1, 1]} : vector<8x128xbf16> to vector<8x32xbf16>
    %cst_244 = arith.constant 5.000000e-01 : bf16
    %712 = vector.broadcast %cst_244 : bf16 to vector<8x32xbf16>
    %713 = arith.mulf %712, %711 : vector<8x32xbf16>
    %714 = math.tanh %713 : vector<8x32xbf16>
    %cst_245 = arith.constant 5.000000e-01 : bf16
    %715 = vector.broadcast %cst_245 : bf16 to vector<8x32xbf16>
    %716 = arith.mulf %715, %714 : vector<8x32xbf16>
    %cst_246 = arith.constant 5.000000e-01 : bf16
    %717 = vector.broadcast %cst_246 : bf16 to vector<8x32xbf16>
    %718 = arith.addf %716, %717 : vector<8x32xbf16>
    %719 = arith.extf %708 : vector<8x32xbf16> to vector<8x32xf32>
    %720 = arith.mulf %719, %628 : vector<8x32xf32>
    %721 = arith.mulf %700, %710 : vector<8x32xbf16>
    %722 = arith.extf %721 : vector<8x32xbf16> to vector<8x32xf32>
    %723 = arith.addf %720, %722 : vector<8x32xf32>
    %724 = math.tanh %723 : vector<8x32xf32>
    %725 = arith.extf %718 : vector<8x32xbf16> to vector<8x32xf32>
    %726 = arith.mulf %725, %724 : vector<8x32xf32>
    %727 = arith.truncf %691 : vector<8x32xf32> to vector<8x32xbf16>
    %728 = arith.index_cast %c6_i32 : i32 to index
    %c0_247 = arith.constant 0 : index
    %c0_248 = arith.constant 0 : index
    %729 = vector.load %arg16[%728, %c0_247, %c0_248] : memref<8x8x32xbf16, #tpu.memory_space<vmem>>, vector<1x8x32xbf16>
    %730 = vector.shape_cast %729 : vector<1x8x32xbf16> to vector<8x32xbf16>
    %731 = vector.shape_cast %727 : vector<8x32xbf16> to vector<1x8x32xbf16>
    tpu.vector_store %arg16[%728, %c0_247, %c0_248], %731 {strides = array<i32>} : memref<8x8x32xbf16, #tpu.memory_space<vmem>>, vector<1x8x32xbf16>,
    %732 = arith.truncf %726 : vector<8x32xf32> to vector<8x32xbf16>
    %733 = arith.index_cast %649 : i32 to index
    %c0_249 = arith.constant 0 : index
    %c0_250 = arith.constant 0 : index
    %734 = vector.load %arg17[%733, %c0_249, %c0_250] : memref<8x8x32xbf16, #tpu.memory_space<vmem>>, vector<1x8x32xbf16>
    %735 = vector.shape_cast %734 : vector<1x8x32xbf16> to vector<8x32xbf16>
    %736 = vector.shape_cast %732 : vector<8x32xbf16> to vector<1x8x32xbf16>
    tpu.vector_store %arg17[%733, %c0_249, %c0_250], %736 {strides = array<i32>} : memref<8x8x32xbf16, #tpu.memory_space<vmem>>, vector<1x8x32xbf16>,
    %c7_i32_251 = arith.constant 7 : i32
    %737 = arith.index_cast %c7_i32_251 : i32 to index
    %c0_252 = arith.constant 0 : index
    %c0_253 = arith.constant 0 : index
    %738 = vector.load %arg14[%737, %c0_252, %c0_253] : memref<8x8x128xbf16, #tpu.memory_space<vmem>>, vector<1x8x128xbf16>
    %739 = vector.shape_cast %738 : vector<1x8x128xbf16> to vector<8x128xbf16>
    %740 = arith.extf %739 : vector<8x128xbf16> to vector<8x128xf32>
    %741 = arith.truncf %691 : vector<8x32xf32> to vector<8x32xbf16>
    %cst_254 = arith.constant dense<0.000000e+00> : vector<8x128xf32>
    %742 = tpu.matmul %741, %39, %cst_254 {dimension_numbers = #tpu.dot_dimension_numbers<[1], [0], [0], [1], [0, 0, 1, 1], [], []>} : vector<8x32xbf16>, vector<32x128xbf16>, vector<8x128xf32> -> vector<8x128xf32>
    %743 = arith.addf %740, %742 : vector<8x128xf32>
    %c7_i32_255 = arith.constant 7 : i32
    %744 = arith.subi %c7_i32_255, %c7_i32_251 : i32
    %745 = arith.index_cast %744 : i32 to index
    %c0_256 = arith.constant 0 : index
    %c0_257 = arith.constant 0 : index
    %746 = vector.load %arg15[%745, %c0_256, %c0_257] : memref<8x8x128xbf16, #tpu.memory_space<vmem>>, vector<1x8x128xbf16>
    %747 = vector.shape_cast %746 : vector<1x8x128xbf16> to vector<8x128xbf16>
    %748 = arith.extf %747 : vector<8x128xbf16> to vector<8x128xf32>
    %749 = arith.truncf %726 : vector<8x32xf32> to vector<8x32xbf16>
    %cst_258 = arith.constant dense<0.000000e+00> : vector<8x128xf32>
    %750 = tpu.matmul %749, %40, %cst_258 {dimension_numbers = #tpu.dot_dimension_numbers<[1], [0], [0], [1], [0, 0, 1, 1], [], []>} : vector<8x32xbf16>, vector<32x128xbf16>, vector<8x128xf32> -> vector<8x128xf32>
    %751 = arith.addf %748, %750 : vector<8x128xf32>
    %752 = arith.truncf %743 : vector<8x128xf32> to vector<8x128xbf16>
    %753 = vector.extract_strided_slice %752 {offsets = [0, 0], sizes = [8, 32], strides = [1, 1]} : vector<8x128xbf16> to vector<8x32xbf16>
    %cst_259 = arith.constant 5.000000e-01 : bf16
    %754 = vector.broadcast %cst_259 : bf16 to vector<8x32xbf16>
    %755 = arith.mulf %754, %753 : vector<8x32xbf16>
    %756 = math.tanh %755 : vector<8x32xbf16>
    %cst_260 = arith.constant 5.000000e-01 : bf16
    %757 = vector.broadcast %cst_260 : bf16 to vector<8x32xbf16>
    %758 = arith.mulf %757, %756 : vector<8x32xbf16>
    %cst_261 = arith.constant 5.000000e-01 : bf16
    %759 = vector.broadcast %cst_261 : bf16 to vector<8x32xbf16>
    %760 = arith.addf %758, %759 : vector<8x32xbf16>
    %761 = vector.extract_strided_slice %752 {offsets = [0, 32], sizes = [8, 32], strides = [1, 1]} : vector<8x128xbf16> to vector<8x32xbf16>
    %cst_262 = arith.constant 5.000000e-01 : bf16
    %762 = vector.broadcast %cst_262 : bf16 to vector<8x32xbf16>
    %763 = arith.mulf %762, %761 : vector<8x32xbf16>
    %764 = math.tanh %763 : vector<8x32xbf16>
    %cst_263 = arith.constant 5.000000e-01 : bf16
    %765 = vector.broadcast %cst_263 : bf16 to vector<8x32xbf16>
    %766 = arith.mulf %765, %764 : vector<8x32xbf16>
    %cst_264 = arith.constant 5.000000e-01 : bf16
    %767 = vector.broadcast %cst_264 : bf16 to vector<8x32xbf16>
    %768 = arith.addf %766, %767 : vector<8x32xbf16>
    %769 = vector.extract_strided_slice %752 {offsets = [0, 64], sizes = [8, 32], strides = [1, 1]} : vector<8x128xbf16> to vector<8x32xbf16>
    %770 = math.tanh %769 : vector<8x32xbf16>
    %771 = vector.extract_strided_slice %752 {offsets = [0, 96], sizes = [8, 32], strides = [1, 1]} : vector<8x128xbf16> to vector<8x32xbf16>
    %cst_265 = arith.constant 5.000000e-01 : bf16
    %772 = vector.broadcast %cst_265 : bf16 to vector<8x32xbf16>
    %773 = arith.mulf %772, %771 : vector<8x32xbf16>
    %774 = math.tanh %773 : vector<8x32xbf16>
    %cst_266 = arith.constant 5.000000e-01 : bf16
    %775 = vector.broadcast %cst_266 : bf16 to vector<8x32xbf16>
    %776 = arith.mulf %775, %774 : vector<8x32xbf16>
    %cst_267 = arith.constant 5.000000e-01 : bf16
    %777 = vector.broadcast %cst_267 : bf16 to vector<8x32xbf16>
    %778 = arith.addf %776, %777 : vector<8x32xbf16>
    %779 = arith.extf %768 : vector<8x32xbf16> to vector<8x32xf32>
    %780 = arith.mulf %779, %688 : vector<8x32xf32>
    %781 = arith.mulf %760, %770 : vector<8x32xbf16>
    %782 = arith.extf %781 : vector<8x32xbf16> to vector<8x32xf32>
    %783 = arith.addf %780, %782 : vector<8x32xf32>
    %784 = math.tanh %783 : vector<8x32xf32>
    %785 = arith.extf %778 : vector<8x32xbf16> to vector<8x32xf32>
    %786 = arith.mulf %785, %784 : vector<8x32xf32>
    %787 = arith.truncf %751 : vector<8x128xf32> to vector<8x128xbf16>
    %788 = vector.extract_strided_slice %787 {offsets = [0, 0], sizes = [8, 32], strides = [1, 1]} : vector<8x128xbf16> to vector<8x32xbf16>
    %cst_268 = arith.constant 5.000000e-01 : bf16
    %789 = vector.broadcast %cst_268 : bf16 to vector<8x32xbf16>
    %790 = arith.mulf %789, %788 : vector<8x32xbf16>
    %791 = math.tanh %790 : vector<8x32xbf16>
    %cst_269 = arith.constant 5.000000e-01 : bf16
    %792 = vector.broadcast %cst_269 : bf16 to vector<8x32xbf16>
    %793 = arith.mulf %792, %791 : vector<8x32xbf16>
    %cst_270 = arith.constant 5.000000e-01 : bf16
    %794 = vector.broadcast %cst_270 : bf16 to vector<8x32xbf16>
    %795 = arith.addf %793, %794 : vector<8x32xbf16>
    %796 = vector.extract_strided_slice %787 {offsets = [0, 32], sizes = [8, 32], strides = [1, 1]} : vector<8x128xbf16> to vector<8x32xbf16>
    %cst_271 = arith.constant 5.000000e-01 : bf16
    %797 = vector.broadcast %cst_271 : bf16 to vector<8x32xbf16>
    %798 = arith.mulf %797, %796 : vector<8x32xbf16>
    %799 = math.tanh %798 : vector<8x32xbf16>
    %cst_272 = arith.constant 5.000000e-01 : bf16
    %800 = vector.broadcast %cst_272 : bf16 to vector<8x32xbf16>
    %801 = arith.mulf %800, %799 : vector<8x32xbf16>
    %cst_273 = arith.constant 5.000000e-01 : bf16
    %802 = vector.broadcast %cst_273 : bf16 to vector<8x32xbf16>
    %803 = arith.addf %801, %802 : vector<8x32xbf16>
    %804 = vector.extract_strided_slice %787 {offsets = [0, 64], sizes = [8, 32], strides = [1, 1]} : vector<8x128xbf16> to vector<8x32xbf16>
    %805 = math.tanh %804 : vector<8x32xbf16>
    %806 = vector.extract_strided_slice %787 {offsets = [0, 96], sizes = [8, 32], strides = [1, 1]} : vector<8x128xbf16> to vector<8x32xbf16>
    %cst_274 = arith.constant 5.000000e-01 : bf16
    %807 = vector.broadcast %cst_274 : bf16 to vector<8x32xbf16>
    %808 = arith.mulf %807, %806 : vector<8x32xbf16>
    %809 = math.tanh %808 : vector<8x32xbf16>
    %cst_275 = arith.constant 5.000000e-01 : bf16
    %810 = vector.broadcast %cst_275 : bf16 to vector<8x32xbf16>
    %811 = arith.mulf %810, %809 : vector<8x32xbf16>
    %cst_276 = arith.constant 5.000000e-01 : bf16
    %812 = vector.broadcast %cst_276 : bf16 to vector<8x32xbf16>
    %813 = arith.addf %811, %812 : vector<8x32xbf16>
    %814 = arith.extf %803 : vector<8x32xbf16> to vector<8x32xf32>
    %815 = arith.mulf %814, %723 : vector<8x32xf32>
    %816 = arith.mulf %795, %805 : vector<8x32xbf16>
    %817 = arith.extf %816 : vector<8x32xbf16> to vector<8x32xf32>
    %818 = arith.addf %815, %817 : vector<8x32xf32>
    %819 = math.tanh %818 : vector<8x32xf32>
    %820 = arith.extf %813 : vector<8x32xbf16> to vector<8x32xf32>
    %821 = arith.mulf %820, %819 : vector<8x32xf32>
    %822 = arith.truncf %786 : vector<8x32xf32> to vector<8x32xbf16>
    %823 = arith.index_cast %c7_i32_251 : i32 to index
    %c0_277 = arith.constant 0 : index
    %c0_278 = arith.constant 0 : index
    %824 = vector.load %arg16[%823, %c0_277, %c0_278] : memref<8x8x32xbf16, #tpu.memory_space<vmem>>, vector<1x8x32xbf16>
    %825 = vector.shape_cast %824 : vector<1x8x32xbf16> to vector<8x32xbf16>
    %826 = vector.shape_cast %822 : vector<8x32xbf16> to vector<1x8x32xbf16>
    tpu.vector_store %arg16[%823, %c0_277, %c0_278], %826 {strides = array<i32>} : memref<8x8x32xbf16, #tpu.memory_space<vmem>>, vector<1x8x32xbf16>,
    %827 = arith.truncf %821 : vector<8x32xf32> to vector<8x32xbf16>
    %828 = arith.index_cast %744 : i32 to index
    %c0_279 = arith.constant 0 : index
    %c0_280 = arith.constant 0 : index
    %829 = vector.load %arg17[%828, %c0_279, %c0_280] : memref<8x8x32xbf16, #tpu.memory_space<vmem>>, vector<1x8x32xbf16>
    %830 = vector.shape_cast %829 : vector<1x8x32xbf16> to vector<8x32xbf16>
    %831 = vector.shape_cast %827 : vector<8x32xbf16> to vector<1x8x32xbf16>
    tpu.vector_store %arg17[%828, %c0_279, %c0_280], %831 {strides = array<i32>} : memref<8x8x32xbf16, #tpu.memory_space<vmem>>, vector<1x8x32xbf16>,
    %c8_i32 = arith.constant 8 : i32
    %c0_281 = arith.constant 0 : index
    %c0_282 = arith.constant 0 : index
    %c0_283 = arith.constant 0 : index
    %832 = vector.load %arg16[%c0_281, %c0_282, %c0_283] : memref<8x8x32xbf16, #tpu.memory_space<vmem>>, vector<8x8x32xbf16>
    %833 = vector.shape_cast %832 : vector<8x8x32xbf16> to vector<64x32xbf16>
    %cst_284 = arith.constant dense<0.000000e+00> : vector<64x16xf32>
    %834 = tpu.matmul %833, %41, %cst_284 {dimension_numbers = #tpu.dot_dimension_numbers<[1], [0], [0], [1], [0, 0, 1, 1], [], []>} : vector<64x32xbf16>, vector<32x16xbf16>, vector<64x16xf32> -> vector<64x16xf32>
    %c0_285 = arith.constant 0 : index
    %c0_286 = arith.constant 0 : index
    %c0_287 = arith.constant 0 : index
    %835 = vector.load %arg13[%c0_285, %c0_286, %c0_287] : memref<8x8x16xf32, #tpu.memory_space<vmem>>, vector<8x8x16xf32>
    %836 = vector.shape_cast %834 : vector<64x16xf32> to vector<8x8x16xf32>
    %837 = arith.addf %835, %836 : vector<8x8x16xf32>
    %c0_288 = arith.constant 0 : index
    %c0_289 = arith.constant 0 : index
    %c0_290 = arith.constant 0 : index
    %838 = vector.load %arg13[%c0_288, %c0_289, %c0_290] : memref<8x8x16xf32, #tpu.memory_space<vmem>>, vector<8x8x16xf32>
    tpu.vector_store %arg13[%c0_288, %c0_289, %c0_290], %837 {strides = array<i32>} : memref<8x8x16xf32, #tpu.memory_space<vmem>>, vector<8x8x16xf32>,
    %c0_291 = arith.constant 0 : index
    %c0_292 = arith.constant 0 : index
    %c0_293 = arith.constant 0 : index
    %839 = vector.load %arg17[%c0_291, %c0_292, %c0_293] : memref<8x8x32xbf16, #tpu.memory_space<vmem>>, vector<8x8x32xbf16>
    %840 = vector.shape_cast %839 : vector<8x8x32xbf16> to vector<64x32xbf16>
    %cst_294 = arith.constant dense<0.000000e+00> : vector<64x16xf32>
    %841 = tpu.matmul %840, %42, %cst_294 {dimension_numbers = #tpu.dot_dimension_numbers<[1], [0], [0], [1], [0, 0, 1, 1], [], []>} : vector<64x32xbf16>, vector<32x16xbf16>, vector<64x16xf32> -> vector<64x16xf32>
    %c0_295 = arith.constant 0 : index
    %c0_296 = arith.constant 0 : index
    %c0_297 = arith.constant 0 : index
    %842 = vector.load %arg13[%c0_295, %c0_296, %c0_297] : memref<8x8x16xf32, #tpu.memory_space<vmem>>, vector<8x8x16xf32>
    %843 = vector.shape_cast %841 : vector<64x16xf32> to vector<8x8x16xf32>
    %844 = arith.addf %842, %843 : vector<8x8x16xf32>
    %c0_298 = arith.constant 0 : index
    %c0_299 = arith.constant 0 : index
    %c0_300 = arith.constant 0 : index
    %845 = vector.load %arg13[%c0_298, %c0_299, %c0_300] : memref<8x8x16xf32, #tpu.memory_space<vmem>>, vector<8x8x16xf32>
    tpu.vector_store %arg13[%c0_298, %c0_299, %c0_300], %844 {strides = array<i32>} : memref<8x8x16xf32, #tpu.memory_space<vmem>>, vector<8x8x16xf32>,
    return
  }
  func.func @transform_0(%arg0: i32) -> (i32, i32, i32) {
    %c0_i32 = arith.constant 0 : i32
    %c0_i32_0 = arith.constant 0 : i32
    %c0_i32_1 = arith.constant 0 : i32
    return %c0_i32, %arg0, %c0_i32_0 : i32, i32, i32
  }
  func.func @transform_1(%arg0: i32) -> (i32, i32) {
    %c0_i32 = arith.constant 0 : i32
    %c0_i32_0 = arith.constant 0 : i32
    %c0_i32_1 = arith.constant 0 : i32
    return %c0_i32, %c0_i32_0 : i32, i32
  }
  func.func @transform_2(%arg0: i32) -> (i32, i32) {
    %c0_i32 = arith.constant 0 : i32
    %c0_i32_0 = arith.constant 0 : i32
    %c0_i32_1 = arith.constant 0 : i32
    return %c0_i32, %c0_i32_0 : i32, i32
  }
  func.func @transform_3(%arg0: i32) -> (i32, i32) {
    %c0_i32 = arith.constant 0 : i32
    %c0_i32_0 = arith.constant 0 : i32
    %c0_i32_1 = arith.constant 0 : i32
    return %c0_i32, %c0_i32_0 : i32, i32
  }
  func.func @transform_4(%arg0: i32) -> (i32, i32) {
    %c0_i32 = arith.constant 0 : i32
    %c0_i32_0 = arith.constant 0 : i32
    %c0_i32_1 = arith.constant 0 : i32
    return %c0_i32, %c0_i32_0 : i32, i32
  }
  func.func @transform_5(%arg0: i32) -> (i32, i32) {
    %c0_i32 = arith.constant 0 : i32
    %c0_i32_0 = arith.constant 0 : i32
    %c0_i32_1 = arith.constant 0 : i32
    return %c0_i32, %c0_i32_0 : i32, i32
  }
  func.func @transform_6(%arg0: i32) -> (i32, i32) {
    %c0_i32 = arith.constant 0 : i32
    %c0_i32_0 = arith.constant 0 : i32
    %c0_i32_1 = arith.constant 0 : i32
    return %c0_i32, %c0_i32_0 : i32, i32
  }
  func.func @transform_7(%arg0: i32) -> (i32, i32) {
    %c0_i32 = arith.constant 0 : i32
    %c0_i32_0 = arith.constant 0 : i32
    %c0_i32_1 = arith.constant 0 : i32
    return %c0_i32, %c0_i32_0 : i32, i32
  }
  func.func @transform_8(%arg0: i32) -> (i32, i32) {
    %c0_i32 = arith.constant 0 : i32
    %c0_i32_0 = arith.constant 0 : i32
    %c0_i32_1 = arith.constant 0 : i32
    return %c0_i32, %c0_i32_0 : i32, i32
  }
  func.func @transform_9(%arg0: i32) -> (i32, i32) {
    %c0_i32 = arith.constant 0 : i32
    %c0_i32_0 = arith.constant 0 : i32
    %c0_i32_1 = arith.constant 0 : i32
    return %c0_i32, %c0_i32_0 : i32, i32
  }
  func.func @transform_10(%arg0: i32) -> (i32, i32) {
    %c0_i32 = arith.constant 0 : i32
    %c0_i32_0 = arith.constant 0 : i32
    %c0_i32_1 = arith.constant 0 : i32
    return %c0_i32, %c0_i32_0 : i32, i32
  }
  func.func @transform_11(%arg0: i32) -> (i32, i32) {
    %c0_i32 = arith.constant 0 : i32
    %c0_i32_0 = arith.constant 0 : i32
    %c0_i32_1 = arith.constant 0 : i32
    return %c0_i32, %c0_i32_0 : i32, i32
  }
  func.func @transform_12(%arg0: i32) -> (i32, i32, i32) {
    %c0_i32 = arith.constant 0 : i32
    %c0_i32_0 = arith.constant 0 : i32
    %c0_i32_1 = arith.constant 0 : i32
    return %c0_i32, %arg0, %c0_i32_0 : i32, i32, i32
  }
}

</mosaic_0001>

<llo_original>
// kernel: tpu_custom_call.1
$region0: #{tpu_custom_call.1}
  #allocation0 [shape = 'u32[]', space=smem, size = 0x4, offset = 0x4, fixed_abs, tag = 'smem constant byte address 0x4 - core index']
  #allocation1 [shape = 'u32[144,128]{1,0:T(1,128)}', space=vmem, size = 0x12000, scoped, tag = 'internal scratch']
  #allocation2 [shape = 'bf16[8,8,128]{2,1,0:T(8,128)(2,1)}', space=vmem, size = 0x4000, scoped, tag = 'scratch operand']
  #allocation3 [shape = 'bf16[8,8,128]{2,1,0:T(8,128)(2,1)}', space=vmem, size = 0x4000, scoped, tag = 'scratch operand']
  #allocation4 [shape = 'bf16[8,8,32]{2,1,0:T(8,128)(2,1)}', space=vmem, size = 0x4000, scoped, tag = 'scratch operand']
  #allocation5 [shape = 'bf16[8,8,32]{2,1,0:T(8,128)(2,1)}', space=vmem, size = 0x4000, scoped, tag = 'scratch operand']
  %s0 = inlined_call_operand.hbm [shape: f32[8,8,16], index: 0, kind: input, shape index: {}]
  %s1 = inlined_call_operand.vmem [shape: f32[1,16], index: 1, kind: input, shape index: {}]
  %s2 = inlined_call_operand.vmem [shape: f32[1,16], index: 2, kind: input, shape index: {}]
  %s3 = inlined_call_operand.vmem [shape: bf16[16,128], index: 3, kind: input, shape index: {}]
  %s4 = inlined_call_operand.hbm [shape: f32[1,128], index: 4, kind: input, shape index: {}]
  %s5 = inlined_call_operand.vmem [shape: bf16[32,128], index: 5, kind: input, shape index: {}]
  %s6 = inlined_call_operand.vmem [shape: bf16[16,128], index: 6, kind: input, shape index: {}]
  %s7 = inlined_call_operand.vmem [shape: f32[1,128], index: 7, kind: input, shape index: {}]
  %s8 = inlined_call_operand.vmem [shape: bf16[32,128], index: 8, kind: input, shape index: {}]
  %s9 = inlined_call_operand.vmem [shape: bf16[32,16], index: 9, kind: input, shape index: {}]
  %s10 = inlined_call_operand.vmem [shape: bf16[32,16], index: 10, kind: input, shape index: {}]
  %s11 = inlined_call_operand.vmem [shape: f32[1,16], index: 11, kind: input, shape index: {}]
  %s12 = inlined_call_operand.hbm [shape: f32[8,8,16], index: 12, kind: output, shape index: {}]
  %s13 = sld [smem:[#allocation0]]
  $region66: #{tpu_custom_call.1} parent=0
    _
  %s15 = ssub.s32 1, %s13
  %s16 = scalar_select 0, %s15, %s13
  $region1: #{tpu_custom_call.1} parent=0
    #allocation6 [shape = 'u8[32768]{0}', space=vmem, size = 0x8000, scoped, tag = 'input window, operand 0, single buffered']
    #allocation7 [shape = 's32[1]{0}', space=sflag, size = 0x4, scoped, tag = 'scoped memory for tpu_custom_call.1']
    #allocation8 [shape = 's32[1]{0}', space=sflag, size = 0x4, scoped, tag = 'scoped memory for tpu_custom_call.1']
    #allocation9 [shape = 'u8[512]{0}', space=vmem, size = 0x400, scoped, tag = 'input window, operand 4, single buffered']
    #allocation10 [shape = 's32[1]{0}', space=sflag, size = 0x4, scoped, tag = 'scoped memory for tpu_custom_call.1']
    #allocation11 [shape = 'u8[32768]{0}', space=vmem, size = 0x8000, scoped, tag = 'output window, operand 0, single buffered']
    %17 = vsyncpa [#allocation7], 0
    %18 = vsyncpa [#allocation10], 0
    %19 = vsyncpa [#allocation8], 0
    // Predicated region
    $region2: #{tpu_custom_call.1} parent=1 // pred_check
      _
    $region3: #{tpu_custom_call.1} parent=1 // pred_check_branch
      %21 = sbr.rel (0) target = $region5
    $region4: #{tpu_custom_call.1} parent=1 // pred_region
      %s23 = ssub.s32 1024, 1024
      %24 = vsyncadd [#allocation7], %s23
      %s25 = sshll.u32 [#allocation6], 4
      %s26 = int_to_ptr.vmem [resolvable:$true] %s25
      %31 = dma.hbm_to_vmem [thread:$0]  %s0, 1024, %s26, [#allocation7], 128, 128, 8
    $region5: #{tpu_custom_call.1} parent=1 // pred_fallthru
      _
    // Predicated region
    $region6: #{tpu_custom_call.1} parent=1 // pred_check
      _
    $region7: #{tpu_custom_call.1} parent=1 // pred_check_branch
      %33 = sbr.rel (0) target = $region9
    $region8: #{tpu_custom_call.1} parent=1 // pred_region
      _
    $region9: #{tpu_custom_call.1} parent=1 // pred_fallthru
      _
    // Predicated region
    $region10: #{tpu_custom_call.1} parent=1 // pred_check
      _
    $region11: #{tpu_custom_call.1} parent=1 // pred_check_branch
      %35 = sbr.rel (0) target = $region13
    $region12: #{tpu_custom_call.1} parent=1 // pred_region
      _
    $region13: #{tpu_custom_call.1} parent=1 // pred_fallthru
      _
    // Predicated region
    $region14: #{tpu_custom_call.1} parent=1 // pred_check
      _
    $region15: #{tpu_custom_call.1} parent=1 // pred_check_branch
      %37 = sbr.rel (0) target = $region17
    $region16: #{tpu_custom_call.1} parent=1 // pred_region
      _
    $region17: #{tpu_custom_call.1} parent=1 // pred_fallthru
      _
    // Predicated region
    $region18: #{tpu_custom_call.1} parent=1 // pred_check
      _
    $region19: #{tpu_custom_call.1} parent=1 // pred_check_branch
      %39 = sbr.rel (0) target = $region21
    $region20: #{tpu_custom_call.1} parent=1 // pred_region
      %s41 = ssub.s32 16, 16
      %42 = vsyncadd [#allocation10], %s41
      %s44 = sshll.u32 [#allocation9], 4
      %s45 = int_to_ptr.vmem [resolvable:$true] %s44
      %47 = dma.hbm_to_vmem [thread:$0]  %s4, 16, %s45, [#allocation10]
    $region21: #{tpu_custom_call.1} parent=1 // pred_fallthru
      _
    // Predicated region
    $region22: #{tpu_custom_call.1} parent=1 // pred_check
      _
    $region23: #{tpu_custom_call.1} parent=1 // pred_check_branch
      %49 = sbr.rel (0) target = $region25
    $region24: #{tpu_custom_call.1} parent=1 // pred_region
      _
    $region25: #{tpu_custom_call.1} parent=1 // pred_fallthru
      _
    // Predicated region
    $region26: #{tpu_custom_call.1} parent=1 // pred_check
      _
    $region27: #{tpu_custom_call.1} parent=1 // pred_check_branch
      %51 = sbr.rel (0) target = $region29
    $region28: #{tpu_custom_call.1} parent=1 // pred_region
      _
    $region29: #{tpu_custom_call.1} parent=1 // pred_fallthru
      _
    // Predicated region
    $region30: #{tpu_custom_call.1} parent=1 // pred_check
      _
    $region31: #{tpu_custom_call.1} parent=1 // pred_check_branch
      %53 = sbr.rel (0) target = $region33
    $region32: #{tpu_custom_call.1} parent=1 // pred_region
      _
    $region33: #{tpu_custom_call.1} parent=1 // pred_fallthru
      _
    // Predicated region
    $region34: #{tpu_custom_call.1} parent=1 // pred_check
      _
    $region35: #{tpu_custom_call.1} parent=1 // pred_check_branch
      %55 = sbr.rel (0) target = $region37
    $region36: #{tpu_custom_call.1} parent=1 // pred_region
      _
    $region37: #{tpu_custom_call.1} parent=1 // pred_fallthru
      _
    // Predicated region
    $region38: #{tpu_custom_call.1} parent=1 // pred_check
      _
    $region39: #{tpu_custom_call.1} parent=1 // pred_check_branch
      %57 = sbr.rel (0) target = $region41
    $region40: #{tpu_custom_call.1} parent=1 // pred_region
      _
    $region41: #{tpu_custom_call.1} parent=1 // pred_fallthru
      _
    // Predicated region
    $region42: #{tpu_custom_call.1} parent=1 // pred_check
      _
    $region43: #{tpu_custom_call.1} parent=1 // pred_check_branch
      %59 = sbr.rel (0) target = $region45
    $region44: #{tpu_custom_call.1} parent=1 // pred_region
      _
    $region45: #{tpu_custom_call.1} parent=1 // pred_fallthru
      _
    // Predicated region
    $region46: #{tpu_custom_call.1} parent=1 // pred_check
      _
    $region47: #{tpu_custom_call.1} parent=1 // pred_check_branch
      %61 = sbr.rel (0) target = $region49
    $region48: #{tpu_custom_call.1} parent=1 // pred_region
      _
    $region49: #{tpu_custom_call.1} parent=1 // pred_fallthru
      _
    // Predicated region
    $region50: #{tpu_custom_call.1} parent=1 // pred_check
      _
    $region51: #{tpu_custom_call.1} parent=1 // pred_check_branch
      %63 = sbr.rel (0) target = $region53
    $region52: #{tpu_custom_call.1} parent=1 // pred_region
      %64 = dma.done [#allocation7], 1024
    $region53: #{tpu_custom_call.1} parent=1 // pred_fallthru
      _
    // Predicated region
    $region54: #{tpu_custom_call.1} parent=1 // pred_check
      _
    $region55: #{tpu_custom_call.1} parent=1 // pred_check_branch
      %66 = sbr.rel (0) target = $region57
    $region56: #{tpu_custom_call.1} parent=1 // pred_region
      %67 = dma.done [#allocation10], 16
    $region57: #{tpu_custom_call.1} parent=1 // pred_fallthru
      _
    %v70 = vld [vmem:[%s11] sm:$0x1]
    %v71 = vld [vmem:[#allocation6] sm:$0xff]
    %v72 = vld [vmem:[#allocation6 + $0x8] sm:$0xff]
    %v73 = vld [vmem:[#allocation6 + $0x10] sm:$0xff]
    %v74 = vld [vmem:[#allocation6 + $0x18] sm:$0xff]
    %v75 = vld [vmem:[#allocation6 + $0x20] sm:$0xff]
    %v76 = vld [vmem:[#allocation6 + $0x28] sm:$0xff]
    %v77 = vld [vmem:[#allocation6 + $0x30] sm:$0xff]
    %v78 = vld [vmem:[#allocation6 + $0x38] sm:$0xff]
    %vm79 = vcmask 130048
    %v80 = vsel %vm79, %v71, 0.0
    %v81 = vsel %vm79, %v72, 0.0
    %v82 = vadd.f32 %v80, %v81
    %v83 = vsel %vm79, %v73, 0.0
    %v84 = vadd.f32 %v82, %v83
    %v85 = vsel %vm79, %v74, 0.0
    %v86 = vadd.f32 %v84, %v85
    %v87 = vsel %vm79, %v75, 0.0
    %v88 = vadd.f32 %v86, %v87
    %v89 = vsel %vm79, %v76, 0.0
    %v90 = vadd.f32 %v88, %v89
    %v91 = vsel %vm79, %v77, 0.0
    %v92 = vadd.f32 %v90, %v91
    %v93 = vsel %vm79, %v78, 0.0
    %v94 = vadd.f32 %v92, %v93
    %95 = vadd.xlane.f32.xlu0 %v94
    %v96 = vpop.xlane.xlu0 %95
    %v97 = vadd.f32 %v96, 0.0
    %v98 = vmul.f32 %v71, %v71
    %v99 = vmul.f32 %v72, %v72
    %v100 = vmul.f32 %v73, %v73
    %v101 = vmul.f32 %v74, %v74
    %v102 = vmul.f32 %v75, %v75
    %v103 = vmul.f32 %v76, %v76
    %v104 = vmul.f32 %v77, %v77
    %v105 = vmul.f32 %v78, %v78
    %v106 = vsel %vm79, %v98, 0.0
    %v107 = vsel %vm79, %v99, 0.0
    %v108 = vadd.f32 %v106, %v107
    %v109 = vsel %vm79, %v100, 0.0
    %v110 = vadd.f32 %v108, %v109
    %v111 = vsel %vm79, %v101, 0.0
    %v112 = vadd.f32 %v110, %v111
    %v113 = vsel %vm79, %v102, 0.0
    %v114 = vadd.f32 %v112, %v113
    %v115 = vsel %vm79, %v103, 0.0
    %v116 = vadd.f32 %v114, %v115
    %v117 = vsel %vm79, %v104, 0.0
    %v118 = vadd.f32 %v116, %v117
    %v119 = vsel %vm79, %v105, 0.0
    %v120 = vadd.f32 %v118, %v119
    %121 = vadd.xlane.f32.xlu0 %v120
    %v122 = vpop.xlane.xlu0 %121
    %v123 = vadd.f32 %v122, 0.0
    %v125 = vlaneseq
    %v126 = vshrl.u32 %v125, 7
    %v127 = vsub.s32 0, %v126
    %v128 = vrot.slane %v70, %v127
    %v130 = vadd.f32 %v71, %v128
    %v131 = vadd.f32 %v72, %v128
    %v132 = vadd.f32 %v73, %v128
    %v133 = vadd.f32 %v74, %v128
    %v134 = vadd.f32 %v75, %v128
    %v135 = vadd.f32 %v76, %v128
    %v136 = vadd.f32 %v77, %v128
    %v137 = vadd.f32 %v78, %v128
    %138 = vst.msk [vmem:[#allocation11] sm:$0xff] %vm79, %v130
    %139 = vst.msk [vmem:[#allocation11 + $0x8] sm:$0xff] %vm79, %v131
    %140 = vst.msk [vmem:[#allocation11 + $0x10] sm:$0xff] %vm79, %v132
    %141 = vst.msk [vmem:[#allocation11 + $0x18] sm:$0xff] %vm79, %v133
    %142 = vst.msk [vmem:[#allocation11 + $0x20] sm:$0xff] %vm79, %v134
    %143 = vst.msk [vmem:[#allocation11 + $0x28] sm:$0xff] %vm79, %v135
    %144 = vst.msk [vmem:[#allocation11 + $0x30] sm:$0xff] %vm79, %v136
    %145 = vst.msk [vmem:[#allocation11 + $0x38] sm:$0xff] %vm79, %v137
    %v146 = vrcp.pop 128.0
    %v147 = vmul.f32 %v97, %v146
    %v148 = vmul.f32 %v123, %v146
    %v149 = vmul.f32 %v147, %v147
    %v150 = vsub.f32 %v148, %v149
    %v151 = vmax.f32 %v150, 0.0
    %v152 = vadd.f32 %v151, 1.1920929e-07
    %v153 = vrsqrt.pop %v152
    %v154 = vld [vmem:[%s1] sm:$0x1]
    %v156 = vlaneseq
    %v157 = vshrl.u32 %v156, 7
    %v158 = vsub.s32 0, %v157
    %v159 = vrot.slane %v154, %v158
    %v161 = vmul.f32 %v153, %v159
    %v162 = vld [vmem:[%s2] sm:$0x1]
    %v163 = vmul.f32 %v147, %v161
    %v165 = vlaneseq
    %v166 = vshrl.u32 %v165, 7
    %v167 = vsub.s32 0, %v166
    %v168 = vrot.slane %v162, %v167
    %v170 = vsub.f32 %v168, %v163
    %v171 = vld [vmem:[%s3] sm:$0xf]
    %v172 = vld [vmem:[%s3 + $0x4] sm:$0xf]
    %v173 = vld [vmem:[%s6] sm:$0xf]
    %v174 = vld [vmem:[%s6 + $0x4] sm:$0xf]
    %v175 = vld [vmem:[%s5] sm:$0xf]
    %v176 = vld [vmem:[%s5 + $0x4] sm:$0xf]
    %v177 = vld [vmem:[%s5 + $0x8] sm:$0xf]
    %v178 = vld [vmem:[%s5 + $0xc] sm:$0xf]
    %v179 = vld [vmem:[%s8] sm:$0xf]
    %v180 = vld [vmem:[%s8 + $0x4] sm:$0xf]
    %v181 = vld [vmem:[%s8 + $0x8] sm:$0xf]
    %v182 = vld [vmem:[%s8 + $0xc] sm:$0xf]
    %v183 = vld [vmem:[%s9] sm:$0xf]
    %v184 = vld [vmem:[%s9 + $0x4] sm:$0xf]
    %v185 = vld [vmem:[%s9 + $0x8] sm:$0xf]
    %v186 = vld [vmem:[%s9 + $0xc] sm:$0xf]
    %v187 = vld [vmem:[%s10] sm:$0xf]
    %v188 = vld [vmem:[%s10 + $0x4] sm:$0xf]
    %v189 = vld [vmem:[%s10 + $0x8] sm:$0xf]
    %v190 = vld [vmem:[%s10 + $0xc] sm:$0xf]
    %v191 = vld [vmem:[#allocation9] sm:$0x1]
    %v192 = vld [vmem:[%s7] sm:$0x1]
    %v193 = vld [vmem:[#allocation6] sm:$0xff]
    %v194 = vld [vmem:[#allocation6 + $0x8] sm:$0xff]
    %v195 = vld [vmem:[#allocation6 + $0x10] sm:$0xff]
    %v196 = vld [vmem:[#allocation6 + $0x18] sm:$0xff]
    %v197 = vld [vmem:[#allocation6 + $0x20] sm:$0xff]
    %v198 = vld [vmem:[#allocation6 + $0x28] sm:$0xff]
    %v199 = vld [vmem:[#allocation6 + $0x30] sm:$0xff]
    %v200 = vld [vmem:[#allocation6 + $0x38] sm:$0xff]
    %v201 = vmul.f32 %v193, %v161
    %v202 = vmul.f32 %v194, %v161
    %v203 = vmul.f32 %v195, %v161
    %v204 = vmul.f32 %v196, %v161
    %v205 = vmul.f32 %v197, %v161
    %v206 = vmul.f32 %v198, %v161
    %v207 = vmul.f32 %v199, %v161
    %v208 = vmul.f32 %v200, %v161
    %v209 = vadd.f32 %v201, %v170
    %v210 = vadd.f32 %v202, %v170
    %v211 = vadd.f32 %v203, %v170
    %v212 = vadd.f32 %v204, %v170
    %v213 = vadd.f32 %v205, %v170
    %v214 = vadd.f32 %v206, %v170
    %v215 = vadd.f32 %v207, %v170
    %v216 = vadd.f32 %v208, %v170
    %v217 = vpack.c.bf16 %v209, %v209
    %v218 = vpack.c.bf16 %v210, %v210
    %v219 = vpack.c.bf16 %v211, %v211
    %v220 = vpack.c.bf16 %v212, %v212
    %v221 = vpack.c.bf16 %v213, %v213
    %v222 = vpack.c.bf16 %v214, %v214
    %v223 = vpack.c.bf16 %v215, %v215
    %v224 = vpack.c.bf16 %v216, %v216
    %v226 = vlaneseq
    %v227 = vshrl.u32 %v226, 7
    %v228 = vsub.s32 0, %v227
    %v229 = vrot.slane %v191, %v228
    %v239 = vunpack.c.l.b16 %v217
    %v240 = vunpack.c.l.b16 %v218
    %v241 = vunpack.c.l.b16 %v219
    %v242 = vunpack.c.l.b16 %v220
    %v243 = vunpack.c.l.b16 %v221
    %v244 = vunpack.c.l.b16 %v222
    %v245 = vunpack.c.l.b16 %v223
    %v246 = vunpack.c.l.b16 %v224
    %v247 = vpack.c.b16 %v240, %v239
    %v248 = vpack.c.b16 %v242, %v241
    %v249 = vpack.c.b16 %v244, %v243
    %v250 = vpack.c.b16 %v246, %v245
    %v253 = vunpack.c.l.b16 %v171
    %v254 = vunpack.c.l.b16 %v172
    %v255 = vpack.c.b16 %v254, %v253
    %v258 = vsel %vm79, %v247, 0
    %v261 = vsel %vm79, %v248, 0
    %v264 = vsel %vm79, %v249, 0
    %v267 = vsel %vm79, %v250, 0
    %269 = vmatprep.subr.bf16.mxu0 0
    %270 = vmatpush1.bf16.msra.mxu0 %v255
    %271 = vmatprep.subr.bf16.mxu0 0
    %272 = vmatpush1.bf16.msra.mxu0 0
    %273 = vmatprep.subr.bf16.mxu0 0
    %274 = vmatpush1.bf16.msra.mxu0 0
    %275 = vmatprep.subr.bf16.mxu0 0
    %276 = vmatpush1.bf16.msra.mxu0 0
    %277 = vmatprep.subr.bf16.mxu0 0
    %278 = vmatpush1.bf16.msra.mxu0 0
    %279 = vmatprep.subr.bf16.mxu0 0
    %280 = vmatpush1.bf16.msra.mxu0 0
    %281 = vmatprep.subr.bf16.mxu0 0
    %282 = vmatpush1.bf16.msra.mxu0 0
    %283 = vmatprep.subr.bf16.mxu0 0
    %284 = vmatpush1.bf16.msra.mxu0 0
    %285 = vmatprep.subr.bf16.mxu0 0
    %286 = vmatpush1.bf16.msra.mxu0 0
    %287 = vmatprep.subr.bf16.mxu0 0
    %288 = vmatpush1.bf16.msra.mxu0 0
    %289 = vmatprep.subr.bf16.mxu0 0
    %290 = vmatpush1.bf16.msra.mxu0 0
    %291 = vmatprep.subr.bf16.mxu0 0
    %292 = vmatpush1.bf16.msra.mxu0 0
    %293 = vmatprep.subr.bf16.mxu0 0
    %294 = vmatpush1.bf16.msra.mxu0 0
    %295 = vmatprep.subr.bf16.mxu0 0
    %296 = vmatpush1.bf16.msra.mxu0 0
    %297 = vmatprep.subr.bf16.mxu0 0
    %298 = vmatpush1.bf16.msra.mxu0 0
    %299 = vmatprep.subr.bf16.mxu0 0
    %300 = vmatpush1.bf16.msra.mxu0 0
    %301 = vmatprep.mubr.bf16.mxu0 0
    %302 = vmatmul.mubr.bf16.gmra.mrb[0].mxu0 %v258
    %v303 = vpop.f32.mrb[0].mxu0
    %v304 = vadd.f32 %v229, %v303
    %v305 = vpop.f32.mrb[0].mxu0
    %v306 = vpop.f32.mrb[0].mxu0
    %v307 = vadd.f32 %v229, %v306
    %v308 = vpop.f32.mrb[0].mxu0
    %309 = vmatprep.mubr.bf16.mxu0 0
    %310 = vmatmul.mubr.bf16.gmra.mrb[0].mxu0 %v261
    %v311 = vpop.f32.mrb[0].mxu0
    %v312 = vadd.f32 %v229, %v311
    %v313 = vpop.f32.mrb[0].mxu0
    %v314 = vpop.f32.mrb[0].mxu0
    %v315 = vadd.f32 %v229, %v314
    %v316 = vpop.f32.mrb[0].mxu0
    %317 = vmatprep.mubr.bf16.mxu0 0
    %318 = vmatmul.mubr.bf16.gmra.mrb[0].mxu0 %v264
    %v319 = vpop.f32.mrb[0].mxu0
    %v320 = vadd.f32 %v229, %v319
    %v321 = vpop.f32.mrb[0].mxu0
    %v322 = vpop.f32.mrb[0].mxu0
    %v323 = vadd.f32 %v229, %v322
    %v324 = vpop.f32.mrb[0].mxu0
    %325 = vmatprep.mubr.bf16.mxu0 0
    %326 = vmatmul.mubr.bf16.gmra.mrb[0].mxu0 %v267
    %v327 = vpop.f32.mrb[0].mxu0
    %v328 = vadd.f32 %v229, %v327
    %v329 = vpop.f32.mrb[0].mxu0
    %v330 = vpop.f32.mrb[0].mxu0
    %v331 = vadd.f32 %v229, %v330
    %v332 = vpop.f32.mrb[0].mxu0
    %333 = vdwg.mxu0
    %v334 = vpack.c.bf16 %v304, %v304
    %v335 = vpack.c.bf16 %v307, %v307
    %v336 = vpack.c.bf16 %v312, %v312
    %v337 = vpack.c.bf16 %v315, %v315
    %v338 = vpack.c.bf16 %v320, %v320
    %v339 = vpack.c.bf16 %v323, %v323
    %v340 = vpack.c.bf16 %v328, %v328
    %v341 = vpack.c.bf16 %v331, %v331
    %342 = vst [vmem:[#allocation2] sm:$0xf] %v334
    %343 = vst [vmem:[#allocation2 + $0x4] sm:$0xf] %v335
    %344 = vst [vmem:[#allocation2 + $0x8] sm:$0xf] %v336
    %345 = vst [vmem:[#allocation2 + $0xc] sm:$0xf] %v337
    %346 = vst [vmem:[#allocation2 + $0x10] sm:$0xf] %v338
    %347 = vst [vmem:[#allocation2 + $0x14] sm:$0xf] %v339
    %348 = vst [vmem:[#allocation2 + $0x18] sm:$0xf] %v340
    %349 = vst [vmem:[#allocation2 + $0x1c] sm:$0xf] %v341
    %v350 = vld [vmem:[#allocation6] sm:$0xff]
    %v351 = vld [vmem:[#allocation6 + $0x8] sm:$0xff]
    %v352 = vld [vmem:[#allocation6 + $0x10] sm:$0xff]
    %v353 = vld [vmem:[#allocation6 + $0x18] sm:$0xff]
    %v354 = vld [vmem:[#allocation6 + $0x20] sm:$0xff]
    %v355 = vld [vmem:[#allocation6 + $0x28] sm:$0xff]
    %v356 = vld [vmem:[#allocation6 + $0x30] sm:$0xff]
    %v357 = vld [vmem:[#allocation6 + $0x38] sm:$0xff]
    %v358 = vmul.f32 %v350, %v161
    %v359 = vmul.f32 %v351, %v161
    %v360 = vmul.f32 %v352, %v161
    %v361 = vmul.f32 %v353, %v161
    %v362 = vmul.f32 %v354, %v161
    %v363 = vmul.f32 %v355, %v161
    %v364 = vmul.f32 %v356, %v161
    %v365 = vmul.f32 %v357, %v161
    %v366 = vadd.f32 %v358, %v170
    %v367 = vadd.f32 %v359, %v170
    %v368 = vadd.f32 %v360, %v170
    %v369 = vadd.f32 %v361, %v170
    %v370 = vadd.f32 %v362, %v170
    %v371 = vadd.f32 %v363, %v170
    %v372 = vadd.f32 %v364, %v170
    %v373 = vadd.f32 %v365, %v170
    %v374 = vpack.c.bf16 %v366, %v366
    %v375 = vpack.c.bf16 %v367, %v367
    %v376 = vpack.c.bf16 %v368, %v368
    %v377 = vpack.c.bf16 %v369, %v369
    %v378 = vpack.c.bf16 %v370, %v370
    %v379 = vpack.c.bf16 %v371, %v371
    %v380 = vpack.c.bf16 %v372, %v372
    %v381 = vpack.c.bf16 %v373, %v373
    %v383 = vlaneseq
    %v384 = vshrl.u32 %v383, 7
    %v385 = vsub.s32 0, %v384
    %v386 = vrot.slane %v192, %v385
    %v396 = vunpack.c.l.b16 %v374
    %v397 = vunpack.c.l.b16 %v375
    %v398 = vunpack.c.l.b16 %v376
    %v399 = vunpack.c.l.b16 %v377
    %v400 = vunpack.c.l.b16 %v378
    %v401 = vunpack.c.l.b16 %v379
    %v402 = vunpack.c.l.b16 %v380
    %v403 = vunpack.c.l.b16 %v381
    %v404 = vpack.c.b16 %v397, %v396
    %v405 = vpack.c.b16 %v399, %v398
    %v406 = vpack.c.b16 %v401, %v400
    %v407 = vpack.c.b16 %v403, %v402
    %v410 = vunpack.c.l.b16 %v173
    %v411 = vunpack.c.l.b16 %v174
    %v412 = vpack.c.b16 %v411, %v410
    %v415 = vsel %vm79, %v404, 0
    %v418 = vsel %vm79, %v405, 0
    %v421 = vsel %vm79, %v406, 0
    %v424 = vsel %vm79, %v407, 0
    %426 = vmatprep.subr.bf16.mxu0 0
    %427 = vmatpush1.bf16.msra.mxu0 %v412
    %428 = vmatprep.subr.bf16.mxu0 0
    %429 = vmatpush1.bf16.msra.mxu0 0
    %430 = vmatprep.subr.bf16.mxu0 0
    %431 = vmatpush1.bf16.msra.mxu0 0
    %432 = vmatprep.subr.bf16.mxu0 0
    %433 = vmatpush1.bf16.msra.mxu0 0
    %434 = vmatprep.subr.bf16.mxu0 0
    %435 = vmatpush1.bf16.msra.mxu0 0
    %436 = vmatprep.subr.bf16.mxu0 0
    %437 = vmatpush1.bf16.msra.mxu0 0
    %438 = vmatprep.subr.bf16.mxu0 0
    %439 = vmatpush1.bf16.msra.mxu0 0
    %440 = vmatprep.subr.bf16.mxu0 0
    %441 = vmatpush1.bf16.msra.mxu0 0
    %442 = vmatprep.subr.bf16.mxu0 0
    %443 = vmatpush1.bf16.msra.mxu0 0
    %444 = vmatprep.subr.bf16.mxu0 0
    %445 = vmatpush1.bf16.msra.mxu0 0
    %446 = vmatprep.subr.bf16.mxu0 0
    %447 = vmatpush1.bf16.msra.mxu0 0
    %448 = vmatprep.subr.bf16.mxu0 0
    %449 = vmatpush1.bf16.msra.mxu0 0
    %450 = vmatprep.subr.bf16.mxu0 0
    %451 = vmatpush1.bf16.msra.mxu0 0
    %452 = vmatprep.subr.bf16.mxu0 0
    %453 = vmatpush1.bf16.msra.mxu0 0
    %454 = vmatprep.subr.bf16.mxu0 0
    %455 = vmatpush1.bf16.msra.mxu0 0
    %456 = vmatprep.subr.bf16.mxu0 0
    %457 = vmatpush1.bf16.msra.mxu0 0
    %458 = vmatprep.mubr.bf16.mxu0 0
    %459 = vmatmul.mubr.bf16.gmra.mrb[0].mxu0 %v415
    %v460 = vpop.f32.mrb[0].mxu0
    %v461 = vadd.f32 %v386, %v460
    %v462 = vpop.f32.mrb[0].mxu0
    %v463 = vpop.f32.mrb[0].mxu0
    %v464 = vadd.f32 %v386, %v463
    %v465 = vpop.f32.mrb[0].mxu0
    %466 = vmatprep.mubr.bf16.mxu0 0
    %467 = vmatmul.mubr.bf16.gmra.mrb[0].mxu0 %v418
    %v468 = vpop.f32.mrb[0].mxu0
    %v469 = vadd.f32 %v386, %v468
    %v470 = vpop.f32.mrb[0].mxu0
    %v471 = vpop.f32.mrb[0].mxu0
    %v472 = vadd.f32 %v386, %v471
    %v473 = vpop.f32.mrb[0].mxu0
    %474 = vmatprep.mubr.bf16.mxu0 0
    %475 = vmatmul.mubr.bf16.gmra.mrb[0].mxu0 %v421
    %v476 = vpop.f32.mrb[0].mxu0
    %v477 = vadd.f32 %v386, %v476
    %v478 = vpop.f32.mrb[0].mxu0
    %v479 = vpop.f32.mrb[0].mxu0
    %v480 = vadd.f32 %v386, %v479
    %v481 = vpop.f32.mrb[0].mxu0
    %482 = vmatprep.mubr.bf16.mxu0 0
    %483 = vmatmul.mubr.bf16.gmra.mrb[0].mxu0 %v424
    %v484 = vpop.f32.mrb[0].mxu0
    %v485 = vadd.f32 %v386, %v484
    %v486 = vpop.f32.mrb[0].mxu0
    %v487 = vpop.f32.mrb[0].mxu0
    %v488 = vadd.f32 %v386, %v487
    %v489 = vpop.f32.mrb[0].mxu0
    %490 = vdwg.mxu0
    %v491 = vpack.c.bf16 %v461, %v461
    %v492 = vpack.c.bf16 %v464, %v464
    %v493 = vpack.c.bf16 %v469, %v469
    %v494 = vpack.c.bf16 %v472, %v472
    %v495 = vpack.c.bf16 %v477, %v477
    %v496 = vpack.c.bf16 %v480, %v480
    %v497 = vpack.c.bf16 %v485, %v485
    %v498 = vpack.c.bf16 %v488, %v488
    %499 = vst [vmem:[#allocation3] sm:$0xf] %v491
    %500 = vst [vmem:[#allocation3 + $0x4] sm:$0xf] %v492
    %501 = vst [vmem:[#allocation3 + $0x8] sm:$0xf] %v493
    %502 = vst [vmem:[#allocation3 + $0xc] sm:$0xf] %v494
    %503 = vst [vmem:[#allocation3 + $0x10] sm:$0xf] %v495
    %504 = vst [vmem:[#allocation3 + $0x14] sm:$0xf] %v496
    %505 = vst [vmem:[#allocation3 + $0x18] sm:$0xf] %v497
    %506 = vst [vmem:[#allocation3 + $0x1c] sm:$0xf] %v498
    %v507 = vld [vmem:[#allocation2] sm:$0xf]
    %v508 = vunpack.c.l.bf16 %v507
    %v513 = vunpack.c.l.b16 %v175
    %v514 = vunpack.c.l.b16 %v176
    %v515 = vunpack.c.l.b16 %v177
    %v516 = vunpack.c.l.b16 %v178
    %v517 = vpack.c.b16 %v514, %v513
    %v518 = vpack.c.b16 %v516, %v515
    %vm521 = vcmask 261120
    %v523 = vsel %vm521, 0, 0
    %525 = vmatprep.subr.bf16.mxu0 0
    %526 = vmatpush1.bf16.msra.mxu0 %v517
    %527 = vmatprep.subr.bf16.mxu0 0
    %528 = vmatpush1.bf16.msra.mxu0 %v518
    %529 = vmatprep.subr.bf16.mxu0 0
    %530 = vmatpush1.bf16.msra.mxu0 0
    %531 = vmatprep.subr.bf16.mxu0 0
    %532 = vmatpush1.bf16.msra.mxu0 0
    %533 = vmatprep.subr.bf16.mxu0 0
    %534 = vmatpush1.bf16.msra.mxu0 0
    %535 = vmatprep.subr.bf16.mxu0 0
    %536 = vmatpush1.bf16.msra.mxu0 0
    %537 = vmatprep.subr.bf16.mxu0 0
    %538 = vmatpush1.bf16.msra.mxu0 0
    %539 = vmatprep.subr.bf16.mxu0 0
    %540 = vmatpush1.bf16.msra.mxu0 0
    %541 = vmatprep.subr.bf16.mxu0 0
    %542 = vmatpush1.bf16.msra.mxu0 0
    %543 = vmatprep.subr.bf16.mxu0 0
    %544 = vmatpush1.bf16.msra.mxu0 0
    %545 = vmatprep.subr.bf16.mxu0 0
    %546 = vmatpush1.bf16.msra.mxu0 0
    %547 = vmatprep.subr.bf16.mxu0 0
    %548 = vmatpush1.bf16.msra.mxu0 0
    %549 = vmatprep.subr.bf16.mxu0 0
    %550 = vmatpush1.bf16.msra.mxu0 0
    %551 = vmatprep.subr.bf16.mxu0 0
    %552 = vmatpush1.bf16.msra.mxu0 0
    %553 = vmatprep.subr.bf16.mxu0 0
    %554 = vmatpush1.bf16.msra.mxu0 0
    %555 = vmatprep.subr.bf16.mxu0 0
    %556 = vmatpush1.bf16.msra.mxu0 0
    %557 = vmatprep.mubr.bf16.mxu0 0
    %558 = vmatmul.mubr.bf16.gmra.mrb[0].mxu0 %v523
    %v559 = vpop.f32.mrb[0].mxu0
    %v560 = vadd.f32 0.0, %v559
    %v561 = vpop.f32.mrb[0].mxu0
    %v562 = vpop.f32.mrb[0].mxu0
    %v563 = vpop.f32.mrb[0].mxu0
    %564 = vdwg.mxu0
    %v565 = vadd.f32 %v508, %v560
    %s566 = scalar_lea.vmem [#allocation3], 28
    %v567 = vld [vmem:[%s566] sm:$0xf]
    %v568 = vunpack.c.l.bf16 %v567
    %v573 = vunpack.c.l.b16 %v179
    %v574 = vunpack.c.l.b16 %v180
    %v575 = vunpack.c.l.b16 %v181
    %v576 = vunpack.c.l.b16 %v182
    %v577 = vpack.c.b16 %v574, %v573
    %v578 = vpack.c.b16 %v576, %v575
    %581 = vmatprep.subr.bf16.mxu0 0
    %582 = vmatpush1.bf16.msra.mxu0 %v577
    %583 = vmatprep.subr.bf16.mxu0 0
    %584 = vmatpush1.bf16.msra.mxu0 %v578
    %585 = vmatprep.subr.bf16.mxu0 0
    %586 = vmatpush1.bf16.msra.mxu0 0
    %587 = vmatprep.subr.bf16.mxu0 0
    %588 = vmatpush1.bf16.msra.mxu0 0
    %589 = vmatprep.subr.bf16.mxu0 0
    %590 = vmatpush1.bf16.msra.mxu0 0
    %591 = vmatprep.subr.bf16.mxu0 0
    %592 = vmatpush1.bf16.msra.mxu0 0
    %593 = vmatprep.subr.bf16.mxu0 0
    %594 = vmatpush1.bf16.msra.mxu0 0
    %595 = vmatprep.subr.bf16.mxu0 0
    %596 = vmatpush1.bf16.msra.mxu0 0
    %597 = vmatprep.subr.bf16.mxu0 0
    %598 = vmatpush1.bf16.msra.mxu0 0
    %599 = vmatprep.subr.bf16.mxu0 0
    %600 = vmatpush1.bf16.msra.mxu0 0
    %601 = vmatprep.subr.bf16.mxu0 0
    %602 = vmatpush1.bf16.msra.mxu0 0
    %603 = vmatprep.subr.bf16.mxu0 0
    %604 = vmatpush1.bf16.msra.mxu0 0
    %605 = vmatprep.subr.bf16.mxu0 0
    %606 = vmatpush1.bf16.msra.mxu0 0
    %607 = vmatprep.subr.bf16.mxu0 0
    %608 = vmatpush1.bf16.msra.mxu0 0
    %609 = vmatprep.subr.bf16.mxu0 0
    %610 = vmatpush1.bf16.msra.mxu0 0
    %611 = vmatprep.subr.bf16.mxu0 0
    %612 = vmatpush1.bf16.msra.mxu0 0
    %613 = vmatprep.mubr.bf16.mxu0 0
    %614 = vmatmul.mubr.bf16.gmra.mrb[0].mxu0 %v523
    %v615 = vpop.f32.mrb[0].mxu0
    %v616 = vadd.f32 0.0, %v615
    %v617 = vpop.f32.mrb[0].mxu0
    %v618 = vpop.f32.mrb[0].mxu0
    %v619 = vpop.f32.mrb[0].mxu0
    %620 = vdwg.mxu0
    %v621 = vadd.f32 %v568, %v616
    %v622 = vpack.c.bf16 %v565, %v565
    %v623 = vmul.bf16 %v622, 1056980736
    %v624 = vtanh.bf16.pop %v623
    %v625 = vmul.bf16 %v624, 1056980736
    %v626 = vadd.bf16 %v625, 1056980736
    %v627 = vtanh.bf16.pop %v622
    %v628 = vunpack.c.l.bf16 %v626
    %v629 = vmul.f32 %v628, 0.0
    %631 = vrot.lane.b32.xlu0 %v627, 64
    %v632 = vpop.permute.xlu0 %631
    %v634 = vmul.bf16 %v626, %v632
    %v635 = vunpack.c.l.bf16 %v634
    %637 = vrot.lane.b32.xlu0 %v635, 32
    %v638 = vpop.permute.xlu0 %637
    %v640 = vadd.f32 %v629, %v638
    %v641 = vtanh.pop %v640
    %643 = vrot.lane.b32.xlu0 %v641, 64
    %v644 = vpop.permute.xlu0 %643
    %v646 = vmul.f32 %v628, %v644
    %v647 = vpack.c.bf16 %v621, %v621
    %v648 = vmul.bf16 %v647, 1056980736
    %v649 = vtanh.bf16.pop %v648
    %v650 = vmul.bf16 %v649, 1056980736
    %v651 = vadd.bf16 %v650, 1056980736
    %v652 = vtanh.bf16.pop %v647
    %v653 = vunpack.c.l.bf16 %v651
    %v654 = vmul.f32 %v653, 0.0
    %656 = vrot.lane.b32.xlu0 %v652, 64
    %v657 = vpop.permute.xlu0 %656
    %v659 = vmul.bf16 %v651, %v657
    %v660 = vunpack.c.l.bf16 %v659
    %662 = vrot.lane.b32.xlu0 %v660, 32
    %v663 = vpop.permute.xlu0 %662
    %v665 = vadd.f32 %v654, %v663
    %v666 = vtanh.pop %v665
    %668 = vrot.lane.b32.xlu0 %v666, 64
    %v669 = vpop.permute.xlu0 %668
    %v671 = vmul.f32 %v653, %v669
    %v672 = vpack.c.bf16 %v646, %v646
    %v674 = vunpack.c.l.b16 %v672
    %v675 = vpack.c.b16 %v674, %v674
    %676 = vrot.lane.b32.xlu0 %v675, 32
    %v677 = vpop.permute.xlu0 %676
    %vm679 = vcmask 257024
    %680 = vst.msk [vmem:[#allocation4] sm:$0xf] %vm679, %v677
    %v681 = vpack.c.bf16 %v671, %v671
    %v683 = vunpack.c.l.b16 %v681
    %v684 = vpack.c.b16 %v683, %v683
    %685 = vrot.lane.b32.xlu0 %v684, 32
    %v686 = vpop.permute.xlu0 %685
    %s688 = scalar_lea.vmem [#allocation5], 28
    %689 = vst.msk [vmem:[%s688] sm:$0xf] %vm679, %v686
    %s690 = scalar_lea.vmem [#allocation2], 4
    %v691 = vld [vmem:[%s690] sm:$0xf]
    %v692 = vunpack.c.l.bf16 %v691
    %693 = vrot.lane.b32.xlu0 %v672, 32
    %v694 = vpop.permute.xlu0 %693
    %v696 = vsel %vm521, %v694, 0
    %698 = vmatprep.subr.bf16.mxu0 0
    %699 = vmatpush1.bf16.msra.mxu0 %v517
    %700 = vmatprep.subr.bf16.mxu0 0
    %701 = vmatpush1.bf16.msra.mxu0 %v518
    %702 = vmatprep.subr.bf16.mxu0 0
    %703 = vmatpush1.bf16.msra.mxu0 0
    %704 = vmatprep.subr.bf16.mxu0 0
    %705 = vmatpush1.bf16.msra.mxu0 0
    %706 = vmatprep.subr.bf16.mxu0 0
    %707 = vmatpush1.bf16.msra.mxu0 0
    %708 = vmatprep.subr.bf16.mxu0 0
    %709 = vmatpush1.bf16.msra.mxu0 0
    %710 = vmatprep.subr.bf16.mxu0 0
    %711 = vmatpush1.bf16.msra.mxu0 0
    %712 = vmatprep.subr.bf16.mxu0 0
    %713 = vmatpush1.bf16.msra.mxu0 0
    %714 = vmatprep.subr.bf16.mxu0 0
    %715 = vmatpush1.bf16.msra.mxu0 0
    %716 = vmatprep.subr.bf16.mxu0 0
    %717 = vmatpush1.bf16.msra.mxu0 0
    %718 = vmatprep.subr.bf16.mxu0 0
    %719 = vmatpush1.bf16.msra.mxu0 0
    %720 = vmatprep.subr.bf16.mxu0 0
    %721 = vmatpush1.bf16.msra.mxu0 0
    %722 = vmatprep.subr.bf16.mxu0 0
    %723 = vmatpush1.bf16.msra.mxu0 0
    %724 = vmatprep.subr.bf16.mxu0 0
    %725 = vmatpush1.bf16.msra.mxu0 0
    %726 = vmatprep.subr.bf16.mxu0 0
    %727 = vmatpush1.bf16.msra.mxu0 0
    %728 = vmatprep.subr.bf16.mxu0 0
    %729 = vmatpush1.bf16.msra.mxu0 0
    %730 = vmatprep.mubr.bf16.mxu0 0
    %731 = vmatmul.mubr.bf16.gmra.mrb[0].mxu0 %v696
    %v732 = vpop.f32.mrb[0].mxu0
    %v733 = vadd.f32 0.0, %v732
    %v734 = vpop.f32.mrb[0].mxu0
    %v735 = vpop.f32.mrb[0].mxu0
    %v736 = vpop.f32.mrb[0].mxu0
    %737 = vdwg.mxu0
    %v738 = vadd.f32 %v692, %v733
    %s739 = scalar_lea.vmem [#allocation3], 24
    %v740 = vld [vmem:[%s739] sm:$0xf]
    %v741 = vunpack.c.l.bf16 %v740
    %742 = vrot.lane.b32.xlu0 %v681, 32
    %v743 = vpop.permute.xlu0 %742
    %v745 = vsel %vm521, %v743, 0
    %747 = vmatprep.subr.bf16.mxu0 0
    %748 = vmatpush1.bf16.msra.mxu0 %v577
    %749 = vmatprep.subr.bf16.mxu0 0
    %750 = vmatpush1.bf16.msra.mxu0 %v578
    %751 = vmatprep.subr.bf16.mxu0 0
    %752 = vmatpush1.bf16.msra.mxu0 0
    %753 = vmatprep.subr.bf16.mxu0 0
    %754 = vmatpush1.bf16.msra.mxu0 0
    %755 = vmatprep.subr.bf16.mxu0 0
    %756 = vmatpush1.bf16.msra.mxu0 0
    %757 = vmatprep.subr.bf16.mxu0 0
    %758 = vmatpush1.bf16.msra.mxu0 0
    %759 = vmatprep.subr.bf16.mxu0 0
    %760 = vmatpush1.bf16.msra.mxu0 0
    %761 = vmatprep.subr.bf16.mxu0 0
    %762 = vmatpush1.bf16.msra.mxu0 0
    %763 = vmatprep.subr.bf16.mxu0 0
    %764 = vmatpush1.bf16.msra.mxu0 0
    %765 = vmatprep.subr.bf16.mxu0 0
    %766 = vmatpush1.bf16.msra.mxu0 0
    %767 = vmatprep.subr.bf16.mxu0 0
    %768 = vmatpush1.bf16.msra.mxu0 0
    %769 = vmatprep.subr.bf16.mxu0 0
    %770 = vmatpush1.bf16.msra.mxu0 0
    %771 = vmatprep.subr.bf16.mxu0 0
    %772 = vmatpush1.bf16.msra.mxu0 0
    %773 = vmatprep.subr.bf16.mxu0 0
    %774 = vmatpush1.bf16.msra.mxu0 0
    %775 = vmatprep.subr.bf16.mxu0 0
    %776 = vmatpush1.bf16.msra.mxu0 0
    %777 = vmatprep.subr.bf16.mxu0 0
    %778 = vmatpush1.bf16.msra.mxu0 0
    %779 = vmatprep.mubr.bf16.mxu0 0
    %780 = vmatmul.mubr.bf16.gmra.mrb[0].mxu0 %v745
    %v781 = vpop.f32.mrb[0].mxu0
    %v782 = vadd.f32 0.0, %v781
    %v783 = vpop.f32.mrb[0].mxu0
    %v784 = vpop.f32.mrb[0].mxu0
    %v785 = vpop.f32.mrb[0].mxu0
    %786 = vdwg.mxu0
    %v787 = vadd.f32 %v741, %v782
    %v788 = vpack.c.bf16 %v738, %v738
    %v789 = vmul.bf16 %v788, 1056980736
    %v790 = vtanh.bf16.pop %v789
    %v791 = vmul.bf16 %v790, 1056980736
    %v792 = vadd.bf16 %v791, 1056980736
    %v793 = vtanh.bf16.pop %v788
    %v794 = vunpack.c.l.bf16 %v792
    %v795 = vmul.f32 %v794, %v640
    %797 = vrot.lane.b32.xlu0 %v793, 64
    %v798 = vpop.permute.xlu0 %797
    %v800 = vmul.bf16 %v792, %v798
    %v801 = vunpack.c.l.bf16 %v800
    %803 = vrot.lane.b32.xlu0 %v801, 32
    %v804 = vpop.permute.xlu0 %803
    %v806 = vadd.f32 %v795, %v804
    %v807 = vtanh.pop %v806
    %809 = vrot.lane.b32.xlu0 %v807, 64
    %v810 = vpop.permute.xlu0 %809
    %v812 = vmul.f32 %v794, %v810
    %v813 = vpack.c.bf16 %v787, %v787
    %v814 = vmul.bf16 %v813, 1056980736
    %v815 = vtanh.bf16.pop %v814
    %v816 = vmul.bf16 %v815, 1056980736
    %v817 = vadd.bf16 %v816, 1056980736
    %v818 = vtanh.bf16.pop %v813
    %v819 = vunpack.c.l.bf16 %v817
    %v820 = vmul.f32 %v819, %v665
    %822 = vrot.lane.b32.xlu0 %v818, 64
    %v823 = vpop.permute.xlu0 %822
    %v825 = vmul.bf16 %v817, %v823
    %v826 = vunpack.c.l.bf16 %v825
    %828 = vrot.lane.b32.xlu0 %v826, 32
    %v829 = vpop.permute.xlu0 %828
    %v831 = vadd.f32 %v820, %v829
    %v832 = vtanh.pop %v831
    %834 = vrot.lane.b32.xlu0 %v832, 64
    %v835 = vpop.permute.xlu0 %834
    %v837 = vmul.f32 %v819, %v835
    %v838 = vpack.c.bf16 %v812, %v812
    %v840 = vunpack.c.l.b16 %v838
    %v841 = vpack.c.b16 %v840, %v840
    %842 = vrot.lane.b32.xlu0 %v841, 32
    %v843 = vpop.permute.xlu0 %842
    %s845 = scalar_lea.vmem [#allocation4], 4
    %846 = vst.msk [vmem:[%s845] sm:$0xf] %vm679, %v843
    %v847 = vpack.c.bf16 %v837, %v837
    %v849 = vunpack.c.l.b16 %v847
    %v850 = vpack.c.b16 %v849, %v849
    %851 = vrot.lane.b32.xlu0 %v850, 32
    %v852 = vpop.permute.xlu0 %851
    %s854 = scalar_lea.vmem [#allocation5], 24
    %855 = vst.msk [vmem:[%s854] sm:$0xf] %vm679, %v852
    %s856 = scalar_lea.vmem [#allocation2], 8
    %v857 = vld [vmem:[%s856] sm:$0xf]
    %v858 = vunpack.c.l.bf16 %v857
    %859 = vrot.lane.b32.xlu0 %v838, 32
    %v860 = vpop.permute.xlu0 %859
    %v862 = vsel %vm521, %v860, 0
    %864 = vmatprep.subr.bf16.mxu0 0
    %865 = vmatpush1.bf16.msra.mxu0 %v517
    %866 = vmatprep.subr.bf16.mxu0 0
    %867 = vmatpush1.bf16.msra.mxu0 %v518
    %868 = vmatprep.subr.bf16.mxu0 0
    %869 = vmatpush1.bf16.msra.mxu0 0
    %870 = vmatprep.subr.bf16.mxu0 0
    %871 = vmatpush1.bf16.msra.mxu0 0
    %872 = vmatprep.subr.bf16.mxu0 0
    %873 = vmatpush1.bf16.msra.mxu0 0
    %874 = vmatprep.subr.bf16.mxu0 0
    %875 = vmatpush1.bf16.msra.mxu0 0
    %876 = vmatprep.subr.bf16.mxu0 0
    %877 = vmatpush1.bf16.msra.mxu0 0
    %878 = vmatprep.subr.bf16.mxu0 0
    %879 = vmatpush1.bf16.msra.mxu0 0
    %880 = vmatprep.subr.bf16.mxu0 0
    %881 = vmatpush1.bf16.msra.mxu0 0
    %882 = vmatprep.subr.bf16.mxu0 0
    %883 = vmatpush1.bf16.msra.mxu0 0
    %884 = vmatprep.subr.bf16.mxu0 0
    %885 = vmatpush1.bf16.msra.mxu0 0
    %886 = vmatprep.subr.bf16.mxu0 0
    %887 = vmatpush1.bf16.msra.mxu0 0
    %888 = vmatprep.subr.bf16.mxu0 0
    %889 = vmatpush1.bf16.msra.mxu0 0
    %890 = vmatprep.subr.bf16.mxu0 0
    %891 = vmatpush1.bf16.msra.mxu0 0
    %892 = vmatprep.subr.bf16.mxu0 0
    %893 = vmatpush1.bf16.msra.mxu0 0
    %894 = vmatprep.subr.bf16.mxu0 0
    %895 = vmatpush1.bf16.msra.mxu0 0
    %896 = vmatprep.mubr.bf16.mxu0 0
    %897 = vmatmul.mubr.bf16.gmra.mrb[0].mxu0 %v862
    %v898 = vpop.f32.mrb[0].mxu0
    %v899 = vadd.f32 0.0, %v898
    %v900 = vpop.f32.mrb[0].mxu0
    %v901 = vpop.f32.mrb[0].mxu0
    %v902 = vpop.f32.mrb[0].mxu0
    %903 = vdwg.mxu0
    %v904 = vadd.f32 %v858, %v899
    %s905 = scalar_lea.vmem [#allocation3], 20
    %v906 = vld [vmem:[%s905] sm:$0xf]
    %v907 = vunpack.c.l.bf16 %v906
    %908 = vrot.lane.b32.xlu0 %v847, 32
    %v909 = vpop.permute.xlu0 %908
    %v911 = vsel %vm521, %v909, 0
    %913 = vmatprep.subr.bf16.mxu0 0
    %914 = vmatpush1.bf16.msra.mxu0 %v577
    %915 = vmatprep.subr.bf16.mxu0 0
    %916 = vmatpush1.bf16.msra.mxu0 %v578
    %917 = vmatprep.subr.bf16.mxu0 0
    %918 = vmatpush1.bf16.msra.mxu0 0
    %919 = vmatprep.subr.bf16.mxu0 0
    %920 = vmatpush1.bf16.msra.mxu0 0
    %921 = vmatprep.subr.bf16.mxu0 0
    %922 = vmatpush1.bf16.msra.mxu0 0
    %923 = vmatprep.subr.bf16.mxu0 0
    %924 = vmatpush1.bf16.msra.mxu0 0
    %925 = vmatprep.subr.bf16.mxu0 0
    %926 = vmatpush1.bf16.msra.mxu0 0
    %927 = vmatprep.subr.bf16.mxu0 0
    %928 = vmatpush1.bf16.msra.mxu0 0
    %929 = vmatprep.subr.bf16.mxu0 0
    %930 = vmatpush1.bf16.msra.mxu0 0
    %931 = vmatprep.subr.bf16.mxu0 0
    %932 = vmatpush1.bf16.msra.mxu0 0
    %933 = vmatprep.subr.bf16.mxu0 0
    %934 = vmatpush1.bf16.msra.mxu0 0
    %935 = vmatprep.subr.bf16.mxu0 0
    %936 = vmatpush1.bf16.msra.mxu0 0
    %937 = vmatprep.subr.bf16.mxu0 0
    %938 = vmatpush1.bf16.msra.mxu0 0
    %939 = vmatprep.subr.bf16.mxu0 0
    %940 = vmatpush1.bf16.msra.mxu0 0
    %941 = vmatprep.subr.bf16.mxu0 0
    %942 = vmatpush1.bf16.msra.mxu0 0
    %943 = vmatprep.subr.bf16.mxu0 0
    %944 = vmatpush1.bf16.msra.mxu0 0
    %945 = vmatprep.mubr.bf16.mxu0 0
    %946 = vmatmul.mubr.bf16.gmra.mrb[0].mxu0 %v911
    %v947 = vpop.f32.mrb[0].mxu0
    %v948 = vadd.f32 0.0, %v947
    %v949 = vpop.f32.mrb[0].mxu0
    %v950 = vpop.f32.mrb[0].mxu0
    %v951 = vpop.f32.mrb[0].mxu0
    %952 = vdwg.mxu0
    %v953 = vadd.f32 %v907, %v948
    %v954 = vpack.c.bf16 %v904, %v904
    %v955 = vmul.bf16 %v954, 1056980736
    %v956 = vtanh.bf16.pop %v955
    %v957 = vmul.bf16 %v956, 1056980736
    %v958 = vadd.bf16 %v957, 1056980736
    %v959 = vtanh.bf16.pop %v954
    %v960 = vunpack.c.l.bf16 %v958
    %v961 = vmul.f32 %v960, %v806
    %963 = vrot.lane.b32.xlu0 %v959, 64
    %v964 = vpop.permute.xlu0 %963
    %v966 = vmul.bf16 %v958, %v964
    %v967 = vunpack.c.l.bf16 %v966
    %969 = vrot.lane.b32.xlu0 %v967, 32
    %v970 = vpop.permute.xlu0 %969
    %v972 = vadd.f32 %v961, %v970
    %v973 = vtanh.pop %v972
    %975 = vrot.lane.b32.xlu0 %v973, 64
    %v976 = vpop.permute.xlu0 %975
    %v978 = vmul.f32 %v960, %v976
    %v979 = vpack.c.bf16 %v953, %v953
    %v980 = vmul.bf16 %v979, 1056980736
    %v981 = vtanh.bf16.pop %v980
    %v982 = vmul.bf16 %v981, 1056980736
    %v983 = vadd.bf16 %v982, 1056980736
    %v984 = vtanh.bf16.pop %v979
    %v985 = vunpack.c.l.bf16 %v983
    %v986 = vmul.f32 %v985, %v831
    %988 = vrot.lane.b32.xlu0 %v984, 64
    %v989 = vpop.permute.xlu0 %988
    %v991 = vmul.bf16 %v983, %v989
    %v992 = vunpack.c.l.bf16 %v991
    %994 = vrot.lane.b32.xlu0 %v992, 32
    %v995 = vpop.permute.xlu0 %994
    %v997 = vadd.f32 %v986, %v995
    %v998 = vtanh.pop %v997
    %1000 = vrot.lane.b32.xlu0 %v998, 64
    %v1001 = vpop.permute.xlu0 %1000
    %v1003 = vmul.f32 %v985, %v1001
    %v1004 = vpack.c.bf16 %v978, %v978
    %v1006 = vunpack.c.l.b16 %v1004
    %v1007 = vpack.c.b16 %v1006, %v1006
    %1008 = vrot.lane.b32.xlu0 %v1007, 32
    %v1009 = vpop.permute.xlu0 %1008
    %s1011 = scalar_lea.vmem [#allocation4], 8
    %1012 = vst.msk [vmem:[%s1011] sm:$0xf] %vm679, %v1009
    %v1013 = vpack.c.bf16 %v1003, %v1003
    %v1015 = vunpack.c.l.b16 %v1013
    %v1016 = vpack.c.b16 %v1015, %v1015
    %1017 = vrot.lane.b32.xlu0 %v1016, 32
    %v1018 = vpop.permute.xlu0 %1017
    %s1020 = scalar_lea.vmem [#allocation5], 20
    %1021 = vst.msk [vmem:[%s1020] sm:$0xf] %vm679, %v1018
    %s1022 = scalar_lea.vmem [#allocation2], 12
    %v1023 = vld [vmem:[%s1022] sm:$0xf]
    %v1024 = vunpack.c.l.bf16 %v1023
    %1025 = vrot.lane.b32.xlu0 %v1004, 32
    %v1026 = vpop.permute.xlu0 %1025
    %v1028 = vsel %vm521, %v1026, 0
    %1030 = vmatprep.subr.bf16.mxu0 0
    %1031 = vmatpush1.bf16.msra.mxu0 %v517
    %1032 = vmatprep.subr.bf16.mxu0 0
    %1033 = vmatpush1.bf16.msra.mxu0 %v518
    %1034 = vmatprep.subr.bf16.mxu0 0
    %1035 = vmatpush1.bf16.msra.mxu0 0
    %1036 = vmatprep.subr.bf16.mxu0 0
    %1037 = vmatpush1.bf16.msra.mxu0 0
    %1038 = vmatprep.subr.bf16.mxu0 0
    %1039 = vmatpush1.bf16.msra.mxu0 0
    %1040 = vmatprep.subr.bf16.mxu0 0
    %1041 = vmatpush1.bf16.msra.mxu0 0
    %1042 = vmatprep.subr.bf16.mxu0 0
    %1043 = vmatpush1.bf16.msra.mxu0 0
    %1044 = vmatprep.subr.bf16.mxu0 0
    %1045 = vmatpush1.bf16.msra.mxu0 0
    %1046 = vmatprep.subr.bf16.mxu0 0
    %1047 = vmatpush1.bf16.msra.mxu0 0
    %1048 = vmatprep.subr.bf16.mxu0 0
    %1049 = vmatpush1.bf16.msra.mxu0 0
    %1050 = vmatprep.subr.bf16.mxu0 0
    %1051 = vmatpush1.bf16.msra.mxu0 0
    %1052 = vmatprep.subr.bf16.mxu0 0
    %1053 = vmatpush1.bf16.msra.mxu0 0
    %1054 = vmatprep.subr.bf16.mxu0 0
    %1055 = vmatpush1.bf16.msra.mxu0 0
    %1056 = vmatprep.subr.bf16.mxu0 0
    %1057 = vmatpush1.bf16.msra.mxu0 0
    %1058 = vmatprep.subr.bf16.mxu0 0
    %1059 = vmatpush1.bf16.msra.mxu0 0
    %1060 = vmatprep.subr.bf16.mxu0 0
    %1061 = vmatpush1.bf16.msra.mxu0 0
    %1062 = vmatprep.mubr.bf16.mxu0 0
    %1063 = vmatmul.mubr.bf16.gmra.mrb[0].mxu0 %v1028
    %v1064 = vpop.f32.mrb[0].mxu0
    %v1065 = vadd.f32 0.0, %v1064
    %v1066 = vpop.f32.mrb[0].mxu0
    %v1067 = vpop.f32.mrb[0].mxu0
    %v1068 = vpop.f32.mrb[0].mxu0
    %1069 = vdwg.mxu0
    %v1070 = vadd.f32 %v1024, %v1065
    %s1071 = scalar_lea.vmem [#allocation3], 16
    %v1072 = vld [vmem:[%s1071] sm:$0xf]
    %v1073 = vunpack.c.l.bf16 %v1072
    %1074 = vrot.lane.b32.xlu0 %v1013, 32
    %v1075 = vpop.permute.xlu0 %1074
    %v1077 = vsel %vm521, %v1075, 0
    %1079 = vmatprep.subr.bf16.mxu0 0
    %1080 = vmatpush1.bf16.msra.mxu0 %v577
    %1081 = vmatprep.subr.bf16.mxu0 0
    %1082 = vmatpush1.bf16.msra.mxu0 %v578
    %1083 = vmatprep.subr.bf16.mxu0 0
    %1084 = vmatpush1.bf16.msra.mxu0 0
    %1085 = vmatprep.subr.bf16.mxu0 0
    %1086 = vmatpush1.bf16.msra.mxu0 0
    %1087 = vmatprep.subr.bf16.mxu0 0
    %1088 = vmatpush1.bf16.msra.mxu0 0
    %1089 = vmatprep.subr.bf16.mxu0 0
    %1090 = vmatpush1.bf16.msra.mxu0 0
    %1091 = vmatprep.subr.bf16.mxu0 0
    %1092 = vmatpush1.bf16.msra.mxu0 0
    %1093 = vmatprep.subr.bf16.mxu0 0
    %1094 = vmatpush1.bf16.msra.mxu0 0
    %1095 = vmatprep.subr.bf16.mxu0 0
    %1096 = vmatpush1.bf16.msra.mxu0 0
    %1097 = vmatprep.subr.bf16.mxu0 0
    %1098 = vmatpush1.bf16.msra.mxu0 0
    %1099 = vmatprep.subr.bf16.mxu0 0
    %1100 = vmatpush1.bf16.msra.mxu0 0
    %1101 = vmatprep.subr.bf16.mxu0 0
    %1102 = vmatpush1.bf16.msra.mxu0 0
    %1103 = vmatprep.subr.bf16.mxu0 0
    %1104 = vmatpush1.bf16.msra.mxu0 0
    %1105 = vmatprep.subr.bf16.mxu0 0
    %1106 = vmatpush1.bf16.msra.mxu0 0
    %1107 = vmatprep.subr.bf16.mxu0 0
    %1108 = vmatpush1.bf16.msra.mxu0 0
    %1109 = vmatprep.subr.bf16.mxu0 0
    %1110 = vmatpush1.bf16.msra.mxu0 0
    %1111 = vmatprep.mubr.bf16.mxu0 0
    %1112 = vmatmul.mubr.bf16.gmra.mrb[0].mxu0 %v1077
    %v1113 = vpop.f32.mrb[0].mxu0
    %v1114 = vadd.f32 0.0, %v1113
    %v1115 = vpop.f32.mrb[0].mxu0
    %v1116 = vpop.f32.mrb[0].mxu0
    %v1117 = vpop.f32.mrb[0].mxu0
    %1118 = vdwg.mxu0
    %v1119 = vadd.f32 %v1073, %v1114
    %v1120 = vpack.c.bf16 %v1070, %v1070
    %v1121 = vmul.bf16 %v1120, 1056980736
    %v1122 = vtanh.bf16.pop %v1121
    %v1123 = vmul.bf16 %v1122, 1056980736
    %v1124 = vadd.bf16 %v1123, 1056980736
    %v1125 = vtanh.bf16.pop %v1120
    %v1126 = vunpack.c.l.bf16 %v1124
    %v1127 = vmul.f32 %v1126, %v972
    %1129 = vrot.lane.b32.xlu0 %v1125, 64
    %v1130 = vpop.permute.xlu0 %1129
    %v1132 = vmul.bf16 %v1124, %v1130
    %v1133 = vunpack.c.l.bf16 %v1132
    %1135 = vrot.lane.b32.xlu0 %v1133, 32
    %v1136 = vpop.permute.xlu0 %1135
    %v1138 = vadd.f32 %v1127, %v1136
    %v1139 = vtanh.pop %v1138
    %1141 = vrot.lane.b32.xlu0 %v1139, 64
    %v1142 = vpop.permute.xlu0 %1141
    %v1144 = vmul.f32 %v1126, %v1142
    %v1145 = vpack.c.bf16 %v1119, %v1119
    %v1146 = vmul.bf16 %v1145, 1056980736
    %v1147 = vtanh.bf16.pop %v1146
    %v1148 = vmul.bf16 %v1147, 1056980736
    %v1149 = vadd.bf16 %v1148, 1056980736
    %v1150 = vtanh.bf16.pop %v1145
    %v1151 = vunpack.c.l.bf16 %v1149
    %v1152 = vmul.f32 %v1151, %v997
    %1154 = vrot.lane.b32.xlu0 %v1150, 64
    %v1155 = vpop.permute.xlu0 %1154
    %v1157 = vmul.bf16 %v1149, %v1155
    %v1158 = vunpack.c.l.bf16 %v1157
    %1160 = vrot.lane.b32.xlu0 %v1158, 32
    %v1161 = vpop.permute.xlu0 %1160
    %v1163 = vadd.f32 %v1152, %v1161
    %v1164 = vtanh.pop %v1163
    %1166 = vrot.lane.b32.xlu0 %v1164, 64
    %v1167 = vpop.permute.xlu0 %1166
    %v1169 = vmul.f32 %v1151, %v1167
    %v1170 = vpack.c.bf16 %v1144, %v1144
    %v1172 = vunpack.c.l.b16 %v1170
    %v1173 = vpack.c.b16 %v1172, %v1172
    %1174 = vrot.lane.b32.xlu0 %v1173, 32
    %v1175 = vpop.permute.xlu0 %1174
    %s1177 = scalar_lea.vmem [#allocation4], 12
    %1178 = vst.msk [vmem:[%s1177] sm:$0xf] %vm679, %v1175
    %v1179 = vpack.c.bf16 %v1169, %v1169
    %v1181 = vunpack.c.l.b16 %v1179
    %v1182 = vpack.c.b16 %v1181, %v1181
    %1183 = vrot.lane.b32.xlu0 %v1182, 32
    %v1184 = vpop.permute.xlu0 %1183
    %s1186 = scalar_lea.vmem [#allocation5], 16
    %1187 = vst.msk [vmem:[%s1186] sm:$0xf] %vm679, %v1184
    %s1188 = scalar_lea.vmem [#allocation2], 16
    %v1189 = vld [vmem:[%s1188] sm:$0xf]
    %v1190 = vunpack.c.l.bf16 %v1189
    %1191 = vrot.lane.b32.xlu0 %v1170, 32
    %v1192 = vpop.permute.xlu0 %1191
    %v1194 = vsel %vm521, %v1192, 0
    %1196 = vmatprep.subr.bf16.mxu0 0
    %1197 = vmatpush1.bf16.msra.mxu0 %v517
    %1198 = vmatprep.subr.bf16.mxu0 0
    %1199 = vmatpush1.bf16.msra.mxu0 %v518
    %1200 = vmatprep.subr.bf16.mxu0 0
    %1201 = vmatpush1.bf16.msra.mxu0 0
    %1202 = vmatprep.subr.bf16.mxu0 0
    %1203 = vmatpush1.bf16.msra.mxu0 0
    %1204 = vmatprep.subr.bf16.mxu0 0
    %1205 = vmatpush1.bf16.msra.mxu0 0
    %1206 = vmatprep.subr.bf16.mxu0 0
    %1207 = vmatpush1.bf16.msra.mxu0 0
    %1208 = vmatprep.subr.bf16.mxu0 0
    %1209 = vmatpush1.bf16.msra.mxu0 0
    %1210 = vmatprep.subr.bf16.mxu0 0
    %1211 = vmatpush1.bf16.msra.mxu0 0
    %1212 = vmatprep.subr.bf16.mxu0 0
    %1213 = vmatpush1.bf16.msra.mxu0 0
    %1214 = vmatprep.subr.bf16.mxu0 0
    %1215 = vmatpush1.bf16.msra.mxu0 0
    %1216 = vmatprep.subr.bf16.mxu0 0
    %1217 = vmatpush1.bf16.msra.mxu0 0
    %1218 = vmatprep.subr.bf16.mxu0 0
    %1219 = vmatpush1.bf16.msra.mxu0 0
    %1220 = vmatprep.subr.bf16.mxu0 0
    %1221 = vmatpush1.bf16.msra.mxu0 0
    %1222 = vmatprep.subr.bf16.mxu0 0
    %1223 = vmatpush1.bf16.msra.mxu0 0
    %1224 = vmatprep.subr.bf16.mxu0 0
    %1225 = vmatpush1.bf16.msra.mxu0 0
    %1226 = vmatprep.subr.bf16.mxu0 0
    %1227 = vmatpush1.bf16.msra.mxu0 0
    %1228 = vmatprep.mubr.bf16.mxu0 0
    %1229 = vmatmul.mubr.bf16.gmra.mrb[0].mxu0 %v1194
    %v1230 = vpop.f32.mrb[0].mxu0
    %v1231 = vadd.f32 0.0, %v1230
    %v1232 = vpop.f32.mrb[0].mxu0
    %v1233 = vpop.f32.mrb[0].mxu0
    %v1234 = vpop.f32.mrb[0].mxu0
    %1235 = vdwg.mxu0
    %v1236 = vadd.f32 %v1190, %v1231
    %s1237 = scalar_lea.vmem [#allocation3], 12
    %v1238 = vld [vmem:[%s1237] sm:$0xf]
    %v1239 = vunpack.c.l.bf16 %v1238
    %1240 = vrot.lane.b32.xlu0 %v1179, 32
    %v1241 = vpop.permute.xlu0 %1240
    %v1243 = vsel %vm521, %v1241, 0
    %1245 = vmatprep.subr.bf16.mxu0 0
    %1246 = vmatpush1.bf16.msra.mxu0 %v577
    %1247 = vmatprep.subr.bf16.mxu0 0
    %1248 = vmatpush1.bf16.msra.mxu0 %v578
    %1249 = vmatprep.subr.bf16.mxu0 0
    %1250 = vmatpush1.bf16.msra.mxu0 0
    %1251 = vmatprep.subr.bf16.mxu0 0
    %1252 = vmatpush1.bf16.msra.mxu0 0
    %1253 = vmatprep.subr.bf16.mxu0 0
    %1254 = vmatpush1.bf16.msra.mxu0 0
    %1255 = vmatprep.subr.bf16.mxu0 0
    %1256 = vmatpush1.bf16.msra.mxu0 0
    %1257 = vmatprep.subr.bf16.mxu0 0
    %1258 = vmatpush1.bf16.msra.mxu0 0
    %1259 = vmatprep.subr.bf16.mxu0 0
    %1260 = vmatpush1.bf16.msra.mxu0 0
    %1261 = vmatprep.subr.bf16.mxu0 0
    %1262 = vmatpush1.bf16.msra.mxu0 0
    %1263 = vmatprep.subr.bf16.mxu0 0
    %1264 = vmatpush1.bf16.msra.mxu0 0
    %1265 = vmatprep.subr.bf16.mxu0 0
    %1266 = vmatpush1.bf16.msra.mxu0 0
    %1267 = vmatprep.subr.bf16.mxu0 0
    %1268 = vmatpush1.bf16.msra.mxu0 0
    %1269 = vmatprep.subr.bf16.mxu0 0
    %1270 = vmatpush1.bf16.msra.mxu0 0
    %1271 = vmatprep.subr.bf16.mxu0 0
    %1272 = vmatpush1.bf16.msra.mxu0 0
    %1273 = vmatprep.subr.bf16.mxu0 0
    %1274 = vmatpush1.bf16.msra.mxu0 0
    %1275 = vmatprep.subr.bf16.mxu0 0
    %1276 = vmatpush1.bf16.msra.mxu0 0
    %1277 = vmatprep.mubr.bf16.mxu0 0
    %1278 = vmatmul.mubr.bf16.gmra.mrb[0].mxu0 %v1243
    %v1279 = vpop.f32.mrb[0].mxu0
    %v1280 = vadd.f32 0.0, %v1279
    %v1281 = vpop.f32.mrb[0].mxu0
    %v1282 = vpop.f32.mrb[0].mxu0
    %v1283 = vpop.f32.mrb[0].mxu0
    %1284 = vdwg.mxu0
    %v1285 = vadd.f32 %v1239, %v1280
    %v1286 = vpack.c.bf16 %v1236, %v1236
    %v1287 = vmul.bf16 %v1286, 1056980736
    %v1288 = vtanh.bf16.pop %v1287
    %v1289 = vmul.bf16 %v1288, 1056980736
    %v1290 = vadd.bf16 %v1289, 1056980736
    %v1291 = vtanh.bf16.pop %v1286
    %v1292 = vunpack.c.l.bf16 %v1290
    %v1293 = vmul.f32 %v1292, %v1138
    %1295 = vrot.lane.b32.xlu0 %v1291, 64
    %v1296 = vpop.permute.xlu0 %1295
    %v1298 = vmul.bf16 %v1290, %v1296
    %v1299 = vunpack.c.l.bf16 %v1298
    %1301 = vrot.lane.b32.xlu0 %v1299, 32
    %v1302 = vpop.permute.xlu0 %1301
    %v1304 = vadd.f32 %v1293, %v1302
    %v1305 = vtanh.pop %v1304
    %1307 = vrot.lane.b32.xlu0 %v1305, 64
    %v1308 = vpop.permute.xlu0 %1307
    %v1310 = vmul.f32 %v1292, %v1308
    %v1311 = vpack.c.bf16 %v1285, %v1285
    %v1312 = vmul.bf16 %v1311, 1056980736
    %v1313 = vtanh.bf16.pop %v1312
    %v1314 = vmul.bf16 %v1313, 1056980736
    %v1315 = vadd.bf16 %v1314, 1056980736
    %v1316 = vtanh.bf16.pop %v1311
    %v1317 = vunpack.c.l.bf16 %v1315
    %v1318 = vmul.f32 %v1317, %v1163
    %1320 = vrot.lane.b32.xlu0 %v1316, 64
    %v1321 = vpop.permute.xlu0 %1320
    %v1323 = vmul.bf16 %v1315, %v1321
    %v1324 = vunpack.c.l.bf16 %v1323
    %1326 = vrot.lane.b32.xlu0 %v1324, 32
    %v1327 = vpop.permute.xlu0 %1326
    %v1329 = vadd.f32 %v1318, %v1327
    %v1330 = vtanh.pop %v1329
    %1332 = vrot.lane.b32.xlu0 %v1330, 64
    %v1333 = vpop.permute.xlu0 %1332
    %v1335 = vmul.f32 %v1317, %v1333
    %v1336 = vpack.c.bf16 %v1310, %v1310
    %v1338 = vunpack.c.l.b16 %v1336
    %v1339 = vpack.c.b16 %v1338, %v1338
    %1340 = vrot.lane.b32.xlu0 %v1339, 32
    %v1341 = vpop.permute.xlu0 %1340
    %s1343 = scalar_lea.vmem [#allocation4], 16
    %1344 = vst.msk [vmem:[%s1343] sm:$0xf] %vm679, %v1341
    %v1345 = vpack.c.bf16 %v1335, %v1335
    %v1347 = vunpack.c.l.b16 %v1345
    %v1348 = vpack.c.b16 %v1347, %v1347
    %1349 = vrot.lane.b32.xlu0 %v1348, 32
    %v1350 = vpop.permute.xlu0 %1349
    %s1352 = scalar_lea.vmem [#allocation5], 12
    %1353 = vst.msk [vmem:[%s1352] sm:$0xf] %vm679, %v1350
    %s1354 = scalar_lea.vmem [#allocation2], 20
    %v1355 = vld [vmem:[%s1354] sm:$0xf]
    %v1356 = vunpack.c.l.bf16 %v1355
    %1357 = vrot.lane.b32.xlu0 %v1336, 32
    %v1358 = vpop.permute.xlu0 %1357
    %v1360 = vsel %vm521, %v1358, 0
    %1362 = vmatprep.subr.bf16.mxu0 0
    %1363 = vmatpush1.bf16.msra.mxu0 %v517
    %1364 = vmatprep.subr.bf16.mxu0 0
    %1365 = vmatpush1.bf16.msra.mxu0 %v518
    %1366 = vmatprep.subr.bf16.mxu0 0
    %1367 = vmatpush1.bf16.msra.mxu0 0
    %1368 = vmatprep.subr.bf16.mxu0 0
    %1369 = vmatpush1.bf16.msra.mxu0 0
    %1370 = vmatprep.subr.bf16.mxu0 0
    %1371 = vmatpush1.bf16.msra.mxu0 0
    %1372 = vmatprep.subr.bf16.mxu0 0
    %1373 = vmatpush1.bf16.msra.mxu0 0
    %1374 = vmatprep.subr.bf16.mxu0 0
    %1375 = vmatpush1.bf16.msra.mxu0 0
    %1376 = vmatprep.subr.bf16.mxu0 0
    %1377 = vmatpush1.bf16.msra.mxu0 0
    %1378 = vmatprep.subr.bf16.mxu0 0
    %1379 = vmatpush1.bf16.msra.mxu0 0
    %1380 = vmatprep.subr.bf16.mxu0 0
    %1381 = vmatpush1.bf16.msra.mxu0 0
    %1382 = vmatprep.subr.bf16.mxu0 0
    %1383 = vmatpush1.bf16.msra.mxu0 0
    %1384 = vmatprep.subr.bf16.mxu0 0
    %1385 = vmatpush1.bf16.msra.mxu0 0
    %1386 = vmatprep.subr.bf16.mxu0 0
    %1387 = vmatpush1.bf16.msra.mxu0 0
    %1388 = vmatprep.subr.bf16.mxu0 0
    %1389 = vmatpush1.bf16.msra.mxu0 0
    %1390 = vmatprep.subr.bf16.mxu0 0
    %1391 = vmatpush1.bf16.msra.mxu0 0
    %1392 = vmatprep.subr.bf16.mxu0 0
    %1393 = vmatpush1.bf16.msra.mxu0 0
    %1394 = vmatprep.mubr.bf16.mxu0 0
    %1395 = vmatmul.mubr.bf16.gmra.mrb[0].mxu0 %v1360
    %v1396 = vpop.f32.mrb[0].mxu0
    %v1397 = vadd.f32 0.0, %v1396
    %v1398 = vpop.f32.mrb[0].mxu0
    %v1399 = vpop.f32.mrb[0].mxu0
    %v1400 = vpop.f32.mrb[0].mxu0
    %1401 = vdwg.mxu0
    %v1402 = vadd.f32 %v1356, %v1397
    %s1403 = scalar_lea.vmem [#allocation3], 8
    %v1404 = vld [vmem:[%s1403] sm:$0xf]
    %v1405 = vunpack.c.l.bf16 %v1404
    %1406 = vrot.lane.b32.xlu0 %v1345, 32
    %v1407 = vpop.permute.xlu0 %1406
    %v1409 = vsel %vm521, %v1407, 0
    %1411 = vmatprep.subr.bf16.mxu0 0
    %1412 = vmatpush1.bf16.msra.mxu0 %v577
    %1413 = vmatprep.subr.bf16.mxu0 0
    %1414 = vmatpush1.bf16.msra.mxu0 %v578
    %1415 = vmatprep.subr.bf16.mxu0 0
    %1416 = vmatpush1.bf16.msra.mxu0 0
    %1417 = vmatprep.subr.bf16.mxu0 0
    %1418 = vmatpush1.bf16.msra.mxu0 0
    %1419 = vmatprep.subr.bf16.mxu0 0
    %1420 = vmatpush1.bf16.msra.mxu0 0
    %1421 = vmatprep.subr.bf16.mxu0 0
    %1422 = vmatpush1.bf16.msra.mxu0 0
    %1423 = vmatprep.subr.bf16.mxu0 0
    %1424 = vmatpush1.bf16.msra.mxu0 0
    %1425 = vmatprep.subr.bf16.mxu0 0
    %1426 = vmatpush1.bf16.msra.mxu0 0
    %1427 = vmatprep.subr.bf16.mxu0 0
    %1428 = vmatpush1.bf16.msra.mxu0 0
    %1429 = vmatprep.subr.bf16.mxu0 0
    %1430 = vmatpush1.bf16.msra.mxu0 0
    %1431 = vmatprep.subr.bf16.mxu0 0
    %1432 = vmatpush1.bf16.msra.mxu0 0
    %1433 = vmatprep.subr.bf16.mxu0 0
    %1434 = vmatpush1.bf16.msra.mxu0 0
    %1435 = vmatprep.subr.bf16.mxu0 0
    %1436 = vmatpush1.bf16.msra.mxu0 0
    %1437 = vmatprep.subr.bf16.mxu0 0
    %1438 = vmatpush1.bf16.msra.mxu0 0
    %1439 = vmatprep.subr.bf16.mxu0 0
    %1440 = vmatpush1.bf16.msra.mxu0 0
    %1441 = vmatprep.subr.bf16.mxu0 0
    %1442 = vmatpush1.bf16.msra.mxu0 0
    %1443 = vmatprep.mubr.bf16.mxu0 0
    %1444 = vmatmul.mubr.bf16.gmra.mrb[0].mxu0 %v1409
    %v1445 = vpop.f32.mrb[0].mxu0
    %v1446 = vadd.f32 0.0, %v1445
    %v1447 = vpop.f32.mrb[0].mxu0
    %v1448 = vpop.f32.mrb[0].mxu0
    %v1449 = vpop.f32.mrb[0].mxu0
    %1450 = vdwg.mxu0
    %v1451 = vadd.f32 %v1405, %v1446
    %v1452 = vpack.c.bf16 %v1402, %v1402
    %v1453 = vmul.bf16 %v1452, 1056980736
    %v1454 = vtanh.bf16.pop %v1453
    %v1455 = vmul.bf16 %v1454, 1056980736
    %v1456 = vadd.bf16 %v1455, 1056980736
    %v1457 = vtanh.bf16.pop %v1452
    %v1458 = vunpack.c.l.bf16 %v1456
    %v1459 = vmul.f32 %v1458, %v1304
    %1461 = vrot.lane.b32.xlu0 %v1457, 64
    %v1462 = vpop.permute.xlu0 %1461
    %v1464 = vmul.bf16 %v1456, %v1462
    %v1465 = vunpack.c.l.bf16 %v1464
    %1467 = vrot.lane.b32.xlu0 %v1465, 32
    %v1468 = vpop.permute.xlu0 %1467
    %v1470 = vadd.f32 %v1459, %v1468
    %v1471 = vtanh.pop %v1470
    %1473 = vrot.lane.b32.xlu0 %v1471, 64
    %v1474 = vpop.permute.xlu0 %1473
    %v1476 = vmul.f32 %v1458, %v1474
    %v1477 = vpack.c.bf16 %v1451, %v1451
    %v1478 = vmul.bf16 %v1477, 1056980736
    %v1479 = vtanh.bf16.pop %v1478
    %v1480 = vmul.bf16 %v1479, 1056980736
    %v1481 = vadd.bf16 %v1480, 1056980736
    %v1482 = vtanh.bf16.pop %v1477
    %v1483 = vunpack.c.l.bf16 %v1481
    %v1484 = vmul.f32 %v1483, %v1329
    %1486 = vrot.lane.b32.xlu0 %v1482, 64
    %v1487 = vpop.permute.xlu0 %1486
    %v1489 = vmul.bf16 %v1481, %v1487
    %v1490 = vunpack.c.l.bf16 %v1489
    %1492 = vrot.lane.b32.xlu0 %v1490, 32
    %v1493 = vpop.permute.xlu0 %1492
    %v1495 = vadd.f32 %v1484, %v1493
    %v1496 = vtanh.pop %v1495
    %1498 = vrot.lane.b32.xlu0 %v1496, 64
    %v1499 = vpop.permute.xlu0 %1498
    %v1501 = vmul.f32 %v1483, %v1499
    %v1502 = vpack.c.bf16 %v1476, %v1476
    %v1504 = vunpack.c.l.b16 %v1502
    %v1505 = vpack.c.b16 %v1504, %v1504
    %1506 = vrot.lane.b32.xlu0 %v1505, 32
    %v1507 = vpop.permute.xlu0 %1506
    %s1509 = scalar_lea.vmem [#allocation4], 20
    %1510 = vst.msk [vmem:[%s1509] sm:$0xf] %vm679, %v1507
    %v1511 = vpack.c.bf16 %v1501, %v1501
    %v1513 = vunpack.c.l.b16 %v1511
    %v1514 = vpack.c.b16 %v1513, %v1513
    %1515 = vrot.lane.b32.xlu0 %v1514, 32
    %v1516 = vpop.permute.xlu0 %1515
    %s1518 = scalar_lea.vmem [#allocation5], 8
    %1519 = vst.msk [vmem:[%s1518] sm:$0xf] %vm679, %v1516
    %s1520 = scalar_lea.vmem [#allocation2], 24
    %v1521 = vld [vmem:[%s1520] sm:$0xf]
    %v1522 = vunpack.c.l.bf16 %v1521
    %1523 = vrot.lane.b32.xlu0 %v1502, 32
    %v1524 = vpop.permute.xlu0 %1523
    %v1526 = vsel %vm521, %v1524, 0
    %1528 = vmatprep.subr.bf16.mxu0 0
    %1529 = vmatpush1.bf16.msra.mxu0 %v517
    %1530 = vmatprep.subr.bf16.mxu0 0
    %1531 = vmatpush1.bf16.msra.mxu0 %v518
    %1532 = vmatprep.subr.bf16.mxu0 0
    %1533 = vmatpush1.bf16.msra.mxu0 0
    %1534 = vmatprep.subr.bf16.mxu0 0
    %1535 = vmatpush1.bf16.msra.mxu0 0
    %1536 = vmatprep.subr.bf16.mxu0 0
    %1537 = vmatpush1.bf16.msra.mxu0 0
    %1538 = vmatprep.subr.bf16.mxu0 0
    %1539 = vmatpush1.bf16.msra.mxu0 0
    %1540 = vmatprep.subr.bf16.mxu0 0
    %1541 = vmatpush1.bf16.msra.mxu0 0
    %1542 = vmatprep.subr.bf16.mxu0 0
    %1543 = vmatpush1.bf16.msra.mxu0 0
    %1544 = vmatprep.subr.bf16.mxu0 0
    %1545 = vmatpush1.bf16.msra.mxu0 0
    %1546 = vmatprep.subr.bf16.mxu0 0
    %1547 = vmatpush1.bf16.msra.mxu0 0
    %1548 = vmatprep.subr.bf16.mxu0 0
    %1549 = vmatpush1.bf16.msra.mxu0 0
    %1550 = vmatprep.subr.bf16.mxu0 0
    %1551 = vmatpush1.bf16.msra.mxu0 0
    %1552 = vmatprep.subr.bf16.mxu0 0
    %1553 = vmatpush1.bf16.msra.mxu0 0
    %1554 = vmatprep.subr.bf16.mxu0 0
    %1555 = vmatpush1.bf16.msra.mxu0 0
    %1556 = vmatprep.subr.bf16.mxu0 0
    %1557 = vmatpush1.bf16.msra.mxu0 0
    %1558 = vmatprep.subr.bf16.mxu0 0
    %1559 = vmatpush1.bf16.msra.mxu0 0
    %1560 = vmatprep.mubr.bf16.mxu0 0
    %1561 = vmatmul.mubr.bf16.gmra.mrb[0].mxu0 %v1526
    %v1562 = vpop.f32.mrb[0].mxu0
    %v1563 = vadd.f32 0.0, %v1562
    %v1564 = vpop.f32.mrb[0].mxu0
    %v1565 = vpop.f32.mrb[0].mxu0
    %v1566 = vpop.f32.mrb[0].mxu0
    %1567 = vdwg.mxu0
    %v1568 = vadd.f32 %v1522, %v1563
    %s1569 = scalar_lea.vmem [#allocation3], 4
    %v1570 = vld [vmem:[%s1569] sm:$0xf]
    %v1571 = vunpack.c.l.bf16 %v1570
    %1572 = vrot.lane.b32.xlu0 %v1511, 32
    %v1573 = vpop.permute.xlu0 %1572
    %v1575 = vsel %vm521, %v1573, 0
    %1577 = vmatprep.subr.bf16.mxu0 0
    %1578 = vmatpush1.bf16.msra.mxu0 %v577
    %1579 = vmatprep.subr.bf16.mxu0 0
    %1580 = vmatpush1.bf16.msra.mxu0 %v578
    %1581 = vmatprep.subr.bf16.mxu0 0
    %1582 = vmatpush1.bf16.msra.mxu0 0
    %1583 = vmatprep.subr.bf16.mxu0 0
    %1584 = vmatpush1.bf16.msra.mxu0 0
    %1585 = vmatprep.subr.bf16.mxu0 0
    %1586 = vmatpush1.bf16.msra.mxu0 0
    %1587 = vmatprep.subr.bf16.mxu0 0
    %1588 = vmatpush1.bf16.msra.mxu0 0
    %1589 = vmatprep.subr.bf16.mxu0 0
    %1590 = vmatpush1.bf16.msra.mxu0 0
    %1591 = vmatprep.subr.bf16.mxu0 0
    %1592 = vmatpush1.bf16.msra.mxu0 0
    %1593 = vmatprep.subr.bf16.mxu0 0
    %1594 = vmatpush1.bf16.msra.mxu0 0
    %1595 = vmatprep.subr.bf16.mxu0 0
    %1596 = vmatpush1.bf16.msra.mxu0 0
    %1597 = vmatprep.subr.bf16.mxu0 0
    %1598 = vmatpush1.bf16.msra.mxu0 0
    %1599 = vmatprep.subr.bf16.mxu0 0
    %1600 = vmatpush1.bf16.msra.mxu0 0
    %1601 = vmatprep.subr.bf16.mxu0 0
    %1602 = vmatpush1.bf16.msra.mxu0 0
    %1603 = vmatprep.subr.bf16.mxu0 0
    %1604 = vmatpush1.bf16.msra.mxu0 0
    %1605 = vmatprep.subr.bf16.mxu0 0
    %1606 = vmatpush1.bf16.msra.mxu0 0
    %1607 = vmatprep.subr.bf16.mxu0 0
    %1608 = vmatpush1.bf16.msra.mxu0 0
    %1609 = vmatprep.mubr.bf16.mxu0 0
    %1610 = vmatmul.mubr.bf16.gmra.mrb[0].mxu0 %v1575
    %v1611 = vpop.f32.mrb[0].mxu0
    %v1612 = vadd.f32 0.0, %v1611
    %v1613 = vpop.f32.mrb[0].mxu0
    %v1614 = vpop.f32.mrb[0].mxu0
    %v1615 = vpop.f32.mrb[0].mxu0
    %1616 = vdwg.mxu0
    %v1617 = vadd.f32 %v1571, %v1612
    %v1618 = vpack.c.bf16 %v1568, %v1568
    %v1619 = vmul.bf16 %v1618, 1056980736
    %v1620 = vtanh.bf16.pop %v1619
    %v1621 = vmul.bf16 %v1620, 1056980736
    %v1622 = vadd.bf16 %v1621, 1056980736
    %v1623 = vtanh.bf16.pop %v1618
    %v1624 = vunpack.c.l.bf16 %v1622
    %v1625 = vmul.f32 %v1624, %v1470
    %1627 = vrot.lane.b32.xlu0 %v1623, 64
    %v1628 = vpop.permute.xlu0 %1627
    %v1630 = vmul.bf16 %v1622, %v1628
    %v1631 = vunpack.c.l.bf16 %v1630
    %1633 = vrot.lane.b32.xlu0 %v1631, 32
    %v1634 = vpop.permute.xlu0 %1633
    %v1636 = vadd.f32 %v1625, %v1634
    %v1637 = vtanh.pop %v1636
    %1639 = vrot.lane.b32.xlu0 %v1637, 64
    %v1640 = vpop.permute.xlu0 %1639
    %v1642 = vmul.f32 %v1624, %v1640
    %v1643 = vpack.c.bf16 %v1617, %v1617
    %v1644 = vmul.bf16 %v1643, 1056980736
    %v1645 = vtanh.bf16.pop %v1644
    %v1646 = vmul.bf16 %v1645, 1056980736
    %v1647 = vadd.bf16 %v1646, 1056980736
    %v1648 = vtanh.bf16.pop %v1643
    %v1649 = vunpack.c.l.bf16 %v1647
    %v1650 = vmul.f32 %v1649, %v1495
    %1652 = vrot.lane.b32.xlu0 %v1648, 64
    %v1653 = vpop.permute.xlu0 %1652
    %v1655 = vmul.bf16 %v1647, %v1653
    %v1656 = vunpack.c.l.bf16 %v1655
    %1658 = vrot.lane.b32.xlu0 %v1656, 32
    %v1659 = vpop.permute.xlu0 %1658
    %v1661 = vadd.f32 %v1650, %v1659
    %v1662 = vtanh.pop %v1661
    %1664 = vrot.lane.b32.xlu0 %v1662, 64
    %v1665 = vpop.permute.xlu0 %1664
    %v1667 = vmul.f32 %v1649, %v1665
    %v1668 = vpack.c.bf16 %v1642, %v1642
    %v1670 = vunpack.c.l.b16 %v1668
    %v1671 = vpack.c.b16 %v1670, %v1670
    %1672 = vrot.lane.b32.xlu0 %v1671, 32
    %v1673 = vpop.permute.xlu0 %1672
    %s1675 = scalar_lea.vmem [#allocation4], 24
    %1676 = vst.msk [vmem:[%s1675] sm:$0xf] %vm679, %v1673
    %v1677 = vpack.c.bf16 %v1667, %v1667
    %v1679 = vunpack.c.l.b16 %v1677
    %v1680 = vpack.c.b16 %v1679, %v1679
    %1681 = vrot.lane.b32.xlu0 %v1680, 32
    %v1682 = vpop.permute.xlu0 %1681
    %s1684 = scalar_lea.vmem [#allocation5], 4
    %1685 = vst.msk [vmem:[%s1684] sm:$0xf] %vm679, %v1682
    %s1686 = scalar_lea.vmem [#allocation2], 28
    %v1687 = vld [vmem:[%s1686] sm:$0xf]
    %v1688 = vunpack.c.l.bf16 %v1687
    %1689 = vrot.lane.b32.xlu0 %v1668, 32
    %v1690 = vpop.permute.xlu0 %1689
    %v1692 = vsel %vm521, %v1690, 0
    %1694 = vmatprep.subr.bf16.mxu0 0
    %1695 = vmatpush1.bf16.msra.mxu0 %v517
    %1696 = vmatprep.subr.bf16.mxu0 0
    %1697 = vmatpush1.bf16.msra.mxu0 %v518
    %1698 = vmatprep.subr.bf16.mxu0 0
    %1699 = vmatpush1.bf16.msra.mxu0 0
    %1700 = vmatprep.subr.bf16.mxu0 0
    %1701 = vmatpush1.bf16.msra.mxu0 0
    %1702 = vmatprep.subr.bf16.mxu0 0
    %1703 = vmatpush1.bf16.msra.mxu0 0
    %1704 = vmatprep.subr.bf16.mxu0 0
    %1705 = vmatpush1.bf16.msra.mxu0 0
    %1706 = vmatprep.subr.bf16.mxu0 0
    %1707 = vmatpush1.bf16.msra.mxu0 0
    %1708 = vmatprep.subr.bf16.mxu0 0
    %1709 = vmatpush1.bf16.msra.mxu0 0
    %1710 = vmatprep.subr.bf16.mxu0 0
    %1711 = vmatpush1.bf16.msra.mxu0 0
    %1712 = vmatprep.subr.bf16.mxu0 0
    %1713 = vmatpush1.bf16.msra.mxu0 0
    %1714 = vmatprep.subr.bf16.mxu0 0
    %1715 = vmatpush1.bf16.msra.mxu0 0
    %1716 = vmatprep.subr.bf16.mxu0 0
    %1717 = vmatpush1.bf16.msra.mxu0 0
    %1718 = vmatprep.subr.bf16.mxu0 0
    %1719 = vmatpush1.bf16.msra.mxu0 0
    %1720 = vmatprep.subr.bf16.mxu0 0
    %1721 = vmatpush1.bf16.msra.mxu0 0
    %1722 = vmatprep.subr.bf16.mxu0 0
    %1723 = vmatpush1.bf16.msra.mxu0 0
    %1724 = vmatprep.subr.bf16.mxu0 0
    %1725 = vmatpush1.bf16.msra.mxu0 0
    %1726 = vmatprep.mubr.bf16.mxu0 0
    %1727 = vmatmul.mubr.bf16.gmra.mrb[0].mxu0 %v1692
    %v1728 = vpop.f32.mrb[0].mxu0
    %v1729 = vadd.f32 0.0, %v1728
    %v1730 = vpop.f32.mrb[0].mxu0
    %v1731 = vpop.f32.mrb[0].mxu0
    %v1732 = vpop.f32.mrb[0].mxu0
    %1733 = vdwg.mxu0
    %v1734 = vadd.f32 %v1688, %v1729
    %v1735 = vld [vmem:[#allocation3] sm:$0xf]
    %v1736 = vunpack.c.l.bf16 %v1735
    %1737 = vrot.lane.b32.xlu0 %v1677, 32
    %v1738 = vpop.permute.xlu0 %1737
    %v1740 = vsel %vm521, %v1738, 0
    %1742 = vmatprep.subr.bf16.mxu0 0
    %1743 = vmatpush1.bf16.msra.mxu0 %v577
    %1744 = vmatprep.subr.bf16.mxu0 0
    %1745 = vmatpush1.bf16.msra.mxu0 %v578
    %1746 = vmatprep.subr.bf16.mxu0 0
    %1747 = vmatpush1.bf16.msra.mxu0 0
    %1748 = vmatprep.subr.bf16.mxu0 0
    %1749 = vmatpush1.bf16.msra.mxu0 0
    %1750 = vmatprep.subr.bf16.mxu0 0
    %1751 = vmatpush1.bf16.msra.mxu0 0
    %1752 = vmatprep.subr.bf16.mxu0 0
    %1753 = vmatpush1.bf16.msra.mxu0 0
    %1754 = vmatprep.subr.bf16.mxu0 0
    %1755 = vmatpush1.bf16.msra.mxu0 0
    %1756 = vmatprep.subr.bf16.mxu0 0
    %1757 = vmatpush1.bf16.msra.mxu0 0
    %1758 = vmatprep.subr.bf16.mxu0 0
    %1759 = vmatpush1.bf16.msra.mxu0 0
    %1760 = vmatprep.subr.bf16.mxu0 0
    %1761 = vmatpush1.bf16.msra.mxu0 0
    %1762 = vmatprep.subr.bf16.mxu0 0
    %1763 = vmatpush1.bf16.msra.mxu0 0
    %1764 = vmatprep.subr.bf16.mxu0 0
    %1765 = vmatpush1.bf16.msra.mxu0 0
    %1766 = vmatprep.subr.bf16.mxu0 0
    %1767 = vmatpush1.bf16.msra.mxu0 0
    %1768 = vmatprep.subr.bf16.mxu0 0
    %1769 = vmatpush1.bf16.msra.mxu0 0
    %1770 = vmatprep.subr.bf16.mxu0 0
    %1771 = vmatpush1.bf16.msra.mxu0 0
    %1772 = vmatprep.subr.bf16.mxu0 0
    %1773 = vmatpush1.bf16.msra.mxu0 0
    %1774 = vmatprep.mubr.bf16.mxu0 0
    %1775 = vmatmul.mubr.bf16.gmra.mrb[0].mxu0 %v1740
    %v1776 = vpop.f32.mrb[0].mxu0
    %v1777 = vadd.f32 0.0, %v1776
    %v1778 = vpop.f32.mrb[0].mxu0
    %v1779 = vpop.f32.mrb[0].mxu0
    %v1780 = vpop.f32.mrb[0].mxu0
    %1781 = vdwg.mxu0
    %v1782 = vadd.f32 %v1736, %v1777
    %v1783 = vpack.c.bf16 %v1734, %v1734
    %v1784 = vmul.bf16 %v1783, 1056980736
    %v1785 = vtanh.bf16.pop %v1784
    %v1786 = vmul.bf16 %v1785, 1056980736
    %v1787 = vadd.bf16 %v1786, 1056980736
    %v1788 = vtanh.bf16.pop %v1783
    %v1789 = vunpack.c.l.bf16 %v1787
    %v1790 = vmul.f32 %v1789, %v1636
    %1792 = vrot.lane.b32.xlu0 %v1788, 64
    %v1793 = vpop.permute.xlu0 %1792
    %v1795 = vmul.bf16 %v1787, %v1793
    %v1796 = vunpack.c.l.bf16 %v1795
    %1798 = vrot.lane.b32.xlu0 %v1796, 32
    %v1799 = vpop.permute.xlu0 %1798
    %v1801 = vadd.f32 %v1790, %v1799
    %v1802 = vtanh.pop %v1801
    %1804 = vrot.lane.b32.xlu0 %v1802, 64
    %v1805 = vpop.permute.xlu0 %1804
    %v1807 = vmul.f32 %v1789, %v1805
    %v1808 = vpack.c.bf16 %v1782, %v1782
    %v1809 = vmul.bf16 %v1808, 1056980736
    %v1810 = vtanh.bf16.pop %v1809
    %v1811 = vmul.bf16 %v1810, 1056980736
    %v1812 = vadd.bf16 %v1811, 1056980736
    %v1813 = vtanh.bf16.pop %v1808
    %v1814 = vunpack.c.l.bf16 %v1812
    %v1815 = vmul.f32 %v1814, %v1661
    %1817 = vrot.lane.b32.xlu0 %v1813, 64
    %v1818 = vpop.permute.xlu0 %1817
    %v1820 = vmul.bf16 %v1812, %v1818
    %v1821 = vunpack.c.l.bf16 %v1820
    %1823 = vrot.lane.b32.xlu0 %v1821, 32
    %v1824 = vpop.permute.xlu0 %1823
    %v1826 = vadd.f32 %v1815, %v1824
    %v1827 = vtanh.pop %v1826
    %1829 = vrot.lane.b32.xlu0 %v1827, 64
    %v1830 = vpop.permute.xlu0 %1829
    %v1832 = vmul.f32 %v1814, %v1830
    %v1833 = vpack.c.bf16 %v1807, %v1807
    %v1835 = vunpack.c.l.b16 %v1833
    %v1836 = vpack.c.b16 %v1835, %v1835
    %1837 = vrot.lane.b32.xlu0 %v1836, 32
    %v1838 = vpop.permute.xlu0 %1837
    %s1840 = scalar_lea.vmem [#allocation4], 28
    %1841 = vst.msk [vmem:[%s1840] sm:$0xf] %vm679, %v1838
    %v1842 = vpack.c.bf16 %v1832, %v1832
    %v1844 = vunpack.c.l.b16 %v1842
    %v1845 = vpack.c.b16 %v1844, %v1844
    %1846 = vrot.lane.b32.xlu0 %v1845, 32
    %v1847 = vpop.permute.xlu0 %1846
    %1849 = vst.msk [vmem:[#allocation5] sm:$0xf] %vm679, %v1847
    %v1850 = vld [vmem:[#allocation4] sm:$0xf]
    %v1851 = vld [vmem:[#allocation4 + $0x4] sm:$0xf]
    %v1852 = vld [vmem:[#allocation4 + $0x8] sm:$0xf]
    %v1853 = vld [vmem:[#allocation4 + $0xc] sm:$0xf]
    %v1854 = vld [vmem:[#allocation4 + $0x10] sm:$0xf]
    %v1855 = vld [vmem:[#allocation4 + $0x14] sm:$0xf]
    %v1856 = vld [vmem:[#allocation4 + $0x18] sm:$0xf]
    %v1857 = vld [vmem:[#allocation4 + $0x1c] sm:$0xf]
    %v1866 = vunpack.c.l.b16 %v1850
    %v1867 = vunpack.c.l.b16 %v1851
    %v1868 = vunpack.c.l.b16 %v1852
    %v1869 = vunpack.c.l.b16 %v1853
    %v1870 = vunpack.c.l.b16 %v1854
    %v1871 = vunpack.c.l.b16 %v1855
    %v1872 = vunpack.c.l.b16 %v1856
    %v1873 = vunpack.c.l.b16 %v1857
    %v1874 = vpack.c.b16 %v1867, %v1866
    %v1875 = vpack.c.b16 %v1869, %v1868
    %v1876 = vpack.c.b16 %v1871, %v1870
    %v1877 = vpack.c.b16 %v1873, %v1872
    %v1882 = vunpack.c.l.b16 %v183
    %v1883 = vunpack.c.l.b16 %v184
    %v1884 = vunpack.c.l.b16 %v185
    %v1885 = vunpack.c.l.b16 %v186
    %v1886 = vpack.c.b16 %v1883, %v1882
    %v1887 = vpack.c.b16 %v1885, %v1884
    %v1891 = vsel %vm521, %v1874, 0
    %v1894 = vsel %vm521, %v1875, 0
    %v1897 = vsel %vm521, %v1876, 0
    %v1900 = vsel %vm521, %v1877, 0
    %1902 = vmatprep.subr.bf16.mxu0 0
    %1903 = vmatpush1.bf16.msra.mxu0 %v1886
    %1904 = vmatprep.subr.bf16.mxu0 0
    %1905 = vmatpush1.bf16.msra.mxu0 %v1887
    %1906 = vmatprep.subr.bf16.mxu0 0
    %1907 = vmatpush1.bf16.msra.mxu0 0
    %1908 = vmatprep.subr.bf16.mxu0 0
    %1909 = vmatpush1.bf16.msra.mxu0 0
    %1910 = vmatprep.subr.bf16.mxu0 0
    %1911 = vmatpush1.bf16.msra.mxu0 0
    %1912 = vmatprep.subr.bf16.mxu0 0
    %1913 = vmatpush1.bf16.msra.mxu0 0
    %1914 = vmatprep.subr.bf16.mxu0 0
    %1915 = vmatpush1.bf16.msra.mxu0 0
    %1916 = vmatprep.subr.bf16.mxu0 0
    %1917 = vmatpush1.bf16.msra.mxu0 0
    %1918 = vmatprep.subr.bf16.mxu0 0
    %1919 = vmatpush1.bf16.msra.mxu0 0
    %1920 = vmatprep.subr.bf16.mxu0 0
    %1921 = vmatpush1.bf16.msra.mxu0 0
    %1922 = vmatprep.subr.bf16.mxu0 0
    %1923 = vmatpush1.bf16.msra.mxu0 0
    %1924 = vmatprep.subr.bf16.mxu0 0
    %1925 = vmatpush1.bf16.msra.mxu0 0
    %1926 = vmatprep.subr.bf16.mxu0 0
    %1927 = vmatpush1.bf16.msra.mxu0 0
    %1928 = vmatprep.subr.bf16.mxu0 0
    %1929 = vmatpush1.bf16.msra.mxu0 0
    %1930 = vmatprep.subr.bf16.mxu0 0
    %1931 = vmatpush1.bf16.msra.mxu0 0
    %1932 = vmatprep.subr.bf16.mxu0 0
    %1933 = vmatpush1.bf16.msra.mxu0 0
    %1934 = vmatprep.mubr.bf16.mxu0 0
    %1935 = vmatmul.mubr.bf16.gmra.mrb[0].mxu0 %v1891
    %v1936 = vpop.f32.mrb[0].mxu0
    %v1937 = vadd.f32 0.0, %v1936
    %v1938 = vpop.f32.mrb[0].mxu0
    %v1939 = vpop.f32.mrb[0].mxu0
    %v1940 = vadd.f32 0.0, %v1939
    %v1941 = vpop.f32.mrb[0].mxu0
    %1942 = vmatprep.mubr.bf16.mxu0 0
    %1943 = vmatmul.mubr.bf16.gmra.mrb[0].mxu0 %v1894
    %v1944 = vpop.f32.mrb[0].mxu0
    %v1945 = vadd.f32 0.0, %v1944
    %v1946 = vpop.f32.mrb[0].mxu0
    %v1947 = vpop.f32.mrb[0].mxu0
    %v1948 = vadd.f32 0.0, %v1947
    %v1949 = vpop.f32.mrb[0].mxu0
    %1950 = vmatprep.mubr.bf16.mxu0 0
    %1951 = vmatmul.mubr.bf16.gmra.mrb[0].mxu0 %v1897
    %v1952 = vpop.f32.mrb[0].mxu0
    %v1953 = vadd.f32 0.0, %v1952
    %v1954 = vpop.f32.mrb[0].mxu0
    %v1955 = vpop.f32.mrb[0].mxu0
    %v1956 = vadd.f32 0.0, %v1955
    %v1957 = vpop.f32.mrb[0].mxu0
    %1958 = vmatprep.mubr.bf16.mxu0 0
    %1959 = vmatmul.mubr.bf16.gmra.mrb[0].mxu0 %v1900
    %v1960 = vpop.f32.mrb[0].mxu0
    %v1961 = vadd.f32 0.0, %v1960
    %v1962 = vpop.f32.mrb[0].mxu0
    %v1963 = vpop.f32.mrb[0].mxu0
    %v1964 = vadd.f32 0.0, %v1963
    %v1965 = vpop.f32.mrb[0].mxu0
    %1966 = vdwg.mxu0
    %v1967 = vld [vmem:[#allocation11] sm:$0xff]
    %v1968 = vld [vmem:[#allocation11 + $0x8] sm:$0xff]
    %v1969 = vld [vmem:[#allocation11 + $0x10] sm:$0xff]
    %v1970 = vld [vmem:[#allocation11 + $0x18] sm:$0xff]
    %v1971 = vld [vmem:[#allocation11 + $0x20] sm:$0xff]
    %v1972 = vld [vmem:[#allocation11 + $0x28] sm:$0xff]
    %v1973 = vld [vmem:[#allocation11 + $0x30] sm:$0xff]
    %v1974 = vld [vmem:[#allocation11 + $0x38] sm:$0xff]
    %v1975 = vadd.f32 %v1967, %v1937
    %v1976 = vadd.f32 %v1968, %v1940
    %v1977 = vadd.f32 %v1969, %v1945
    %v1978 = vadd.f32 %v1970, %v1948
    %v1979 = vadd.f32 %v1971, %v1953
    %v1980 = vadd.f32 %v1972, %v1956
    %v1981 = vadd.f32 %v1973, %v1961
    %v1982 = vadd.f32 %v1974, %v1964
    %1983 = vst.msk [vmem:[#allocation11] sm:$0xff] %vm79, %v1975
    %1984 = vst.msk [vmem:[#allocation11 + $0x8] sm:$0xff] %vm79, %v1976
    %1985 = vst.msk [vmem:[#allocation11 + $0x10] sm:$0xff] %vm79, %v1977
    %1986 = vst.msk [vmem:[#allocation11 + $0x18] sm:$0xff] %vm79, %v1978
    %1987 = vst.msk [vmem:[#allocation11 + $0x20] sm:$0xff] %vm79, %v1979
    %1988 = vst.msk [vmem:[#allocation11 + $0x28] sm:$0xff] %vm79, %v1980
    %1989 = vst.msk [vmem:[#allocation11 + $0x30] sm:$0xff] %vm79, %v1981
    %1990 = vst.msk [vmem:[#allocation11 + $0x38] sm:$0xff] %vm79, %v1982
    %v1991 = vld [vmem:[#allocation5] sm:$0xf]
    %v1992 = vld [vmem:[#allocation5 + $0x4] sm:$0xf]
    %v1993 = vld [vmem:[#allocation5 + $0x8] sm:$0xf]
    %v1994 = vld [vmem:[#allocation5 + $0xc] sm:$0xf]
    %v1995 = vld [vmem:[#allocation5 + $0x10] sm:$0xf]
    %v1996 = vld [vmem:[#allocation5 + $0x14] sm:$0xf]
    %v1997 = vld [vmem:[#allocation5 + $0x18] sm:$0xf]
    %v1998 = vld [vmem:[#allocation5 + $0x1c] sm:$0xf]
    %v2007 = vunpack.c.l.b16 %v1991
    %v2008 = vunpack.c.l.b16 %v1992
    %v2009 = vunpack.c.l.b16 %v1993
    %v2010 = vunpack.c.l.b16 %v1994
    %v2011 = vunpack.c.l.b16 %v1995
    %v2012 = vunpack.c.l.b16 %v1996
    %v2013 = vunpack.c.l.b16 %v1997
    %v2014 = vunpack.c.l.b16 %v1998
    %v2015 = vpack.c.b16 %v2008, %v2007
    %v2016 = vpack.c.b16 %v2010, %v2009
    %v2017 = vpack.c.b16 %v2012, %v2011
    %v2018 = vpack.c.b16 %v2014, %v2013
    %v2023 = vunpack.c.l.b16 %v187
    %v2024 = vunpack.c.l.b16 %v188
    %v2025 = vunpack.c.l.b16 %v189
    %v2026 = vunpack.c.l.b16 %v190
    %v2027 = vpack.c.b16 %v2024, %v2023
    %v2028 = vpack.c.b16 %v2026, %v2025
    %v2032 = vsel %vm521, %v2015, 0
    %v2035 = vsel %vm521, %v2016, 0
    %v2038 = vsel %vm521, %v2017, 0
    %v2041 = vsel %vm521, %v2018, 0
    %2043 = vmatprep.subr.bf16.mxu0 0
    %2044 = vmatpush1.bf16.msra.mxu0 %v2027
    %2045 = vmatprep.subr.bf16.mxu0 0
    %2046 = vmatpush1.bf16.msra.mxu0 %v2028
    %2047 = vmatprep.subr.bf16.mxu0 0
    %2048 = vmatpush1.bf16.msra.mxu0 0
    %2049 = vmatprep.subr.bf16.mxu0 0
    %2050 = vmatpush1.bf16.msra.mxu0 0
    %2051 = vmatprep.subr.bf16.mxu0 0
    %2052 = vmatpush1.bf16.msra.mxu0 0
    %2053 = vmatprep.subr.bf16.mxu0 0
    %2054 = vmatpush1.bf16.msra.mxu0 0
    %2055 = vmatprep.subr.bf16.mxu0 0
    %2056 = vmatpush1.bf16.msra.mxu0 0
    %2057 = vmatprep.subr.bf16.mxu0 0
    %2058 = vmatpush1.bf16.msra.mxu0 0
    %2059 = vmatprep.subr.bf16.mxu0 0
    %2060 = vmatpush1.bf16.msra.mxu0 0
    %2061 = vmatprep.subr.bf16.mxu0 0
    %2062 = vmatpush1.bf16.msra.mxu0 0
    %2063 = vmatprep.subr.bf16.mxu0 0
    %2064 = vmatpush1.bf16.msra.mxu0 0
    %2065 = vmatprep.subr.bf16.mxu0 0
    %2066 = vmatpush1.bf16.msra.mxu0 0
    %2067 = vmatprep.subr.bf16.mxu0 0
    %2068 = vmatpush1.bf16.msra.mxu0 0
    %2069 = vmatprep.subr.bf16.mxu0 0
    %2070 = vmatpush1.bf16.msra.mxu0 0
    %2071 = vmatprep.subr.bf16.mxu0 0
    %2072 = vmatpush1.bf16.msra.mxu0 0
    %2073 = vmatprep.subr.bf16.mxu0 0
    %2074 = vmatpush1.bf16.msra.mxu0 0
    %2075 = vmatprep.mubr.bf16.mxu0 0
    %2076 = vmatmul.mubr.bf16.gmra.mrb[0].mxu0 %v2032
    %v2077 = vpop.f32.mrb[0].mxu0
    %v2078 = vadd.f32 0.0, %v2077
    %v2079 = vpop.f32.mrb[0].mxu0
    %v2080 = vpop.f32.mrb[0].mxu0
    %v2081 = vadd.f32 0.0, %v2080
    %v2082 = vpop.f32.mrb[0].mxu0
    %2083 = vmatprep.mubr.bf16.mxu0 0
    %2084 = vmatmul.mubr.bf16.gmra.mrb[0].mxu0 %v2035
    %v2085 = vpop.f32.mrb[0].mxu0
    %v2086 = vadd.f32 0.0, %v2085
    %v2087 = vpop.f32.mrb[0].mxu0
    %v2088 = vpop.f32.mrb[0].mxu0
    %v2089 = vadd.f32 0.0, %v2088
    %v2090 = vpop.f32.mrb[0].mxu0
    %2091 = vmatprep.mubr.bf16.mxu0 0
    %2092 = vmatmul.mubr.bf16.gmra.mrb[0].mxu0 %v2038
    %v2093 = vpop.f32.mrb[0].mxu0
    %v2094 = vadd.f32 0.0, %v2093
    %v2095 = vpop.f32.mrb[0].mxu0
    %v2096 = vpop.f32.mrb[0].mxu0
    %v2097 = vadd.f32 0.0, %v2096
    %v2098 = vpop.f32.mrb[0].mxu0
    %2099 = vmatprep.mubr.bf16.mxu0 0
    %2100 = vmatmul.mubr.bf16.gmra.mrb[0].mxu0 %v2041
    %v2101 = vpop.f32.mrb[0].mxu0
    %v2102 = vadd.f32 0.0, %v2101
    %v2103 = vpop.f32.mrb[0].mxu0
    %v2104 = vpop.f32.mrb[0].mxu0
    %v2105 = vadd.f32 0.0, %v2104
    %v2106 = vpop.f32.mrb[0].mxu0
    %2107 = vdwg.mxu0
    %v2108 = vld [vmem:[#allocation11] sm:$0xff]
    %v2109 = vld [vmem:[#allocation11 + $0x8] sm:$0xff]
    %v2110 = vld [vmem:[#allocation11 + $0x10] sm:$0xff]
    %v2111 = vld [vmem:[#allocation11 + $0x18] sm:$0xff]
    %v2112 = vld [vmem:[#allocation11 + $0x20] sm:$0xff]
    %v2113 = vld [vmem:[#allocation11 + $0x28] sm:$0xff]
    %v2114 = vld [vmem:[#allocation11 + $0x30] sm:$0xff]
    %v2115 = vld [vmem:[#allocation11 + $0x38] sm:$0xff]
    %v2116 = vadd.f32 %v2108, %v2078
    %v2117 = vadd.f32 %v2109, %v2081
    %v2118 = vadd.f32 %v2110, %v2086
    %v2119 = vadd.f32 %v2111, %v2089
    %v2120 = vadd.f32 %v2112, %v2094
    %v2121 = vadd.f32 %v2113, %v2097
    %v2122 = vadd.f32 %v2114, %v2102
    %v2123 = vadd.f32 %v2115, %v2105
    %2124 = vst.msk [vmem:[#allocation11] sm:$0xff] %vm79, %v2116
    %2125 = vst.msk [vmem:[#allocation11 + $0x8] sm:$0xff] %vm79, %v2117
    %2126 = vst.msk [vmem:[#allocation11 + $0x10] sm:$0xff] %vm79, %v2118
    %2127 = vst.msk [vmem:[#allocation11 + $0x18] sm:$0xff] %vm79, %v2119
    %2128 = vst.msk [vmem:[#allocation11 + $0x20] sm:$0xff] %vm79, %v2120
    %2129 = vst.msk [vmem:[#allocation11 + $0x28] sm:$0xff] %vm79, %v2121
    %2130 = vst.msk [vmem:[#allocation11 + $0x30] sm:$0xff] %vm79, %v2122
    %2131 = vst.msk [vmem:[#allocation11 + $0x38] sm:$0xff] %vm79, %v2123
    // Predicated region
    $region58: #{tpu_custom_call.1} parent=1 // pred_check
      _
    $region59: #{tpu_custom_call.1} parent=1 // pred_check_branch
      %2133 = sbr.rel (0) target = $region61
    $region60: #{tpu_custom_call.1} parent=1 // pred_region
      %s2135 = ssub.s32 1024, 1024
      %2136 = vsyncadd [#allocation8], %s2135
      %s2137 = sshll.u32 [#allocation11], 4
      %s2138 = int_to_ptr.vmem [resolvable:$true] %s2137
      %2143 = dma.vmem_to_hbm [thread:$0]  %s2138, 1024, %s12, [#allocation8], 128, 128, 8
    $region61: #{tpu_custom_call.1} parent=1 // pred_fallthru
      _
    // Predicated region
    $region62: #{tpu_custom_call.1} parent=1 // pred_check
      _
    $region63: #{tpu_custom_call.1} parent=1 // pred_check_branch
      %2145 = sbr.rel (0) target = $region65
    $region64: #{tpu_custom_call.1} parent=1 // pred_region
      %2146 = dma.done [#allocation8], 1024
    $region65: #{tpu_custom_call.1} parent=1 // pred_fallthru
      _
    %2147 = vsyncpa [#allocation7], 1
    %2148 = vsyncpa [#allocation10], 1
    %2149 = vsyncpa [#allocation8], 1

// kernel: tpu_custom_call.1
$region0: #{tpu_custom_call.1}
  #allocation0 [shape = 'u32[]', space=smem, size = 0x4, offset = 0x4, fixed_abs, tag = 'smem constant byte address 0x4 - core index']
  #allocation1 [shape = 'u32[144,128]{1,0:T(1,128)}', space=vmem, size = 0x12000, scoped, tag = 'internal scratch']
  #allocation2 [shape = 'bf16[8,8,128]{2,1,0:T(8,128)(2,1)}', space=vmem, size = 0x4000, scoped, tag = 'scratch operand']
  #allocation3 [shape = 'bf16[8,8,128]{2,1,0:T(8,128)(2,1)}', space=vmem, size = 0x4000, scoped, tag = 'scratch operand']
  #allocation4 [shape = 'bf16[8,8,32]{2,1,0:T(8,128)(2,1)}', space=vmem, size = 0x4000, scoped, tag = 'scratch operand']
  #allocation5 [shape = 'bf16[8,8,32]{2,1,0:T(8,128)(2,1)}', space=vmem, size = 0x4000, scoped, tag = 'scratch operand']
  %s0 = inlined_call_operand.hbm [shape: f32[8,8,16], index: 0, kind: input, shape index: {}]
  %s1 = inlined_call_operand.vmem [shape: f32[1,16], index: 1, kind: input, shape index: {}]
  %s2 = inlined_call_operand.vmem [shape: f32[1,16], index: 2, kind: input, shape index: {}]
  %s3 = inlined_call_operand.vmem [shape: bf16[16,128], index: 3, kind: input, shape index: {}]
  %s4 = inlined_call_operand.hbm [shape: f32[1,128], index: 4, kind: input, shape index: {}]
  %s5 = inlined_call_operand.vmem [shape: bf16[32,128], index: 5, kind: input, shape index: {}]
  %s6 = inlined_call_operand.vmem [shape: bf16[16,128], index: 6, kind: input, shape index: {}]
  %s7 = inlined_call_operand.vmem [shape: f32[1,128], index: 7, kind: input, shape index: {}]
  %s8 = inlined_call_operand.vmem [shape: bf16[32,128], index: 8, kind: input, shape index: {}]
  %s9 = inlined_call_operand.vmem [shape: bf16[32,16], index: 9, kind: input, shape index: {}]
  %s10 = inlined_call_operand.vmem [shape: bf16[32,16], index: 10, kind: input, shape index: {}]
  %s11 = inlined_call_operand.vmem [shape: f32[1,16], index: 11, kind: input, shape index: {}]
  %s12 = inlined_call_operand.hbm [shape: f32[8,8,16], index: 12, kind: output, shape index: {}]
  %s13 = sld [smem:[#allocation0]]
  $region66: #{tpu_custom_call.1} parent=0
    _
  %s15 = ssub.s32 1, %s13
  %s16 = scalar_select 0, %s15, %s13
  $region1: #{tpu_custom_call.1} parent=0
    #allocation6 [shape = 'u8[32768]{0}', space=vmem, size = 0x8000, scoped, tag = 'input window, operand 0, single buffered']
    #allocation7 [shape = 's32[1]{0}', space=sflag, size = 0x4, scoped, tag = 'scoped memory for tpu_custom_call.1']
    #allocation8 [shape = 's32[1]{0}', space=sflag, size = 0x4, scoped, tag = 'scoped memory for tpu_custom_call.1']
    #allocation9 [shape = 'u8[512]{0}', space=vmem, size = 0x400, scoped, tag = 'input window, operand 4, single buffered']
    #allocation10 [shape = 's32[1]{0}', space=sflag, size = 0x4, scoped, tag = 'scoped memory for tpu_custom_call.1']
    #allocation11 [shape = 'u8[32768]{0}', space=vmem, size = 0x8000, scoped, tag = 'output window, operand 0, single buffered']
    %17 = vsyncpa [#allocation7], 0
    %18 = vsyncpa [#allocation10], 0
    %19 = vsyncpa [#allocation8], 0
    // Predicated region
    $region2: #{tpu_custom_call.1} parent=1 // pred_check
      _
    $region3: #{tpu_custom_call.1} parent=1 // pred_check_branch
      %21 = sbr.rel (0) target = $region5
    $region4: #{tpu_custom_call.1} parent=1 // pred_region
      %s23 = ssub.s32 1024, 1024
      %24 = vsyncadd [#allocation7], %s23
      %s25 = sshll.u32 [#allocation6], 4
      %s26 = int_to_ptr.vmem [resolvable:$true] %s25
      %31 = dma.hbm_to_vmem [thread:$0]  %s0, 1024, %s26, [#allocation7], 128, 128, 8
    $region5: #{tpu_custom_call.1} parent=1 // pred_fallthru
      _
    // Predicated region
    $region6: #{tpu_custom_call.1} parent=1 // pred_check
      _
    $region7: #{tpu_custom_call.1} parent=1 // pred_check_branch
      %33 = sbr.rel (0) target = $region9
    $region8: #{tpu_custom_call.1} parent=1 // pred_region
      _
    $region9: #{tpu_custom_call.1} parent=1 // pred_fallthru
      _
    // Predicated region
    $region10: #{tpu_custom_call.1} parent=1 // pred_check
      _
    $region11: #{tpu_custom_call.1} parent=1 // pred_check_branch
      %35 = sbr.rel (0) target = $region13
    $region12: #{tpu_custom_call.1} parent=1 // pred_region
      _
    $region13: #{tpu_custom_call.1} parent=1 // pred_fallthru
      _
    // Predicated region
    $region14: #{tpu_custom_call.1} parent=1 // pred_check
      _
    $region15: #{tpu_custom_call.1} parent=1 // pred_check_branch
      %37 = sbr.rel (0) target = $region17
    $region16: #{tpu_custom_call.1} parent=1 // pred_region
      _
    $region17: #{tpu_custom_call.1} parent=1 // pred_fallthru
      _
    // Predicated region
    $region18: #{tpu_custom_call.1} parent=1 // pred_check
      _
    $region19: #{tpu_custom_call.1} parent=1 // pred_check_branch
      %39 = sbr.rel (0) target = $region21
    $region20: #{tpu_custom_call.1} parent=1 // pred_region
      %s41 = ssub.s32 16, 16
      %42 = vsyncadd [#allocation10], %s41
      %s44 = sshll.u32 [#allocation9], 4
      %s45 = int_to_ptr.vmem [resolvable:$true] %s44
      %47 = dma.hbm_to_vmem [thread:$0]  %s4, 16, %s45, [#allocation10]
    $region21: #{tpu_custom_call.1} parent=1 // pred_fallthru
      _
    // Predicated region
    $region22: #{tpu_custom_call.1} parent=1 // pred_check
      _
    $region23: #{tpu_custom_call.1} parent=1 // pred_check_branch
      %49 = sbr.rel (0) target = $region25
    $region24: #{tpu_custom_call.1} parent=1 // pred_region
      _
    $region25: #{tpu_custom_call.1} parent=1 // pred_fallthru
      _
    // Predicated region
    $region26: #{tpu_custom_call.1} parent=1 // pred_check
      _
    $region27: #{tpu_custom_call.1} parent=1 // pred_check_branch
      %51 = sbr.rel (0) target = $region29
    $region28: #{tpu_custom_call.1} parent=1 // pred_region
      _
    $region29: #{tpu_custom_call.1} parent=1 // pred_fallthru
      _
    // Predicated region
    $region30: #{tpu_custom_call.1} parent=1 // pred_check
      _
    $region31: #{tpu_custom_call.1} parent=1 // pred_check_branch
      %53 = sbr.rel (0) target = $region33
    $region32: #{tpu_custom_call.1} parent=1 // pred_region
      _
    $region33: #{tpu_custom_call.1} parent=1 // pred_fallthru
      _
    // Predicated region
    $region34: #{tpu_custom_call.1} parent=1 // pred_check
      _
    $region35: #{tpu_custom_call.1} parent=1 // pred_check_branch
      %55 = sbr.rel (0) target = $region37
    $region36: #{tpu_custom_call.1} parent=1 // pred_region
      _
    $region37: #{tpu_custom_call.1} parent=1 // pred_fallthru
      _
    // Predicated region
    $region38: #{tpu_custom_call.1} parent=1 // pred_check
      _
    $region39: #{tpu_custom_call.1} parent=1 // pred_check_branch
      %57 = sbr.rel (0) target = $region41
    $region40: #{tpu_custom_call.1} parent=1 // pred_region
      _
    $region41: #{tpu_custom_call.1} parent=1 // pred_fallthru
      _
    // Predicated region
    $region42: #{tpu_custom_call.1} parent=1 // pred_check
      _
    $region43: #{tpu_custom_call.1} parent=1 // pred_check_branch
      %59 = sbr.rel (0) target = $region45
    $region44: #{tpu_custom_call.1} parent=1 // pred_region
      _
    $region45: #{tpu_custom_call.1} parent=1 // pred_fallthru
      _
    // Predicated region
    $region46: #{tpu_custom_call.1} parent=1 // pred_check
      _
    $region47: #{tpu_custom_call.1} parent=1 // pred_check_branch
      %61 = sbr.rel (0) target = $region49
    $region48: #{tpu_custom_call.1} parent=1 // pred_region
      _
    $region49: #{tpu_custom_call.1} parent=1 // pred_fallthru
      _
    // Predicated region
    $region50: #{tpu_custom_call.1} parent=1 // pred_check
      _
    $region51: #{tpu_custom_call.1} parent=1 // pred_check_branch
      %63 = sbr.rel (0) target = $region53
    $region52: #{tpu_custom_call.1} parent=1 // pred_region
      %64 = dma.done [#allocation7], 1024
    $region53: #{tpu_custom_call.1} parent=1 // pred_fallthru
      _
    // Predicated region
    $region54: #{tpu_custom_call.1} parent=1 // pred_check
      _
    $region55: #{tpu_custom_call.1} parent=1 // pred_check_branch
      %66 = sbr.rel (0) target = $region57
    $region56: #{tpu_custom_call.1} parent=1 // pred_region
      %67 = dma.done [#allocation10], 16
    $region57: #{tpu_custom_call.1} parent=1 // pred_fallthru
      _
    %v70 = vld [vmem:[%s11] sm:$0x1]
    %v71 = vld [vmem:[#allocation6] sm:$0xff]
    %v72 = vld [vmem:[#allocation6 + $0x8] sm:$0xff]
    %v73 = vld [vmem:[#allocation6 + $0x10] sm:$0xff]
    %v74 = vld [vmem:[#allocation6 + $0x18] sm:$0xff]
    %v75 = vld [vmem:[#allocation6 + $0x20] sm:$0xff]
    %v76 = vld [vmem:[#allocation6 + $0x28] sm:$0xff]
    %v77 = vld [vmem:[#allocation6 + $0x30] sm:$0xff]
    %v78 = vld [vmem:[#allocation6 + $0x38] sm:$0xff]
    %vm79 = vcmask 130048
    %v80 = vsel %vm79, %v71, 0.0
    %v81 = vsel %vm79, %v72, 0.0
    %v82 = vadd.f32 %v80, %v81
    %v83 = vsel %vm79, %v73, 0.0
    %v84 = vadd.f32 %v82, %v83
    %v85 = vsel %vm79, %v74, 0.0
    %v86 = vadd.f32 %v84, %v85
    %v87 = vsel %vm79, %v75, 0.0
    %v88 = vadd.f32 %v86, %v87
    %v89 = vsel %vm79, %v76, 0.0
    %v90 = vadd.f32 %v88, %v89
    %v91 = vsel %vm79, %v77, 0.0
    %v92 = vadd.f32 %v90, %v91
    %v93 = vsel %vm79, %v78, 0.0
    %v94 = vadd.f32 %v92, %v93
    %95 = vadd.xlane.f32.xlu0 %v94
    %v96 = vpop.xlane.xlu0 %95
    %v97 = vadd.f32 %v96, 0.0
    %v98 = vmul.f32 %v71, %v71
    %v99 = vmul.f32 %v72, %v72
    %v100 = vmul.f32 %v73, %v73
    %v101 = vmul.f32 %v74, %v74
    %v102 = vmul.f32 %v75, %v75
    %v103 = vmul.f32 %v76, %v76
    %v104 = vmul.f32 %v77, %v77
    %v105 = vmul.f32 %v78, %v78
    %v106 = vsel %vm79, %v98, 0.0
    %v107 = vsel %vm79, %v99, 0.0
    %v108 = vadd.f32 %v106, %v107
    %v109 = vsel %vm79, %v100, 0.0
    %v110 = vadd.f32 %v108, %v109
    %v111 = vsel %vm79, %v101, 0.0
    %v112 = vadd.f32 %v110, %v111
    %v113 = vsel %vm79, %v102, 0.0
    %v114 = vadd.f32 %v112, %v113
    %v115 = vsel %vm79, %v103, 0.0
    %v116 = vadd.f32 %v114, %v115
    %v117 = vsel %vm79, %v104, 0.0
    %v118 = vadd.f32 %v116, %v117
    %v119 = vsel %vm79, %v105, 0.0
    %v120 = vadd.f32 %v118, %v119
    %121 = vadd.xlane.f32.xlu0 %v120
    %v122 = vpop.xlane.xlu0 %121
    %v123 = vadd.f32 %v122, 0.0
    %v125 = vlaneseq
    %v126 = vshrl.u32 %v125, 7
    %v127 = vsub.s32 0, %v126
    %v128 = vrot.slane %v70, %v127
    %v130 = vadd.f32 %v71, %v128
    %v131 = vadd.f32 %v72, %v128
    %v132 = vadd.f32 %v73, %v128
    %v133 = vadd.f32 %v74, %v128
    %v134 = vadd.f32 %v75, %v128
    %v135 = vadd.f32 %v76, %v128
    %v136 = vadd.f32 %v77, %v128
    %v137 = vadd.f32 %v78, %v128
    %138 = vst.msk [vmem:[#allocation11] sm:$0xff] %vm79, %v130
    %139 = vst.msk [vmem:[#allocation11 + $0x8] sm:$0xff] %vm79, %v131
    %140 = vst.msk [vmem:[#allocation11 + $0x10] sm:$0xff] %vm79, %v132
    %141 = vst.msk [vmem:[#allocation11 + $0x18] sm:$0xff] %vm79, %v133
    %142 = vst.msk [vmem:[#allocation11 + $0x20] sm:$0xff] %vm79, %v134
    %143 = vst.msk [vmem:[#allocation11 + $0x28] sm:$0xff] %vm79, %v135
    %144 = vst.msk [vmem:[#allocation11 + $0x30] sm:$0xff] %vm79, %v136
    %145 = vst.msk [vmem:[#allocation11 + $0x38] sm:$0xff] %vm79, %v137
    %v146 = vrcp.pop 128.0
    %v147 = vmul.f32 %v97, %v146
    %v148 = vmul.f32 %v123, %v146
    %v149 = vmul.f32 %v147, %v147
    %v150 = vsub.f32 %v148, %v149
    %v151 = vmax.f32 %v150, 0.0
    %v152 = vadd.f32 %v151, 1.1920929e-07
    %v153 = vrsqrt.pop %v152
    %v154 = vld [vmem:[%s1] sm:$0x1]
    %v156 = vlaneseq
    %v157 = vshrl.u32 %v156, 7
    %v158 = vsub.s32 0, %v157
    %v159 = vrot.slane %v154, %v158
    %v161 = vmul.f32 %v153, %v159
    %v162 = vld [vmem:[%s2] sm:$0x1]
    %v163 = vmul.f32 %v147, %v161
    %v165 = vlaneseq
    %v166 = vshrl.u32 %v165, 7
    %v167 = vsub.s32 0, %v166
    %v168 = vrot.slane %v162, %v167
    %v170 = vsub.f32 %v168, %v163
    %v171 = vld [vmem:[%s3] sm:$0xf]
    %v172 = vld [vmem:[%s3 + $0x4] sm:$0xf]
    %v173 = vld [vmem:[%s6] sm:$0xf]
    %v174 = vld [vmem:[%s6 + $0x4] sm:$0xf]
    %v175 = vld [vmem:[%s5] sm:$0xf]
    %v176 = vld [vmem:[%s5 + $0x4] sm:$0xf]
    %v177 = vld [vmem:[%s5 + $0x8] sm:$0xf]
    %v178 = vld [vmem:[%s5 + $0xc] sm:$0xf]
    %v179 = vld [vmem:[%s8] sm:$0xf]
    %v180 = vld [vmem:[%s8 + $0x4] sm:$0xf]
    %v181 = vld [vmem:[%s8 + $0x8] sm:$0xf]
    %v182 = vld [vmem:[%s8 + $0xc] sm:$0xf]
    %v183 = vld [vmem:[%s9] sm:$0xf]
    %v184 = vld [vmem:[%s9 + $0x4] sm:$0xf]
    %v185 = vld [vmem:[%s9 + $0x8] sm:$0xf]
    %v186 = vld [vmem:[%s9 + $0xc] sm:$0xf]
    %v187 = vld [vmem:[%s10] sm:$0xf]
    %v188 = vld [vmem:[%s10 + $0x4] sm:$0xf]
    %v189 = vld [vmem:[%s10 + $0x8] sm:$0xf]
    %v190 = vld [vmem:[%s10 + $0xc] sm:$0xf]
    %v191 = vld [vmem:[#allocation9] sm:$0x1]
    %v192 = vld [vmem:[%s7] sm:$0x1]
    %v193 = vld [vmem:[#allocation6] sm:$0xff]
    %v194 = vld [vmem:[#allocation6 + $0x8] sm:$0xff]
    %v195 = vld [vmem:[#allocation6 + $0x10] sm:$0xff]
    %v196 = vld [vmem:[#allocation6 + $0x18] sm:$0xff]
    %v197 = vld [vmem:[#allocation6 + $0x20] sm:$0xff]
    %v198 = vld [vmem:[#allocation6 + $0x28] sm:$0xff]
    %v199 = vld [vmem:[#allocation6 + $0x30] sm:$0xff]
    %v200 = vld [vmem:[#allocation6 + $0x38] sm:$0xff]
    %v201 = vmul.f32 %v193, %v161
    %v202 = vmul.f32 %v194, %v161
    %v203 = vmul.f32 %v195, %v161
    %v204 = vmul.f32 %v196, %v161
    %v205 = vmul.f32 %v197, %v161
    %v206 = vmul.f32 %v198, %v161
    %v207 = vmul.f32 %v199, %v161
    %v208 = vmul.f32 %v200, %v161
    %v209 = vadd.f32 %v201, %v170
    %v210 = vadd.f32 %v202, %v170
    %v211 = vadd.f32 %v203, %v170
    %v212 = vadd.f32 %v204, %v170
    %v213 = vadd.f32 %v205, %v170
    %v214 = vadd.f32 %v206, %v170
    %v215 = vadd.f32 %v207, %v170
    %v216 = vadd.f32 %v208, %v170
    %v217 = vpack.c.bf16 %v209, %v209
    %v218 = vpack.c.bf16 %v210, %v210
    %v219 = vpack.c.bf16 %v211, %v211
    %v220 = vpack.c.bf16 %v212, %v212
    %v221 = vpack.c.bf16 %v213, %v213
    %v222 = vpack.c.bf16 %v214, %v214
    %v223 = vpack.c.bf16 %v215, %v215
    %v224 = vpack.c.bf16 %v216, %v216
    %v226 = vlaneseq
    %v227 = vshrl.u32 %v226, 7
    %v228 = vsub.s32 0, %v227
    %v229 = vrot.slane %v191, %v228
    %v239 = vunpack.c.l.b16 %v217
    %v240 = vunpack.c.l.b16 %v218
    %v241 = vunpack.c.l.b16 %v219
    %v242 = vunpack.c.l.b16 %v220
    %v243 = vunpack.c.l.b16 %v221
    %v244 = vunpack.c.l.b16 %v222
    %v245 = vunpack.c.l.b16 %v223
    %v246 = vunpack.c.l.b16 %v224
    %v247 = vpack.c.b16 %v240, %v239
    %v248 = vpack.c.b16 %v242, %v241
    %v249 = vpack.c.b16 %v244, %v243
    %v250 = vpack.c.b16 %v246, %v245
    %v253 = vunpack.c.l.b16 %v171
    %v254 = vunpack.c.l.b16 %v172
    %v255 = vpack.c.b16 %v254, %v253
    %v258 = vsel %vm79, %v247, 0
    %v261 = vsel %vm79, %v248, 0
    %v264 = vsel %vm79, %v249, 0
    %v267 = vsel %vm79, %v250, 0
    %269 = vmatprep.subr.bf16.mxu0 0
    %270 = vmatpush1.bf16.msra.mxu0 %v255
    %271 = vmatprep.subr.bf16.mxu0 0
    %272 = vmatpush1.bf16.msra.mxu0 0
    %273 = vmatprep.subr.bf16.mxu0 0
    %274 = vmatpush1.bf16.msra.mxu0 0
    %275 = vmatprep.subr.bf16.mxu0 0
    %276 = vmatpush1.bf16.msra.mxu0 0
    %277 = vmatprep.subr.bf16.mxu0 0
    %278 = vmatpush1.bf16.msra.mxu0 0
    %279 = vmatprep.subr.bf16.mxu0 0
    %280 = vmatpush1.bf16.msra.mxu0 0
    %281 = vmatprep.subr.bf16.mxu0 0
    %282 = vmatpush1.bf16.msra.mxu0 0
    %283 = vmatprep.subr.bf16.mxu0 0
    %284 = vmatpush1.bf16.msra.mxu0 0
    %285 = vmatprep.subr.bf16.mxu0 0
    %286 = vmatpush1.bf16.msra.mxu0 0
    %287 = vmatprep.subr.bf16.mxu0 0
    %288 = vmatpush1.bf16.msra.mxu0 0
    %289 = vmatprep.subr.bf16.mxu0 0
    %290 = vmatpush1.bf16.msra.mxu0 0
    %291 = vmatprep.subr.bf16.mxu0 0
    %292 = vmatpush1.bf16.msra.mxu0 0
    %293 = vmatprep.subr.bf16.mxu0 0
    %294 = vmatpush1.bf16.msra.mxu0 0
    %295 = vmatprep.subr.bf16.mxu0 0
    %296 = vmatpush1.bf16.msra.mxu0 0
    %297 = vmatprep.subr.bf16.mxu0 0
    %298 = vmatpush1.bf16.msra.mxu0 0
    %299 = vmatprep.subr.bf16.mxu0 0
    %300 = vmatpush1.bf16.msra.mxu0 0
    %301 = vmatprep.mubr.bf16.mxu0 0
    %302 = vmatmul.mubr.bf16.gmra.mrb[0].mxu0 %v258
    %v303 = vpop.f32.mrb[0].mxu0
    %v304 = vadd.f32 %v229, %v303
    %v305 = vpop.f32.mrb[0].mxu0
    %v306 = vpop.f32.mrb[0].mxu0
    %v307 = vadd.f32 %v229, %v306
    %v308 = vpop.f32.mrb[0].mxu0
    %309 = vmatprep.mubr.bf16.mxu0 0
    %310 = vmatmul.mubr.bf16.gmra.mrb[0].mxu0 %v261
    %v311 = vpop.f32.mrb[0].mxu0
    %v312 = vadd.f32 %v229, %v311
    %v313 = vpop.f32.mrb[0].mxu0
    %v314 = vpop.f32.mrb[0].mxu0
    %v315 = vadd.f32 %v229, %v314
    %v316 = vpop.f32.mrb[0].mxu0
    %317 = vmatprep.mubr.bf16.mxu0 0
    %318 = vmatmul.mubr.bf16.gmra.mrb[0].mxu0 %v264
    %v319 = vpop.f32.mrb[0].mxu0
    %v320 = vadd.f32 %v229, %v319
    %v321 = vpop.f32.mrb[0].mxu0
    %v322 = vpop.f32.mrb[0].mxu0
    %v323 = vadd.f32 %v229, %v322
    %v324 = vpop.f32.mrb[0].mxu0
    %325 = vmatprep.mubr.bf16.mxu0 0
    %326 = vmatmul.mubr.bf16.gmra.mrb[0].mxu0 %v267
    %v327 = vpop.f32.mrb[0].mxu0
    %v328 = vadd.f32 %v229, %v327
    %v329 = vpop.f32.mrb[0].mxu0
    %v330 = vpop.f32.mrb[0].mxu0
    %v331 = vadd.f32 %v229, %v330
    %v332 = vpop.f32.mrb[0].mxu0
    %333 = vdwg.mxu0
    %v334 = vpack.c.bf16 %v304, %v304
    %v335 = vpack.c.bf16 %v307, %v307
    %v336 = vpack.c.bf16 %v312, %v312
    %v337 = vpack.c.bf16 %v315, %v315
    %v338 = vpack.c.bf16 %v320, %v320
    %v339 = vpack.c.bf16 %v323, %v323
    %v340 = vpack.c.bf16 %v328, %v328
    %v341 = vpack.c.bf16 %v331, %v331
    %342 = vst [vmem:[#allocation2] sm:$0xf] %v334
    %343 = vst [vmem:[#allocation2 + $0x4] sm:$0xf] %v335
    %344 = vst [vmem:[#allocation2 + $0x8] sm:$0xf] %v336
    %345 = vst [vmem:[#allocation2 + $0xc] sm:$0xf] %v337
    %346 = vst [vmem:[#allocation2 + $0x10] sm:$0xf] %v338
    %347 = vst [vmem:[#allocation2 + $0x14] sm:$0xf] %v339
    %348 = vst [vmem:[#allocation2 + $0x18] sm:$0xf] %v340
    %349 = vst [vmem:[#allocation2 + $0x1c] sm:$0xf] %v341
    %v350 = vld [vmem:[#allocation6] sm:$0xff]
    %v351 = vld [vmem:[#allocation6 + $0x8] sm:$0xff]
    %v352 = vld [vmem:[#allocation6 + $0x10] sm:$0xff]
    %v353 = vld [vmem:[#allocation6 + $0x18] sm:$0xff]
    %v354 = vld [vmem:[#allocation6 + $0x20] sm:$0xff]
    %v355 = vld [vmem:[#allocation6 + $0x28] sm:$0xff]
    %v356 = vld [vmem:[#allocation6 + $0x30] sm:$0xff]
    %v357 = vld [vmem:[#allocation6 + $0x38] sm:$0xff]
    %v358 = vmul.f32 %v350, %v161
    %v359 = vmul.f32 %v351, %v161
    %v360 = vmul.f32 %v352, %v161
    %v361 = vmul.f32 %v353, %v161
    %v362 = vmul.f32 %v354, %v161
    %v363 = vmul.f32 %v355, %v161
    %v364 = vmul.f32 %v356, %v161
    %v365 = vmul.f32 %v357, %v161
    %v366 = vadd.f32 %v358, %v170
    %v367 = vadd.f32 %v359, %v170
    %v368 = vadd.f32 %v360, %v170
    %v369 = vadd.f32 %v361, %v170
    %v370 = vadd.f32 %v362, %v170
    %v371 = vadd.f32 %v363, %v170
    %v372 = vadd.f32 %v364, %v170
    %v373 = vadd.f32 %v365, %v170
    %v374 = vpack.c.bf16 %v366, %v366
    %v375 = vpack.c.bf16 %v367, %v367
    %v376 = vpack.c.bf16 %v368, %v368
    %v377 = vpack.c.bf16 %v369, %v369
    %v378 = vpack.c.bf16 %v370, %v370
    %v379 = vpack.c.bf16 %v371, %v371
    %v380 = vpack.c.bf16 %v372, %v372
    %v381 = vpack.c.bf16 %v373, %v373
    %v383 = vlaneseq
    %v384 = vshrl.u32 %v383, 7
    %v385 = vsub.s32 0, %v384
    %v386 = vrot.slane %v192, %v385
    %v396 = vunpack.c.l.b16 %v374
    %v397 = vunpack.c.l.b16 %v375
    %v398 = vunpack.c.l.b16 %v376
    %v399 = vunpack.c.l.b16 %v377
    %v400 = vunpack.c.l.b16 %v378
    %v401 = vunpack.c.l.b16 %v379
    %v402 = vunpack.c.l.b16 %v380
    %v403 = vunpack.c.l.b16 %v381
    %v404 = vpack.c.b16 %v397, %v396
    %v405 = vpack.c.b16 %v399, %v398
    %v406 = vpack.c.b16 %v401, %v400
    %v407 = vpack.c.b16 %v403, %v402
    %v410 = vunpack.c.l.b16 %v173
    %v411 = vunpack.c.l.b16 %v174
    %v412 = vpack.c.b16 %v411, %v410
    %v415 = vsel %vm79, %v404, 0
    %v418 = vsel %vm79, %v405, 0
    %v421 = vsel %vm79, %v406, 0
    %v424 = vsel %vm79, %v407, 0
    %426 = vmatprep.subr.bf16.mxu0 0
    %427 = vmatpush1.bf16.msra.mxu0 %v412
    %428 = vmatprep.subr.bf16.mxu0 0
    %429 = vmatpush1.bf16.msra.mxu0 0
    %430 = vmatprep.subr.bf16.mxu0 0
    %431 = vmatpush1.bf16.msra.mxu0 0
    %432 = vmatprep.subr.bf16.mxu0 0
    %433 = vmatpush1.bf16.msra.mxu0 0
    %434 = vmatprep.subr.bf16.mxu0 0
    %435 = vmatpush1.bf16.msra.mxu0 0
    %436 = vmatprep.subr.bf16.mxu0 0
    %437 = vmatpush1.bf16.msra.mxu0 0
    %438 = vmatprep.subr.bf16.mxu0 0
    %439 = vmatpush1.bf16.msra.mxu0 0
    %440 = vmatprep.subr.bf16.mxu0 0
    %441 = vmatpush1.bf16.msra.mxu0 0
    %442 = vmatprep.subr.bf16.mxu0 0
    %443 = vmatpush1.bf16.msra.mxu0 0
    %444 = vmatprep.subr.bf16.mxu0 0
    %445 = vmatpush1.bf16.msra.mxu0 0
    %446 = vmatprep.subr.bf16.mxu0 0
    %447 = vmatpush1.bf16.msra.mxu0 0
    %448 = vmatprep.subr.bf16.mxu0 0
    %449 = vmatpush1.bf16.msra.mxu0 0
    %450 = vmatprep.subr.bf16.mxu0 0
    %451 = vmatpush1.bf16.msra.mxu0 0
    %452 = vmatprep.subr.bf16.mxu0 0
    %453 = vmatpush1.bf16.msra.mxu0 0
    %454 = vmatprep.subr.bf16.mxu0 0
    %455 = vmatpush1.bf16.msra.mxu0 0
    %456 = vmatprep.subr.bf16.mxu0 0
    %457 = vmatpush1.bf16.msra.mxu0 0
    %458 = vmatprep.mubr.bf16.mxu0 0
    %459 = vmatmul.mubr.bf16.gmra.mrb[0].mxu0 %v415
    %v460 = vpop.f32.mrb[0].mxu0
    %v461 = vadd.f32 %v386, %v460
    %v462 = vpop.f32.mrb[0].mxu0
    %v463 = vpop.f32.mrb[0].mxu0
    %v464 = vadd.f32 %v386, %v463
    %v465 = vpop.f32.mrb[0].mxu0
    %466 = vmatprep.mubr.bf16.mxu0 0
    %467 = vmatmul.mubr.bf16.gmra.mrb[0].mxu0 %v418
    %v468 = vpop.f32.mrb[0].mxu0
    %v469 = vadd.f32 %v386, %v468
    %v470 = vpop.f32.mrb[0].mxu0
    %v471 = vpop.f32.mrb[0].mxu0
    %v472 = vadd.f32 %v386, %v471
    %v473 = vpop.f32.mrb[0].mxu0
    %474 = vmatprep.mubr.bf16.mxu0 0
    %475 = vmatmul.mubr.bf16.gmra.mrb[0].mxu0 %v421
    %v476 = vpop.f32.mrb[0].mxu0
    %v477 = vadd.f32 %v386, %v476
    %v478 = vpop.f32.mrb[0].mxu0
    %v479 = vpop.f32.mrb[0].mxu0
    %v480 = vadd.f32 %v386, %v479
    %v481 = vpop.f32.mrb[0].mxu0
    %482 = vmatprep.mubr.bf16.mxu0 0
    %483 = vmatmul.mubr.bf16.gmra.mrb[0].mxu0 %v424
    %v484 = vpop.f32.mrb[0].mxu0
    %v485 = vadd.f32 %v386, %v484
    %v486 = vpop.f32.mrb[0].mxu0
    %v487 = vpop.f32.mrb[0].mxu0
    %v488 = vadd.f32 %v386, %v487
    %v489 = vpop.f32.mrb[0].mxu0
    %490 = vdwg.mxu0
    %v491 = vpack.c.bf16 %v461, %v461
    %v492 = vpack.c.bf16 %v464, %v464
    %v493 = vpack.c.bf16 %v469, %v469
    %v494 = vpack.c.bf16 %v472, %v472
    %v495 = vpack.c.bf16 %v477, %v477
    %v496 = vpack.c.bf16 %v480, %v480
    %v497 = vpack.c.bf16 %v485, %v485
    %v498 = vpack.c.bf16 %v488, %v488
    %499 = vst [vmem:[#allocation3] sm:$0xf] %v491
    %500 = vst [vmem:[#allocation3 + $0x4] sm:$0xf] %v492
    %501 = vst [vmem:[#allocation3 + $0x8] sm:$0xf] %v493
    %502 = vst [vmem:[#allocation3 + $0xc] sm:$0xf] %v494
    %503 = vst [vmem:[#allocation3 + $0x10] sm:$0xf] %v495
    %504 = vst [vmem:[#allocation3 + $0x14] sm:$0xf] %v496
    %505 = vst [vmem:[#allocation3 + $0x18] sm:$0xf] %v497
    %506 = vst [vmem:[#allocation3 + $0x1c] sm:$0xf] %v498
    %v507 = vld [vmem:[#allocation2] sm:$0xf]
    %v508 = vunpack.c.l.bf16 %v507
    %v513 = vunpack.c.l.b16 %v175
    %v514 = vunpack.c.l.b16 %v176
    %v515 = vunpack.c.l.b16 %v177
    %v516 = vunpack.c.l.b16 %v178
    %v517 = vpack.c.b16 %v514, %v513
    %v518 = vpack.c.b16 %v516, %v515
    %vm521 = vcmask 261120
    %v523 = vsel %vm521, 0, 0
    %525 = vmatprep.subr.bf16.mxu0 0
    %526 = vmatpush1.bf16.msra.mxu0 %v517
    %527 = vmatprep.subr.bf16.mxu0 0
    %528 = vmatpush1.bf16.msra.mxu0 %v518
    %529 = vmatprep.subr.bf16.mxu0 0
    %530 = vmatpush1.bf16.msra.mxu0 0
    %531 = vmatprep.subr.bf16.mxu0 0
    %532 = vmatpush1.bf16.msra.mxu0 0
    %533 = vmatprep.subr.bf16.mxu0 0
    %534 = vmatpush1.bf16.msra.mxu0 0
    %535 = vmatprep.subr.bf16.mxu0 0
    %536 = vmatpush1.bf16.msra.mxu0 0
    %537 = vmatprep.subr.bf16.mxu0 0
    %538 = vmatpush1.bf16.msra.mxu0 0
    %539 = vmatprep.subr.bf16.mxu0 0
    %540 = vmatpush1.bf16.msra.mxu0 0
    %541 = vmatprep.subr.bf16.mxu0 0
    %542 = vmatpush1.bf16.msra.mxu0 0
    %543 = vmatprep.subr.bf16.mxu0 0
    %544 = vmatpush1.bf16.msra.mxu0 0
    %545 = vmatprep.subr.bf16.mxu0 0
    %546 = vmatpush1.bf16.msra.mxu0 0
    %547 = vmatprep.subr.bf16.mxu0 0
    %548 = vmatpush1.bf16.msra.mxu0 0
    %549 = vmatprep.subr.bf16.mxu0 0
    %550 = vmatpush1.bf16.msra.mxu0 0
    %551 = vmatprep.subr.bf16.mxu0 0
    %552 = vmatpush1.bf16.msra.mxu0 0
    %553 = vmatprep.subr.bf16.mxu0 0
    %554 = vmatpush1.bf16.msra.mxu0 0
    %555 = vmatprep.subr.bf16.mxu0 0
    %556 = vmatpush1.bf16.msra.mxu0 0
    %557 = vmatprep.mubr.bf16.mxu0 0
    %558 = vmatmul.mubr.bf16.gmra.mrb[0].mxu0 %v523
    %v559 = vpop.f32.mrb[0].mxu0
    %v560 = vadd.f32 0.0, %v559
    %v561 = vpop.f32.mrb[0].mxu0
    %v562 = vpop.f32.mrb[0].mxu0
    %v563 = vpop.f32.mrb[0].mxu0
    %564 = vdwg.mxu0
    %v565 = vadd.f32 %v508, %v560
    %s566 = scalar_lea.vmem [#allocation3], 28
    %v567 = vld [vmem:[%s566] sm:$0xf]
    %v568 = vunpack.c.l.bf16 %v567
    %v573 = vunpack.c.l.b16 %v179
    %v574 = vunpack.c.l.b16 %v180
    %v575 = vunpack.c.l.b16 %v181
    %v576 = vunpack.c.l.b16 %v182
    %v577 = vpack.c.b16 %v574, %v573
    %v578 = vpack.c.b16 %v576, %v575
    %581 = vmatprep.subr.bf16.mxu0 0
    %582 = vmatpush1.bf16.msra.mxu0 %v577
    %583 = vmatprep.subr.bf16.mxu0 0
    %584 = vmatpush1.bf16.msra.mxu0 %v578
    %585 = vmatprep.subr.bf16.mxu0 0
    %586 = vmatpush1.bf16.msra.mxu0 0
    %587 = vmatprep.subr.bf16.mxu0 0
    %588 = vmatpush1.bf16.msra.mxu0 0
    %589 = vmatprep.subr.bf16.mxu0 0
    %590 = vmatpush1.bf16.msra.mxu0 0
    %591 = vmatprep.subr.bf16.mxu0 0
    %592 = vmatpush1.bf16.msra.mxu0 0
    %593 = vmatprep.subr.bf16.mxu0 0
    %594 = vmatpush1.bf16.msra.mxu0 0
    %595 = vmatprep.subr.bf16.mxu0 0
    %596 = vmatpush1.bf16.msra.mxu0 0
    %597 = vmatprep.subr.bf16.mxu0 0
    %598 = vmatpush1.bf16.msra.mxu0 0
    %599 = vmatprep.subr.bf16.mxu0 0
    %600 = vmatpush1.bf16.msra.mxu0 0
    %601 = vmatprep.subr.bf16.mxu0 0
    %602 = vmatpush1.bf16.msra.mxu0 0
    %603 = vmatprep.subr.bf16.mxu0 0
    %604 = vmatpush1.bf16.msra.mxu0 0
    %605 = vmatprep.subr.bf16.mxu0 0
    %606 = vmatpush1.bf16.msra.mxu0 0
    %607 = vmatprep.subr.bf16.mxu0 0
    %608 = vmatpush1.bf16.msra.mxu0 0
    %609 = vmatprep.subr.bf16.mxu0 0
    %610 = vmatpush1.bf16.msra.mxu0 0
    %611 = vmatprep.subr.bf16.mxu0 0
    %612 = vmatpush1.bf16.msra.mxu0 0
    %613 = vmatprep.mubr.bf16.mxu0 0
    %614 = vmatmul.mubr.bf16.gmra.mrb[0].mxu0 %v523
    %v615 = vpop.f32.mrb[0].mxu0
    %v616 = vadd.f32 0.0, %v615
    %v617 = vpop.f32.mrb[0].mxu0
    %v618 = vpop.f32.mrb[0].mxu0
    %v619 = vpop.f32.mrb[0].mxu0
    %620 = vdwg.mxu0
    %v621 = vadd.f32 %v568, %v616
    %v622 = vpack.c.bf16 %v565, %v565
    %v623 = vmul.bf16 %v622, 1056980736
    %v624 = vtanh.bf16.pop %v623
    %v625 = vmul.bf16 %v624, 1056980736
    %v626 = vadd.bf16 %v625, 1056980736
    %v627 = vtanh.bf16.pop %v622
    %v628 = vunpack.c.l.bf16 %v626
    %v629 = vmul.f32 %v628, 0.0
    %631 = vrot.lane.b32.xlu0 %v627, 64
    %v632 = vpop.permute.xlu0 %631
    %v634 = vmul.bf16 %v626, %v632
    %v635 = vunpack.c.l.bf16 %v634
    %637 = vrot.lane.b32.xlu0 %v635, 32
    %v638 = vpop.permute.xlu0 %637
    %v640 = vadd.f32 %v629, %v638
    %v641 = vtanh.pop %v640
    %643 = vrot.lane.b32.xlu0 %v641, 64
    %v644 = vpop.permute.xlu0 %643
    %v646 = vmul.f32 %v628, %v644
    %v647 = vpack.c.bf16 %v621, %v621
    %v648 = vmul.bf16 %v647, 1056980736
    %v649 = vtanh.bf16.pop %v648
    %v650 = vmul.bf16 %v649, 1056980736
    %v651 = vadd.bf16 %v650, 1056980736
    %v652 = vtanh.bf16.pop %v647
    %v653 = vunpack.c.l.bf16 %v651
    %v654 = vmul.f32 %v653, 0.0
    %656 = vrot.lane.b32.xlu0 %v652, 64
    %v657 = vpop.permute.xlu0 %656
    %v659 = vmul.bf16 %v651, %v657
    %v660 = vunpack.c.l.bf16 %v659
    %662 = vrot.lane.b32.xlu0 %v660, 32
    %v663 = vpop.permute.xlu0 %662
    %v665 = vadd.f32 %v654, %v663
    %v666 = vtanh.pop %v665
    %668 = vrot.lane.b32.xlu0 %v666, 64
    %v669 = vpop.permute.xlu0 %668
    %v671 = vmul.f32 %v653, %v669
    %v672 = vpack.c.bf16 %v646, %v646
    %v674 = vunpack.c.l.b16 %v672
    %v675 = vpack.c.b16 %v674, %v674
    %676 = vrot.lane.b32.xlu0 %v675, 32
    %v677 = vpop.permute.xlu0 %676
    %vm679 = vcmask 257024
    %680 = vst.msk [vmem:[#allocation4] sm:$0xf] %vm679, %v677
    %v681 = vpack.c.bf16 %v671, %v671
    %v683 = vunpack.c.l.b16 %v681
    %v684 = vpack.c.b16 %v683, %v683
    %685 = vrot.lane.b32.xlu0 %v684, 32
    %v686 = vpop.permute.xlu0 %685
    %s688 = scalar_lea.vmem [#allocation5], 28
    %689 = vst.msk [vmem:[%s688] sm:$0xf] %vm679, %v686
    %s690 = scalar_lea.vmem [#allocation2], 4
    %v691 = vld [vmem:[%s690] sm:$0xf]
    %v692 = vunpack.c.l.bf16 %v691
    %693 = vrot.lane.b32.xlu0 %v672, 32
    %v694 = vpop.permute.xlu0 %693
    %v696 = vsel %vm521, %v694, 0
    %698 = vmatprep.subr.bf16.mxu0 0
    %699 = vmatpush1.bf16.msra.mxu0 %v517
    %700 = vmatprep.subr.bf16.mxu0 0
    %701 = vmatpush1.bf16.msra.mxu0 %v518
    %702 = vmatprep.subr.bf16.mxu0 0
    %703 = vmatpush1.bf16.msra.mxu0 0
    %704 = vmatprep.subr.bf16.mxu0 0
    %705 = vmatpush1.bf16.msra.mxu0 0
    %706 = vmatprep.subr.bf16.mxu0 0
    %707 = vmatpush1.bf16.msra.mxu0 0
    %708 = vmatprep.subr.bf16.mxu0 0
    %709 = vmatpush1.bf16.msra.mxu0 0
    %710 = vmatprep.subr.bf16.mxu0 0
    %711 = vmatpush1.bf16.msra.mxu0 0
    %712 = vmatprep.subr.bf16.mxu0 0
    %713 = vmatpush1.bf16.msra.mxu0 0
    %714 = vmatprep.subr.bf16.mxu0 0
    %715 = vmatpush1.bf16.msra.mxu0 0
    %716 = vmatprep.subr.bf16.mxu0 0
    %717 = vmatpush1.bf16.msra.mxu0 0
    %718 = vmatprep.subr.bf16.mxu0 0
    %719 = vmatpush1.bf16.msra.mxu0 0
    %720 = vmatprep.subr.bf16.mxu0 0
    %721 = vmatpush1.bf16.msra.mxu0 0
    %722 = vmatprep.subr.bf16.mxu0 0
    %723 = vmatpush1.bf16.msra.mxu0 0
    %724 = vmatprep.subr.bf16.mxu0 0
    %725 = vmatpush1.bf16.msra.mxu0 0
    %726 = vmatprep.subr.bf16.mxu0 0
    %727 = vmatpush1.bf16.msra.mxu0 0
    %728 = vmatprep.subr.bf16.mxu0 0
    %729 = vmatpush1.bf16.msra.mxu0 0
    %730 = vmatprep.mubr.bf16.mxu0 0
    %731 = vmatmul.mubr.bf16.gmra.mrb[0].mxu0 %v696
    %v732 = vpop.f32.mrb[0].mxu0
    %v733 = vadd.f32 0.0, %v732
    %v734 = vpop.f32.mrb[0].mxu0
    %v735 = vpop.f32.mrb[0].mxu0
    %v736 = vpop.f32.mrb[0].mxu0
    %737 = vdwg.mxu0
    %v738 = vadd.f32 %v692, %v733
    %s739 = scalar_lea.vmem [#allocation3], 24
    %v740 = vld [vmem:[%s739] sm:$0xf]
    %v741 = vunpack.c.l.bf16 %v740
    %742 = vrot.lane.b32.xlu0 %v681, 32
    %v743 = vpop.permute.xlu0 %742
    %v745 = vsel %vm521, %v743, 0
    %747 = vmatprep.subr.bf16.mxu0 0
    %748 = vmatpush1.bf16.msra.mxu0 %v577
    %749 = vmatprep.subr.bf16.mxu0 0
    %750 = vmatpush1.bf16.msra.mxu0 %v578
    %751 = vmatprep.subr.bf16.mxu0 0
    %752 = vmatpush1.bf16.msra.mxu0 0
    %753 = vmatprep.subr.bf16.mxu0 0
    %754 = vmatpush1.bf16.msra.mxu0 0
    %755 = vmatprep.subr.bf16.mxu0 0
    %756 = vmatpush1.bf16.msra.mxu0 0
    %757 = vmatprep.subr.bf16.mxu0 0
    %758 = vmatpush1.bf16.msra.mxu0 0
    %759 = vmatprep.subr.bf16.mxu0 0
    %760 = vmatpush1.bf16.msra.mxu0 0
    %761 = vmatprep.subr.bf16.mxu0 0
    %762 = vmatpush1.bf16.msra.mxu0 0
    %763 = vmatprep.subr.bf16.mxu0 0
    %764 = vmatpush1.bf16.msra.mxu0 0
    %765 = vmatprep.subr.bf16.mxu0 0
    %766 = vmatpush1.bf16.msra.mxu0 0
    %767 = vmatprep.subr.bf16.mxu0 0
    %768 = vmatpush1.bf16.msra.mxu0 0
    %769 = vmatprep.subr.bf16.mxu0 0
    %770 = vmatpush1.bf16.msra.mxu0 0
    %771 = vmatprep.subr.bf16.mxu0 0
    %772 = vmatpush1.bf16.msra.mxu0 0
    %773 = vmatprep.subr.bf16.mxu0 0
    %774 = vmatpush1.bf16.msra.mxu0 0
    %775 = vmatprep.subr.bf16.mxu0 0
    %776 = vmatpush1.bf16.msra.mxu0 0
    %777 = vmatprep.subr.bf16.mxu0 0
    %778 = vmatpush1.bf16.msra.mxu0 0
    %779 = vmatprep.mubr.bf16.mxu0 0
    %780 = vmatmul.mubr.bf16.gmra.mrb[0].mxu0 %v745
    %v781 = vpop.f32.mrb[0].mxu0
    %v782 = vadd.f32 0.0, %v781
    %v783 = vpop.f32.mrb[0].mxu0
    %v784 = vpop.f32.mrb[0].mxu0
    %v785 = vpop.f32.mrb[0].mxu0
    %786 = vdwg.mxu0
    %v787 = vadd.f32 %v741, %v782
    %v788 = vpack.c.bf16 %v738, %v738
    %v789 = vmul.bf16 %v788, 1056980736
    %v790 = vtanh.bf16.pop %v789
    %v791 = vmul.bf16 %v790, 1056980736
    %v792 = vadd.bf16 %v791, 1056980736
    %v793 = vtanh.bf16.pop %v788
    %v794 = vunpack.c.l.bf16 %v792
    %v795 = vmul.f32 %v794, %v640
    %797 = vrot.lane.b32.xlu0 %v793, 64
    %v798 = vpop.permute.xlu0 %797
    %v800 = vmul.bf16 %v792, %v798
    %v801 = vunpack.c.l.bf16 %v800
    %803 = vrot.lane.b32.xlu0 %v801, 32
    %v804 = vpop.permute.xlu0 %803
    %v806 = vadd.f32 %v795, %v804
    %v807 = vtanh.pop %v806
    %809 = vrot.lane.b32.xlu0 %v807, 64
    %v810 = vpop.permute.xlu0 %809
    %v812 = vmul.f32 %v794, %v810
    %v813 = vpack.c.bf16 %v787, %v787
    %v814 = vmul.bf16 %v813, 1056980736
    %v815 = vtanh.bf16.pop %v814
    %v816 = vmul.bf16 %v815, 1056980736
    %v817 = vadd.bf16 %v816, 1056980736
    %v818 = vtanh.bf16.pop %v813
    %v819 = vunpack.c.l.bf16 %v817
    %v820 = vmul.f32 %v819, %v665
    %822 = vrot.lane.b32.xlu0 %v818, 64
    %v823 = vpop.permute.xlu0 %822
    %v825 = vmul.bf16 %v817, %v823
    %v826 = vunpack.c.l.bf16 %v825
    %828 = vrot.lane.b32.xlu0 %v826, 32
    %v829 = vpop.permute.xlu0 %828
    %v831 = vadd.f32 %v820, %v829
    %v832 = vtanh.pop %v831
    %834 = vrot.lane.b32.xlu0 %v832, 64
    %v835 = vpop.permute.xlu0 %834
    %v837 = vmul.f32 %v819, %v835
    %v838 = vpack.c.bf16 %v812, %v812
    %v840 = vunpack.c.l.b16 %v838
    %v841 = vpack.c.b16 %v840, %v840
    %842 = vrot.lane.b32.xlu0 %v841, 32
    %v843 = vpop.permute.xlu0 %842
    %s845 = scalar_lea.vmem [#allocation4], 4
    %846 = vst.msk [vmem:[%s845] sm:$0xf] %vm679, %v843
    %v847 = vpack.c.bf16 %v837, %v837
    %v849 = vunpack.c.l.b16 %v847
    %v850 = vpack.c.b16 %v849, %v849
    %851 = vrot.lane.b32.xlu0 %v850, 32
    %v852 = vpop.permute.xlu0 %851
    %s854 = scalar_lea.vmem [#allocation5], 24
    %855 = vst.msk [vmem:[%s854] sm:$0xf] %vm679, %v852
    %s856 = scalar_lea.vmem [#allocation2], 8
    %v857 = vld [vmem:[%s856] sm:$0xf]
    %v858 = vunpack.c.l.bf16 %v857
    %859 = vrot.lane.b32.xlu0 %v838, 32
    %v860 = vpop.permute.xlu0 %859
    %v862 = vsel %vm521, %v860, 0
    %864 = vmatprep.subr.bf16.mxu0 0
    %865 = vmatpush1.bf16.msra.mxu0 %v517
    %866 = vmatprep.subr.bf16.mxu0 0
    %867 = vmatpush1.bf16.msra.mxu0 %v518
    %868 = vmatprep.subr.bf16.mxu0 0
    %869 = vmatpush1.bf16.msra.mxu0 0
    %870 = vmatprep.subr.bf16.mxu0 0
    %871 = vmatpush1.bf16.msra.mxu0 0
    %872 = vmatprep.subr.bf16.mxu0 0
    %873 = vmatpush1.bf16.msra.mxu0 0
    %874 = vmatprep.subr.bf16.mxu0 0
    %875 = vmatpush1.bf16.msra.mxu0 0
    %876 = vmatprep.subr.bf16.mxu0 0
    %877 = vmatpush1.bf16.msra.mxu0 0
    %878 = vmatprep.subr.bf16.mxu0 0
    %879 = vmatpush1.bf16.msra.mxu0 0
    %880 = vmatprep.subr.bf16.mxu0 0
    %881 = vmatpush1.bf16.msra.mxu0 0
    %882 = vmatprep.subr.bf16.mxu0 0
    %883 = vmatpush1.bf16.msra.mxu0 0
    %884 = vmatprep.subr.bf16.mxu0 0
    %885 = vmatpush1.bf16.msra.mxu0 0
    %886 = vmatprep.subr.bf16.mxu0 0
    %887 = vmatpush1.bf16.msra.mxu0 0
    %888 = vmatprep.subr.bf16.mxu0 0
    %889 = vmatpush1.bf16.msra.mxu0 0
    %890 = vmatprep.subr.bf16.mxu0 0
    %891 = vmatpush1.bf16.msra.mxu0 0
    %892 = vmatprep.subr.bf16.mxu0 0
    %893 = vmatpush1.bf16.msra.mxu0 0
    %894 = vmatprep.subr.bf16.mxu0 0
    %895 = vmatpush1.bf16.msra.mxu0 0
    %896 = vmatprep.mubr.bf16.mxu0 0
    %897 = vmatmul.mubr.bf16.gmra.mrb[0].mxu0 %v862
    %v898 = vpop.f32.mrb[0].mxu0
    %v899 = vadd.f32 0.0, %v898
    %v900 = vpop.f32.mrb[0].mxu0
    %v901 = vpop.f32.mrb[0].mxu0
    %v902 = vpop.f32.mrb[0].mxu0
    %903 = vdwg.mxu0
    %v904 = vadd.f32 %v858, %v899
    %s905 = scalar_lea.vmem [#allocation3], 20
    %v906 = vld [vmem:[%s905] sm:$0xf]
    %v907 = vunpack.c.l.bf16 %v906
    %908 = vrot.lane.b32.xlu0 %v847, 32
    %v909 = vpop.permute.xlu0 %908
    %v911 = vsel %vm521, %v909, 0
    %913 = vmatprep.subr.bf16.mxu0 0
    %914 = vmatpush1.bf16.msra.mxu0 %v577
    %915 = vmatprep.subr.bf16.mxu0 0
    %916 = vmatpush1.bf16.msra.mxu0 %v578
    %917 = vmatprep.subr.bf16.mxu0 0
    %918 = vmatpush1.bf16.msra.mxu0 0
    %919 = vmatprep.subr.bf16.mxu0 0
    %920 = vmatpush1.bf16.msra.mxu0 0
    %921 = vmatprep.subr.bf16.mxu0 0
    %922 = vmatpush1.bf16.msra.mxu0 0
    %923 = vmatprep.subr.bf16.mxu0 0
    %924 = vmatpush1.bf16.msra.mxu0 0
    %925 = vmatprep.subr.bf16.mxu0 0
    %926 = vmatpush1.bf16.msra.mxu0 0
    %927 = vmatprep.subr.bf16.mxu0 0
    %928 = vmatpush1.bf16.msra.mxu0 0
    %929 = vmatprep.subr.bf16.mxu0 0
    %930 = vmatpush1.bf16.msra.mxu0 0
    %931 = vmatprep.subr.bf16.mxu0 0
    %932 = vmatpush1.bf16.msra.mxu0 0
    %933 = vmatprep.subr.bf16.mxu0 0
    %934 = vmatpush1.bf16.msra.mxu0 0
    %935 = vmatprep.subr.bf16.mxu0 0
    %936 = vmatpush1.bf16.msra.mxu0 0
    %937 = vmatprep.subr.bf16.mxu0 0
    %938 = vmatpush1.bf16.msra.mxu0 0
    %939 = vmatprep.subr.bf16.mxu0 0
    %940 = vmatpush1.bf16.msra.mxu0 0
    %941 = vmatprep.subr.bf16.mxu0 0
    %942 = vmatpush1.bf16.msra.mxu0 0
    %943 = vmatprep.subr.bf16.mxu0 0
    %944 = vmatpush1.bf16.msra.mxu0 0
    %945 = vmatprep.mubr.bf16.mxu0 0
    %946 = vmatmul.mubr.bf16.gmra.mrb[0].mxu0 %v911
    %v947 = vpop.f32.mrb[0].mxu0
    %v948 = vadd.f32 0.0, %v947
    %v949 = vpop.f32.mrb[0].mxu0
    %v950 = vpop.f32.mrb[0].mxu0
    %v951 = vpop.f32.mrb[0].mxu0
    %952 = vdwg.mxu0
    %v953 = vadd.f32 %v907, %v948
    %v954 = vpack.c.bf16 %v904, %v904
    %v955 = vmul.bf16 %v954, 1056980736
    %v956 = vtanh.bf16.pop %v955
    %v957 = vmul.bf16 %v956, 1056980736
    %v958 = vadd.bf16 %v957, 1056980736
    %v959 = vtanh.bf16.pop %v954
    %v960 = vunpack.c.l.bf16 %v958
    %v961 = vmul.f32 %v960, %v806
    %963 = vrot.lane.b32.xlu0 %v959, 64
    %v964 = vpop.permute.xlu0 %963
    %v966 = vmul.bf16 %v958, %v964
    %v967 = vunpack.c.l.bf16 %v966
    %969 = vrot.lane.b32.xlu0 %v967, 32
    %v970 = vpop.permute.xlu0 %969
    %v972 = vadd.f32 %v961, %v970
    %v973 = vtanh.pop %v972
    %975 = vrot.lane.b32.xlu0 %v973, 64
    %v976 = vpop.permute.xlu0 %975
    %v978 = vmul.f32 %v960, %v976
    %v979 = vpack.c.bf16 %v953, %v953
    %v980 = vmul.bf16 %v979, 1056980736
    %v981 = vtanh.bf16.pop %v980
    %v982 = vmul.bf16 %v981, 1056980736
    %v983 = vadd.bf16 %v982, 1056980736
    %v984 = vtanh.bf16.pop %v979
    %v985 = vunpack.c.l.bf16 %v983
    %v986 = vmul.f32 %v985, %v831
    %988 = vrot.lane.b32.xlu0 %v984, 64
    %v989 = vpop.permute.xlu0 %988
    %v991 = vmul.bf16 %v983, %v989
    %v992 = vunpack.c.l.bf16 %v991
    %994 = vrot.lane.b32.xlu0 %v992, 32
    %v995 = vpop.permute.xlu0 %994
    %v997 = vadd.f32 %v986, %v995
    %v998 = vtanh.pop %v997
    %1000 = vrot.lane.b32.xlu0 %v998, 64
    %v1001 = vpop.permute.xlu0 %1000
    %v1003 = vmul.f32 %v985, %v1001
    %v1004 = vpack.c.bf16 %v978, %v978
    %v1006 = vunpack.c.l.b16 %v1004
    %v1007 = vpack.c.b16 %v1006, %v1006
    %1008 = vrot.lane.b32.xlu0 %v1007, 32
    %v1009 = vpop.permute.xlu0 %1008
    %s1011 = scalar_lea.vmem [#allocation4], 8
    %1012 = vst.msk [vmem:[%s1011] sm:$0xf] %vm679, %v1009
    %v1013 = vpack.c.bf16 %v1003, %v1003
    %v1015 = vunpack.c.l.b16 %v1013
    %v1016 = vpack.c.b16 %v1015, %v1015
    %1017 = vrot.lane.b32.xlu0 %v1016, 32
    %v1018 = vpop.permute.xlu0 %1017
    %s1020 = scalar_lea.vmem [#allocation5], 20
    %1021 = vst.msk [vmem:[%s1020] sm:$0xf] %vm679, %v1018
    %s1022 = scalar_lea.vmem [#allocation2], 12
    %v1023 = vld [vmem:[%s1022] sm:$0xf]
    %v1024 = vunpack.c.l.bf16 %v1023
    %1025 = vrot.lane.b32.xlu0 %v1004, 32
    %v1026 = vpop.permute.xlu0 %1025
    %v1028 = vsel %vm521, %v1026, 0
    %1030 = vmatprep.subr.bf16.mxu0 0
    %1031 = vmatpush1.bf16.msra.mxu0 %v517
    %1032 = vmatprep.subr.bf16.mxu0 0
    %1033 = vmatpush1.bf16.msra.mxu0 %v518
    %1034 = vmatprep.subr.bf16.mxu0 0
    %1035 = vmatpush1.bf16.msra.mxu0 0
    %1036 = vmatprep.subr.bf16.mxu0 0
    %1037 = vmatpush1.bf16.msra.mxu0 0
    %1038 = vmatprep.subr.bf16.mxu0 0
    %1039 = vmatpush1.bf16.msra.mxu0 0
    %1040 = vmatprep.subr.bf16.mxu0 0
    %1041 = vmatpush1.bf16.msra.mxu0 0
    %1042 = vmatprep.subr.bf16.mxu0 0
    %1043 = vmatpush1.bf16.msra.mxu0 0
    %1044 = vmatprep.subr.bf16.mxu0 0
    %1045 = vmatpush1.bf16.msra.mxu0 0
    %1046 = vmatprep.subr.bf16.mxu0 0
    %1047 = vmatpush1.bf16.msra.mxu0 0
    %1048 = vmatprep.subr.bf16.mxu0 0
    %1049 = vmatpush1.bf16.msra.mxu0 0
    %1050 = vmatprep.subr.bf16.mxu0 0
    %1051 = vmatpush1.bf16.msra.mxu0 0
    %1052 = vmatprep.subr.bf16.mxu0 0
    %1053 = vmatpush1.bf16.msra.mxu0 0
    %1054 = vmatprep.subr.bf16.mxu0 0
    %1055 = vmatpush1.bf16.msra.mxu0 0
    %1056 = vmatprep.subr.bf16.mxu0 0
    %1057 = vmatpush1.bf16.msra.mxu0 0
    %1058 = vmatprep.subr.bf16.mxu0 0
    %1059 = vmatpush1.bf16.msra.mxu0 0
    %1060 = vmatprep.subr.bf16.mxu0 0
    %1061 = vmatpush1.bf16.msra.mxu0 0
    %1062 = vmatprep.mubr.bf16.mxu0 0
    %1063 = vmatmul.mubr.bf16.gmra.mrb[0].mxu0 %v1028
    %v1064 = vpop.f32.mrb[0].mxu0
    %v1065 = vadd.f32 0.0, %v1064
    %v1066 = vpop.f32.mrb[0].mxu0
    %v1067 = vpop.f32.mrb[0].mxu0
    %v1068 = vpop.f32.mrb[0].mxu0
    %1069 = vdwg.mxu0
    %v1070 = vadd.f32 %v1024, %v1065
    %s1071 = scalar_lea.vmem [#allocation3], 16
    %v1072 = vld [vmem:[%s1071] sm:$0xf]
    %v1073 = vunpack.c.l.bf16 %v1072
    %1074 = vrot.lane.b32.xlu0 %v1013, 32
    %v1075 = vpop.permute.xlu0 %1074
    %v1077 = vsel %vm521, %v1075, 0
    %1079 = vmatprep.subr.bf16.mxu0 0
    %1080 = vmatpush1.bf16.msra.mxu0 %v577
    %1081 = vmatprep.subr.bf16.mxu0 0
    %1082 = vmatpush1.bf16.msra.mxu0 %v578
    %1083 = vmatprep.subr.bf16.mxu0 0
    %1084 = vmatpush1.bf16.msra.mxu0 0
    %1085 = vmatprep.subr.bf16.mxu0 0
    %1086 = vmatpush1.bf16.msra.mxu0 0
    %1087 = vmatprep.subr.bf16.mxu0 0
    %1088 = vmatpush1.bf16.msra.mxu0 0
    %1089 = vmatprep.subr.bf16.mxu0 0
    %1090 = vmatpush1.bf16.msra.mxu0 0
    %1091 = vmatprep.subr.bf16.mxu0 0
    %1092 = vmatpush1.bf16.msra.mxu0 0
    %1093 = vmatprep.subr.bf16.mxu0 0
    %1094 = vmatpush1.bf16.msra.mxu0 0
    %1095 = vmatprep.subr.bf16.mxu0 0
    %1096 = vmatpush1.bf16.msra.mxu0 0
    %1097 = vmatprep.subr.bf16.mxu0 0
    %1098 = vmatpush1.bf16.msra.mxu0 0
    %1099 = vmatprep.subr.bf16.mxu0 0
    %1100 = vmatpush1.bf16.msra.mxu0 0
    %1101 = vmatprep.subr.bf16.mxu0 0
    %1102 = vmatpush1.bf16.msra.mxu0 0
    %1103 = vmatprep.subr.bf16.mxu0 0
    %1104 = vmatpush1.bf16.msra.mxu0 0
    %1105 = vmatprep.subr.bf16.mxu0 0
    %1106 = vmatpush1.bf16.msra.mxu0 0
    %1107 = vmatprep.subr.bf16.mxu0 0
    %1108 = vmatpush1.bf16.msra.mxu0 0
    %1109 = vmatprep.subr.bf16.mxu0 0
    %1110 = vmatpush1.bf16.msra.mxu0 0
    %1111 = vmatprep.mubr.bf16.mxu0 0
    %1112 = vmatmul.mubr.bf16.gmra.mrb[0].mxu0 %v1077
    %v1113 = vpop.f32.mrb[0].mxu0
    %v1114 = vadd.f32 0.0, %v1113
    %v1115 = vpop.f32.mrb[0].mxu0
    %v1116 = vpop.f32.mrb[0].mxu0
    %v1117 = vpop.f32.mrb[0].mxu0
    %1118 = vdwg.mxu0
    %v1119 = vadd.f32 %v1073, %v1114
    %v1120 = vpack.c.bf16 %v1070, %v1070
    %v1121 = vmul.bf16 %v1120, 1056980736
    %v1122 = vtanh.bf16.pop %v1121
    %v1123 = vmul.bf16 %v1122, 1056980736
    %v1124 = vadd.bf16 %v1123, 1056980736
    %v1125 = vtanh.bf16.pop %v1120
    %v1126 = vunpack.c.l.bf16 %v1124
    %v1127 = vmul.f32 %v1126, %v972
    %1129 = vrot.lane.b32.xlu0 %v1125, 64
    %v1130 = vpop.permute.xlu0 %1129
    %v1132 = vmul.bf16 %v1124, %v1130
    %v1133 = vunpack.c.l.bf16 %v1132
    %1135 = vrot.lane.b32.xlu0 %v1133, 32
    %v1136 = vpop.permute.xlu0 %1135
    %v1138 = vadd.f32 %v1127, %v1136
    %v1139 = vtanh.pop %v1138
    %1141 = vrot.lane.b32.xlu0 %v1139, 64
    %v1142 = vpop.permute.xlu0 %1141
    %v1144 = vmul.f32 %v1126, %v1142
    %v1145 = vpack.c.bf16 %v1119, %v1119
    %v1146 = vmul.bf16 %v1145, 1056980736
    %v1147 = vtanh.bf16.pop %v1146
    %v1148 = vmul.bf16 %v1147, 1056980736
    %v1149 = vadd.bf16 %v1148, 1056980736
    %v1150 = vtanh.bf16.pop %v1145
    %v1151 = vunpack.c.l.bf16 %v1149
    %v1152 = vmul.f32 %v1151, %v997
    %1154 = vrot.lane.b32.xlu0 %v1150, 64
    %v1155 = vpop.permute.xlu0 %1154
    %v1157 = vmul.bf16 %v1149, %v1155
    %v1158 = vunpack.c.l.bf16 %v1157
    %1160 = vrot.lane.b32.xlu0 %v1158, 32
    %v1161 = vpop.permute.xlu0 %1160
    %v1163 = vadd.f32 %v1152, %v1161
    %v1164 = vtanh.pop %v1163
    %1166 = vrot.lane.b32.xlu0 %v1164, 64
    %v1167 = vpop.permute.xlu0 %1166
    %v1169 = vmul.f32 %v1151, %v1167
    %v1170 = vpack.c.bf16 %v1144, %v1144
    %v1172 = vunpack.c.l.b16 %v1170
    %v1173 = vpack.c.b16 %v1172, %v1172
    %1174 = vrot.lane.b32.xlu0 %v1173, 32
    %v1175 = vpop.permute.xlu0 %1174
    %s1177 = scalar_lea.vmem [#allocation4], 12
    %1178 = vst.msk [vmem:[%s1177] sm:$0xf] %vm679, %v1175
    %v1179 = vpack.c.bf16 %v1169, %v1169
    %v1181 = vunpack.c.l.b16 %v1179
    %v1182 = vpack.c.b16 %v1181, %v1181
    %1183 = vrot.lane.b32.xlu0 %v1182, 32
    %v1184 = vpop.permute.xlu0 %1183
    %s1186 = scalar_lea.vmem [#allocation5], 16
    %1187 = vst.msk [vmem:[%s1186] sm:$0xf] %vm679, %v1184
    %s1188 = scalar_lea.vmem [#allocation2], 16
    %v1189 = vld [vmem:[%s1188] sm:$0xf]
    %v1190 = vunpack.c.l.bf16 %v1189
    %1191 = vrot.lane.b32.xlu0 %v1170, 32
    %v1192 = vpop.permute.xlu0 %1191
    %v1194 = vsel %vm521, %v1192, 0
    %1196 = vmatprep.subr.bf16.mxu0 0
    %1197 = vmatpush1.bf16.msra.mxu0 %v517
    %1198 = vmatprep.subr.bf16.mxu0 0
    %1199 = vmatpush1.bf16.msra.mxu0 %v518
    %1200 = vmatprep.subr.bf16.mxu0 0
    %1201 = vmatpush1.bf16.msra.mxu0 0
    %1202 = vmatprep.subr.bf16.mxu0 0
    %1203 = vmatpush1.bf16.msra.mxu0 0
    %1204 = vmatprep.subr.bf16.mxu0 0
    %1205 = vmatpush1.bf16.msra.mxu0 0
    %1206 = vmatprep.subr.bf16.mxu0 0
    %1207 = vmatpush1.bf16.msra.mxu0 0
    %1208 = vmatprep.subr.bf16.mxu0 0
    %1209 = vmatpush1.bf16.msra.mxu0 0
    %1210 = vmatprep.subr.bf16.mxu0 0
    %1211 = vmatpush1.bf16.msra.mxu0 0
    %1212 = vmatprep.subr.bf16.mxu0 0
    %1213 = vmatpush1.bf16.msra.mxu0 0
    %1214 = vmatprep.subr.bf16.mxu0 0
    %1215 = vmatpush1.bf16.msra.mxu0 0
    %1216 = vmatprep.subr.bf16.mxu0 0
    %1217 = vmatpush1.bf16.msra.mxu0 0
    %1218 = vmatprep.subr.bf16.mxu0 0
    %1219 = vmatpush1.bf16.msra.mxu0 0
    %1220 = vmatprep.subr.bf16.mxu0 0
    %1221 = vmatpush1.bf16.msra.mxu0 0
    %1222 = vmatprep.subr.bf16.mxu0 0
    %1223 = vmatpush1.bf16.msra.mxu0 0
    %1224 = vmatprep.subr.bf16.mxu0 0
    %1225 = vmatpush1.bf16.msra.mxu0 0
    %1226 = vmatprep.subr.bf16.mxu0 0
    %1227 = vmatpush1.bf16.msra.mxu0 0
    %1228 = vmatprep.mubr.bf16.mxu0 0
    %1229 = vmatmul.mubr.bf16.gmra.mrb[0].mxu0 %v1194
    %v1230 = vpop.f32.mrb[0].mxu0
    %v1231 = vadd.f32 0.0, %v1230
    %v1232 = vpop.f32.mrb[0].mxu0
    %v1233 = vpop.f32.mrb[0].mxu0
    %v1234 = vpop.f32.mrb[0].mxu0
    %1235 = vdwg.mxu0
    %v1236 = vadd.f32 %v1190, %v1231
    %s1237 = scalar_lea.vmem [#allocation3], 12
    %v1238 = vld [vmem:[%s1237] sm:$0xf]
    %v1239 = vunpack.c.l.bf16 %v1238
    %1240 = vrot.lane.b32.xlu0 %v1179, 32
    %v1241 = vpop.permute.xlu0 %1240
    %v1243 = vsel %vm521, %v1241, 0
    %1245 = vmatprep.subr.bf16.mxu0 0
    %1246 = vmatpush1.bf16.msra.mxu0 %v577
    %1247 = vmatprep.subr.bf16.mxu0 0
    %1248 = vmatpush1.bf16.msra.mxu0 %v578
    %1249 = vmatprep.subr.bf16.mxu0 0
    %1250 = vmatpush1.bf16.msra.mxu0 0
    %1251 = vmatprep.subr.bf16.mxu0 0
    %1252 = vmatpush1.bf16.msra.mxu0 0
    %1253 = vmatprep.subr.bf16.mxu0 0
    %1254 = vmatpush1.bf16.msra.mxu0 0
    %1255 = vmatprep.subr.bf16.mxu0 0
    %1256 = vmatpush1.bf16.msra.mxu0 0
    %1257 = vmatprep.subr.bf16.mxu0 0
    %1258 = vmatpush1.bf16.msra.mxu0 0
    %1259 = vmatprep.subr.bf16.mxu0 0
    %1260 = vmatpush1.bf16.msra.mxu0 0
    %1261 = vmatprep.subr.bf16.mxu0 0
    %1262 = vmatpush1.bf16.msra.mxu0 0
    %1263 = vmatprep.subr.bf16.mxu0 0
    %1264 = vmatpush1.bf16.msra.mxu0 0
    %1265 = vmatprep.subr.bf16.mxu0 0
    %1266 = vmatpush1.bf16.msra.mxu0 0
    %1267 = vmatprep.subr.bf16.mxu0 0
    %1268 = vmatpush1.bf16.msra.mxu0 0
    %1269 = vmatprep.subr.bf16.mxu0 0
    %1270 = vmatpush1.bf16.msra.mxu0 0
    %1271 = vmatprep.subr.bf16.mxu0 0
    %1272 = vmatpush1.bf16.msra.mxu0 0
    %1273 = vmatprep.subr.bf16.mxu0 0
    %1274 = vmatpush1.bf16.msra.mxu0 0
    %1275 = vmatprep.subr.bf16.mxu0 0
    %1276 = vmatpush1.bf16.msra.mxu0 0
    %1277 = vmatprep.mubr.bf16.mxu0 0
    %1278 = vmatmul.mubr.bf16.gmra.mrb[0].mxu0 %v1243
    %v1279 = vpop.f32.mrb[0].mxu0
    %v1280 = vadd.f32 0.0, %v1279
    %v1281 = vpop.f32.mrb[0].mxu0
    %v1282 = vpop.f32.mrb[0].mxu0
    %v1283 = vpop.f32.mrb[0].mxu0
    %1284 = vdwg.mxu0
    %v1285 = vadd.f32 %v1239, %v1280
    %v1286 = vpack.c.bf16 %v1236, %v1236
    %v1287 = vmul.bf16 %v1286, 1056980736
    %v1288 = vtanh.bf16.pop %v1287
    %v1289 = vmul.bf16 %v1288, 1056980736
    %v1290 = vadd.bf16 %v1289, 1056980736
    %v1291 = vtanh.bf16.pop %v1286
    %v1292 = vunpack.c.l.bf16 %v1290
    %v1293 = vmul.f32 %v1292, %v1138
    %1295 = vrot.lane.b32.xlu0 %v1291, 64
    %v1296 = vpop.permute.xlu0 %1295
    %v1298 = vmul.bf16 %v1290, %v1296
    %v1299 = vunpack.c.l.bf16 %v1298
    %1301 = vrot.lane.b32.xlu0 %v1299, 32
    %v1302 = vpop.permute.xlu0 %1301
    %v1304 = vadd.f32 %v1293, %v1302
    %v1305 = vtanh.pop %v1304
    %1307 = vrot.lane.b32.xlu0 %v1305, 64
    %v1308 = vpop.permute.xlu0 %1307
    %v1310 = vmul.f32 %v1292, %v1308
    %v1311 = vpack.c.bf16 %v1285, %v1285
    %v1312 = vmul.bf16 %v1311, 1056980736
    %v1313 = vtanh.bf16.pop %v1312
    %v1314 = vmul.bf16 %v1313, 1056980736
    %v1315 = vadd.bf16 %v1314, 1056980736
    %v1316 = vtanh.bf16.pop %v1311
    %v1317 = vunpack.c.l.bf16 %v1315
    %v1318 = vmul.f32 %v1317, %v1163
    %1320 = vrot.lane.b32.xlu0 %v1316, 64
    %v1321 = vpop.permute.xlu0 %1320
    %v1323 = vmul.bf16 %v1315, %v1321
    %v1324 = vunpack.c.l.bf16 %v1323
    %1326 = vrot.lane.b32.xlu0 %v1324, 32
    %v1327 = vpop.permute.xlu0 %1326
    %v1329 = vadd.f32 %v1318, %v1327
    %v1330 = vtanh.pop %v1329
    %1332 = vrot.lane.b32.xlu0 %v1330, 64
    %v1333 = vpop.permute.xlu0 %1332
    %v1335 = vmul.f32 %v1317, %v1333
    %v1336 = vpack.c.bf16 %v1310, %v1310
    %v1338 = vunpack.c.l.b16 %v1336
    %v1339 = vpack.c.b16 %v1338, %v1338
    %1340 = vrot.lane.b32.xlu0 %v1339, 32
    %v1341 = vpop.permute.xlu0 %1340
    %s1343 = scalar_lea.vmem [#allocation4], 16
    %1344 = vst.msk [vmem:[%s1343] sm:$0xf] %vm679, %v1341
    %v1345 = vpack.c.bf16 %v1335, %v1335
    %v1347 = vunpack.c.l.b16 %v1345
    %v1348 = vpack.c.b16 %v1347, %v1347
    %1349 = vrot.lane.b32.xlu0 %v1348, 32
    %v1350 = vpop.permute.xlu0 %1349
    %s1352 = scalar_lea.vmem [#allocation5], 12
    %1353 = vst.msk [vmem:[%s1352] sm:$0xf] %vm679, %v1350
    %s1354 = scalar_lea.vmem [#allocation2], 20
    %v1355 = vld [vmem:[%s1354] sm:$0xf]
    %v1356 = vunpack.c.l.bf16 %v1355
    %1357 = vrot.lane.b32.xlu0 %v1336, 32
    %v1358 = vpop.permute.xlu0 %1357
    %v1360 = vsel %vm521, %v1358, 0
    %1362 = vmatprep.subr.bf16.mxu0 0
    %1363 = vmatpush1.bf16.msra.mxu0 %v517
    %1364 = vmatprep.subr.bf16.mxu0 0
    %1365 = vmatpush1.bf16.msra.mxu0 %v518
    %1366 = vmatprep.subr.bf16.mxu0 0
    %1367 = vmatpush1.bf16.msra.mxu0 0
    %1368 = vmatprep.subr.bf16.mxu0 0
    %1369 = vmatpush1.bf16.msra.mxu0 0
    %1370 = vmatprep.subr.bf16.mxu0 0
    %1371 = vmatpush1.bf16.msra.mxu0 0
    %1372 = vmatprep.subr.bf16.mxu0 0
    %1373 = vmatpush1.bf16.msra.mxu0 0
    %1374 = vmatprep.subr.bf16.mxu0 0
    %1375 = vmatpush1.bf16.msra.mxu0 0
    %1376 = vmatprep.subr.bf16.mxu0 0
    %1377 = vmatpush1.bf16.msra.mxu0 0
    %1378 = vmatprep.subr.bf16.mxu0 0
    %1379 = vmatpush1.bf16.msra.mxu0 0
    %1380 = vmatprep.subr.bf16.mxu0 0
    %1381 = vmatpush1.bf16.msra.mxu0 0
    %1382 = vmatprep.subr.bf16.mxu0 0
    %1383 = vmatpush1.bf16.msra.mxu0 0
    %1384 = vmatprep.subr.bf16.mxu0 0
    %1385 = vmatpush1.bf16.msra.mxu0 0
    %1386 = vmatprep.subr.bf16.mxu0 0
    %1387 = vmatpush1.bf16.msra.mxu0 0
    %1388 = vmatprep.subr.bf16.mxu0 0
    %1389 = vmatpush1.bf16.msra.mxu0 0
    %1390 = vmatprep.subr.bf16.mxu0 0
    %1391 = vmatpush1.bf16.msra.mxu0 0
    %1392 = vmatprep.subr.bf16.mxu0 0
    %1393 = vmatpush1.bf16.msra.mxu0 0
    %1394 = vmatprep.mubr.bf16.mxu0 0
    %1395 = vmatmul.mubr.bf16.gmra.mrb[0].mxu0 %v1360
    %v1396 = vpop.f32.mrb[0].mxu0
    %v1397 = vadd.f32 0.0, %v1396
    %v1398 = vpop.f32.mrb[0].mxu0
    %v1399 = vpop.f32.mrb[0].mxu0
    %v1400 = vpop.f32.mrb[0].mxu0
    %1401 = vdwg.mxu0
    %v1402 = vadd.f32 %v1356, %v1397
    %s1403 = scalar_lea.vmem [#allocation3], 8
    %v1404 = vld [vmem:[%s1403] sm:$0xf]
    %v1405 = vunpack.c.l.bf16 %v1404
    %1406 = vrot.lane.b32.xlu0 %v1345, 32
    %v1407 = vpop.permute.xlu0 %1406
    %v1409 = vsel %vm521, %v1407, 0
    %1411 = vmatprep.subr.bf16.mxu0 0
    %1412 = vmatpush1.bf16.msra.mxu0 %v577
    %1413 = vmatprep.subr.bf16.mxu0 0
    %1414 = vmatpush1.bf16.msra.mxu0 %v578
    %1415 = vmatprep.subr.bf16.mxu0 0
    %1416 = vmatpush1.bf16.msra.mxu0 0
    %1417 = vmatprep.subr.bf16.mxu0 0
    %1418 = vmatpush1.bf16.msra.mxu0 0
    %1419 = vmatprep.subr.bf16.mxu0 0
    %1420 = vmatpush1.bf16.msra.mxu0 0
    %1421 = vmatprep.subr.bf16.mxu0 0
    %1422 = vmatpush1.bf16.msra.mxu0 0
    %1423 = vmatprep.subr.bf16.mxu0 0
    %1424 = vmatpush1.bf16.msra.mxu0 0
    %1425 = vmatprep.subr.bf16.mxu0 0
    %1426 = vmatpush1.bf16.msra.mxu0 0
    %1427 = vmatprep.subr.bf16.mxu0 0
    %1428 = vmatpush1.bf16.msra.mxu0 0
    %1429 = vmatprep.subr.bf16.mxu0 0
    %1430 = vmatpush1.bf16.msra.mxu0 0
    %1431 = vmatprep.subr.bf16.mxu0 0
    %1432 = vmatpush1.bf16.msra.mxu0 0
    %1433 = vmatprep.subr.bf16.mxu0 0
    %1434 = vmatpush1.bf16.msra.mxu0 0
    %1435 = vmatprep.subr.bf16.mxu0 0
    %1436 = vmatpush1.bf16.msra.mxu0 0
    %1437 = vmatprep.subr.bf16.mxu0 0
    %1438 = vmatpush1.bf16.msra.mxu0 0
    %1439 = vmatprep.subr.bf16.mxu0 0
    %1440 = vmatpush1.bf16.msra.mxu0 0
    %1441 = vmatprep.subr.bf16.mxu0 0
    %1442 = vmatpush1.bf16.msra.mxu0 0
    %1443 = vmatprep.mubr.bf16.mxu0 0
    %1444 = vmatmul.mubr.bf16.gmra.mrb[0].mxu0 %v1409
    %v1445 = vpop.f32.mrb[0].mxu0
    %v1446 = vadd.f32 0.0, %v1445
    %v1447 = vpop.f32.mrb[0].mxu0
    %v1448 = vpop.f32.mrb[0].mxu0
    %v1449 = vpop.f32.mrb[0].mxu0
    %1450 = vdwg.mxu0
    %v1451 = vadd.f32 %v1405, %v1446
    %v1452 = vpack.c.bf16 %v1402, %v1402
    %v1453 = vmul.bf16 %v1452, 1056980736
    %v1454 = vtanh.bf16.pop %v1453
    %v1455 = vmul.bf16 %v1454, 1056980736
    %v1456 = vadd.bf16 %v1455, 1056980736
    %v1457 = vtanh.bf16.pop %v1452
    %v1458 = vunpack.c.l.bf16 %v1456
    %v1459 = vmul.f32 %v1458, %v1304
    %1461 = vrot.lane.b32.xlu0 %v1457, 64
    %v1462 = vpop.permute.xlu0 %1461
    %v1464 = vmul.bf16 %v1456, %v1462
    %v1465 = vunpack.c.l.bf16 %v1464
    %1467 = vrot.lane.b32.xlu0 %v1465, 32
    %v1468 = vpop.permute.xlu0 %1467
    %v1470 = vadd.f32 %v1459, %v1468
    %v1471 = vtanh.pop %v1470
    %1473 = vrot.lane.b32.xlu0 %v1471, 64
    %v1474 = vpop.permute.xlu0 %1473
    %v1476 = vmul.f32 %v1458, %v1474
    %v1477 = vpack.c.bf16 %v1451, %v1451
    %v1478 = vmul.bf16 %v1477, 1056980736
    %v1479 = vtanh.bf16.pop %v1478
    %v1480 = vmul.bf16 %v1479, 1056980736
    %v1481 = vadd.bf16 %v1480, 1056980736
    %v1482 = vtanh.bf16.pop %v1477
    %v1483 = vunpack.c.l.bf16 %v1481
    %v1484 = vmul.f32 %v1483, %v1329
    %1486 = vrot.lane.b32.xlu0 %v1482, 64
    %v1487 = vpop.permute.xlu0 %1486
    %v1489 = vmul.bf16 %v1481, %v1487
    %v1490 = vunpack.c.l.bf16 %v1489
    %1492 = vrot.lane.b32.xlu0 %v1490, 32
    %v1493 = vpop.permute.xlu0 %1492
    %v1495 = vadd.f32 %v1484, %v1493
    %v1496 = vtanh.pop %v1495
    %1498 = vrot.lane.b32.xlu0 %v1496, 64
    %v1499 = vpop.permute.xlu0 %1498
    %v1501 = vmul.f32 %v1483, %v1499
    %v1502 = vpack.c.bf16 %v1476, %v1476
    %v1504 = vunpack.c.l.b16 %v1502
    %v1505 = vpack.c.b16 %v1504, %v1504
    %1506 = vrot.lane.b32.xlu0 %v1505, 32
    %v1507 = vpop.permute.xlu0 %1506
    %s1509 = scalar_lea.vmem [#allocation4], 20
    %1510 = vst.msk [vmem:[%s1509] sm:$0xf] %vm679, %v1507
    %v1511 = vpack.c.bf16 %v1501, %v1501
    %v1513 = vunpack.c.l.b16 %v1511
    %v1514 = vpack.c.b16 %v1513, %v1513
    %1515 = vrot.lane.b32.xlu0 %v1514, 32
    %v1516 = vpop.permute.xlu0 %1515
    %s1518 = scalar_lea.vmem [#allocation5], 8
    %1519 = vst.msk [vmem:[%s1518] sm:$0xf] %vm679, %v1516
    %s1520 = scalar_lea.vmem [#allocation2], 24
    %v1521 = vld [vmem:[%s1520] sm:$0xf]
    %v1522 = vunpack.c.l.bf16 %v1521
    %1523 = vrot.lane.b32.xlu0 %v1502, 32
    %v1524 = vpop.permute.xlu0 %1523
    %v1526 = vsel %vm521, %v1524, 0
    %1528 = vmatprep.subr.bf16.mxu0 0
    %1529 = vmatpush1.bf16.msra.mxu0 %v517
    %1530 = vmatprep.subr.bf16.mxu0 0
    %1531 = vmatpush1.bf16.msra.mxu0 %v518
    %1532 = vmatprep.subr.bf16.mxu0 0
    %1533 = vmatpush1.bf16.msra.mxu0 0
    %1534 = vmatprep.subr.bf16.mxu0 0
    %1535 = vmatpush1.bf16.msra.mxu0 0
    %1536 = vmatprep.subr.bf16.mxu0 0
    %1537 = vmatpush1.bf16.msra.mxu0 0
    %1538 = vmatprep.subr.bf16.mxu0 0
    %1539 = vmatpush1.bf16.msra.mxu0 0
    %1540 = vmatprep.subr.bf16.mxu0 0
    %1541 = vmatpush1.bf16.msra.mxu0 0
    %1542 = vmatprep.subr.bf16.mxu0 0
    %1543 = vmatpush1.bf16.msra.mxu0 0
    %1544 = vmatprep.subr.bf16.mxu0 0
    %1545 = vmatpush1.bf16.msra.mxu0 0
    %1546 = vmatprep.subr.bf16.mxu0 0
    %1547 = vmatpush1.bf16.msra.mxu0 0
    %1548 = vmatprep.subr.bf16.mxu0 0
    %1549 = vmatpush1.bf16.msra.mxu0 0
    %1550 = vmatprep.subr.bf16.mxu0 0
    %1551 = vmatpush1.bf16.msra.mxu0 0
    %1552 = vmatprep.subr.bf16.mxu0 0
    %1553 = vmatpush1.bf16.msra.mxu0 0
    %1554 = vmatprep.subr.bf16.mxu0 0
    %1555 = vmatpush1.bf16.msra.mxu0 0
    %1556 = vmatprep.subr.bf16.mxu0 0
    %1557 = vmatpush1.bf16.msra.mxu0 0
    %1558 = vmatprep.subr.bf16.mxu0 0
    %1559 = vmatpush1.bf16.msra.mxu0 0
    %1560 = vmatprep.mubr.bf16.mxu0 0
    %1561 = vmatmul.mubr.bf16.gmra.mrb[0].mxu0 %v1526
    %v1562 = vpop.f32.mrb[0].mxu0
    %v1563 = vadd.f32 0.0, %v1562
    %v1564 = vpop.f32.mrb[0].mxu0
    %v1565 = vpop.f32.mrb[0].mxu0
    %v1566 = vpop.f32.mrb[0].mxu0
    %1567 = vdwg.mxu0
    %v1568 = vadd.f32 %v1522, %v1563
    %s1569 = scalar_lea.vmem [#allocation3], 4
    %v1570 = vld [vmem:[%s1569] sm:$0xf]
    %v1571 = vunpack.c.l.bf16 %v1570
    %1572 = vrot.lane.b32.xlu0 %v1511, 32
    %v1573 = vpop.permute.xlu0 %1572
    %v1575 = vsel %vm521, %v1573, 0
    %1577 = vmatprep.subr.bf16.mxu0 0
    %1578 = vmatpush1.bf16.msra.mxu0 %v577
    %1579 = vmatprep.subr.bf16.mxu0 0
    %1580 = vmatpush1.bf16.msra.mxu0 %v578
    %1581 = vmatprep.subr.bf16.mxu0 0
    %1582 = vmatpush1.bf16.msra.mxu0 0
    %1583 = vmatprep.subr.bf16.mxu0 0
    %1584 = vmatpush1.bf16.msra.mxu0 0
    %1585 = vmatprep.subr.bf16.mxu0 0
    %1586 = vmatpush1.bf16.msra.mxu0 0
    %1587 = vmatprep.subr.bf16.mxu0 0
    %1588 = vmatpush1.bf16.msra.mxu0 0
    %1589 = vmatprep.subr.bf16.mxu0 0
    %1590 = vmatpush1.bf16.msra.mxu0 0
    %1591 = vmatprep.subr.bf16.mxu0 0
    %1592 = vmatpush1.bf16.msra.mxu0 0
    %1593 = vmatprep.subr.bf16.mxu0 0
    %1594 = vmatpush1.bf16.msra.mxu0 0
    %1595 = vmatprep.subr.bf16.mxu0 0
    %1596 = vmatpush1.bf16.msra.mxu0 0
    %1597 = vmatprep.subr.bf16.mxu0 0
    %1598 = vmatpush1.bf16.msra.mxu0 0
    %1599 = vmatprep.subr.bf16.mxu0 0
    %1600 = vmatpush1.bf16.msra.mxu0 0
    %1601 = vmatprep.subr.bf16.mxu0 0
    %1602 = vmatpush1.bf16.msra.mxu0 0
    %1603 = vmatprep.subr.bf16.mxu0 0
    %1604 = vmatpush1.bf16.msra.mxu0 0
    %1605 = vmatprep.subr.bf16.mxu0 0
    %1606 = vmatpush1.bf16.msra.mxu0 0
    %1607 = vmatprep.subr.bf16.mxu0 0
    %1608 = vmatpush1.bf16.msra.mxu0 0
    %1609 = vmatprep.mubr.bf16.mxu0 0
    %1610 = vmatmul.mubr.bf16.gmra.mrb[0].mxu0 %v1575
    %v1611 = vpop.f32.mrb[0].mxu0
    %v1612 = vadd.f32 0.0, %v1611
    %v1613 = vpop.f32.mrb[0].mxu0
    %v1614 = vpop.f32.mrb[0].mxu0
    %v1615 = vpop.f32.mrb[0].mxu0
    %1616 = vdwg.mxu0
    %v1617 = vadd.f32 %v1571, %v1612
    %v1618 = vpack.c.bf16 %v1568, %v1568
    %v1619 = vmul.bf16 %v1618, 1056980736
    %v1620 = vtanh.bf16.pop %v1619
    %v1621 = vmul.bf16 %v1620, 1056980736
    %v1622 = vadd.bf16 %v1621, 1056980736
    %v1623 = vtanh.bf16.pop %v1618
    %v1624 = vunpack.c.l.bf16 %v1622
    %v1625 = vmul.f32 %v1624, %v1470
    %1627 = vrot.lane.b32.xlu0 %v1623, 64
    %v1628 = vpop.permute.xlu0 %1627
    %v1630 = vmul.bf16 %v1622, %v1628
    %v1631 = vunpack.c.l.bf16 %v1630
    %1633 = vrot.lane.b32.xlu0 %v1631, 32
    %v1634 = vpop.permute.xlu0 %1633
    %v1636 = vadd.f32 %v1625, %v1634
    %v1637 = vtanh.pop %v1636
    %1639 = vrot.lane.b32.xlu0 %v1637, 64
    %v1640 = vpop.permute.xlu0 %1639
    %v1642 = vmul.f32 %v1624, %v1640
    %v1643 = vpack.c.bf16 %v1617, %v1617
    %v1644 = vmul.bf16 %v1643, 1056980736
    %v1645 = vtanh.bf16.pop %v1644
    %v1646 = vmul.bf16 %v1645, 1056980736
    %v1647 = vadd.bf16 %v1646, 1056980736
    %v1648 = vtanh.bf16.pop %v1643
    %v1649 = vunpack.c.l.bf16 %v1647
    %v1650 = vmul.f32 %v1649, %v1495
    %1652 = vrot.lane.b32.xlu0 %v1648, 64
    %v1653 = vpop.permute.xlu0 %1652
    %v1655 = vmul.bf16 %v1647, %v1653
    %v1656 = vunpack.c.l.bf16 %v1655
    %1658 = vrot.lane.b32.xlu0 %v1656, 32
    %v1659 = vpop.permute.xlu0 %1658
    %v1661 = vadd.f32 %v1650, %v1659
    %v1662 = vtanh.pop %v1661
    %1664 = vrot.lane.b32.xlu0 %v1662, 64
    %v1665 = vpop.permute.xlu0 %1664
    %v1667 = vmul.f32 %v1649, %v1665
    %v1668 = vpack.c.bf16 %v1642, %v1642
    %v1670 = vunpack.c.l.b16 %v1668
    %v1671 = vpack.c.b16 %v1670, %v1670
    %1672 = vrot.lane.b32.xlu0 %v1671, 32
    %v1673 = vpop.permute.xlu0 %1672
    %s1675 = scalar_lea.vmem [#allocation4], 24
    %1676 = vst.msk [vmem:[%s1675] sm:$0xf] %vm679, %v1673
    %v1677 = vpack.c.bf16 %v1667, %v1667
    %v1679 = vunpack.c.l.b16 %v1677
    %v1680 = vpack.c.b16 %v1679, %v1679
    %1681 = vrot.lane.b32.xlu0 %v1680, 32
    %v1682 = vpop.permute.xlu0 %1681
    %s1684 = scalar_lea.vmem [#allocation5], 4
    %1685 = vst.msk [vmem:[%s1684] sm:$0xf] %vm679, %v1682
    %s1686 = scalar_lea.vmem [#allocation2], 28
    %v1687 = vld [vmem:[%s1686] sm:$0xf]
    %v1688 = vunpack.c.l.bf16 %v1687
    %1689 = vrot.lane.b32.xlu0 %v1668, 32
    %v1690 = vpop.permute.xlu0 %1689
    %v1692 = vsel %vm521, %v1690, 0
    %1694 = vmatprep.subr.bf16.mxu0 0
    %1695 = vmatpush1.bf16.msra.mxu0 %v517
    %1696 = vmatprep.subr.bf16.mxu0 0
    %1697 = vmatpush1.bf16.msra.mxu0 %v518
    %1698 = vmatprep.subr.bf16.mxu0 0
    %1699 = vmatpush1.bf16.msra.mxu0 0
    %1700 = vmatprep.subr.bf16.mxu0 0
    %1701 = vmatpush1.bf16.msra.mxu0 0
    %1702 = vmatprep.subr.bf16.mxu0 0
    %1703 = vmatpush1.bf16.msra.mxu0 0
    %1704 = vmatprep.subr.bf16.mxu0 0
    %1705 = vmatpush1.bf16.msra.mxu0 0
    %1706 = vmatprep.subr.bf16.mxu0 0
    %1707 = vmatpush1.bf16.msra.mxu0 0
    %1708 = vmatprep.subr.bf16.mxu0 0
    %1709 = vmatpush1.bf16.msra.mxu0 0
    %1710 = vmatprep.subr.bf16.mxu0 0
    %1711 = vmatpush1.bf16.msra.mxu0 0
    %1712 = vmatprep.subr.bf16.mxu0 0
    %1713 = vmatpush1.bf16.msra.mxu0 0
    %1714 = vmatprep.subr.bf16.mxu0 0
    %1715 = vmatpush1.bf16.msra.mxu0 0
    %1716 = vmatprep.subr.bf16.mxu0 0
    %1717 = vmatpush1.bf16.msra.mxu0 0
    %1718 = vmatprep.subr.bf16.mxu0 0
    %1719 = vmatpush1.bf16.msra.mxu0 0
    %1720 = vmatprep.subr.bf16.mxu0 0
    %1721 = vmatpush1.bf16.msra.mxu0 0
    %1722 = vmatprep.subr.bf16.mxu0 0
    %1723 = vmatpush1.bf16.msra.mxu0 0
    %1724 = vmatprep.subr.bf16.mxu0 0
    %1725 = vmatpush1.bf16.msra.mxu0 0
    %1726 = vmatprep.mubr.bf16.mxu0 0
    %1727 = vmatmul.mubr.bf16.gmra.mrb[0].mxu0 %v1692
    %v1728 = vpop.f32.mrb[0].mxu0
    %v1729 = vadd.f32 0.0, %v1728
    %v1730 = vpop.f32.mrb[0].mxu0
    %v1731 = vpop.f32.mrb[0].mxu0
    %v1732 = vpop.f32.mrb[0].mxu0
    %1733 = vdwg.mxu0
    %v1734 = vadd.f32 %v1688, %v1729
    %v1735 = vld [vmem:[#allocation3] sm:$0xf]
    %v1736 = vunpack.c.l.bf16 %v1735
    %1737 = vrot.lane.b32.xlu0 %v1677, 32
    %v1738 = vpop.permute.xlu0 %1737
    %v1740 = vsel %vm521, %v1738, 0
    %1742 = vmatprep.subr.bf16.mxu0 0
    %1743 = vmatpush1.bf16.msra.mxu0 %v577
    %1744 = vmatprep.subr.bf16.mxu0 0
    %1745 = vmatpush1.bf16.msra.mxu0 %v578
    %1746 = vmatprep.subr.bf16.mxu0 0
    %1747 = vmatpush1.bf16.msra.mxu0 0
    %1748 = vmatprep.subr.bf16.mxu0 0
    %1749 = vmatpush1.bf16.msra.mxu0 0
    %1750 = vmatprep.subr.bf16.mxu0 0
    %1751 = vmatpush1.bf16.msra.mxu0 0
    %1752 = vmatprep.subr.bf16.mxu0 0
    %1753 = vmatpush1.bf16.msra.mxu0 0
    %1754 = vmatprep.subr.bf16.mxu0 0
    %1755 = vmatpush1.bf16.msra.mxu0 0
    %1756 = vmatprep.subr.bf16.mxu0 0
    %1757 = vmatpush1.bf16.msra.mxu0 0
    %1758 = vmatprep.subr.bf16.mxu0 0
    %1759 = vmatpush1.bf16.msra.mxu0 0
    %1760 = vmatprep.subr.bf16.mxu0 0
    %1761 = vmatpush1.bf16.msra.mxu0 0
    %1762 = vmatprep.subr.bf16.mxu0 0
    %1763 = vmatpush1.bf16.msra.mxu0 0
    %1764 = vmatprep.subr.bf16.mxu0 0
    %1765 = vmatpush1.bf16.msra.mxu0 0
    %1766 = vmatprep.subr.bf16.mxu0 0
    %1767 = vmatpush1.bf16.msra.mxu0 0
    %1768 = vmatprep.subr.bf16.mxu0 0
    %1769 = vmatpush1.bf16.msra.mxu0 0
    %1770 = vmatprep.subr.bf16.mxu0 0
    %1771 = vmatpush1.bf16.msra.mxu0 0
    %1772 = vmatprep.subr.bf16.mxu0 0
    %1773 = vmatpush1.bf16.msra.mxu0 0
    %1774 = vmatprep.mubr.bf16.mxu0 0
    %1775 = vmatmul.mubr.bf16.gmra.mrb[0].mxu0 %v1740
    %v1776 = vpop.f32.mrb[0].mxu0
    %v1777 = vadd.f32 0.0, %v1776
    %v1778 = vpop.f32.mrb[0].mxu0
    %v1779 = vpop.f32.mrb[0].mxu0
    %v1780 = vpop.f32.mrb[0].mxu0
    %1781 = vdwg.mxu0
    %v1782 = vadd.f32 %v1736, %v1777
    %v1783 = vpack.c.bf16 %v1734, %v1734
    %v1784 = vmul.bf16 %v1783, 1056980736
    %v1785 = vtanh.bf16.pop %v1784
    %v1786 = vmul.bf16 %v1785, 1056980736
    %v1787 = vadd.bf16 %v1786, 1056980736
    %v1788 = vtanh.bf16.pop %v1783
    %v1789 = vunpack.c.l.bf16 %v1787
    %v1790 = vmul.f32 %v1789, %v1636
    %1792 = vrot.lane.b32.xlu0 %v1788, 64
    %v1793 = vpop.permute.xlu0 %1792
    %v1795 = vmul.bf16 %v1787, %v1793
    %v1796 = vunpack.c.l.bf16 %v1795
    %1798 = vrot.lane.b32.xlu0 %v1796, 32
    %v1799 = vpop.permute.xlu0 %1798
    %v1801 = vadd.f32 %v1790, %v1799
    %v1802 = vtanh.pop %v1801
    %1804 = vrot.lane.b32.xlu0 %v1802, 64
    %v1805 = vpop.permute.xlu0 %1804
    %v1807 = vmul.f32 %v1789, %v1805
    %v1808 = vpack.c.bf16 %v1782, %v1782
    %v1809 = vmul.bf16 %v1808, 1056980736
    %v1810 = vtanh.bf16.pop %v1809
    %v1811 = vmul.bf16 %v1810, 1056980736
    %v1812 = vadd.bf16 %v1811, 1056980736
    %v1813 = vtanh.bf16.pop %v1808
    %v1814 = vunpack.c.l.bf16 %v1812
    %v1815 = vmul.f32 %v1814, %v1661
    %1817 = vrot.lane.b32.xlu0 %v1813, 64
    %v1818 = vpop.permute.xlu0 %1817
    %v1820 = vmul.bf16 %v1812, %v1818
    %v1821 = vunpack.c.l.bf16 %v1820
    %1823 = vrot.lane.b32.xlu0 %v1821, 32
    %v1824 = vpop.permute.xlu0 %1823
    %v1826 = vadd.f32 %v1815, %v1824
    %v1827 = vtanh.pop %v1826
    %1829 = vrot.lane.b32.xlu0 %v1827, 64
    %v1830 = vpop.permute.xlu0 %1829
    %v1832 = vmul.f32 %v1814, %v1830
    %v1833 = vpack.c.bf16 %v1807, %v1807
    %v1835 = vunpack.c.l.b16 %v1833
    %v1836 = vpack.c.b16 %v1835, %v1835
    %1837 = vrot.lane.b32.xlu0 %v1836, 32
    %v1838 = vpop.permute.xlu0 %1837
    %s1840 = scalar_lea.vmem [#allocation4], 28
    %1841 = vst.msk [vmem:[%s1840] sm:$0xf] %vm679, %v1838
    %v1842 = vpack.c.bf16 %v1832, %v1832
    %v1844 = vunpack.c.l.b16 %v1842
    %v1845 = vpack.c.b16 %v1844, %v1844
    %1846 = vrot.lane.b32.xlu0 %v1845, 32
    %v1847 = vpop.permute.xlu0 %1846
    %1849 = vst.msk [vmem:[#allocation5] sm:$0xf] %vm679, %v1847
    %v1850 = vld [vmem:[#allocation4] sm:$0xf]
    %v1851 = vld [vmem:[#allocation4 + $0x4] sm:$0xf]
    %v1852 = vld [vmem:[#allocation4 + $0x8] sm:$0xf]
    %v1853 = vld [vmem:[#allocation4 + $0xc] sm:$0xf]
    %v1854 = vld [vmem:[#allocation4 + $0x10] sm:$0xf]
    %v1855 = vld [vmem:[#allocation4 + $0x14] sm:$0xf]
    %v1856 = vld [vmem:[#allocation4 + $0x18] sm:$0xf]
    %v1857 = vld [vmem:[#allocation4 + $0x1c] sm:$0xf]
    %v1866 = vunpack.c.l.b16 %v1850
    %v1867 = vunpack.c.l.b16 %v1851
    %v1868 = vunpack.c.l.b16 %v1852
    %v1869 = vunpack.c.l.b16 %v1853
    %v1870 = vunpack.c.l.b16 %v1854
    %v1871 = vunpack.c.l.b16 %v1855
    %v1872 = vunpack.c.l.b16 %v1856
    %v1873 = vunpack.c.l.b16 %v1857
    %v1874 = vpack.c.b16 %v1867, %v1866
    %v1875 = vpack.c.b16 %v1869, %v1868
    %v1876 = vpack.c.b16 %v1871, %v1870
    %v1877 = vpack.c.b16 %v1873, %v1872
    %v1882 = vunpack.c.l.b16 %v183
    %v1883 = vunpack.c.l.b16 %v184
    %v1884 = vunpack.c.l.b16 %v185
    %v1885 = vunpack.c.l.b16 %v186
    %v1886 = vpack.c.b16 %v1883, %v1882
    %v1887 = vpack.c.b16 %v1885, %v1884
    %v1891 = vsel %vm521, %v1874, 0
    %v1894 = vsel %vm521, %v1875, 0
    %v1897 = vsel %vm521, %v1876, 0
    %v1900 = vsel %vm521, %v1877, 0
    %1902 = vmatprep.subr.bf16.mxu0 0
    %1903 = vmatpush1.bf16.msra.mxu0 %v1886
    %1904 = vmatprep.subr.bf16.mxu0 0
    %1905 = vmatpush1.bf16.msra.mxu0 %v1887
    %1906 = vmatprep.subr.bf16.mxu0 0
    %1907 = vmatpush1.bf16.msra.mxu0 0
    %1908 = vmatprep.subr.bf16.mxu0 0
    %1909 = vmatpush1.bf16.msra.mxu0 0
    %1910 = vmatprep.subr.bf16.mxu0 0
    %1911 = vmatpush1.bf16.msra.mxu0 0
    %1912 = vmatprep.subr.bf16.mxu0 0
    %1913 = vmatpush1.bf16.msra.mxu0 0
    %1914 = vmatprep.subr.bf16.mxu0 0
    %1915 = vmatpush1.bf16.msra.mxu0 0
    %1916 = vmatprep.subr.bf16.mxu0 0
    %1917 = vmatpush1.bf16.msra.mxu0 0
    %1918 = vmatprep.subr.bf16.mxu0 0
    %1919 = vmatpush1.bf16.msra.mxu0 0
    %1920 = vmatprep.subr.bf16.mxu0 0
    %1921 = vmatpush1.bf16.msra.mxu0 0
    %1922 = vmatprep.subr.bf16.mxu0 0
    %1923 = vmatpush1.bf16.msra.mxu0 0
    %1924 = vmatprep.subr.bf16.mxu0 0
    %1925 = vmatpush1.bf16.msra.mxu0 0
    %1926 = vmatprep.subr.bf16.mxu0 0
    %1927 = vmatpush1.bf16.msra.mxu0 0
    %1928 = vmatprep.subr.bf16.mxu0 0
    %1929 = vmatpush1.bf16.msra.mxu0 0
    %1930 = vmatprep.subr.bf16.mxu0 0
    %1931 = vmatpush1.bf16.msra.mxu0 0
    %1932 = vmatprep.subr.bf16.mxu0 0
    %1933 = vmatpush1.bf16.msra.mxu0 0
    %1934 = vmatprep.mubr.bf16.mxu0 0
    %1935 = vmatmul.mubr.bf16.gmra.mrb[0].mxu0 %v1891
    %v1936 = vpop.f32.mrb[0].mxu0
    %v1937 = vadd.f32 0.0, %v1936
    %v1938 = vpop.f32.mrb[0].mxu0
    %v1939 = vpop.f32.mrb[0].mxu0
    %v1940 = vadd.f32 0.0, %v1939
    %v1941 = vpop.f32.mrb[0].mxu0
    %1942 = vmatprep.mubr.bf16.mxu0 0
    %1943 = vmatmul.mubr.bf16.gmra.mrb[0].mxu0 %v1894
    %v1944 = vpop.f32.mrb[0].mxu0
    %v1945 = vadd.f32 0.0, %v1944
    %v1946 = vpop.f32.mrb[0].mxu0
    %v1947 = vpop.f32.mrb[0].mxu0
    %v1948 = vadd.f32 0.0, %v1947
    %v1949 = vpop.f32.mrb[0].mxu0
    %1950 = vmatprep.mubr.bf16.mxu0 0
    %1951 = vmatmul.mubr.bf16.gmra.mrb[0].mxu0 %v1897
    %v1952 = vpop.f32.mrb[0].mxu0
    %v1953 = vadd.f32 0.0, %v1952
    %v1954 = vpop.f32.mrb[0].mxu0
    %v1955 = vpop.f32.mrb[0].mxu0
    %v1956 = vadd.f32 0.0, %v1955
    %v1957 = vpop.f32.mrb[0].mxu0
    %1958 = vmatprep.mubr.bf16.mxu0 0
    %1959 = vmatmul.mubr.bf16.gmra.mrb[0].mxu0 %v1900
    %v1960 = vpop.f32.mrb[0].mxu0
    %v1961 = vadd.f32 0.0, %v1960
    %v1962 = vpop.f32.mrb[0].mxu0
    %v1963 = vpop.f32.mrb[0].mxu0
    %v1964 = vadd.f32 0.0, %v1963
    %v1965 = vpop.f32.mrb[0].mxu0
    %1966 = vdwg.mxu0
    %v1967 = vld [vmem:[#allocation11] sm:$0xff]
    %v1968 = vld [vmem:[#allocation11 + $0x8] sm:$0xff]
    %v1969 = vld [vmem:[#allocation11 + $0x10] sm:$0xff]
    %v1970 = vld [vmem:[#allocation11 + $0x18] sm:$0xff]
    %v1971 = vld [vmem:[#allocation11 + $0x20] sm:$0xff]
    %v1972 = vld [vmem:[#allocation11 + $0x28] sm:$0xff]
    %v1973 = vld [vmem:[#allocation11 + $0x30] sm:$0xff]
    %v1974 = vld [vmem:[#allocation11 + $0x38] sm:$0xff]
    %v1975 = vadd.f32 %v1967, %v1937
    %v1976 = vadd.f32 %v1968, %v1940
    %v1977 = vadd.f32 %v1969, %v1945
    %v1978 = vadd.f32 %v1970, %v1948
    %v1979 = vadd.f32 %v1971, %v1953
    %v1980 = vadd.f32 %v1972, %v1956
    %v1981 = vadd.f32 %v1973, %v1961
    %v1982 = vadd.f32 %v1974, %v1964
    %1983 = vst.msk [vmem:[#allocation11] sm:$0xff] %vm79, %v1975
    %1984 = vst.msk [vmem:[#allocation11 + $0x8] sm:$0xff] %vm79, %v1976
    %1985 = vst.msk [vmem:[#allocation11 + $0x10] sm:$0xff] %vm79, %v1977
    %1986 = vst.msk [vmem:[#allocation11 + $0x18] sm:$0xff] %vm79, %v1978
    %1987 = vst.msk [vmem:[#allocation11 + $0x20] sm:$0xff] %vm79, %v1979
    %1988 = vst.msk [vmem:[#allocation11 + $0x28] sm:$0xff] %vm79, %v1980
    %1989 = vst.msk [vmem:[#allocation11 + $0x30] sm:$0xff] %vm79, %v1981
    %1990 = vst.msk [vmem:[#allocation11 + $0x38] sm:$0xff] %vm79, %v1982
    %v1991 = vld [vmem:[#allocation5] sm:$0xf]
    %v1992 = vld [vmem:[#allocation5 + $0x4] sm:$0xf]
    %v1993 = vld [vmem:[#allocation5 + $0x8] sm:$0xf]
    %v1994 = vld [vmem:[#allocation5 + $0xc] sm:$0xf]
    %v1995 = vld [vmem:[#allocation5 + $0x10] sm:$0xf]
    %v1996 = vld [vmem:[#allocation5 + $0x14] sm:$0xf]
    %v1997 = vld [vmem:[#allocation5 + $0x18] sm:$0xf]
    %v1998 = vld [vmem:[#allocation5 + $0x1c] sm:$0xf]
    %v2007 = vunpack.c.l.b16 %v1991
    %v2008 = vunpack.c.l.b16 %v1992
    %v2009 = vunpack.c.l.b16 %v1993
    %v2010 = vunpack.c.l.b16 %v1994
    %v2011 = vunpack.c.l.b16 %v1995
    %v2012 = vunpack.c.l.b16 %v1996
    %v2013 = vunpack.c.l.b16 %v1997
    %v2014 = vunpack.c.l.b16 %v1998
    %v2015 = vpack.c.b16 %v2008, %v2007
    %v2016 = vpack.c.b16 %v2010, %v2009
    %v2017 = vpack.c.b16 %v2012, %v2011
    %v2018 = vpack.c.b16 %v2014, %v2013
    %v2023 = vunpack.c.l.b16 %v187
    %v2024 = vunpack.c.l.b16 %v188
    %v2025 = vunpack.c.l.b16 %v189
    %v2026 = vunpack.c.l.b16 %v190
    %v2027 = vpack.c.b16 %v2024, %v2023
    %v2028 = vpack.c.b16 %v2026, %v2025
    %v2032 = vsel %vm521, %v2015, 0
    %v2035 = vsel %vm521, %v2016, 0
    %v2038 = vsel %vm521, %v2017, 0
    %v2041 = vsel %vm521, %v2018, 0
    %2043 = vmatprep.subr.bf16.mxu0 0
    %2044 = vmatpush1.bf16.msra.mxu0 %v2027
    %2045 = vmatprep.subr.bf16.mxu0 0
    %2046 = vmatpush1.bf16.msra.mxu0 %v2028
    %2047 = vmatprep.subr.bf16.mxu0 0
    %2048 = vmatpush1.bf16.msra.mxu0 0
    %2049 = vmatprep.subr.bf16.mxu0 0
    %2050 = vmatpush1.bf16.msra.mxu0 0
    %2051 = vmatprep.subr.bf16.mxu0 0
    %2052 = vmatpush1.bf16.msra.mxu0 0
    %2053 = vmatprep.subr.bf16.mxu0 0
    %2054 = vmatpush1.bf16.msra.mxu0 0
    %2055 = vmatprep.subr.bf16.mxu0 0
    %2056 = vmatpush1.bf16.msra.mxu0 0
    %2057 = vmatprep.subr.bf16.mxu0 0
    %2058 = vmatpush1.bf16.msra.mxu0 0
    %2059 = vmatprep.subr.bf16.mxu0 0
    %2060 = vmatpush1.bf16.msra.mxu0 0
    %2061 = vmatprep.subr.bf16.mxu0 0
    %2062 = vmatpush1.bf16.msra.mxu0 0
    %2063 = vmatprep.subr.bf16.mxu0 0
    %2064 = vmatpush1.bf16.msra.mxu0 0
    %2065 = vmatprep.subr.bf16.mxu0 0
    %2066 = vmatpush1.bf16.msra.mxu0 0
    %2067 = vmatprep.subr.bf16.mxu0 0
    %2068 = vmatpush1.bf16.msra.mxu0 0
    %2069 = vmatprep.subr.bf16.mxu0 0
    %2070 = vmatpush1.bf16.msra.mxu0 0
    %2071 = vmatprep.subr.bf16.mxu0 0
    %2072 = vmatpush1.bf16.msra.mxu0 0
    %2073 = vmatprep.subr.bf16.mxu0 0
    %2074 = vmatpush1.bf16.msra.mxu0 0
    %2075 = vmatprep.mubr.bf16.mxu0 0
    %2076 = vmatmul.mubr.bf16.gmra.mrb[0].mxu0 %v2032
    %v2077 = vpop.f32.mrb[0].mxu0
    %v2078 = vadd.f32 0.0, %v2077
    %v2079 = vpop.f32.mrb[0].mxu0
    %v2080 = vpop.f32.mrb[0].mxu0
    %v2081 = vadd.f32 0.0, %v2080
    %v2082 = vpop.f32.mrb[0].mxu0
    %2083 = vmatprep.mubr.bf16.mxu0 0
    %2084 = vmatmul.mubr.bf16.gmra.mrb[0].mxu0 %v2035
    %v2085 = vpop.f32.mrb[0].mxu0
    %v2086 = vadd.f32 0.0, %v2085
    %v2087 = vpop.f32.mrb[0].mxu0
    %v2088 = vpop.f32.mrb[0].mxu0
    %v2089 = vadd.f32 0.0, %v2088
    %v2090 = vpop.f32.mrb[0].mxu0
    %2091 = vmatprep.mubr.bf16.mxu0 0
    %2092 = vmatmul.mubr.bf16.gmra.mrb[0].mxu0 %v2038
    %v2093 = vpop.f32.mrb[0].mxu0
    %v2094 = vadd.f32 0.0, %v2093
    %v2095 = vpop.f32.mrb[0].mxu0
    %v2096 = vpop.f32.mrb[0].mxu0
    %v2097 = vadd.f32 0.0, %v2096
    %v2098 = vpop.f32.mrb[0].mxu0
    %2099 = vmatprep.mubr.bf16.mxu0 0
    %2100 = vmatmul.mubr.bf16.gmra.mrb[0].mxu0 %v2041
    %v2101 = vpop.f32.mrb[0].mxu0
    %v2102 = vadd.f32 0.0, %v2101
    %v2103 = vpop.f32.mrb[0].mxu0
    %v2104 = vpop.f32.mrb[0].mxu0
    %v2105 = vadd.f32 0.0, %v2104
    %v2106 = vpop.f32.mrb[0].mxu0
    %2107 = vdwg.mxu0
    %v2108 = vld [vmem:[#allocation11] sm:$0xff]
    %v2109 = vld [vmem:[#allocation11 + $0x8] sm:$0xff]
    %v2110 = vld [vmem:[#allocation11 + $0x10] sm:$0xff]
    %v2111 = vld [vmem:[#allocation11 + $0x18] sm:$0xff]
    %v2112 = vld [vmem:[#allocation11 + $0x20] sm:$0xff]
    %v2113 = vld [vmem:[#allocation11 + $0x28] sm:$0xff]
    %v2114 = vld [vmem:[#allocation11 + $0x30] sm:$0xff]
    %v2115 = vld [vmem:[#allocation11 + $0x38] sm:$0xff]
    %v2116 = vadd.f32 %v2108, %v2078
    %v2117 = vadd.f32 %v2109, %v2081
    %v2118 = vadd.f32 %v2110, %v2086
    %v2119 = vadd.f32 %v2111, %v2089
    %v2120 = vadd.f32 %v2112, %v2094
    %v2121 = vadd.f32 %v2113, %v2097
    %v2122 = vadd.f32 %v2114, %v2102
    %v2123 = vadd.f32 %v2115, %v2105
    %2124 = vst.msk [vmem:[#allocation11] sm:$0xff] %vm79, %v2116
    %2125 = vst.msk [vmem:[#allocation11 + $0x8] sm:$0xff] %vm79, %v2117
    %2126 = vst.msk [vmem:[#allocation11 + $0x10] sm:$0xff] %vm79, %v2118
    %2127 = vst.msk [vmem:[#allocation11 + $0x18] sm:$0xff] %vm79, %v2119
    %2128 = vst.msk [vmem:[#allocation11 + $0x20] sm:$0xff] %vm79, %v2120
    %2129 = vst.msk [vmem:[#allocation11 + $0x28] sm:$0xff] %vm79, %v2121
    %2130 = vst.msk [vmem:[#allocation11 + $0x30] sm:$0xff] %vm79, %v2122
    %2131 = vst.msk [vmem:[#allocation11 + $0x38] sm:$0xff] %vm79, %v2123
    // Predicated region
    $region58: #{tpu_custom_call.1} parent=1 // pred_check
      _
    $region59: #{tpu_custom_call.1} parent=1 // pred_check_branch
      %2133 = sbr.rel (0) target = $region61
    $region60: #{tpu_custom_call.1} parent=1 // pred_region
      %s2135 = ssub.s32 1024, 1024
      %2136 = vsyncadd [#allocation8], %s2135
      %s2137 = sshll.u32 [#allocation11], 4
      %s2138 = int_to_ptr.vmem [resolvable:$true] %s2137
      %2143 = dma.vmem_to_hbm [thread:$0]  %s2138, 1024, %s12, [#allocation8], 128, 128, 8
    $region61: #{tpu_custom_call.1} parent=1 // pred_fallthru
      _
    // Predicated region
    $region62: #{tpu_custom_call.1} parent=1 // pred_check
      _
    $region63: #{tpu_custom_call.1} parent=1 // pred_check_branch
      %2145 = sbr.rel (0) target = $region65
    $region64: #{tpu_custom_call.1} parent=1 // pred_region
      %2146 = dma.done [#allocation8], 1024
    $region65: #{tpu_custom_call.1} parent=1 // pred_fallthru
      _
    %2147 = vsyncpa [#allocation7], 1
    %2148 = vsyncpa [#allocation10], 1
    %2149 = vsyncpa [#allocation8], 1

</llo_original>
